<compile_context>
chip_gen: v7x
topology: tpu7x:2x2x1
jax: 0.10.0
libtpu: 0.0.40
codegen_flags: <defaults>
</compile_context>

<pallas_src>
import jax
import jax.numpy as jnp
from jax import lax
from jax.experimental import pallas as pl
from jax.experimental.pallas import tpu as pltpu

BN_EPS = 1e-5


def _round_up(x, m):
    return (x + m - 1) // m * m


def _full_spec(shape):
    nd = len(shape)
    return pl.BlockSpec(shape, lambda i, _nd=nd: (0,) * _nd)


def down_fused(x_nhwc, w1, w2, g1, b1, g2, b2):
    """Fused MaxPool2d(2) + DoubleConv forward.  x_nhwc: (N, H, W, Cin) float32."""
    N, H, W, Cin = x_nhwc.shape
    assert H % 2 == 0 and W % 2 == 0, "MaxPool2d(2) path assumes even H and W"
    Cmid = w1.shape[-1]
    Cout = w2.shape[-1]
    H2, W2 = H // 2, W // 2
    Wp = W2 + 2                               # padded width (conv padding=1)
    RO = H2 * Wp                              # rows of a conv-output slab (2 junk cols / row)
    RP = _round_up(2 * Wp + 2 + RO, 8)        # rows of a padded activation slab (+ tap slack)
    inv_cnt = 1.0 / float(N * H2 * W2)        # BN count over valid cells only

    def kernel(x_ref, w1_ref, w2_ref, g1_ref, b1_ref, g2_ref, b2_ref, o_ref,
               xp_ref, y1_ref, y1p_ref, y2_ref):
        # x_ref  : (N, H, W, Cin)   NHWC input (full batch in VMEM)
        # w*_ref : (9, Cin, Cmid) / (9, Cmid, Cout)  tap-major conv weights
        # g*/b*  : (1, C)           BN affine parameters
        # o_ref  : (N, H2, W2, Cout) NHWC output
        # xp_ref : (N, RP, Cin)     pooled + zero-padded activation, spatially flattened
        # y1_ref : (N, RO, Cmid)    conv1 raw output slab
        # y1p_ref: (N, RP, Cmid)    BN1+ReLU output, zero-padded, flattened
        # y2_ref : (N, RO, Cout)    conv2 raw output slab

        # -------- stage 1: MaxPool2d(2) -> zero-padded flat slab ------------------
        # (At W2=8 the per-cell scatter below is negligible; for large W one would
        #  use strided reads `pl.ds(..., stride=2)` instead.)
        xp_ref[...] = jnp.zeros(xp_ref.shape, xp_ref.dtype)
        for n in range(N):
            for h2 in range(H2):
                r0, r1 = 2 * h2, 2 * h2 + 1
                a = jnp.maximum(x_ref[n, r0, 0:W - 1, :], x_ref[n, r0, 1:W, :])
                b = jnp.maximum(x_ref[n, r1, 0:W - 1, :], x_ref[n, r1, 1:W, :])
                pm = jnp.maximum(a, b)          # (W-1, Cin); pooled values at even cols
                base = (h2 + 1) * Wp + 1
                for w2 in range(W2):
                    xp_ref[n, base + w2:base + w2 + 1, :] = pm[2 * w2:2 * w2 + 1, :]

        # -------- helper: 3x3 conv on a padded-flat slab = 9 whole-image matmuls --
        def conv_slab(src_ref, n, w_ref, cout):
            acc = jnp.zeros((RO, cout), jnp.float32)
            for dy in range(3):
                for dx in range(3):
                    start = dy * Wp + dx
                    acc = acc + jnp.dot(src_ref[n, start:start + RO, :],
                                        w_ref[dy * 3 + dx],
                                        preferred_element_type=jnp.float32)
            return acc

        # -------- helper: per-channel training-mode batch stats -> scale/shift ----
        def bn_scale_shift(y_ref, c, g_ref, b_ref):
            s = jnp.zeros((1, c), jnp.float32)
            ss = jnp.zeros((1, c), jnp.float32)
            for n in range(N):
                for h2 in range(H2):
                    v = y_ref[n, h2 * Wp:h2 * Wp + W2, :]     # valid cells only
                    s = s + jnp.sum(v, axis=0, keepdims=True)
                    ss = ss + jnp.sum(v * v, axis=0, keepdims=True)
            mean = s * inv_cnt
            var = jnp.maximum(ss * inv_cnt - mean * mean, 0.0)  # biased variance
            scale = g_ref[...] * lax.rsqrt(var + BN_EPS)
            shift = b_ref[...] - mean * scale
            return scale, shift

        # -------- stage 2: conv1 ---------------------------------------------------
        for n in range(N):
            y1_ref[n] = conv_slab(xp_ref, n, w1_ref, Cmid)

        # -------- stage 3: BN1 + ReLU -> zero-padded slab for conv2 ----------------
        scale1, shift1 = bn_scale_shift(y1_ref, Cmid, g1_ref, b1_ref)
        y1p_ref[...] = jnp.zeros(y1p_ref.shape, y1p_ref.dtype)
        for n in range(N):
            for h2 in range(H2):
                v = y1_ref[n, h2 * Wp:h2 * Wp + W2, :]
                dst = (h2 + 1) * Wp + 1
                y1p_ref[n, dst:dst + W2, :] = jnp.maximum(v * scale1 + shift1, 0.0)

        # -------- stage 4: conv2 ---------------------------------------------------
        for n in range(N):
            y2_ref[n] = conv_slab(y1p_ref, n, w2_ref, Cout)

        # -------- stage 5: BN2 + ReLU -> NHWC output -------------------------------
        scale2, shift2 = bn_scale_shift(y2_ref, Cout, g2_ref, b2_ref)
        for n in range(N):
            for h2 in range(H2):
                v = y2_ref[n, h2 * Wp:h2 * Wp + W2, :]
                o_ref[n, h2, :, :] = jnp.maximum(v * scale2 + shift2,
                                                 0.0).astype(o_ref.dtype)

    return pl.pallas_call(
        kernel,
        out_shape=jax.ShapeDtypeStruct((N, H2, W2, Cout), jnp.float32),
        grid=(1,),
        in_specs=[
            _full_spec((N, H, W, Cin)),
            _full_spec(w1.shape),
            _full_spec(w2.shape),
            _full_spec((1, Cmid)),
            _full_spec((1, Cmid)),
            _full_spec((1, Cout)),
            _full_spec((1, Cout)),
        ],
        out_specs=_full_spec((N, H2, W2, Cout)),
        scratch_shapes=[
            pltpu.VMEM((N, RP, Cin), jnp.float32),    # pooled + padded input slab
            pltpu.VMEM((N, RO, Cmid), jnp.float32),   # conv1 raw output
            pltpu.VMEM((N, RP, Cmid), jnp.float32),   # BN1+ReLU, padded (conv2 input)
            pltpu.VMEM((N, RO, Cout), jnp.float32),   # conv2 raw output
        ],
        compiler_params=pltpu.CompilerParams(dimension_semantics=("arbitrary",)),
    )(x_nhwc,
      w1.astype(jnp.float32),
      w2.astype(jnp.float32),
      g1.reshape(1, Cmid).astype(jnp.float32),
      b1.reshape(1, Cmid).astype(jnp.float32),
      g2.reshape(1, Cout).astype(jnp.float32),
      b2.reshape(1, Cout).astype(jnp.float32))


def init_down_params(key, in_channels, out_channels):
    mid_channels = out_channels  # DoubleConv default (mid_channels = out_channels)
    k1, k2 = jax.random.split(key)
    # Conv weights are synthesized directly in tap-major (9, Cin, Cout) layout,
    # i.e. w[dy*3+dx, i, o] == torch_weight[o, i, dy, dx] -- identical
    # cross-correlation semantics to nn.Conv2d(3, padding=1, bias=False).
    w1 = 0.1 * jax.random.normal(k1, (3, 3, in_channels, mid_channels), jnp.float32)
    w2 = 0.1 * jax.random.normal(k2, (3, 3, mid_channels, out_channels), jnp.float32)
    return {
        "w1": w1.reshape(9, in_channels, mid_channels),
        "g1": jnp.ones((mid_channels,), jnp.float32),
        "b1": jnp.zeros((mid_channels,), jnp.float32),
        "w2": w2.reshape(9, mid_channels, out_channels),
        "g2": jnp.ones((out_channels,), jnp.float32),
        "b2": jnp.zeros((out_channels,), jnp.float32),
    }


@jax.jit
def down_forward(x_nchw, params):
    # NCHW in/out (PyTorch convention); channels-last inside the kernel so the
    # channel axis sits on the 128-lane dimension.  The two boundary transposes
    # are thin XLA layout glue on a few KiB of data.
    x = jnp.transpose(x_nchw, (0, 2, 3, 1)).astype(jnp.float32)   # -> NHWC
    y = down_fused(x, params["w1"], params["w2"],
                   params["g1"], params["b1"], params["g2"], params["b2"])
    return jnp.transpose(y, (0, 3, 1, 2))                         # -> NCHW


if __name__ == "__main__":
    N, in_channels, H, W = 2, 4, 16, 16
    out_channels = 8

    key = jax.random.PRNGKey(0)
    kx, kp = jax.random.split(key)
    x = jax.random.normal(kx, (N, in_channels, H, W), jnp.float32)  # NCHW input
    params = init_down_params(kp, in_channels, out_channels)

    y = jax.block_until_ready(down_forward(x, params))
    assert y.shape == (N, out_channels, H // 2, W // 2), y.shape
    assert bool(jnp.all(jnp.isfinite(y)))
    print("KERNEL_OK")
</pallas_src>

<mosaic_0001>
module attributes {stable_mosaic.version = 11 : i64} {
  func.func @kernel(%arg0: i32, %arg1: memref<2x16x16x4xf32, #tpu.memory_space<vmem>>, %arg2: memref<9x4x8xf32, #tpu.memory_space<vmem>>, %arg3: memref<9x8x8xf32, #tpu.memory_space<vmem>>, %arg4: memref<1x8xf32, #tpu.memory_space<vmem>>, %arg5: memref<1x8xf32, #tpu.memory_space<vmem>>, %arg6: memref<1x8xf32, #tpu.memory_space<vmem>>, %arg7: memref<1x8xf32, #tpu.memory_space<vmem>>, %arg8: memref<2x8x8x8xf32, #tpu.memory_space<vmem>>, %arg9: memref<2x104x4xf32, #tpu.memory_space<vmem>>, %arg10: memref<2x80x8xf32, #tpu.memory_space<vmem>>, %arg11: memref<2x104x8xf32, #tpu.memory_space<vmem>>, %arg12: memref<2x80x8xf32, #tpu.memory_space<vmem>>) attributes {dimension_semantics = [#tpu.dimension_semantics<arbitrary>], iteration_bounds = array<i64: 1>, scalar_prefetch = 0 : i64, scratch_operands = 4 : i64, tpu.core_type = #tpu.core_type<tc>, window_params = [{pipeline_mode = #tpu.pipeline_mode<synchronous>, transform_indices = @transform_0, window_bounds = array<i64: 2, 16, 16, 4>}, {pipeline_mode = #tpu.pipeline_mode<synchronous>, transform_indices = @transform_1, window_bounds = array<i64: 9, 4, 8>}, {pipeline_mode = #tpu.pipeline_mode<synchronous>, transform_indices = @transform_2, window_bounds = array<i64: 9, 8, 8>}, {pipeline_mode = #tpu.pipeline_mode<synchronous>, transform_indices = @transform_3, window_bounds = array<i64: 1, 8>}, {pipeline_mode = #tpu.pipeline_mode<synchronous>, transform_indices = @transform_4, window_bounds = array<i64: 1, 8>}, {pipeline_mode = #tpu.pipeline_mode<synchronous>, transform_indices = @transform_5, window_bounds = array<i64: 1, 8>}, {pipeline_mode = #tpu.pipeline_mode<synchronous>, transform_indices = @transform_6, window_bounds = array<i64: 1, 8>}, {pipeline_mode = #tpu.pipeline_mode<synchronous>, transform_indices = @transform_7, window_bounds = array<i64: 2, 8, 8, 8>}]} {
    %cst = arith.constant 0.000000e+00 : f32
    %0 = vector.broadcast %cst : f32 to vector<2x104x4xf32>
    %c0 = arith.constant 0 : index
    %c0_0 = arith.constant 0 : index
    %c0_1 = arith.constant 0 : index
    %1 = vector.load %arg9[%c0, %c0_0, %c0_1] : memref<2x104x4xf32, #tpu.memory_space<vmem>>, vector<2x104x4xf32>
    tpu.vector_store %arg9[%c0, %c0_0, %c0_1], %0 {strides = array<i32>} : memref<2x104x4xf32, #tpu.memory_space<vmem>>, vector<2x104x4xf32>,
    %c0_2 = arith.constant 0 : index
    %c0_3 = arith.constant 0 : index
    %c0_4 = arith.constant 0 : index
    %c0_5 = arith.constant 0 : index
    %2 = vector.load %arg1[%c0_2, %c0_3, %c0_4, %c0_5] : memref<2x16x16x4xf32, #tpu.memory_space<vmem>>, vector<1x1x15x4xf32>
    %3 = vector.shape_cast %2 : vector<1x1x15x4xf32> to vector<15x4xf32>
    %c0_6 = arith.constant 0 : index
    %c0_7 = arith.constant 0 : index
    %c1 = arith.constant 1 : index
    %c0_8 = arith.constant 0 : index
    %4 = vector.load %arg1[%c0_6, %c0_7, %c1, %c0_8] : memref<2x16x16x4xf32, #tpu.memory_space<vmem>>, vector<1x1x15x4xf32>
    %5 = vector.shape_cast %4 : vector<1x1x15x4xf32> to vector<15x4xf32>
    %6 = arith.maximumf %3, %5 : vector<15x4xf32>
    %c0_9 = arith.constant 0 : index
    %c1_10 = arith.constant 1 : index
    %c0_11 = arith.constant 0 : index
    %c0_12 = arith.constant 0 : index
    %7 = vector.load %arg1[%c0_9, %c1_10, %c0_11, %c0_12] : memref<2x16x16x4xf32, #tpu.memory_space<vmem>>, vector<1x1x15x4xf32>
    %8 = vector.shape_cast %7 : vector<1x1x15x4xf32> to vector<15x4xf32>
    %c0_13 = arith.constant 0 : index
    %c1_14 = arith.constant 1 : index
    %c1_15 = arith.constant 1 : index
    %c0_16 = arith.constant 0 : index
    %9 = vector.load %arg1[%c0_13, %c1_14, %c1_15, %c0_16] : memref<2x16x16x4xf32, #tpu.memory_space<vmem>>, vector<1x1x15x4xf32>
    %10 = vector.shape_cast %9 : vector<1x1x15x4xf32> to vector<15x4xf32>
    %11 = arith.maximumf %8, %10 : vector<15x4xf32>
    %12 = arith.maximumf %6, %11 : vector<15x4xf32>
    %13 = vector.extract_strided_slice %12 {offsets = [0, 0], sizes = [1, 4], strides = [1, 1]} : vector<15x4xf32> to vector<1x4xf32>
    %c0_17 = arith.constant 0 : index
    %c11 = arith.constant 11 : index
    %c0_18 = arith.constant 0 : index
    %14 = vector.load %arg9[%c0_17, %c11, %c0_18] : memref<2x104x4xf32, #tpu.memory_space<vmem>>, vector<1x1x4xf32>
    %15 = vector.shape_cast %14 : vector<1x1x4xf32> to vector<1x4xf32>
    %16 = vector.shape_cast %13 : vector<1x4xf32> to vector<1x1x4xf32>
    tpu.vector_store %arg9[%c0_17, %c11, %c0_18], %16 {strides = array<i32>} : memref<2x104x4xf32, #tpu.memory_space<vmem>>, vector<1x1x4xf32>,
    %17 = vector.extract_strided_slice %12 {offsets = [2, 0], sizes = [1, 4], strides = [1, 1]} : vector<15x4xf32> to vector<1x4xf32>
    %c0_19 = arith.constant 0 : index
    %c12 = arith.constant 12 : index
    %c0_20 = arith.constant 0 : index
    %18 = vector.load %arg9[%c0_19, %c12, %c0_20] : memref<2x104x4xf32, #tpu.memory_space<vmem>>, vector<1x1x4xf32>
    %19 = vector.shape_cast %18 : vector<1x1x4xf32> to vector<1x4xf32>
    %20 = vector.shape_cast %17 : vector<1x4xf32> to vector<1x1x4xf32>
    tpu.vector_store %arg9[%c0_19, %c12, %c0_20], %20 {strides = array<i32>} : memref<2x104x4xf32, #tpu.memory_space<vmem>>, vector<1x1x4xf32>,
    %21 = vector.extract_strided_slice %12 {offsets = [4, 0], sizes = [1, 4], strides = [1, 1]} : vector<15x4xf32> to vector<1x4xf32>
    %c0_21 = arith.constant 0 : index
    %c13 = arith.constant 13 : index
    %c0_22 = arith.constant 0 : index
    %22 = vector.load %arg9[%c0_21, %c13, %c0_22] : memref<2x104x4xf32, #tpu.memory_space<vmem>>, vector<1x1x4xf32>
    %23 = vector.shape_cast %22 : vector<1x1x4xf32> to vector<1x4xf32>
    %24 = vector.shape_cast %21 : vector<1x4xf32> to vector<1x1x4xf32>
    tpu.vector_store %arg9[%c0_21, %c13, %c0_22], %24 {strides = array<i32>} : memref<2x104x4xf32, #tpu.memory_space<vmem>>, vector<1x1x4xf32>,
    %25 = vector.extract_strided_slice %12 {offsets = [6, 0], sizes = [1, 4], strides = [1, 1]} : vector<15x4xf32> to vector<1x4xf32>
    %c0_23 = arith.constant 0 : index
    %c14 = arith.constant 14 : index
    %c0_24 = arith.constant 0 : index
    %26 = vector.load %arg9[%c0_23, %c14, %c0_24] : memref<2x104x4xf32, #tpu.memory_space<vmem>>, vector<1x1x4xf32>
    %27 = vector.shape_cast %26 : vector<1x1x4xf32> to vector<1x4xf32>
    %28 = vector.shape_cast %25 : vector<1x4xf32> to vector<1x1x4xf32>
    tpu.vector_store %arg9[%c0_23, %c14, %c0_24], %28 {strides = array<i32>} : memref<2x104x4xf32, #tpu.memory_space<vmem>>, vector<1x1x4xf32>,
    %29 = vector.extract_strided_slice %12 {offsets = [8, 0], sizes = [1, 4], strides = [1, 1]} : vector<15x4xf32> to vector<1x4xf32>
    %c0_25 = arith.constant 0 : index
    %c15 = arith.constant 15 : index
    %c0_26 = arith.constant 0 : index
    %30 = vector.load %arg9[%c0_25, %c15, %c0_26] : memref<2x104x4xf32, #tpu.memory_space<vmem>>, vector<1x1x4xf32>
    %31 = vector.shape_cast %30 : vector<1x1x4xf32> to vector<1x4xf32>
    %32 = vector.shape_cast %29 : vector<1x4xf32> to vector<1x1x4xf32>
    tpu.vector_store %arg9[%c0_25, %c15, %c0_26], %32 {strides = array<i32>} : memref<2x104x4xf32, #tpu.memory_space<vmem>>, vector<1x1x4xf32>,
    %33 = vector.extract_strided_slice %12 {offsets = [10, 0], sizes = [1, 4], strides = [1, 1]} : vector<15x4xf32> to vector<1x4xf32>
    %c0_27 = arith.constant 0 : index
    %c16 = arith.constant 16 : index
    %c0_28 = arith.constant 0 : index
    %34 = vector.load %arg9[%c0_27, %c16, %c0_28] : memref<2x104x4xf32, #tpu.memory_space<vmem>>, vector<1x1x4xf32>
    %35 = vector.shape_cast %34 : vector<1x1x4xf32> to vector<1x4xf32>
    %36 = vector.shape_cast %33 : vector<1x4xf32> to vector<1x1x4xf32>
    tpu.vector_store %arg9[%c0_27, %c16, %c0_28], %36 {strides = array<i32>} : memref<2x104x4xf32, #tpu.memory_space<vmem>>, vector<1x1x4xf32>,
    %37 = vector.extract_strided_slice %12 {offsets = [12, 0], sizes = [1, 4], strides = [1, 1]} : vector<15x4xf32> to vector<1x4xf32>
    %c0_29 = arith.constant 0 : index
    %c17 = arith.constant 17 : index
    %c0_30 = arith.constant 0 : index
    %38 = vector.load %arg9[%c0_29, %c17, %c0_30] : memref<2x104x4xf32, #tpu.memory_space<vmem>>, vector<1x1x4xf32>
    %39 = vector.shape_cast %38 : vector<1x1x4xf32> to vector<1x4xf32>
    %40 = vector.shape_cast %37 : vector<1x4xf32> to vector<1x1x4xf32>
    tpu.vector_store %arg9[%c0_29, %c17, %c0_30], %40 {strides = array<i32>} : memref<2x104x4xf32, #tpu.memory_space<vmem>>, vector<1x1x4xf32>,
    %41 = vector.extract_strided_slice %12 {offsets = [14, 0], sizes = [1, 4], strides = [1, 1]} : vector<15x4xf32> to vector<1x4xf32>
    %c0_31 = arith.constant 0 : index
    %c18 = arith.constant 18 : index
    %c0_32 = arith.constant 0 : index
    %42 = vector.load %arg9[%c0_31, %c18, %c0_32] : memref<2x104x4xf32, #tpu.memory_space<vmem>>, vector<1x1x4xf32>
    %43 = vector.shape_cast %42 : vector<1x1x4xf32> to vector<1x4xf32>
    %44 = vector.shape_cast %41 : vector<1x4xf32> to vector<1x1x4xf32>
    tpu.vector_store %arg9[%c0_31, %c18, %c0_32], %44 {strides = array<i32>} : memref<2x104x4xf32, #tpu.memory_space<vmem>>, vector<1x1x4xf32>,
    %c0_33 = arith.constant 0 : index
    %c2 = arith.constant 2 : index
    %c0_34 = arith.constant 0 : index
    %c0_35 = arith.constant 0 : index
    %45 = vector.load %arg1[%c0_33, %c2, %c0_34, %c0_35] : memref<2x16x16x4xf32, #tpu.memory_space<vmem>>, vector<1x1x15x4xf32>
    %46 = vector.shape_cast %45 : vector<1x1x15x4xf32> to vector<15x4xf32>
    %c0_36 = arith.constant 0 : index
    %c2_37 = arith.constant 2 : index
    %c1_38 = arith.constant 1 : index
    %c0_39 = arith.constant 0 : index
    %47 = vector.load %arg1[%c0_36, %c2_37, %c1_38, %c0_39] : memref<2x16x16x4xf32, #tpu.memory_space<vmem>>, vector<1x1x15x4xf32>
    %48 = vector.shape_cast %47 : vector<1x1x15x4xf32> to vector<15x4xf32>
    %49 = arith.maximumf %46, %48 : vector<15x4xf32>
    %c0_40 = arith.constant 0 : index
    %c3 = arith.constant 3 : index
    %c0_41 = arith.constant 0 : index
    %c0_42 = arith.constant 0 : index
    %50 = vector.load %arg1[%c0_40, %c3, %c0_41, %c0_42] : memref<2x16x16x4xf32, #tpu.memory_space<vmem>>, vector<1x1x15x4xf32>
    %51 = vector.shape_cast %50 : vector<1x1x15x4xf32> to vector<15x4xf32>
    %c0_43 = arith.constant 0 : index
    %c3_44 = arith.constant 3 : index
    %c1_45 = arith.constant 1 : index
    %c0_46 = arith.constant 0 : index
    %52 = vector.load %arg1[%c0_43, %c3_44, %c1_45, %c0_46] : memref<2x16x16x4xf32, #tpu.memory_space<vmem>>, vector<1x1x15x4xf32>
    %53 = vector.shape_cast %52 : vector<1x1x15x4xf32> to vector<15x4xf32>
    %54 = arith.maximumf %51, %53 : vector<15x4xf32>
    %55 = arith.maximumf %49, %54 : vector<15x4xf32>
    %56 = vector.extract_strided_slice %55 {offsets = [0, 0], sizes = [1, 4], strides = [1, 1]} : vector<15x4xf32> to vector<1x4xf32>
    %c0_47 = arith.constant 0 : index
    %c21 = arith.constant 21 : index
    %c0_48 = arith.constant 0 : index
    %57 = vector.load %arg9[%c0_47, %c21, %c0_48] : memref<2x104x4xf32, #tpu.memory_space<vmem>>, vector<1x1x4xf32>
    %58 = vector.shape_cast %57 : vector<1x1x4xf32> to vector<1x4xf32>
    %59 = vector.shape_cast %56 : vector<1x4xf32> to vector<1x1x4xf32>
    tpu.vector_store %arg9[%c0_47, %c21, %c0_48], %59 {strides = array<i32>} : memref<2x104x4xf32, #tpu.memory_space<vmem>>, vector<1x1x4xf32>,
    %60 = vector.extract_strided_slice %55 {offsets = [2, 0], sizes = [1, 4], strides = [1, 1]} : vector<15x4xf32> to vector<1x4xf32>
    %c0_49 = arith.constant 0 : index
    %c22 = arith.constant 22 : index
    %c0_50 = arith.constant 0 : index
    %61 = vector.load %arg9[%c0_49, %c22, %c0_50] : memref<2x104x4xf32, #tpu.memory_space<vmem>>, vector<1x1x4xf32>
    %62 = vector.shape_cast %61 : vector<1x1x4xf32> to vector<1x4xf32>
    %63 = vector.shape_cast %60 : vector<1x4xf32> to vector<1x1x4xf32>
    tpu.vector_store %arg9[%c0_49, %c22, %c0_50], %63 {strides = array<i32>} : memref<2x104x4xf32, #tpu.memory_space<vmem>>, vector<1x1x4xf32>,
    %64 = vector.extract_strided_slice %55 {offsets = [4, 0], sizes = [1, 4], strides = [1, 1]} : vector<15x4xf32> to vector<1x4xf32>
    %c0_51 = arith.constant 0 : index
    %c23 = arith.constant 23 : index
    %c0_52 = arith.constant 0 : index
    %65 = vector.load %arg9[%c0_51, %c23, %c0_52] : memref<2x104x4xf32, #tpu.memory_space<vmem>>, vector<1x1x4xf32>
    %66 = vector.shape_cast %65 : vector<1x1x4xf32> to vector<1x4xf32>
    %67 = vector.shape_cast %64 : vector<1x4xf32> to vector<1x1x4xf32>
    tpu.vector_store %arg9[%c0_51, %c23, %c0_52], %67 {strides = array<i32>} : memref<2x104x4xf32, #tpu.memory_space<vmem>>, vector<1x1x4xf32>,
    %68 = vector.extract_strided_slice %55 {offsets = [6, 0], sizes = [1, 4], strides = [1, 1]} : vector<15x4xf32> to vector<1x4xf32>
    %c0_53 = arith.constant 0 : index
    %c24 = arith.constant 24 : index
    %c0_54 = arith.constant 0 : index
    %69 = vector.load %arg9[%c0_53, %c24, %c0_54] : memref<2x104x4xf32, #tpu.memory_space<vmem>>, vector<1x1x4xf32>
    %70 = vector.shape_cast %69 : vector<1x1x4xf32> to vector<1x4xf32>
    %71 = vector.shape_cast %68 : vector<1x4xf32> to vector<1x1x4xf32>
    tpu.vector_store %arg9[%c0_53, %c24, %c0_54], %71 {strides = array<i32>} : memref<2x104x4xf32, #tpu.memory_space<vmem>>, vector<1x1x4xf32>,
    %72 = vector.extract_strided_slice %55 {offsets = [8, 0], sizes = [1, 4], strides = [1, 1]} : vector<15x4xf32> to vector<1x4xf32>
    %c0_55 = arith.constant 0 : index
    %c25 = arith.constant 25 : index
    %c0_56 = arith.constant 0 : index
    %73 = vector.load %arg9[%c0_55, %c25, %c0_56] : memref<2x104x4xf32, #tpu.memory_space<vmem>>, vector<1x1x4xf32>
    %74 = vector.shape_cast %73 : vector<1x1x4xf32> to vector<1x4xf32>
    %75 = vector.shape_cast %72 : vector<1x4xf32> to vector<1x1x4xf32>
    tpu.vector_store %arg9[%c0_55, %c25, %c0_56], %75 {strides = array<i32>} : memref<2x104x4xf32, #tpu.memory_space<vmem>>, vector<1x1x4xf32>,
    %76 = vector.extract_strided_slice %55 {offsets = [10, 0], sizes = [1, 4], strides = [1, 1]} : vector<15x4xf32> to vector<1x4xf32>
    %c0_57 = arith.constant 0 : index
    %c26 = arith.constant 26 : index
    %c0_58 = arith.constant 0 : index
    %77 = vector.load %arg9[%c0_57, %c26, %c0_58] : memref<2x104x4xf32, #tpu.memory_space<vmem>>, vector<1x1x4xf32>
    %78 = vector.shape_cast %77 : vector<1x1x4xf32> to vector<1x4xf32>
    %79 = vector.shape_cast %76 : vector<1x4xf32> to vector<1x1x4xf32>
    tpu.vector_store %arg9[%c0_57, %c26, %c0_58], %79 {strides = array<i32>} : memref<2x104x4xf32, #tpu.memory_space<vmem>>, vector<1x1x4xf32>,
    %80 = vector.extract_strided_slice %55 {offsets = [12, 0], sizes = [1, 4], strides = [1, 1]} : vector<15x4xf32> to vector<1x4xf32>
    %c0_59 = arith.constant 0 : index
    %c27 = arith.constant 27 : index
    %c0_60 = arith.constant 0 : index
    %81 = vector.load %arg9[%c0_59, %c27, %c0_60] : memref<2x104x4xf32, #tpu.memory_space<vmem>>, vector<1x1x4xf32>
    %82 = vector.shape_cast %81 : vector<1x1x4xf32> to vector<1x4xf32>
    %83 = vector.shape_cast %80 : vector<1x4xf32> to vector<1x1x4xf32>
    tpu.vector_store %arg9[%c0_59, %c27, %c0_60], %83 {strides = array<i32>} : memref<2x104x4xf32, #tpu.memory_space<vmem>>, vector<1x1x4xf32>,
    %84 = vector.extract_strided_slice %55 {offsets = [14, 0], sizes = [1, 4], strides = [1, 1]} : vector<15x4xf32> to vector<1x4xf32>
    %c0_61 = arith.constant 0 : index
    %c28 = arith.constant 28 : index
    %c0_62 = arith.constant 0 : index
    %85 = vector.load %arg9[%c0_61, %c28, %c0_62] : memref<2x104x4xf32, #tpu.memory_space<vmem>>, vector<1x1x4xf32>
    %86 = vector.shape_cast %85 : vector<1x1x4xf32> to vector<1x4xf32>
    %87 = vector.shape_cast %84 : vector<1x4xf32> to vector<1x1x4xf32>
    tpu.vector_store %arg9[%c0_61, %c28, %c0_62], %87 {strides = array<i32>} : memref<2x104x4xf32, #tpu.memory_space<vmem>>, vector<1x1x4xf32>,
    %c0_63 = arith.constant 0 : index
    %c4 = arith.constant 4 : index
    %c0_64 = arith.constant 0 : index
    %c0_65 = arith.constant 0 : index
    %88 = vector.load %arg1[%c0_63, %c4, %c0_64, %c0_65] : memref<2x16x16x4xf32, #tpu.memory_space<vmem>>, vector<1x1x15x4xf32>
    %89 = vector.shape_cast %88 : vector<1x1x15x4xf32> to vector<15x4xf32>
    %c0_66 = arith.constant 0 : index
    %c4_67 = arith.constant 4 : index
    %c1_68 = arith.constant 1 : index
    %c0_69 = arith.constant 0 : index
    %90 = vector.load %arg1[%c0_66, %c4_67, %c1_68, %c0_69] : memref<2x16x16x4xf32, #tpu.memory_space<vmem>>, vector<1x1x15x4xf32>
    %91 = vector.shape_cast %90 : vector<1x1x15x4xf32> to vector<15x4xf32>
    %92 = arith.maximumf %89, %91 : vector<15x4xf32>
    %c0_70 = arith.constant 0 : index
    %c5 = arith.constant 5 : index
    %c0_71 = arith.constant 0 : index
    %c0_72 = arith.constant 0 : index
    %93 = vector.load %arg1[%c0_70, %c5, %c0_71, %c0_72] : memref<2x16x16x4xf32, #tpu.memory_space<vmem>>, vector<1x1x15x4xf32>
    %94 = vector.shape_cast %93 : vector<1x1x15x4xf32> to vector<15x4xf32>
    %c0_73 = arith.constant 0 : index
    %c5_74 = arith.constant 5 : index
    %c1_75 = arith.constant 1 : index
    %c0_76 = arith.constant 0 : index
    %95 = vector.load %arg1[%c0_73, %c5_74, %c1_75, %c0_76] : memref<2x16x16x4xf32, #tpu.memory_space<vmem>>, vector<1x1x15x4xf32>
    %96 = vector.shape_cast %95 : vector<1x1x15x4xf32> to vector<15x4xf32>
    %97 = arith.maximumf %94, %96 : vector<15x4xf32>
    %98 = arith.maximumf %92, %97 : vector<15x4xf32>
    %99 = vector.extract_strided_slice %98 {offsets = [0, 0], sizes = [1, 4], strides = [1, 1]} : vector<15x4xf32> to vector<1x4xf32>
    %c0_77 = arith.constant 0 : index
    %c31 = arith.constant 31 : index
    %c0_78 = arith.constant 0 : index
    %100 = vector.load %arg9[%c0_77, %c31, %c0_78] : memref<2x104x4xf32, #tpu.memory_space<vmem>>, vector<1x1x4xf32>
    %101 = vector.shape_cast %100 : vector<1x1x4xf32> to vector<1x4xf32>
    %102 = vector.shape_cast %99 : vector<1x4xf32> to vector<1x1x4xf32>
    tpu.vector_store %arg9[%c0_77, %c31, %c0_78], %102 {strides = array<i32>} : memref<2x104x4xf32, #tpu.memory_space<vmem>>, vector<1x1x4xf32>,
    %103 = vector.extract_strided_slice %98 {offsets = [2, 0], sizes = [1, 4], strides = [1, 1]} : vector<15x4xf32> to vector<1x4xf32>
    %c0_79 = arith.constant 0 : index
    %c32 = arith.constant 32 : index
    %c0_80 = arith.constant 0 : index
    %104 = vector.load %arg9[%c0_79, %c32, %c0_80] : memref<2x104x4xf32, #tpu.memory_space<vmem>>, vector<1x1x4xf32>
    %105 = vector.shape_cast %104 : vector<1x1x4xf32> to vector<1x4xf32>
    %106 = vector.shape_cast %103 : vector<1x4xf32> to vector<1x1x4xf32>
    tpu.vector_store %arg9[%c0_79, %c32, %c0_80], %106 {strides = array<i32>} : memref<2x104x4xf32, #tpu.memory_space<vmem>>, vector<1x1x4xf32>,
    %107 = vector.extract_strided_slice %98 {offsets = [4, 0], sizes = [1, 4], strides = [1, 1]} : vector<15x4xf32> to vector<1x4xf32>
    %c0_81 = arith.constant 0 : index
    %c33 = arith.constant 33 : index
    %c0_82 = arith.constant 0 : index
    %108 = vector.load %arg9[%c0_81, %c33, %c0_82] : memref<2x104x4xf32, #tpu.memory_space<vmem>>, vector<1x1x4xf32>
    %109 = vector.shape_cast %108 : vector<1x1x4xf32> to vector<1x4xf32>
    %110 = vector.shape_cast %107 : vector<1x4xf32> to vector<1x1x4xf32>
    tpu.vector_store %arg9[%c0_81, %c33, %c0_82], %110 {strides = array<i32>} : memref<2x104x4xf32, #tpu.memory_space<vmem>>, vector<1x1x4xf32>,
    %111 = vector.extract_strided_slice %98 {offsets = [6, 0], sizes = [1, 4], strides = [1, 1]} : vector<15x4xf32> to vector<1x4xf32>
    %c0_83 = arith.constant 0 : index
    %c34 = arith.constant 34 : index
    %c0_84 = arith.constant 0 : index
    %112 = vector.load %arg9[%c0_83, %c34, %c0_84] : memref<2x104x4xf32, #tpu.memory_space<vmem>>, vector<1x1x4xf32>
    %113 = vector.shape_cast %112 : vector<1x1x4xf32> to vector<1x4xf32>
    %114 = vector.shape_cast %111 : vector<1x4xf32> to vector<1x1x4xf32>
    tpu.vector_store %arg9[%c0_83, %c34, %c0_84], %114 {strides = array<i32>} : memref<2x104x4xf32, #tpu.memory_space<vmem>>, vector<1x1x4xf32>,
    %115 = vector.extract_strided_slice %98 {offsets = [8, 0], sizes = [1, 4], strides = [1, 1]} : vector<15x4xf32> to vector<1x4xf32>
    %c0_85 = arith.constant 0 : index
    %c35 = arith.constant 35 : index
    %c0_86 = arith.constant 0 : index
    %116 = vector.load %arg9[%c0_85, %c35, %c0_86] : memref<2x104x4xf32, #tpu.memory_space<vmem>>, vector<1x1x4xf32>
    %117 = vector.shape_cast %116 : vector<1x1x4xf32> to vector<1x4xf32>
    %118 = vector.shape_cast %115 : vector<1x4xf32> to vector<1x1x4xf32>
    tpu.vector_store %arg9[%c0_85, %c35, %c0_86], %118 {strides = array<i32>} : memref<2x104x4xf32, #tpu.memory_space<vmem>>, vector<1x1x4xf32>,
    %119 = vector.extract_strided_slice %98 {offsets = [10, 0], sizes = [1, 4], strides = [1, 1]} : vector<15x4xf32> to vector<1x4xf32>
    %c0_87 = arith.constant 0 : index
    %c36 = arith.constant 36 : index
    %c0_88 = arith.constant 0 : index
    %120 = vector.load %arg9[%c0_87, %c36, %c0_88] : memref<2x104x4xf32, #tpu.memory_space<vmem>>, vector<1x1x4xf32>
    %121 = vector.shape_cast %120 : vector<1x1x4xf32> to vector<1x4xf32>
    %122 = vector.shape_cast %119 : vector<1x4xf32> to vector<1x1x4xf32>
    tpu.vector_store %arg9[%c0_87, %c36, %c0_88], %122 {strides = array<i32>} : memref<2x104x4xf32, #tpu.memory_space<vmem>>, vector<1x1x4xf32>,
    %123 = vector.extract_strided_slice %98 {offsets = [12, 0], sizes = [1, 4], strides = [1, 1]} : vector<15x4xf32> to vector<1x4xf32>
    %c0_89 = arith.constant 0 : index
    %c37 = arith.constant 37 : index
    %c0_90 = arith.constant 0 : index
    %124 = vector.load %arg9[%c0_89, %c37, %c0_90] : memref<2x104x4xf32, #tpu.memory_space<vmem>>, vector<1x1x4xf32>
    %125 = vector.shape_cast %124 : vector<1x1x4xf32> to vector<1x4xf32>
    %126 = vector.shape_cast %123 : vector<1x4xf32> to vector<1x1x4xf32>
    tpu.vector_store %arg9[%c0_89, %c37, %c0_90], %126 {strides = array<i32>} : memref<2x104x4xf32, #tpu.memory_space<vmem>>, vector<1x1x4xf32>,
    %127 = vector.extract_strided_slice %98 {offsets = [14, 0], sizes = [1, 4], strides = [1, 1]} : vector<15x4xf32> to vector<1x4xf32>
    %c0_91 = arith.constant 0 : index
    %c38 = arith.constant 38 : index
    %c0_92 = arith.constant 0 : index
    %128 = vector.load %arg9[%c0_91, %c38, %c0_92] : memref<2x104x4xf32, #tpu.memory_space<vmem>>, vector<1x1x4xf32>
    %129 = vector.shape_cast %128 : vector<1x1x4xf32> to vector<1x4xf32>
    %130 = vector.shape_cast %127 : vector<1x4xf32> to vector<1x1x4xf32>
    tpu.vector_store %arg9[%c0_91, %c38, %c0_92], %130 {strides = array<i32>} : memref<2x104x4xf32, #tpu.memory_space<vmem>>, vector<1x1x4xf32>,
    %c0_93 = arith.constant 0 : index
    %c6 = arith.constant 6 : index
    %c0_94 = arith.constant 0 : index
    %c0_95 = arith.constant 0 : index
    %131 = vector.load %arg1[%c0_93, %c6, %c0_94, %c0_95] : memref<2x16x16x4xf32, #tpu.memory_space<vmem>>, vector<1x1x15x4xf32>
    %132 = vector.shape_cast %131 : vector<1x1x15x4xf32> to vector<15x4xf32>
    %c0_96 = arith.constant 0 : index
    %c6_97 = arith.constant 6 : index
    %c1_98 = arith.constant 1 : index
    %c0_99 = arith.constant 0 : index
    %133 = vector.load %arg1[%c0_96, %c6_97, %c1_98, %c0_99] : memref<2x16x16x4xf32, #tpu.memory_space<vmem>>, vector<1x1x15x4xf32>
    %134 = vector.shape_cast %133 : vector<1x1x15x4xf32> to vector<15x4xf32>
    %135 = arith.maximumf %132, %134 : vector<15x4xf32>
    %c0_100 = arith.constant 0 : index
    %c7 = arith.constant 7 : index
    %c0_101 = arith.constant 0 : index
    %c0_102 = arith.constant 0 : index
    %136 = vector.load %arg1[%c0_100, %c7, %c0_101, %c0_102] : memref<2x16x16x4xf32, #tpu.memory_space<vmem>>, vector<1x1x15x4xf32>
    %137 = vector.shape_cast %136 : vector<1x1x15x4xf32> to vector<15x4xf32>
    %c0_103 = arith.constant 0 : index
    %c7_104 = arith.constant 7 : index
    %c1_105 = arith.constant 1 : index
    %c0_106 = arith.constant 0 : index
    %138 = vector.load %arg1[%c0_103, %c7_104, %c1_105, %c0_106] : memref<2x16x16x4xf32, #tpu.memory_space<vmem>>, vector<1x1x15x4xf32>
    %139 = vector.shape_cast %138 : vector<1x1x15x4xf32> to vector<15x4xf32>
    %140 = arith.maximumf %137, %139 : vector<15x4xf32>
    %141 = arith.maximumf %135, %140 : vector<15x4xf32>
    %142 = vector.extract_strided_slice %141 {offsets = [0, 0], sizes = [1, 4], strides = [1, 1]} : vector<15x4xf32> to vector<1x4xf32>
    %c0_107 = arith.constant 0 : index
    %c41 = arith.constant 41 : index
    %c0_108 = arith.constant 0 : index
    %143 = vector.load %arg9[%c0_107, %c41, %c0_108] : memref<2x104x4xf32, #tpu.memory_space<vmem>>, vector<1x1x4xf32>
    %144 = vector.shape_cast %143 : vector<1x1x4xf32> to vector<1x4xf32>
    %145 = vector.shape_cast %142 : vector<1x4xf32> to vector<1x1x4xf32>
    tpu.vector_store %arg9[%c0_107, %c41, %c0_108], %145 {strides = array<i32>} : memref<2x104x4xf32, #tpu.memory_space<vmem>>, vector<1x1x4xf32>,
    %146 = vector.extract_strided_slice %141 {offsets = [2, 0], sizes = [1, 4], strides = [1, 1]} : vector<15x4xf32> to vector<1x4xf32>
    %c0_109 = arith.constant 0 : index
    %c42 = arith.constant 42 : index
    %c0_110 = arith.constant 0 : index
    %147 = vector.load %arg9[%c0_109, %c42, %c0_110] : memref<2x104x4xf32, #tpu.memory_space<vmem>>, vector<1x1x4xf32>
    %148 = vector.shape_cast %147 : vector<1x1x4xf32> to vector<1x4xf32>
    %149 = vector.shape_cast %146 : vector<1x4xf32> to vector<1x1x4xf32>
    tpu.vector_store %arg9[%c0_109, %c42, %c0_110], %149 {strides = array<i32>} : memref<2x104x4xf32, #tpu.memory_space<vmem>>, vector<1x1x4xf32>,
    %150 = vector.extract_strided_slice %141 {offsets = [4, 0], sizes = [1, 4], strides = [1, 1]} : vector<15x4xf32> to vector<1x4xf32>
    %c0_111 = arith.constant 0 : index
    %c43 = arith.constant 43 : index
    %c0_112 = arith.constant 0 : index
    %151 = vector.load %arg9[%c0_111, %c43, %c0_112] : memref<2x104x4xf32, #tpu.memory_space<vmem>>, vector<1x1x4xf32>
    %152 = vector.shape_cast %151 : vector<1x1x4xf32> to vector<1x4xf32>
    %153 = vector.shape_cast %150 : vector<1x4xf32> to vector<1x1x4xf32>
    tpu.vector_store %arg9[%c0_111, %c43, %c0_112], %153 {strides = array<i32>} : memref<2x104x4xf32, #tpu.memory_space<vmem>>, vector<1x1x4xf32>,
    %154 = vector.extract_strided_slice %141 {offsets = [6, 0], sizes = [1, 4], strides = [1, 1]} : vector<15x4xf32> to vector<1x4xf32>
    %c0_113 = arith.constant 0 : index
    %c44 = arith.constant 44 : index
    %c0_114 = arith.constant 0 : index
    %155 = vector.load %arg9[%c0_113, %c44, %c0_114] : memref<2x104x4xf32, #tpu.memory_space<vmem>>, vector<1x1x4xf32>
    %156 = vector.shape_cast %155 : vector<1x1x4xf32> to vector<1x4xf32>
    %157 = vector.shape_cast %154 : vector<1x4xf32> to vector<1x1x4xf32>
    tpu.vector_store %arg9[%c0_113, %c44, %c0_114], %157 {strides = array<i32>} : memref<2x104x4xf32, #tpu.memory_space<vmem>>, vector<1x1x4xf32>,
    %158 = vector.extract_strided_slice %141 {offsets = [8, 0], sizes = [1, 4], strides = [1, 1]} : vector<15x4xf32> to vector<1x4xf32>
    %c0_115 = arith.constant 0 : index
    %c45 = arith.constant 45 : index
    %c0_116 = arith.constant 0 : index
    %159 = vector.load %arg9[%c0_115, %c45, %c0_116] : memref<2x104x4xf32, #tpu.memory_space<vmem>>, vector<1x1x4xf32>
    %160 = vector.shape_cast %159 : vector<1x1x4xf32> to vector<1x4xf32>
    %161 = vector.shape_cast %158 : vector<1x4xf32> to vector<1x1x4xf32>
    tpu.vector_store %arg9[%c0_115, %c45, %c0_116], %161 {strides = array<i32>} : memref<2x104x4xf32, #tpu.memory_space<vmem>>, vector<1x1x4xf32>,
    %162 = vector.extract_strided_slice %141 {offsets = [10, 0], sizes = [1, 4], strides = [1, 1]} : vector<15x4xf32> to vector<1x4xf32>
    %c0_117 = arith.constant 0 : index
    %c46 = arith.constant 46 : index
    %c0_118 = arith.constant 0 : index
    %163 = vector.load %arg9[%c0_117, %c46, %c0_118] : memref<2x104x4xf32, #tpu.memory_space<vmem>>, vector<1x1x4xf32>
    %164 = vector.shape_cast %163 : vector<1x1x4xf32> to vector<1x4xf32>
    %165 = vector.shape_cast %162 : vector<1x4xf32> to vector<1x1x4xf32>
    tpu.vector_store %arg9[%c0_117, %c46, %c0_118], %165 {strides = array<i32>} : memref<2x104x4xf32, #tpu.memory_space<vmem>>, vector<1x1x4xf32>,
    %166 = vector.extract_strided_slice %141 {offsets = [12, 0], sizes = [1, 4], strides = [1, 1]} : vector<15x4xf32> to vector<1x4xf32>
    %c0_119 = arith.constant 0 : index
    %c47 = arith.constant 47 : index
    %c0_120 = arith.constant 0 : index
    %167 = vector.load %arg9[%c0_119, %c47, %c0_120] : memref<2x104x4xf32, #tpu.memory_space<vmem>>, vector<1x1x4xf32>
    %168 = vector.shape_cast %167 : vector<1x1x4xf32> to vector<1x4xf32>
    %169 = vector.shape_cast %166 : vector<1x4xf32> to vector<1x1x4xf32>
    tpu.vector_store %arg9[%c0_119, %c47, %c0_120], %169 {strides = array<i32>} : memref<2x104x4xf32, #tpu.memory_space<vmem>>, vector<1x1x4xf32>,
    %170 = vector.extract_strided_slice %141 {offsets = [14, 0], sizes = [1, 4], strides = [1, 1]} : vector<15x4xf32> to vector<1x4xf32>
    %c0_121 = arith.constant 0 : index
    %c48 = arith.constant 48 : index
    %c0_122 = arith.constant 0 : index
    %171 = vector.load %arg9[%c0_121, %c48, %c0_122] : memref<2x104x4xf32, #tpu.memory_space<vmem>>, vector<1x1x4xf32>
    %172 = vector.shape_cast %171 : vector<1x1x4xf32> to vector<1x4xf32>
    %173 = vector.shape_cast %170 : vector<1x4xf32> to vector<1x1x4xf32>
    tpu.vector_store %arg9[%c0_121, %c48, %c0_122], %173 {strides = array<i32>} : memref<2x104x4xf32, #tpu.memory_space<vmem>>, vector<1x1x4xf32>,
    %c0_123 = arith.constant 0 : index
    %c8 = arith.constant 8 : index
    %c0_124 = arith.constant 0 : index
    %c0_125 = arith.constant 0 : index
    %174 = vector.load %arg1[%c0_123, %c8, %c0_124, %c0_125] : memref<2x16x16x4xf32, #tpu.memory_space<vmem>>, vector<1x1x15x4xf32>
    %175 = vector.shape_cast %174 : vector<1x1x15x4xf32> to vector<15x4xf32>
    %c0_126 = arith.constant 0 : index
    %c8_127 = arith.constant 8 : index
    %c1_128 = arith.constant 1 : index
    %c0_129 = arith.constant 0 : index
    %176 = vector.load %arg1[%c0_126, %c8_127, %c1_128, %c0_129] : memref<2x16x16x4xf32, #tpu.memory_space<vmem>>, vector<1x1x15x4xf32>
    %177 = vector.shape_cast %176 : vector<1x1x15x4xf32> to vector<15x4xf32>
    %178 = arith.maximumf %175, %177 : vector<15x4xf32>
    %c0_130 = arith.constant 0 : index
    %c9 = arith.constant 9 : index
    %c0_131 = arith.constant 0 : index
    %c0_132 = arith.constant 0 : index
    %179 = vector.load %arg1[%c0_130, %c9, %c0_131, %c0_132] : memref<2x16x16x4xf32, #tpu.memory_space<vmem>>, vector<1x1x15x4xf32>
    %180 = vector.shape_cast %179 : vector<1x1x15x4xf32> to vector<15x4xf32>
    %c0_133 = arith.constant 0 : index
    %c9_134 = arith.constant 9 : index
    %c1_135 = arith.constant 1 : index
    %c0_136 = arith.constant 0 : index
    %181 = vector.load %arg1[%c0_133, %c9_134, %c1_135, %c0_136] : memref<2x16x16x4xf32, #tpu.memory_space<vmem>>, vector<1x1x15x4xf32>
    %182 = vector.shape_cast %181 : vector<1x1x15x4xf32> to vector<15x4xf32>
    %183 = arith.maximumf %180, %182 : vector<15x4xf32>
    %184 = arith.maximumf %178, %183 : vector<15x4xf32>
    %185 = vector.extract_strided_slice %184 {offsets = [0, 0], sizes = [1, 4], strides = [1, 1]} : vector<15x4xf32> to vector<1x4xf32>
    %c0_137 = arith.constant 0 : index
    %c51 = arith.constant 51 : index
    %c0_138 = arith.constant 0 : index
    %186 = vector.load %arg9[%c0_137, %c51, %c0_138] : memref<2x104x4xf32, #tpu.memory_space<vmem>>, vector<1x1x4xf32>
    %187 = vector.shape_cast %186 : vector<1x1x4xf32> to vector<1x4xf32>
    %188 = vector.shape_cast %185 : vector<1x4xf32> to vector<1x1x4xf32>
    tpu.vector_store %arg9[%c0_137, %c51, %c0_138], %188 {strides = array<i32>} : memref<2x104x4xf32, #tpu.memory_space<vmem>>, vector<1x1x4xf32>,
    %189 = vector.extract_strided_slice %184 {offsets = [2, 0], sizes = [1, 4], strides = [1, 1]} : vector<15x4xf32> to vector<1x4xf32>
    %c0_139 = arith.constant 0 : index
    %c52 = arith.constant 52 : index
    %c0_140 = arith.constant 0 : index
    %190 = vector.load %arg9[%c0_139, %c52, %c0_140] : memref<2x104x4xf32, #tpu.memory_space<vmem>>, vector<1x1x4xf32>
    %191 = vector.shape_cast %190 : vector<1x1x4xf32> to vector<1x4xf32>
    %192 = vector.shape_cast %189 : vector<1x4xf32> to vector<1x1x4xf32>
    tpu.vector_store %arg9[%c0_139, %c52, %c0_140], %192 {strides = array<i32>} : memref<2x104x4xf32, #tpu.memory_space<vmem>>, vector<1x1x4xf32>,
    %193 = vector.extract_strided_slice %184 {offsets = [4, 0], sizes = [1, 4], strides = [1, 1]} : vector<15x4xf32> to vector<1x4xf32>
    %c0_141 = arith.constant 0 : index
    %c53 = arith.constant 53 : index
    %c0_142 = arith.constant 0 : index
    %194 = vector.load %arg9[%c0_141, %c53, %c0_142] : memref<2x104x4xf32, #tpu.memory_space<vmem>>, vector<1x1x4xf32>
    %195 = vector.shape_cast %194 : vector<1x1x4xf32> to vector<1x4xf32>
    %196 = vector.shape_cast %193 : vector<1x4xf32> to vector<1x1x4xf32>
    tpu.vector_store %arg9[%c0_141, %c53, %c0_142], %196 {strides = array<i32>} : memref<2x104x4xf32, #tpu.memory_space<vmem>>, vector<1x1x4xf32>,
    %197 = vector.extract_strided_slice %184 {offsets = [6, 0], sizes = [1, 4], strides = [1, 1]} : vector<15x4xf32> to vector<1x4xf32>
    %c0_143 = arith.constant 0 : index
    %c54 = arith.constant 54 : index
    %c0_144 = arith.constant 0 : index
    %198 = vector.load %arg9[%c0_143, %c54, %c0_144] : memref<2x104x4xf32, #tpu.memory_space<vmem>>, vector<1x1x4xf32>
    %199 = vector.shape_cast %198 : vector<1x1x4xf32> to vector<1x4xf32>
    %200 = vector.shape_cast %197 : vector<1x4xf32> to vector<1x1x4xf32>
    tpu.vector_store %arg9[%c0_143, %c54, %c0_144], %200 {strides = array<i32>} : memref<2x104x4xf32, #tpu.memory_space<vmem>>, vector<1x1x4xf32>,
    %201 = vector.extract_strided_slice %184 {offsets = [8, 0], sizes = [1, 4], strides = [1, 1]} : vector<15x4xf32> to vector<1x4xf32>
    %c0_145 = arith.constant 0 : index
    %c55 = arith.constant 55 : index
    %c0_146 = arith.constant 0 : index
    %202 = vector.load %arg9[%c0_145, %c55, %c0_146] : memref<2x104x4xf32, #tpu.memory_space<vmem>>, vector<1x1x4xf32>
    %203 = vector.shape_cast %202 : vector<1x1x4xf32> to vector<1x4xf32>
    %204 = vector.shape_cast %201 : vector<1x4xf32> to vector<1x1x4xf32>
    tpu.vector_store %arg9[%c0_145, %c55, %c0_146], %204 {strides = array<i32>} : memref<2x104x4xf32, #tpu.memory_space<vmem>>, vector<1x1x4xf32>,
    %205 = vector.extract_strided_slice %184 {offsets = [10, 0], sizes = [1, 4], strides = [1, 1]} : vector<15x4xf32> to vector<1x4xf32>
    %c0_147 = arith.constant 0 : index
    %c56 = arith.constant 56 : index
    %c0_148 = arith.constant 0 : index
    %206 = vector.load %arg9[%c0_147, %c56, %c0_148] : memref<2x104x4xf32, #tpu.memory_space<vmem>>, vector<1x1x4xf32>
    %207 = vector.shape_cast %206 : vector<1x1x4xf32> to vector<1x4xf32>
    %208 = vector.shape_cast %205 : vector<1x4xf32> to vector<1x1x4xf32>
    tpu.vector_store %arg9[%c0_147, %c56, %c0_148], %208 {strides = array<i32>} : memref<2x104x4xf32, #tpu.memory_space<vmem>>, vector<1x1x4xf32>,
    %209 = vector.extract_strided_slice %184 {offsets = [12, 0], sizes = [1, 4], strides = [1, 1]} : vector<15x4xf32> to vector<1x4xf32>
    %c0_149 = arith.constant 0 : index
    %c57 = arith.constant 57 : index
    %c0_150 = arith.constant 0 : index
    %210 = vector.load %arg9[%c0_149, %c57, %c0_150] : memref<2x104x4xf32, #tpu.memory_space<vmem>>, vector<1x1x4xf32>
    %211 = vector.shape_cast %210 : vector<1x1x4xf32> to vector<1x4xf32>
    %212 = vector.shape_cast %209 : vector<1x4xf32> to vector<1x1x4xf32>
    tpu.vector_store %arg9[%c0_149, %c57, %c0_150], %212 {strides = array<i32>} : memref<2x104x4xf32, #tpu.memory_space<vmem>>, vector<1x1x4xf32>,
    %213 = vector.extract_strided_slice %184 {offsets = [14, 0], sizes = [1, 4], strides = [1, 1]} : vector<15x4xf32> to vector<1x4xf32>
    %c0_151 = arith.constant 0 : index
    %c58 = arith.constant 58 : index
    %c0_152 = arith.constant 0 : index
    %214 = vector.load %arg9[%c0_151, %c58, %c0_152] : memref<2x104x4xf32, #tpu.memory_space<vmem>>, vector<1x1x4xf32>
    %215 = vector.shape_cast %214 : vector<1x1x4xf32> to vector<1x4xf32>
    %216 = vector.shape_cast %213 : vector<1x4xf32> to vector<1x1x4xf32>
    tpu.vector_store %arg9[%c0_151, %c58, %c0_152], %216 {strides = array<i32>} : memref<2x104x4xf32, #tpu.memory_space<vmem>>, vector<1x1x4xf32>,
    %c0_153 = arith.constant 0 : index
    %c10 = arith.constant 10 : index
    %c0_154 = arith.constant 0 : index
    %c0_155 = arith.constant 0 : index
    %217 = vector.load %arg1[%c0_153, %c10, %c0_154, %c0_155] : memref<2x16x16x4xf32, #tpu.memory_space<vmem>>, vector<1x1x15x4xf32>
    %218 = vector.shape_cast %217 : vector<1x1x15x4xf32> to vector<15x4xf32>
    %c0_156 = arith.constant 0 : index
    %c10_157 = arith.constant 10 : index
    %c1_158 = arith.constant 1 : index
    %c0_159 = arith.constant 0 : index
    %219 = vector.load %arg1[%c0_156, %c10_157, %c1_158, %c0_159] : memref<2x16x16x4xf32, #tpu.memory_space<vmem>>, vector<1x1x15x4xf32>
    %220 = vector.shape_cast %219 : vector<1x1x15x4xf32> to vector<15x4xf32>
    %221 = arith.maximumf %218, %220 : vector<15x4xf32>
    %c0_160 = arith.constant 0 : index
    %c11_161 = arith.constant 11 : index
    %c0_162 = arith.constant 0 : index
    %c0_163 = arith.constant 0 : index
    %222 = vector.load %arg1[%c0_160, %c11_161, %c0_162, %c0_163] : memref<2x16x16x4xf32, #tpu.memory_space<vmem>>, vector<1x1x15x4xf32>
    %223 = vector.shape_cast %222 : vector<1x1x15x4xf32> to vector<15x4xf32>
    %c0_164 = arith.constant 0 : index
    %c11_165 = arith.constant 11 : index
    %c1_166 = arith.constant 1 : index
    %c0_167 = arith.constant 0 : index
    %224 = vector.load %arg1[%c0_164, %c11_165, %c1_166, %c0_167] : memref<2x16x16x4xf32, #tpu.memory_space<vmem>>, vector<1x1x15x4xf32>
    %225 = vector.shape_cast %224 : vector<1x1x15x4xf32> to vector<15x4xf32>
    %226 = arith.maximumf %223, %225 : vector<15x4xf32>
    %227 = arith.maximumf %221, %226 : vector<15x4xf32>
    %228 = vector.extract_strided_slice %227 {offsets = [0, 0], sizes = [1, 4], strides = [1, 1]} : vector<15x4xf32> to vector<1x4xf32>
    %c0_168 = arith.constant 0 : index
    %c61 = arith.constant 61 : index
    %c0_169 = arith.constant 0 : index
    %229 = vector.load %arg9[%c0_168, %c61, %c0_169] : memref<2x104x4xf32, #tpu.memory_space<vmem>>, vector<1x1x4xf32>
    %230 = vector.shape_cast %229 : vector<1x1x4xf32> to vector<1x4xf32>
    %231 = vector.shape_cast %228 : vector<1x4xf32> to vector<1x1x4xf32>
    tpu.vector_store %arg9[%c0_168, %c61, %c0_169], %231 {strides = array<i32>} : memref<2x104x4xf32, #tpu.memory_space<vmem>>, vector<1x1x4xf32>,
    %232 = vector.extract_strided_slice %227 {offsets = [2, 0], sizes = [1, 4], strides = [1, 1]} : vector<15x4xf32> to vector<1x4xf32>
    %c0_170 = arith.constant 0 : index
    %c62 = arith.constant 62 : index
    %c0_171 = arith.constant 0 : index
    %233 = vector.load %arg9[%c0_170, %c62, %c0_171] : memref<2x104x4xf32, #tpu.memory_space<vmem>>, vector<1x1x4xf32>
    %234 = vector.shape_cast %233 : vector<1x1x4xf32> to vector<1x4xf32>
    %235 = vector.shape_cast %232 : vector<1x4xf32> to vector<1x1x4xf32>
    tpu.vector_store %arg9[%c0_170, %c62, %c0_171], %235 {strides = array<i32>} : memref<2x104x4xf32, #tpu.memory_space<vmem>>, vector<1x1x4xf32>,
    %236 = vector.extract_strided_slice %227 {offsets = [4, 0], sizes = [1, 4], strides = [1, 1]} : vector<15x4xf32> to vector<1x4xf32>
    %c0_172 = arith.constant 0 : index
    %c63 = arith.constant 63 : index
    %c0_173 = arith.constant 0 : index
    %237 = vector.load %arg9[%c0_172, %c63, %c0_173] : memref<2x104x4xf32, #tpu.memory_space<vmem>>, vector<1x1x4xf32>
    %238 = vector.shape_cast %237 : vector<1x1x4xf32> to vector<1x4xf32>
    %239 = vector.shape_cast %236 : vector<1x4xf32> to vector<1x1x4xf32>
    tpu.vector_store %arg9[%c0_172, %c63, %c0_173], %239 {strides = array<i32>} : memref<2x104x4xf32, #tpu.memory_space<vmem>>, vector<1x1x4xf32>,
    %240 = vector.extract_strided_slice %227 {offsets = [6, 0], sizes = [1, 4], strides = [1, 1]} : vector<15x4xf32> to vector<1x4xf32>
    %c0_174 = arith.constant 0 : index
    %c64 = arith.constant 64 : index
    %c0_175 = arith.constant 0 : index
    %241 = vector.load %arg9[%c0_174, %c64, %c0_175] : memref<2x104x4xf32, #tpu.memory_space<vmem>>, vector<1x1x4xf32>
    %242 = vector.shape_cast %241 : vector<1x1x4xf32> to vector<1x4xf32>
    %243 = vector.shape_cast %240 : vector<1x4xf32> to vector<1x1x4xf32>
    tpu.vector_store %arg9[%c0_174, %c64, %c0_175], %243 {strides = array<i32>} : memref<2x104x4xf32, #tpu.memory_space<vmem>>, vector<1x1x4xf32>,
    %244 = vector.extract_strided_slice %227 {offsets = [8, 0], sizes = [1, 4], strides = [1, 1]} : vector<15x4xf32> to vector<1x4xf32>
    %c0_176 = arith.constant 0 : index
    %c65 = arith.constant 65 : index
    %c0_177 = arith.constant 0 : index
    %245 = vector.load %arg9[%c0_176, %c65, %c0_177] : memref<2x104x4xf32, #tpu.memory_space<vmem>>, vector<1x1x4xf32>
    %246 = vector.shape_cast %245 : vector<1x1x4xf32> to vector<1x4xf32>
    %247 = vector.shape_cast %244 : vector<1x4xf32> to vector<1x1x4xf32>
    tpu.vector_store %arg9[%c0_176, %c65, %c0_177], %247 {strides = array<i32>} : memref<2x104x4xf32, #tpu.memory_space<vmem>>, vector<1x1x4xf32>,
    %248 = vector.extract_strided_slice %227 {offsets = [10, 0], sizes = [1, 4], strides = [1, 1]} : vector<15x4xf32> to vector<1x4xf32>
    %c0_178 = arith.constant 0 : index
    %c66 = arith.constant 66 : index
    %c0_179 = arith.constant 0 : index
    %249 = vector.load %arg9[%c0_178, %c66, %c0_179] : memref<2x104x4xf32, #tpu.memory_space<vmem>>, vector<1x1x4xf32>
    %250 = vector.shape_cast %249 : vector<1x1x4xf32> to vector<1x4xf32>
    %251 = vector.shape_cast %248 : vector<1x4xf32> to vector<1x1x4xf32>
    tpu.vector_store %arg9[%c0_178, %c66, %c0_179], %251 {strides = array<i32>} : memref<2x104x4xf32, #tpu.memory_space<vmem>>, vector<1x1x4xf32>,
    %252 = vector.extract_strided_slice %227 {offsets = [12, 0], sizes = [1, 4], strides = [1, 1]} : vector<15x4xf32> to vector<1x4xf32>
    %c0_180 = arith.constant 0 : index
    %c67 = arith.constant 67 : index
    %c0_181 = arith.constant 0 : index
    %253 = vector.load %arg9[%c0_180, %c67, %c0_181] : memref<2x104x4xf32, #tpu.memory_space<vmem>>, vector<1x1x4xf32>
    %254 = vector.shape_cast %253 : vector<1x1x4xf32> to vector<1x4xf32>
    %255 = vector.shape_cast %252 : vector<1x4xf32> to vector<1x1x4xf32>
    tpu.vector_store %arg9[%c0_180, %c67, %c0_181], %255 {strides = array<i32>} : memref<2x104x4xf32, #tpu.memory_space<vmem>>, vector<1x1x4xf32>,
    %256 = vector.extract_strided_slice %227 {offsets = [14, 0], sizes = [1, 4], strides = [1, 1]} : vector<15x4xf32> to vector<1x4xf32>
    %c0_182 = arith.constant 0 : index
    %c68 = arith.constant 68 : index
    %c0_183 = arith.constant 0 : index
    %257 = vector.load %arg9[%c0_182, %c68, %c0_183] : memref<2x104x4xf32, #tpu.memory_space<vmem>>, vector<1x1x4xf32>
    %258 = vector.shape_cast %257 : vector<1x1x4xf32> to vector<1x4xf32>
    %259 = vector.shape_cast %256 : vector<1x4xf32> to vector<1x1x4xf32>
    tpu.vector_store %arg9[%c0_182, %c68, %c0_183], %259 {strides = array<i32>} : memref<2x104x4xf32, #tpu.memory_space<vmem>>, vector<1x1x4xf32>,
    %c0_184 = arith.constant 0 : index
    %c12_185 = arith.constant 12 : index
    %c0_186 = arith.constant 0 : index
    %c0_187 = arith.constant 0 : index
    %260 = vector.load %arg1[%c0_184, %c12_185, %c0_186, %c0_187] : memref<2x16x16x4xf32, #tpu.memory_space<vmem>>, vector<1x1x15x4xf32>
    %261 = vector.shape_cast %260 : vector<1x1x15x4xf32> to vector<15x4xf32>
    %c0_188 = arith.constant 0 : index
    %c12_189 = arith.constant 12 : index
    %c1_190 = arith.constant 1 : index
    %c0_191 = arith.constant 0 : index
    %262 = vector.load %arg1[%c0_188, %c12_189, %c1_190, %c0_191] : memref<2x16x16x4xf32, #tpu.memory_space<vmem>>, vector<1x1x15x4xf32>
    %263 = vector.shape_cast %262 : vector<1x1x15x4xf32> to vector<15x4xf32>
    %264 = arith.maximumf %261, %263 : vector<15x4xf32>
    %c0_192 = arith.constant 0 : index
    %c13_193 = arith.constant 13 : index
    %c0_194 = arith.constant 0 : index
    %c0_195 = arith.constant 0 : index
    %265 = vector.load %arg1[%c0_192, %c13_193, %c0_194, %c0_195] : memref<2x16x16x4xf32, #tpu.memory_space<vmem>>, vector<1x1x15x4xf32>
    %266 = vector.shape_cast %265 : vector<1x1x15x4xf32> to vector<15x4xf32>
    %c0_196 = arith.constant 0 : index
    %c13_197 = arith.constant 13 : index
    %c1_198 = arith.constant 1 : index
    %c0_199 = arith.constant 0 : index
    %267 = vector.load %arg1[%c0_196, %c13_197, %c1_198, %c0_199] : memref<2x16x16x4xf32, #tpu.memory_space<vmem>>, vector<1x1x15x4xf32>
    %268 = vector.shape_cast %267 : vector<1x1x15x4xf32> to vector<15x4xf32>
    %269 = arith.maximumf %266, %268 : vector<15x4xf32>
    %270 = arith.maximumf %264, %269 : vector<15x4xf32>
    %271 = vector.extract_strided_slice %270 {offsets = [0, 0], sizes = [1, 4], strides = [1, 1]} : vector<15x4xf32> to vector<1x4xf32>
    %c0_200 = arith.constant 0 : index
    %c71 = arith.constant 71 : index
    %c0_201 = arith.constant 0 : index
    %272 = vector.load %arg9[%c0_200, %c71, %c0_201] : memref<2x104x4xf32, #tpu.memory_space<vmem>>, vector<1x1x4xf32>
    %273 = vector.shape_cast %272 : vector<1x1x4xf32> to vector<1x4xf32>
    %274 = vector.shape_cast %271 : vector<1x4xf32> to vector<1x1x4xf32>
    tpu.vector_store %arg9[%c0_200, %c71, %c0_201], %274 {strides = array<i32>} : memref<2x104x4xf32, #tpu.memory_space<vmem>>, vector<1x1x4xf32>,
    %275 = vector.extract_strided_slice %270 {offsets = [2, 0], sizes = [1, 4], strides = [1, 1]} : vector<15x4xf32> to vector<1x4xf32>
    %c0_202 = arith.constant 0 : index
    %c72 = arith.constant 72 : index
    %c0_203 = arith.constant 0 : index
    %276 = vector.load %arg9[%c0_202, %c72, %c0_203] : memref<2x104x4xf32, #tpu.memory_space<vmem>>, vector<1x1x4xf32>
    %277 = vector.shape_cast %276 : vector<1x1x4xf32> to vector<1x4xf32>
    %278 = vector.shape_cast %275 : vector<1x4xf32> to vector<1x1x4xf32>
    tpu.vector_store %arg9[%c0_202, %c72, %c0_203], %278 {strides = array<i32>} : memref<2x104x4xf32, #tpu.memory_space<vmem>>, vector<1x1x4xf32>,
    %279 = vector.extract_strided_slice %270 {offsets = [4, 0], sizes = [1, 4], strides = [1, 1]} : vector<15x4xf32> to vector<1x4xf32>
    %c0_204 = arith.constant 0 : index
    %c73 = arith.constant 73 : index
    %c0_205 = arith.constant 0 : index
    %280 = vector.load %arg9[%c0_204, %c73, %c0_205] : memref<2x104x4xf32, #tpu.memory_space<vmem>>, vector<1x1x4xf32>
    %281 = vector.shape_cast %280 : vector<1x1x4xf32> to vector<1x4xf32>
    %282 = vector.shape_cast %279 : vector<1x4xf32> to vector<1x1x4xf32>
    tpu.vector_store %arg9[%c0_204, %c73, %c0_205], %282 {strides = array<i32>} : memref<2x104x4xf32, #tpu.memory_space<vmem>>, vector<1x1x4xf32>,
    %283 = vector.extract_strided_slice %270 {offsets = [6, 0], sizes = [1, 4], strides = [1, 1]} : vector<15x4xf32> to vector<1x4xf32>
    %c0_206 = arith.constant 0 : index
    %c74 = arith.constant 74 : index
    %c0_207 = arith.constant 0 : index
    %284 = vector.load %arg9[%c0_206, %c74, %c0_207] : memref<2x104x4xf32, #tpu.memory_space<vmem>>, vector<1x1x4xf32>
    %285 = vector.shape_cast %284 : vector<1x1x4xf32> to vector<1x4xf32>
    %286 = vector.shape_cast %283 : vector<1x4xf32> to vector<1x1x4xf32>
    tpu.vector_store %arg9[%c0_206, %c74, %c0_207], %286 {strides = array<i32>} : memref<2x104x4xf32, #tpu.memory_space<vmem>>, vector<1x1x4xf32>,
    %287 = vector.extract_strided_slice %270 {offsets = [8, 0], sizes = [1, 4], strides = [1, 1]} : vector<15x4xf32> to vector<1x4xf32>
    %c0_208 = arith.constant 0 : index
    %c75 = arith.constant 75 : index
    %c0_209 = arith.constant 0 : index
    %288 = vector.load %arg9[%c0_208, %c75, %c0_209] : memref<2x104x4xf32, #tpu.memory_space<vmem>>, vector<1x1x4xf32>
    %289 = vector.shape_cast %288 : vector<1x1x4xf32> to vector<1x4xf32>
    %290 = vector.shape_cast %287 : vector<1x4xf32> to vector<1x1x4xf32>
    tpu.vector_store %arg9[%c0_208, %c75, %c0_209], %290 {strides = array<i32>} : memref<2x104x4xf32, #tpu.memory_space<vmem>>, vector<1x1x4xf32>,
    %291 = vector.extract_strided_slice %270 {offsets = [10, 0], sizes = [1, 4], strides = [1, 1]} : vector<15x4xf32> to vector<1x4xf32>
    %c0_210 = arith.constant 0 : index
    %c76 = arith.constant 76 : index
    %c0_211 = arith.constant 0 : index
    %292 = vector.load %arg9[%c0_210, %c76, %c0_211] : memref<2x104x4xf32, #tpu.memory_space<vmem>>, vector<1x1x4xf32>
    %293 = vector.shape_cast %292 : vector<1x1x4xf32> to vector<1x4xf32>
    %294 = vector.shape_cast %291 : vector<1x4xf32> to vector<1x1x4xf32>
    tpu.vector_store %arg9[%c0_210, %c76, %c0_211], %294 {strides = array<i32>} : memref<2x104x4xf32, #tpu.memory_space<vmem>>, vector<1x1x4xf32>,
    %295 = vector.extract_strided_slice %270 {offsets = [12, 0], sizes = [1, 4], strides = [1, 1]} : vector<15x4xf32> to vector<1x4xf32>
    %c0_212 = arith.constant 0 : index
    %c77 = arith.constant 77 : index
    %c0_213 = arith.constant 0 : index
    %296 = vector.load %arg9[%c0_212, %c77, %c0_213] : memref<2x104x4xf32, #tpu.memory_space<vmem>>, vector<1x1x4xf32>
    %297 = vector.shape_cast %296 : vector<1x1x4xf32> to vector<1x4xf32>
    %298 = vector.shape_cast %295 : vector<1x4xf32> to vector<1x1x4xf32>
    tpu.vector_store %arg9[%c0_212, %c77, %c0_213], %298 {strides = array<i32>} : memref<2x104x4xf32, #tpu.memory_space<vmem>>, vector<1x1x4xf32>,
    %299 = vector.extract_strided_slice %270 {offsets = [14, 0], sizes = [1, 4], strides = [1, 1]} : vector<15x4xf32> to vector<1x4xf32>
    %c0_214 = arith.constant 0 : index
    %c78 = arith.constant 78 : index
    %c0_215 = arith.constant 0 : index
    %300 = vector.load %arg9[%c0_214, %c78, %c0_215] : memref<2x104x4xf32, #tpu.memory_space<vmem>>, vector<1x1x4xf32>
    %301 = vector.shape_cast %300 : vector<1x1x4xf32> to vector<1x4xf32>
    %302 = vector.shape_cast %299 : vector<1x4xf32> to vector<1x1x4xf32>
    tpu.vector_store %arg9[%c0_214, %c78, %c0_215], %302 {strides = array<i32>} : memref<2x104x4xf32, #tpu.memory_space<vmem>>, vector<1x1x4xf32>,
    %c0_216 = arith.constant 0 : index
    %c14_217 = arith.constant 14 : index
    %c0_218 = arith.constant 0 : index
    %c0_219 = arith.constant 0 : index
    %303 = vector.load %arg1[%c0_216, %c14_217, %c0_218, %c0_219] : memref<2x16x16x4xf32, #tpu.memory_space<vmem>>, vector<1x1x15x4xf32>
    %304 = vector.shape_cast %303 : vector<1x1x15x4xf32> to vector<15x4xf32>
    %c0_220 = arith.constant 0 : index
    %c14_221 = arith.constant 14 : index
    %c1_222 = arith.constant 1 : index
    %c0_223 = arith.constant 0 : index
    %305 = vector.load %arg1[%c0_220, %c14_221, %c1_222, %c0_223] : memref<2x16x16x4xf32, #tpu.memory_space<vmem>>, vector<1x1x15x4xf32>
    %306 = vector.shape_cast %305 : vector<1x1x15x4xf32> to vector<15x4xf32>
    %307 = arith.maximumf %304, %306 : vector<15x4xf32>
    %c0_224 = arith.constant 0 : index
    %c15_225 = arith.constant 15 : index
    %c0_226 = arith.constant 0 : index
    %c0_227 = arith.constant 0 : index
    %308 = vector.load %arg1[%c0_224, %c15_225, %c0_226, %c0_227] : memref<2x16x16x4xf32, #tpu.memory_space<vmem>>, vector<1x1x15x4xf32>
    %309 = vector.shape_cast %308 : vector<1x1x15x4xf32> to vector<15x4xf32>
    %c0_228 = arith.constant 0 : index
    %c15_229 = arith.constant 15 : index
    %c1_230 = arith.constant 1 : index
    %c0_231 = arith.constant 0 : index
    %310 = vector.load %arg1[%c0_228, %c15_229, %c1_230, %c0_231] : memref<2x16x16x4xf32, #tpu.memory_space<vmem>>, vector<1x1x15x4xf32>
    %311 = vector.shape_cast %310 : vector<1x1x15x4xf32> to vector<15x4xf32>
    %312 = arith.maximumf %309, %311 : vector<15x4xf32>
    %313 = arith.maximumf %307, %312 : vector<15x4xf32>
    %314 = vector.extract_strided_slice %313 {offsets = [0, 0], sizes = [1, 4], strides = [1, 1]} : vector<15x4xf32> to vector<1x4xf32>
    %c0_232 = arith.constant 0 : index
    %c81 = arith.constant 81 : index
    %c0_233 = arith.constant 0 : index
    %315 = vector.load %arg9[%c0_232, %c81, %c0_233] : memref<2x104x4xf32, #tpu.memory_space<vmem>>, vector<1x1x4xf32>
    %316 = vector.shape_cast %315 : vector<1x1x4xf32> to vector<1x4xf32>
    %317 = vector.shape_cast %314 : vector<1x4xf32> to vector<1x1x4xf32>
    tpu.vector_store %arg9[%c0_232, %c81, %c0_233], %317 {strides = array<i32>} : memref<2x104x4xf32, #tpu.memory_space<vmem>>, vector<1x1x4xf32>,
    %318 = vector.extract_strided_slice %313 {offsets = [2, 0], sizes = [1, 4], strides = [1, 1]} : vector<15x4xf32> to vector<1x4xf32>
    %c0_234 = arith.constant 0 : index
    %c82 = arith.constant 82 : index
    %c0_235 = arith.constant 0 : index
    %319 = vector.load %arg9[%c0_234, %c82, %c0_235] : memref<2x104x4xf32, #tpu.memory_space<vmem>>, vector<1x1x4xf32>
    %320 = vector.shape_cast %319 : vector<1x1x4xf32> to vector<1x4xf32>
    %321 = vector.shape_cast %318 : vector<1x4xf32> to vector<1x1x4xf32>
    tpu.vector_store %arg9[%c0_234, %c82, %c0_235], %321 {strides = array<i32>} : memref<2x104x4xf32, #tpu.memory_space<vmem>>, vector<1x1x4xf32>,
    %322 = vector.extract_strided_slice %313 {offsets = [4, 0], sizes = [1, 4], strides = [1, 1]} : vector<15x4xf32> to vector<1x4xf32>
    %c0_236 = arith.constant 0 : index
    %c83 = arith.constant 83 : index
    %c0_237 = arith.constant 0 : index
    %323 = vector.load %arg9[%c0_236, %c83, %c0_237] : memref<2x104x4xf32, #tpu.memory_space<vmem>>, vector<1x1x4xf32>
    %324 = vector.shape_cast %323 : vector<1x1x4xf32> to vector<1x4xf32>
    %325 = vector.shape_cast %322 : vector<1x4xf32> to vector<1x1x4xf32>
    tpu.vector_store %arg9[%c0_236, %c83, %c0_237], %325 {strides = array<i32>} : memref<2x104x4xf32, #tpu.memory_space<vmem>>, vector<1x1x4xf32>,
    %326 = vector.extract_strided_slice %313 {offsets = [6, 0], sizes = [1, 4], strides = [1, 1]} : vector<15x4xf32> to vector<1x4xf32>
    %c0_238 = arith.constant 0 : index
    %c84 = arith.constant 84 : index
    %c0_239 = arith.constant 0 : index
    %327 = vector.load %arg9[%c0_238, %c84, %c0_239] : memref<2x104x4xf32, #tpu.memory_space<vmem>>, vector<1x1x4xf32>
    %328 = vector.shape_cast %327 : vector<1x1x4xf32> to vector<1x4xf32>
    %329 = vector.shape_cast %326 : vector<1x4xf32> to vector<1x1x4xf32>
    tpu.vector_store %arg9[%c0_238, %c84, %c0_239], %329 {strides = array<i32>} : memref<2x104x4xf32, #tpu.memory_space<vmem>>, vector<1x1x4xf32>,
    %330 = vector.extract_strided_slice %313 {offsets = [8, 0], sizes = [1, 4], strides = [1, 1]} : vector<15x4xf32> to vector<1x4xf32>
    %c0_240 = arith.constant 0 : index
    %c85 = arith.constant 85 : index
    %c0_241 = arith.constant 0 : index
    %331 = vector.load %arg9[%c0_240, %c85, %c0_241] : memref<2x104x4xf32, #tpu.memory_space<vmem>>, vector<1x1x4xf32>
    %332 = vector.shape_cast %331 : vector<1x1x4xf32> to vector<1x4xf32>
    %333 = vector.shape_cast %330 : vector<1x4xf32> to vector<1x1x4xf32>
    tpu.vector_store %arg9[%c0_240, %c85, %c0_241], %333 {strides = array<i32>} : memref<2x104x4xf32, #tpu.memory_space<vmem>>, vector<1x1x4xf32>,
    %334 = vector.extract_strided_slice %313 {offsets = [10, 0], sizes = [1, 4], strides = [1, 1]} : vector<15x4xf32> to vector<1x4xf32>
    %c0_242 = arith.constant 0 : index
    %c86 = arith.constant 86 : index
    %c0_243 = arith.constant 0 : index
    %335 = vector.load %arg9[%c0_242, %c86, %c0_243] : memref<2x104x4xf32, #tpu.memory_space<vmem>>, vector<1x1x4xf32>
    %336 = vector.shape_cast %335 : vector<1x1x4xf32> to vector<1x4xf32>
    %337 = vector.shape_cast %334 : vector<1x4xf32> to vector<1x1x4xf32>
    tpu.vector_store %arg9[%c0_242, %c86, %c0_243], %337 {strides = array<i32>} : memref<2x104x4xf32, #tpu.memory_space<vmem>>, vector<1x1x4xf32>,
    %338 = vector.extract_strided_slice %313 {offsets = [12, 0], sizes = [1, 4], strides = [1, 1]} : vector<15x4xf32> to vector<1x4xf32>
    %c0_244 = arith.constant 0 : index
    %c87 = arith.constant 87 : index
    %c0_245 = arith.constant 0 : index
    %339 = vector.load %arg9[%c0_244, %c87, %c0_245] : memref<2x104x4xf32, #tpu.memory_space<vmem>>, vector<1x1x4xf32>
    %340 = vector.shape_cast %339 : vector<1x1x4xf32> to vector<1x4xf32>
    %341 = vector.shape_cast %338 : vector<1x4xf32> to vector<1x1x4xf32>
    tpu.vector_store %arg9[%c0_244, %c87, %c0_245], %341 {strides = array<i32>} : memref<2x104x4xf32, #tpu.memory_space<vmem>>, vector<1x1x4xf32>,
    %342 = vector.extract_strided_slice %313 {offsets = [14, 0], sizes = [1, 4], strides = [1, 1]} : vector<15x4xf32> to vector<1x4xf32>
    %c0_246 = arith.constant 0 : index
    %c88 = arith.constant 88 : index
    %c0_247 = arith.constant 0 : index
    %343 = vector.load %arg9[%c0_246, %c88, %c0_247] : memref<2x104x4xf32, #tpu.memory_space<vmem>>, vector<1x1x4xf32>
    %344 = vector.shape_cast %343 : vector<1x1x4xf32> to vector<1x4xf32>
    %345 = vector.shape_cast %342 : vector<1x4xf32> to vector<1x1x4xf32>
    tpu.vector_store %arg9[%c0_246, %c88, %c0_247], %345 {strides = array<i32>} : memref<2x104x4xf32, #tpu.memory_space<vmem>>, vector<1x1x4xf32>,
    %c1_248 = arith.constant 1 : index
    %c0_249 = arith.constant 0 : index
    %c0_250 = arith.constant 0 : index
    %c0_251 = arith.constant 0 : index
    %346 = vector.load %arg1[%c1_248, %c0_249, %c0_250, %c0_251] : memref<2x16x16x4xf32, #tpu.memory_space<vmem>>, vector<1x1x15x4xf32>
    %347 = vector.shape_cast %346 : vector<1x1x15x4xf32> to vector<15x4xf32>
    %c1_252 = arith.constant 1 : index
    %c0_253 = arith.constant 0 : index
    %c1_254 = arith.constant 1 : index
    %c0_255 = arith.constant 0 : index
    %348 = vector.load %arg1[%c1_252, %c0_253, %c1_254, %c0_255] : memref<2x16x16x4xf32, #tpu.memory_space<vmem>>, vector<1x1x15x4xf32>
    %349 = vector.shape_cast %348 : vector<1x1x15x4xf32> to vector<15x4xf32>
    %350 = arith.maximumf %347, %349 : vector<15x4xf32>
    %c1_256 = arith.constant 1 : index
    %c1_257 = arith.constant 1 : index
    %c0_258 = arith.constant 0 : index
    %c0_259 = arith.constant 0 : index
    %351 = vector.load %arg1[%c1_256, %c1_257, %c0_258, %c0_259] : memref<2x16x16x4xf32, #tpu.memory_space<vmem>>, vector<1x1x15x4xf32>
    %352 = vector.shape_cast %351 : vector<1x1x15x4xf32> to vector<15x4xf32>
    %c1_260 = arith.constant 1 : index
    %c1_261 = arith.constant 1 : index
    %c1_262 = arith.constant 1 : index
    %c0_263 = arith.constant 0 : index
    %353 = vector.load %arg1[%c1_260, %c1_261, %c1_262, %c0_263] : memref<2x16x16x4xf32, #tpu.memory_space<vmem>>, vector<1x1x15x4xf32>
    %354 = vector.shape_cast %353 : vector<1x1x15x4xf32> to vector<15x4xf32>
    %355 = arith.maximumf %352, %354 : vector<15x4xf32>
    %356 = arith.maximumf %350, %355 : vector<15x4xf32>
    %357 = vector.extract_strided_slice %356 {offsets = [0, 0], sizes = [1, 4], strides = [1, 1]} : vector<15x4xf32> to vector<1x4xf32>
    %c1_264 = arith.constant 1 : index
    %c11_265 = arith.constant 11 : index
    %c0_266 = arith.constant 0 : index
    %358 = vector.load %arg9[%c1_264, %c11_265, %c0_266] : memref<2x104x4xf32, #tpu.memory_space<vmem>>, vector<1x1x4xf32>
    %359 = vector.shape_cast %358 : vector<1x1x4xf32> to vector<1x4xf32>
    %360 = vector.shape_cast %357 : vector<1x4xf32> to vector<1x1x4xf32>
    tpu.vector_store %arg9[%c1_264, %c11_265, %c0_266], %360 {strides = array<i32>} : memref<2x104x4xf32, #tpu.memory_space<vmem>>, vector<1x1x4xf32>,
    %361 = vector.extract_strided_slice %356 {offsets = [2, 0], sizes = [1, 4], strides = [1, 1]} : vector<15x4xf32> to vector<1x4xf32>
    %c1_267 = arith.constant 1 : index
    %c12_268 = arith.constant 12 : index
    %c0_269 = arith.constant 0 : index
    %362 = vector.load %arg9[%c1_267, %c12_268, %c0_269] : memref<2x104x4xf32, #tpu.memory_space<vmem>>, vector<1x1x4xf32>
    %363 = vector.shape_cast %362 : vector<1x1x4xf32> to vector<1x4xf32>
    %364 = vector.shape_cast %361 : vector<1x4xf32> to vector<1x1x4xf32>
    tpu.vector_store %arg9[%c1_267, %c12_268, %c0_269], %364 {strides = array<i32>} : memref<2x104x4xf32, #tpu.memory_space<vmem>>, vector<1x1x4xf32>,
    %365 = vector.extract_strided_slice %356 {offsets = [4, 0], sizes = [1, 4], strides = [1, 1]} : vector<15x4xf32> to vector<1x4xf32>
    %c1_270 = arith.constant 1 : index
    %c13_271 = arith.constant 13 : index
    %c0_272 = arith.constant 0 : index
    %366 = vector.load %arg9[%c1_270, %c13_271, %c0_272] : memref<2x104x4xf32, #tpu.memory_space<vmem>>, vector<1x1x4xf32>
    %367 = vector.shape_cast %366 : vector<1x1x4xf32> to vector<1x4xf32>
    %368 = vector.shape_cast %365 : vector<1x4xf32> to vector<1x1x4xf32>
    tpu.vector_store %arg9[%c1_270, %c13_271, %c0_272], %368 {strides = array<i32>} : memref<2x104x4xf32, #tpu.memory_space<vmem>>, vector<1x1x4xf32>,
    %369 = vector.extract_strided_slice %356 {offsets = [6, 0], sizes = [1, 4], strides = [1, 1]} : vector<15x4xf32> to vector<1x4xf32>
    %c1_273 = arith.constant 1 : index
    %c14_274 = arith.constant 14 : index
    %c0_275 = arith.constant 0 : index
    %370 = vector.load %arg9[%c1_273, %c14_274, %c0_275] : memref<2x104x4xf32, #tpu.memory_space<vmem>>, vector<1x1x4xf32>
    %371 = vector.shape_cast %370 : vector<1x1x4xf32> to vector<1x4xf32>
    %372 = vector.shape_cast %369 : vector<1x4xf32> to vector<1x1x4xf32>
    tpu.vector_store %arg9[%c1_273, %c14_274, %c0_275], %372 {strides = array<i32>} : memref<2x104x4xf32, #tpu.memory_space<vmem>>, vector<1x1x4xf32>,
    %373 = vector.extract_strided_slice %356 {offsets = [8, 0], sizes = [1, 4], strides = [1, 1]} : vector<15x4xf32> to vector<1x4xf32>
    %c1_276 = arith.constant 1 : index
    %c15_277 = arith.constant 15 : index
    %c0_278 = arith.constant 0 : index
    %374 = vector.load %arg9[%c1_276, %c15_277, %c0_278] : memref<2x104x4xf32, #tpu.memory_space<vmem>>, vector<1x1x4xf32>
    %375 = vector.shape_cast %374 : vector<1x1x4xf32> to vector<1x4xf32>
    %376 = vector.shape_cast %373 : vector<1x4xf32> to vector<1x1x4xf32>
    tpu.vector_store %arg9[%c1_276, %c15_277, %c0_278], %376 {strides = array<i32>} : memref<2x104x4xf32, #tpu.memory_space<vmem>>, vector<1x1x4xf32>,
    %377 = vector.extract_strided_slice %356 {offsets = [10, 0], sizes = [1, 4], strides = [1, 1]} : vector<15x4xf32> to vector<1x4xf32>
    %c1_279 = arith.constant 1 : index
    %c16_280 = arith.constant 16 : index
    %c0_281 = arith.constant 0 : index
    %378 = vector.load %arg9[%c1_279, %c16_280, %c0_281] : memref<2x104x4xf32, #tpu.memory_space<vmem>>, vector<1x1x4xf32>
    %379 = vector.shape_cast %378 : vector<1x1x4xf32> to vector<1x4xf32>
    %380 = vector.shape_cast %377 : vector<1x4xf32> to vector<1x1x4xf32>
    tpu.vector_store %arg9[%c1_279, %c16_280, %c0_281], %380 {strides = array<i32>} : memref<2x104x4xf32, #tpu.memory_space<vmem>>, vector<1x1x4xf32>,
    %381 = vector.extract_strided_slice %356 {offsets = [12, 0], sizes = [1, 4], strides = [1, 1]} : vector<15x4xf32> to vector<1x4xf32>
    %c1_282 = arith.constant 1 : index
    %c17_283 = arith.constant 17 : index
    %c0_284 = arith.constant 0 : index
    %382 = vector.load %arg9[%c1_282, %c17_283, %c0_284] : memref<2x104x4xf32, #tpu.memory_space<vmem>>, vector<1x1x4xf32>
    %383 = vector.shape_cast %382 : vector<1x1x4xf32> to vector<1x4xf32>
    %384 = vector.shape_cast %381 : vector<1x4xf32> to vector<1x1x4xf32>
    tpu.vector_store %arg9[%c1_282, %c17_283, %c0_284], %384 {strides = array<i32>} : memref<2x104x4xf32, #tpu.memory_space<vmem>>, vector<1x1x4xf32>,
    %385 = vector.extract_strided_slice %356 {offsets = [14, 0], sizes = [1, 4], strides = [1, 1]} : vector<15x4xf32> to vector<1x4xf32>
    %c1_285 = arith.constant 1 : index
    %c18_286 = arith.constant 18 : index
    %c0_287 = arith.constant 0 : index
    %386 = vector.load %arg9[%c1_285, %c18_286, %c0_287] : memref<2x104x4xf32, #tpu.memory_space<vmem>>, vector<1x1x4xf32>
    %387 = vector.shape_cast %386 : vector<1x1x4xf32> to vector<1x4xf32>
    %388 = vector.shape_cast %385 : vector<1x4xf32> to vector<1x1x4xf32>
    tpu.vector_store %arg9[%c1_285, %c18_286, %c0_287], %388 {strides = array<i32>} : memref<2x104x4xf32, #tpu.memory_space<vmem>>, vector<1x1x4xf32>,
    %c1_288 = arith.constant 1 : index
    %c2_289 = arith.constant 2 : index
    %c0_290 = arith.constant 0 : index
    %c0_291 = arith.constant 0 : index
    %389 = vector.load %arg1[%c1_288, %c2_289, %c0_290, %c0_291] : memref<2x16x16x4xf32, #tpu.memory_space<vmem>>, vector<1x1x15x4xf32>
    %390 = vector.shape_cast %389 : vector<1x1x15x4xf32> to vector<15x4xf32>
    %c1_292 = arith.constant 1 : index
    %c2_293 = arith.constant 2 : index
    %c1_294 = arith.constant 1 : index
    %c0_295 = arith.constant 0 : index
    %391 = vector.load %arg1[%c1_292, %c2_293, %c1_294, %c0_295] : memref<2x16x16x4xf32, #tpu.memory_space<vmem>>, vector<1x1x15x4xf32>
    %392 = vector.shape_cast %391 : vector<1x1x15x4xf32> to vector<15x4xf32>
    %393 = arith.maximumf %390, %392 : vector<15x4xf32>
    %c1_296 = arith.constant 1 : index
    %c3_297 = arith.constant 3 : index
    %c0_298 = arith.constant 0 : index
    %c0_299 = arith.constant 0 : index
    %394 = vector.load %arg1[%c1_296, %c3_297, %c0_298, %c0_299] : memref<2x16x16x4xf32, #tpu.memory_space<vmem>>, vector<1x1x15x4xf32>
    %395 = vector.shape_cast %394 : vector<1x1x15x4xf32> to vector<15x4xf32>
    %c1_300 = arith.constant 1 : index
    %c3_301 = arith.constant 3 : index
    %c1_302 = arith.constant 1 : index
    %c0_303 = arith.constant 0 : index
    %396 = vector.load %arg1[%c1_300, %c3_301, %c1_302, %c0_303] : memref<2x16x16x4xf32, #tpu.memory_space<vmem>>, vector<1x1x15x4xf32>
    %397 = vector.shape_cast %396 : vector<1x1x15x4xf32> to vector<15x4xf32>
    %398 = arith.maximumf %395, %397 : vector<15x4xf32>
    %399 = arith.maximumf %393, %398 : vector<15x4xf32>
    %400 = vector.extract_strided_slice %399 {offsets = [0, 0], sizes = [1, 4], strides = [1, 1]} : vector<15x4xf32> to vector<1x4xf32>
    %c1_304 = arith.constant 1 : index
    %c21_305 = arith.constant 21 : index
    %c0_306 = arith.constant 0 : index
    %401 = vector.load %arg9[%c1_304, %c21_305, %c0_306] : memref<2x104x4xf32, #tpu.memory_space<vmem>>, vector<1x1x4xf32>
    %402 = vector.shape_cast %401 : vector<1x1x4xf32> to vector<1x4xf32>
    %403 = vector.shape_cast %400 : vector<1x4xf32> to vector<1x1x4xf32>
    tpu.vector_store %arg9[%c1_304, %c21_305, %c0_306], %403 {strides = array<i32>} : memref<2x104x4xf32, #tpu.memory_space<vmem>>, vector<1x1x4xf32>,
    %404 = vector.extract_strided_slice %399 {offsets = [2, 0], sizes = [1, 4], strides = [1, 1]} : vector<15x4xf32> to vector<1x4xf32>
    %c1_307 = arith.constant 1 : index
    %c22_308 = arith.constant 22 : index
    %c0_309 = arith.constant 0 : index
    %405 = vector.load %arg9[%c1_307, %c22_308, %c0_309] : memref<2x104x4xf32, #tpu.memory_space<vmem>>, vector<1x1x4xf32>
    %406 = vector.shape_cast %405 : vector<1x1x4xf32> to vector<1x4xf32>
    %407 = vector.shape_cast %404 : vector<1x4xf32> to vector<1x1x4xf32>
    tpu.vector_store %arg9[%c1_307, %c22_308, %c0_309], %407 {strides = array<i32>} : memref<2x104x4xf32, #tpu.memory_space<vmem>>, vector<1x1x4xf32>,
    %408 = vector.extract_strided_slice %399 {offsets = [4, 0], sizes = [1, 4], strides = [1, 1]} : vector<15x4xf32> to vector<1x4xf32>
    %c1_310 = arith.constant 1 : index
    %c23_311 = arith.constant 23 : index
    %c0_312 = arith.constant 0 : index
    %409 = vector.load %arg9[%c1_310, %c23_311, %c0_312] : memref<2x104x4xf32, #tpu.memory_space<vmem>>, vector<1x1x4xf32>
    %410 = vector.shape_cast %409 : vector<1x1x4xf32> to vector<1x4xf32>
    %411 = vector.shape_cast %408 : vector<1x4xf32> to vector<1x1x4xf32>
    tpu.vector_store %arg9[%c1_310, %c23_311, %c0_312], %411 {strides = array<i32>} : memref<2x104x4xf32, #tpu.memory_space<vmem>>, vector<1x1x4xf32>,
    %412 = vector.extract_strided_slice %399 {offsets = [6, 0], sizes = [1, 4], strides = [1, 1]} : vector<15x4xf32> to vector<1x4xf32>
    %c1_313 = arith.constant 1 : index
    %c24_314 = arith.constant 24 : index
    %c0_315 = arith.constant 0 : index
    %413 = vector.load %arg9[%c1_313, %c24_314, %c0_315] : memref<2x104x4xf32, #tpu.memory_space<vmem>>, vector<1x1x4xf32>
    %414 = vector.shape_cast %413 : vector<1x1x4xf32> to vector<1x4xf32>
    %415 = vector.shape_cast %412 : vector<1x4xf32> to vector<1x1x4xf32>
    tpu.vector_store %arg9[%c1_313, %c24_314, %c0_315], %415 {strides = array<i32>} : memref<2x104x4xf32, #tpu.memory_space<vmem>>, vector<1x1x4xf32>,
    %416 = vector.extract_strided_slice %399 {offsets = [8, 0], sizes = [1, 4], strides = [1, 1]} : vector<15x4xf32> to vector<1x4xf32>
    %c1_316 = arith.constant 1 : index
    %c25_317 = arith.constant 25 : index
    %c0_318 = arith.constant 0 : index
    %417 = vector.load %arg9[%c1_316, %c25_317, %c0_318] : memref<2x104x4xf32, #tpu.memory_space<vmem>>, vector<1x1x4xf32>
    %418 = vector.shape_cast %417 : vector<1x1x4xf32> to vector<1x4xf32>
    %419 = vector.shape_cast %416 : vector<1x4xf32> to vector<1x1x4xf32>
    tpu.vector_store %arg9[%c1_316, %c25_317, %c0_318], %419 {strides = array<i32>} : memref<2x104x4xf32, #tpu.memory_space<vmem>>, vector<1x1x4xf32>,
    %420 = vector.extract_strided_slice %399 {offsets = [10, 0], sizes = [1, 4], strides = [1, 1]} : vector<15x4xf32> to vector<1x4xf32>
    %c1_319 = arith.constant 1 : index
    %c26_320 = arith.constant 26 : index
    %c0_321 = arith.constant 0 : index
    %421 = vector.load %arg9[%c1_319, %c26_320, %c0_321] : memref<2x104x4xf32, #tpu.memory_space<vmem>>, vector<1x1x4xf32>
    %422 = vector.shape_cast %421 : vector<1x1x4xf32> to vector<1x4xf32>
    %423 = vector.shape_cast %420 : vector<1x4xf32> to vector<1x1x4xf32>
    tpu.vector_store %arg9[%c1_319, %c26_320, %c0_321], %423 {strides = array<i32>} : memref<2x104x4xf32, #tpu.memory_space<vmem>>, vector<1x1x4xf32>,
    %424 = vector.extract_strided_slice %399 {offsets = [12, 0], sizes = [1, 4], strides = [1, 1]} : vector<15x4xf32> to vector<1x4xf32>
    %c1_322 = arith.constant 1 : index
    %c27_323 = arith.constant 27 : index
    %c0_324 = arith.constant 0 : index
    %425 = vector.load %arg9[%c1_322, %c27_323, %c0_324] : memref<2x104x4xf32, #tpu.memory_space<vmem>>, vector<1x1x4xf32>
    %426 = vector.shape_cast %425 : vector<1x1x4xf32> to vector<1x4xf32>
    %427 = vector.shape_cast %424 : vector<1x4xf32> to vector<1x1x4xf32>
    tpu.vector_store %arg9[%c1_322, %c27_323, %c0_324], %427 {strides = array<i32>} : memref<2x104x4xf32, #tpu.memory_space<vmem>>, vector<1x1x4xf32>,
    %428 = vector.extract_strided_slice %399 {offsets = [14, 0], sizes = [1, 4], strides = [1, 1]} : vector<15x4xf32> to vector<1x4xf32>
    %c1_325 = arith.constant 1 : index
    %c28_326 = arith.constant 28 : index
    %c0_327 = arith.constant 0 : index
    %429 = vector.load %arg9[%c1_325, %c28_326, %c0_327] : memref<2x104x4xf32, #tpu.memory_space<vmem>>, vector<1x1x4xf32>
    %430 = vector.shape_cast %429 : vector<1x1x4xf32> to vector<1x4xf32>
    %431 = vector.shape_cast %428 : vector<1x4xf32> to vector<1x1x4xf32>
    tpu.vector_store %arg9[%c1_325, %c28_326, %c0_327], %431 {strides = array<i32>} : memref<2x104x4xf32, #tpu.memory_space<vmem>>, vector<1x1x4xf32>,
    %c1_328 = arith.constant 1 : index
    %c4_329 = arith.constant 4 : index
    %c0_330 = arith.constant 0 : index
    %c0_331 = arith.constant 0 : index
    %432 = vector.load %arg1[%c1_328, %c4_329, %c0_330, %c0_331] : memref<2x16x16x4xf32, #tpu.memory_space<vmem>>, vector<1x1x15x4xf32>
    %433 = vector.shape_cast %432 : vector<1x1x15x4xf32> to vector<15x4xf32>
    %c1_332 = arith.constant 1 : index
    %c4_333 = arith.constant 4 : index
    %c1_334 = arith.constant 1 : index
    %c0_335 = arith.constant 0 : index
    %434 = vector.load %arg1[%c1_332, %c4_333, %c1_334, %c0_335] : memref<2x16x16x4xf32, #tpu.memory_space<vmem>>, vector<1x1x15x4xf32>
    %435 = vector.shape_cast %434 : vector<1x1x15x4xf32> to vector<15x4xf32>
    %436 = arith.maximumf %433, %435 : vector<15x4xf32>
    %c1_336 = arith.constant 1 : index
    %c5_337 = arith.constant 5 : index
    %c0_338 = arith.constant 0 : index
    %c0_339 = arith.constant 0 : index
    %437 = vector.load %arg1[%c1_336, %c5_337, %c0_338, %c0_339] : memref<2x16x16x4xf32, #tpu.memory_space<vmem>>, vector<1x1x15x4xf32>
    %438 = vector.shape_cast %437 : vector<1x1x15x4xf32> to vector<15x4xf32>
    %c1_340 = arith.constant 1 : index
    %c5_341 = arith.constant 5 : index
    %c1_342 = arith.constant 1 : index
    %c0_343 = arith.constant 0 : index
    %439 = vector.load %arg1[%c1_340, %c5_341, %c1_342, %c0_343] : memref<2x16x16x4xf32, #tpu.memory_space<vmem>>, vector<1x1x15x4xf32>
    %440 = vector.shape_cast %439 : vector<1x1x15x4xf32> to vector<15x4xf32>
    %441 = arith.maximumf %438, %440 : vector<15x4xf32>
    %442 = arith.maximumf %436, %441 : vector<15x4xf32>
    %443 = vector.extract_strided_slice %442 {offsets = [0, 0], sizes = [1, 4], strides = [1, 1]} : vector<15x4xf32> to vector<1x4xf32>
    %c1_344 = arith.constant 1 : index
    %c31_345 = arith.constant 31 : index
    %c0_346 = arith.constant 0 : index
    %444 = vector.load %arg9[%c1_344, %c31_345, %c0_346] : memref<2x104x4xf32, #tpu.memory_space<vmem>>, vector<1x1x4xf32>
    %445 = vector.shape_cast %444 : vector<1x1x4xf32> to vector<1x4xf32>
    %446 = vector.shape_cast %443 : vector<1x4xf32> to vector<1x1x4xf32>
    tpu.vector_store %arg9[%c1_344, %c31_345, %c0_346], %446 {strides = array<i32>} : memref<2x104x4xf32, #tpu.memory_space<vmem>>, vector<1x1x4xf32>,
    %447 = vector.extract_strided_slice %442 {offsets = [2, 0], sizes = [1, 4], strides = [1, 1]} : vector<15x4xf32> to vector<1x4xf32>
    %c1_347 = arith.constant 1 : index
    %c32_348 = arith.constant 32 : index
    %c0_349 = arith.constant 0 : index
    %448 = vector.load %arg9[%c1_347, %c32_348, %c0_349] : memref<2x104x4xf32, #tpu.memory_space<vmem>>, vector<1x1x4xf32>
    %449 = vector.shape_cast %448 : vector<1x1x4xf32> to vector<1x4xf32>
    %450 = vector.shape_cast %447 : vector<1x4xf32> to vector<1x1x4xf32>
    tpu.vector_store %arg9[%c1_347, %c32_348, %c0_349], %450 {strides = array<i32>} : memref<2x104x4xf32, #tpu.memory_space<vmem>>, vector<1x1x4xf32>,
    %451 = vector.extract_strided_slice %442 {offsets = [4, 0], sizes = [1, 4], strides = [1, 1]} : vector<15x4xf32> to vector<1x4xf32>
    %c1_350 = arith.constant 1 : index
    %c33_351 = arith.constant 33 : index
    %c0_352 = arith.constant 0 : index
    %452 = vector.load %arg9[%c1_350, %c33_351, %c0_352] : memref<2x104x4xf32, #tpu.memory_space<vmem>>, vector<1x1x4xf32>
    %453 = vector.shape_cast %452 : vector<1x1x4xf32> to vector<1x4xf32>
    %454 = vector.shape_cast %451 : vector<1x4xf32> to vector<1x1x4xf32>
    tpu.vector_store %arg9[%c1_350, %c33_351, %c0_352], %454 {strides = array<i32>} : memref<2x104x4xf32, #tpu.memory_space<vmem>>, vector<1x1x4xf32>,
    %455 = vector.extract_strided_slice %442 {offsets = [6, 0], sizes = [1, 4], strides = [1, 1]} : vector<15x4xf32> to vector<1x4xf32>
    %c1_353 = arith.constant 1 : index
    %c34_354 = arith.constant 34 : index
    %c0_355 = arith.constant 0 : index
    %456 = vector.load %arg9[%c1_353, %c34_354, %c0_355] : memref<2x104x4xf32, #tpu.memory_space<vmem>>, vector<1x1x4xf32>
    %457 = vector.shape_cast %456 : vector<1x1x4xf32> to vector<1x4xf32>
    %458 = vector.shape_cast %455 : vector<1x4xf32> to vector<1x1x4xf32>
    tpu.vector_store %arg9[%c1_353, %c34_354, %c0_355], %458 {strides = array<i32>} : memref<2x104x4xf32, #tpu.memory_space<vmem>>, vector<1x1x4xf32>,
    %459 = vector.extract_strided_slice %442 {offsets = [8, 0], sizes = [1, 4], strides = [1, 1]} : vector<15x4xf32> to vector<1x4xf32>
    %c1_356 = arith.constant 1 : index
    %c35_357 = arith.constant 35 : index
    %c0_358 = arith.constant 0 : index
    %460 = vector.load %arg9[%c1_356, %c35_357, %c0_358] : memref<2x104x4xf32, #tpu.memory_space<vmem>>, vector<1x1x4xf32>
    %461 = vector.shape_cast %460 : vector<1x1x4xf32> to vector<1x4xf32>
    %462 = vector.shape_cast %459 : vector<1x4xf32> to vector<1x1x4xf32>
    tpu.vector_store %arg9[%c1_356, %c35_357, %c0_358], %462 {strides = array<i32>} : memref<2x104x4xf32, #tpu.memory_space<vmem>>, vector<1x1x4xf32>,
    %463 = vector.extract_strided_slice %442 {offsets = [10, 0], sizes = [1, 4], strides = [1, 1]} : vector<15x4xf32> to vector<1x4xf32>
    %c1_359 = arith.constant 1 : index
    %c36_360 = arith.constant 36 : index
    %c0_361 = arith.constant 0 : index
    %464 = vector.load %arg9[%c1_359, %c36_360, %c0_361] : memref<2x104x4xf32, #tpu.memory_space<vmem>>, vector<1x1x4xf32>
    %465 = vector.shape_cast %464 : vector<1x1x4xf32> to vector<1x4xf32>
    %466 = vector.shape_cast %463 : vector<1x4xf32> to vector<1x1x4xf32>
    tpu.vector_store %arg9[%c1_359, %c36_360, %c0_361], %466 {strides = array<i32>} : memref<2x104x4xf32, #tpu.memory_space<vmem>>, vector<1x1x4xf32>,
    %467 = vector.extract_strided_slice %442 {offsets = [12, 0], sizes = [1, 4], strides = [1, 1]} : vector<15x4xf32> to vector<1x4xf32>
    %c1_362 = arith.constant 1 : index
    %c37_363 = arith.constant 37 : index
    %c0_364 = arith.constant 0 : index
    %468 = vector.load %arg9[%c1_362, %c37_363, %c0_364] : memref<2x104x4xf32, #tpu.memory_space<vmem>>, vector<1x1x4xf32>
    %469 = vector.shape_cast %468 : vector<1x1x4xf32> to vector<1x4xf32>
    %470 = vector.shape_cast %467 : vector<1x4xf32> to vector<1x1x4xf32>
    tpu.vector_store %arg9[%c1_362, %c37_363, %c0_364], %470 {strides = array<i32>} : memref<2x104x4xf32, #tpu.memory_space<vmem>>, vector<1x1x4xf32>,
    %471 = vector.extract_strided_slice %442 {offsets = [14, 0], sizes = [1, 4], strides = [1, 1]} : vector<15x4xf32> to vector<1x4xf32>
    %c1_365 = arith.constant 1 : index
    %c38_366 = arith.constant 38 : index
    %c0_367 = arith.constant 0 : index
    %472 = vector.load %arg9[%c1_365, %c38_366, %c0_367] : memref<2x104x4xf32, #tpu.memory_space<vmem>>, vector<1x1x4xf32>
    %473 = vector.shape_cast %472 : vector<1x1x4xf32> to vector<1x4xf32>
    %474 = vector.shape_cast %471 : vector<1x4xf32> to vector<1x1x4xf32>
    tpu.vector_store %arg9[%c1_365, %c38_366, %c0_367], %474 {strides = array<i32>} : memref<2x104x4xf32, #tpu.memory_space<vmem>>, vector<1x1x4xf32>,
    %c1_368 = arith.constant 1 : index
    %c6_369 = arith.constant 6 : index
    %c0_370 = arith.constant 0 : index
    %c0_371 = arith.constant 0 : index
    %475 = vector.load %arg1[%c1_368, %c6_369, %c0_370, %c0_371] : memref<2x16x16x4xf32, #tpu.memory_space<vmem>>, vector<1x1x15x4xf32>
    %476 = vector.shape_cast %475 : vector<1x1x15x4xf32> to vector<15x4xf32>
    %c1_372 = arith.constant 1 : index
    %c6_373 = arith.constant 6 : index
    %c1_374 = arith.constant 1 : index
    %c0_375 = arith.constant 0 : index
    %477 = vector.load %arg1[%c1_372, %c6_373, %c1_374, %c0_375] : memref<2x16x16x4xf32, #tpu.memory_space<vmem>>, vector<1x1x15x4xf32>
    %478 = vector.shape_cast %477 : vector<1x1x15x4xf32> to vector<15x4xf32>
    %479 = arith.maximumf %476, %478 : vector<15x4xf32>
    %c1_376 = arith.constant 1 : index
    %c7_377 = arith.constant 7 : index
    %c0_378 = arith.constant 0 : index
    %c0_379 = arith.constant 0 : index
    %480 = vector.load %arg1[%c1_376, %c7_377, %c0_378, %c0_379] : memref<2x16x16x4xf32, #tpu.memory_space<vmem>>, vector<1x1x15x4xf32>
    %481 = vector.shape_cast %480 : vector<1x1x15x4xf32> to vector<15x4xf32>
    %c1_380 = arith.constant 1 : index
    %c7_381 = arith.constant 7 : index
    %c1_382 = arith.constant 1 : index
    %c0_383 = arith.constant 0 : index
    %482 = vector.load %arg1[%c1_380, %c7_381, %c1_382, %c0_383] : memref<2x16x16x4xf32, #tpu.memory_space<vmem>>, vector<1x1x15x4xf32>
    %483 = vector.shape_cast %482 : vector<1x1x15x4xf32> to vector<15x4xf32>
    %484 = arith.maximumf %481, %483 : vector<15x4xf32>
    %485 = arith.maximumf %479, %484 : vector<15x4xf32>
    %486 = vector.extract_strided_slice %485 {offsets = [0, 0], sizes = [1, 4], strides = [1, 1]} : vector<15x4xf32> to vector<1x4xf32>
    %c1_384 = arith.constant 1 : index
    %c41_385 = arith.constant 41 : index
    %c0_386 = arith.constant 0 : index
    %487 = vector.load %arg9[%c1_384, %c41_385, %c0_386] : memref<2x104x4xf32, #tpu.memory_space<vmem>>, vector<1x1x4xf32>
    %488 = vector.shape_cast %487 : vector<1x1x4xf32> to vector<1x4xf32>
    %489 = vector.shape_cast %486 : vector<1x4xf32> to vector<1x1x4xf32>
    tpu.vector_store %arg9[%c1_384, %c41_385, %c0_386], %489 {strides = array<i32>} : memref<2x104x4xf32, #tpu.memory_space<vmem>>, vector<1x1x4xf32>,
    %490 = vector.extract_strided_slice %485 {offsets = [2, 0], sizes = [1, 4], strides = [1, 1]} : vector<15x4xf32> to vector<1x4xf32>
    %c1_387 = arith.constant 1 : index
    %c42_388 = arith.constant 42 : index
    %c0_389 = arith.constant 0 : index
    %491 = vector.load %arg9[%c1_387, %c42_388, %c0_389] : memref<2x104x4xf32, #tpu.memory_space<vmem>>, vector<1x1x4xf32>
    %492 = vector.shape_cast %491 : vector<1x1x4xf32> to vector<1x4xf32>
    %493 = vector.shape_cast %490 : vector<1x4xf32> to vector<1x1x4xf32>
    tpu.vector_store %arg9[%c1_387, %c42_388, %c0_389], %493 {strides = array<i32>} : memref<2x104x4xf32, #tpu.memory_space<vmem>>, vector<1x1x4xf32>,
    %494 = vector.extract_strided_slice %485 {offsets = [4, 0], sizes = [1, 4], strides = [1, 1]} : vector<15x4xf32> to vector<1x4xf32>
    %c1_390 = arith.constant 1 : index
    %c43_391 = arith.constant 43 : index
    %c0_392 = arith.constant 0 : index
    %495 = vector.load %arg9[%c1_390, %c43_391, %c0_392] : memref<2x104x4xf32, #tpu.memory_space<vmem>>, vector<1x1x4xf32>
    %496 = vector.shape_cast %495 : vector<1x1x4xf32> to vector<1x4xf32>
    %497 = vector.shape_cast %494 : vector<1x4xf32> to vector<1x1x4xf32>
    tpu.vector_store %arg9[%c1_390, %c43_391, %c0_392], %497 {strides = array<i32>} : memref<2x104x4xf32, #tpu.memory_space<vmem>>, vector<1x1x4xf32>,
    %498 = vector.extract_strided_slice %485 {offsets = [6, 0], sizes = [1, 4], strides = [1, 1]} : vector<15x4xf32> to vector<1x4xf32>
    %c1_393 = arith.constant 1 : index
    %c44_394 = arith.constant 44 : index
    %c0_395 = arith.constant 0 : index
    %499 = vector.load %arg9[%c1_393, %c44_394, %c0_395] : memref<2x104x4xf32, #tpu.memory_space<vmem>>, vector<1x1x4xf32>
    %500 = vector.shape_cast %499 : vector<1x1x4xf32> to vector<1x4xf32>
    %501 = vector.shape_cast %498 : vector<1x4xf32> to vector<1x1x4xf32>
    tpu.vector_store %arg9[%c1_393, %c44_394, %c0_395], %501 {strides = array<i32>} : memref<2x104x4xf32, #tpu.memory_space<vmem>>, vector<1x1x4xf32>,
    %502 = vector.extract_strided_slice %485 {offsets = [8, 0], sizes = [1, 4], strides = [1, 1]} : vector<15x4xf32> to vector<1x4xf32>
    %c1_396 = arith.constant 1 : index
    %c45_397 = arith.constant 45 : index
    %c0_398 = arith.constant 0 : index
    %503 = vector.load %arg9[%c1_396, %c45_397, %c0_398] : memref<2x104x4xf32, #tpu.memory_space<vmem>>, vector<1x1x4xf32>
    %504 = vector.shape_cast %503 : vector<1x1x4xf32> to vector<1x4xf32>
    %505 = vector.shape_cast %502 : vector<1x4xf32> to vector<1x1x4xf32>
    tpu.vector_store %arg9[%c1_396, %c45_397, %c0_398], %505 {strides = array<i32>} : memref<2x104x4xf32, #tpu.memory_space<vmem>>, vector<1x1x4xf32>,
    %506 = vector.extract_strided_slice %485 {offsets = [10, 0], sizes = [1, 4], strides = [1, 1]} : vector<15x4xf32> to vector<1x4xf32>
    %c1_399 = arith.constant 1 : index
    %c46_400 = arith.constant 46 : index
    %c0_401 = arith.constant 0 : index
    %507 = vector.load %arg9[%c1_399, %c46_400, %c0_401] : memref<2x104x4xf32, #tpu.memory_space<vmem>>, vector<1x1x4xf32>
    %508 = vector.shape_cast %507 : vector<1x1x4xf32> to vector<1x4xf32>
    %509 = vector.shape_cast %506 : vector<1x4xf32> to vector<1x1x4xf32>
    tpu.vector_store %arg9[%c1_399, %c46_400, %c0_401], %509 {strides = array<i32>} : memref<2x104x4xf32, #tpu.memory_space<vmem>>, vector<1x1x4xf32>,
    %510 = vector.extract_strided_slice %485 {offsets = [12, 0], sizes = [1, 4], strides = [1, 1]} : vector<15x4xf32> to vector<1x4xf32>
    %c1_402 = arith.constant 1 : index
    %c47_403 = arith.constant 47 : index
    %c0_404 = arith.constant 0 : index
    %511 = vector.load %arg9[%c1_402, %c47_403, %c0_404] : memref<2x104x4xf32, #tpu.memory_space<vmem>>, vector<1x1x4xf32>
    %512 = vector.shape_cast %511 : vector<1x1x4xf32> to vector<1x4xf32>
    %513 = vector.shape_cast %510 : vector<1x4xf32> to vector<1x1x4xf32>
    tpu.vector_store %arg9[%c1_402, %c47_403, %c0_404], %513 {strides = array<i32>} : memref<2x104x4xf32, #tpu.memory_space<vmem>>, vector<1x1x4xf32>,
    %514 = vector.extract_strided_slice %485 {offsets = [14, 0], sizes = [1, 4], strides = [1, 1]} : vector<15x4xf32> to vector<1x4xf32>
    %c1_405 = arith.constant 1 : index
    %c48_406 = arith.constant 48 : index
    %c0_407 = arith.constant 0 : index
    %515 = vector.load %arg9[%c1_405, %c48_406, %c0_407] : memref<2x104x4xf32, #tpu.memory_space<vmem>>, vector<1x1x4xf32>
    %516 = vector.shape_cast %515 : vector<1x1x4xf32> to vector<1x4xf32>
    %517 = vector.shape_cast %514 : vector<1x4xf32> to vector<1x1x4xf32>
    tpu.vector_store %arg9[%c1_405, %c48_406, %c0_407], %517 {strides = array<i32>} : memref<2x104x4xf32, #tpu.memory_space<vmem>>, vector<1x1x4xf32>,
    %c1_408 = arith.constant 1 : index
    %c8_409 = arith.constant 8 : index
    %c0_410 = arith.constant 0 : index
    %c0_411 = arith.constant 0 : index
    %518 = vector.load %arg1[%c1_408, %c8_409, %c0_410, %c0_411] : memref<2x16x16x4xf32, #tpu.memory_space<vmem>>, vector<1x1x15x4xf32>
    %519 = vector.shape_cast %518 : vector<1x1x15x4xf32> to vector<15x4xf32>
    %c1_412 = arith.constant 1 : index
    %c8_413 = arith.constant 8 : index
    %c1_414 = arith.constant 1 : index
    %c0_415 = arith.constant 0 : index
    %520 = vector.load %arg1[%c1_412, %c8_413, %c1_414, %c0_415] : memref<2x16x16x4xf32, #tpu.memory_space<vmem>>, vector<1x1x15x4xf32>
    %521 = vector.shape_cast %520 : vector<1x1x15x4xf32> to vector<15x4xf32>
    %522 = arith.maximumf %519, %521 : vector<15x4xf32>
    %c1_416 = arith.constant 1 : index
    %c9_417 = arith.constant 9 : index
    %c0_418 = arith.constant 0 : index
    %c0_419 = arith.constant 0 : index
    %523 = vector.load %arg1[%c1_416, %c9_417, %c0_418, %c0_419] : memref<2x16x16x4xf32, #tpu.memory_space<vmem>>, vector<1x1x15x4xf32>
    %524 = vector.shape_cast %523 : vector<1x1x15x4xf32> to vector<15x4xf32>
    %c1_420 = arith.constant 1 : index
    %c9_421 = arith.constant 9 : index
    %c1_422 = arith.constant 1 : index
    %c0_423 = arith.constant 0 : index
    %525 = vector.load %arg1[%c1_420, %c9_421, %c1_422, %c0_423] : memref<2x16x16x4xf32, #tpu.memory_space<vmem>>, vector<1x1x15x4xf32>
    %526 = vector.shape_cast %525 : vector<1x1x15x4xf32> to vector<15x4xf32>
    %527 = arith.maximumf %524, %526 : vector<15x4xf32>
    %528 = arith.maximumf %522, %527 : vector<15x4xf32>
    %529 = vector.extract_strided_slice %528 {offsets = [0, 0], sizes = [1, 4], strides = [1, 1]} : vector<15x4xf32> to vector<1x4xf32>
    %c1_424 = arith.constant 1 : index
    %c51_425 = arith.constant 51 : index
    %c0_426 = arith.constant 0 : index
    %530 = vector.load %arg9[%c1_424, %c51_425, %c0_426] : memref<2x104x4xf32, #tpu.memory_space<vmem>>, vector<1x1x4xf32>
    %531 = vector.shape_cast %530 : vector<1x1x4xf32> to vector<1x4xf32>
    %532 = vector.shape_cast %529 : vector<1x4xf32> to vector<1x1x4xf32>
    tpu.vector_store %arg9[%c1_424, %c51_425, %c0_426], %532 {strides = array<i32>} : memref<2x104x4xf32, #tpu.memory_space<vmem>>, vector<1x1x4xf32>,
    %533 = vector.extract_strided_slice %528 {offsets = [2, 0], sizes = [1, 4], strides = [1, 1]} : vector<15x4xf32> to vector<1x4xf32>
    %c1_427 = arith.constant 1 : index
    %c52_428 = arith.constant 52 : index
    %c0_429 = arith.constant 0 : index
    %534 = vector.load %arg9[%c1_427, %c52_428, %c0_429] : memref<2x104x4xf32, #tpu.memory_space<vmem>>, vector<1x1x4xf32>
    %535 = vector.shape_cast %534 : vector<1x1x4xf32> to vector<1x4xf32>
    %536 = vector.shape_cast %533 : vector<1x4xf32> to vector<1x1x4xf32>
    tpu.vector_store %arg9[%c1_427, %c52_428, %c0_429], %536 {strides = array<i32>} : memref<2x104x4xf32, #tpu.memory_space<vmem>>, vector<1x1x4xf32>,
    %537 = vector.extract_strided_slice %528 {offsets = [4, 0], sizes = [1, 4], strides = [1, 1]} : vector<15x4xf32> to vector<1x4xf32>
    %c1_430 = arith.constant 1 : index
    %c53_431 = arith.constant 53 : index
    %c0_432 = arith.constant 0 : index
    %538 = vector.load %arg9[%c1_430, %c53_431, %c0_432] : memref<2x104x4xf32, #tpu.memory_space<vmem>>, vector<1x1x4xf32>
    %539 = vector.shape_cast %538 : vector<1x1x4xf32> to vector<1x4xf32>
    %540 = vector.shape_cast %537 : vector<1x4xf32> to vector<1x1x4xf32>
    tpu.vector_store %arg9[%c1_430, %c53_431, %c0_432], %540 {strides = array<i32>} : memref<2x104x4xf32, #tpu.memory_space<vmem>>, vector<1x1x4xf32>,
    %541 = vector.extract_strided_slice %528 {offsets = [6, 0], sizes = [1, 4], strides = [1, 1]} : vector<15x4xf32> to vector<1x4xf32>
    %c1_433 = arith.constant 1 : index
    %c54_434 = arith.constant 54 : index
    %c0_435 = arith.constant 0 : index
    %542 = vector.load %arg9[%c1_433, %c54_434, %c0_435] : memref<2x104x4xf32, #tpu.memory_space<vmem>>, vector<1x1x4xf32>
    %543 = vector.shape_cast %542 : vector<1x1x4xf32> to vector<1x4xf32>
    %544 = vector.shape_cast %541 : vector<1x4xf32> to vector<1x1x4xf32>
    tpu.vector_store %arg9[%c1_433, %c54_434, %c0_435], %544 {strides = array<i32>} : memref<2x104x4xf32, #tpu.memory_space<vmem>>, vector<1x1x4xf32>,
    %545 = vector.extract_strided_slice %528 {offsets = [8, 0], sizes = [1, 4], strides = [1, 1]} : vector<15x4xf32> to vector<1x4xf32>
    %c1_436 = arith.constant 1 : index
    %c55_437 = arith.constant 55 : index
    %c0_438 = arith.constant 0 : index
    %546 = vector.load %arg9[%c1_436, %c55_437, %c0_438] : memref<2x104x4xf32, #tpu.memory_space<vmem>>, vector<1x1x4xf32>
    %547 = vector.shape_cast %546 : vector<1x1x4xf32> to vector<1x4xf32>
    %548 = vector.shape_cast %545 : vector<1x4xf32> to vector<1x1x4xf32>
    tpu.vector_store %arg9[%c1_436, %c55_437, %c0_438], %548 {strides = array<i32>} : memref<2x104x4xf32, #tpu.memory_space<vmem>>, vector<1x1x4xf32>,
    %549 = vector.extract_strided_slice %528 {offsets = [10, 0], sizes = [1, 4], strides = [1, 1]} : vector<15x4xf32> to vector<1x4xf32>
    %c1_439 = arith.constant 1 : index
    %c56_440 = arith.constant 56 : index
    %c0_441 = arith.constant 0 : index
    %550 = vector.load %arg9[%c1_439, %c56_440, %c0_441] : memref<2x104x4xf32, #tpu.memory_space<vmem>>, vector<1x1x4xf32>
    %551 = vector.shape_cast %550 : vector<1x1x4xf32> to vector<1x4xf32>
    %552 = vector.shape_cast %549 : vector<1x4xf32> to vector<1x1x4xf32>
    tpu.vector_store %arg9[%c1_439, %c56_440, %c0_441], %552 {strides = array<i32>} : memref<2x104x4xf32, #tpu.memory_space<vmem>>, vector<1x1x4xf32>,
    %553 = vector.extract_strided_slice %528 {offsets = [12, 0], sizes = [1, 4], strides = [1, 1]} : vector<15x4xf32> to vector<1x4xf32>
    %c1_442 = arith.constant 1 : index
    %c57_443 = arith.constant 57 : index
    %c0_444 = arith.constant 0 : index
    %554 = vector.load %arg9[%c1_442, %c57_443, %c0_444] : memref<2x104x4xf32, #tpu.memory_space<vmem>>, vector<1x1x4xf32>
    %555 = vector.shape_cast %554 : vector<1x1x4xf32> to vector<1x4xf32>
    %556 = vector.shape_cast %553 : vector<1x4xf32> to vector<1x1x4xf32>
    tpu.vector_store %arg9[%c1_442, %c57_443, %c0_444], %556 {strides = array<i32>} : memref<2x104x4xf32, #tpu.memory_space<vmem>>, vector<1x1x4xf32>,
    %557 = vector.extract_strided_slice %528 {offsets = [14, 0], sizes = [1, 4], strides = [1, 1]} : vector<15x4xf32> to vector<1x4xf32>
    %c1_445 = arith.constant 1 : index
    %c58_446 = arith.constant 58 : index
    %c0_447 = arith.constant 0 : index
    %558 = vector.load %arg9[%c1_445, %c58_446, %c0_447] : memref<2x104x4xf32, #tpu.memory_space<vmem>>, vector<1x1x4xf32>
    %559 = vector.shape_cast %558 : vector<1x1x4xf32> to vector<1x4xf32>
    %560 = vector.shape_cast %557 : vector<1x4xf32> to vector<1x1x4xf32>
    tpu.vector_store %arg9[%c1_445, %c58_446, %c0_447], %560 {strides = array<i32>} : memref<2x104x4xf32, #tpu.memory_space<vmem>>, vector<1x1x4xf32>,
    %c1_448 = arith.constant 1 : index
    %c10_449 = arith.constant 10 : index
    %c0_450 = arith.constant 0 : index
    %c0_451 = arith.constant 0 : index
    %561 = vector.load %arg1[%c1_448, %c10_449, %c0_450, %c0_451] : memref<2x16x16x4xf32, #tpu.memory_space<vmem>>, vector<1x1x15x4xf32>
    %562 = vector.shape_cast %561 : vector<1x1x15x4xf32> to vector<15x4xf32>
    %c1_452 = arith.constant 1 : index
    %c10_453 = arith.constant 10 : index
    %c1_454 = arith.constant 1 : index
    %c0_455 = arith.constant 0 : index
    %563 = vector.load %arg1[%c1_452, %c10_453, %c1_454, %c0_455] : memref<2x16x16x4xf32, #tpu.memory_space<vmem>>, vector<1x1x15x4xf32>
    %564 = vector.shape_cast %563 : vector<1x1x15x4xf32> to vector<15x4xf32>
    %565 = arith.maximumf %562, %564 : vector<15x4xf32>
    %c1_456 = arith.constant 1 : index
    %c11_457 = arith.constant 11 : index
    %c0_458 = arith.constant 0 : index
    %c0_459 = arith.constant 0 : index
    %566 = vector.load %arg1[%c1_456, %c11_457, %c0_458, %c0_459] : memref<2x16x16x4xf32, #tpu.memory_space<vmem>>, vector<1x1x15x4xf32>
    %567 = vector.shape_cast %566 : vector<1x1x15x4xf32> to vector<15x4xf32>
    %c1_460 = arith.constant 1 : index
    %c11_461 = arith.constant 11 : index
    %c1_462 = arith.constant 1 : index
    %c0_463 = arith.constant 0 : index
    %568 = vector.load %arg1[%c1_460, %c11_461, %c1_462, %c0_463] : memref<2x16x16x4xf32, #tpu.memory_space<vmem>>, vector<1x1x15x4xf32>
    %569 = vector.shape_cast %568 : vector<1x1x15x4xf32> to vector<15x4xf32>
    %570 = arith.maximumf %567, %569 : vector<15x4xf32>
    %571 = arith.maximumf %565, %570 : vector<15x4xf32>
    %572 = vector.extract_strided_slice %571 {offsets = [0, 0], sizes = [1, 4], strides = [1, 1]} : vector<15x4xf32> to vector<1x4xf32>
    %c1_464 = arith.constant 1 : index
    %c61_465 = arith.constant 61 : index
    %c0_466 = arith.constant 0 : index
    %573 = vector.load %arg9[%c1_464, %c61_465, %c0_466] : memref<2x104x4xf32, #tpu.memory_space<vmem>>, vector<1x1x4xf32>
    %574 = vector.shape_cast %573 : vector<1x1x4xf32> to vector<1x4xf32>
    %575 = vector.shape_cast %572 : vector<1x4xf32> to vector<1x1x4xf32>
    tpu.vector_store %arg9[%c1_464, %c61_465, %c0_466], %575 {strides = array<i32>} : memref<2x104x4xf32, #tpu.memory_space<vmem>>, vector<1x1x4xf32>,
    %576 = vector.extract_strided_slice %571 {offsets = [2, 0], sizes = [1, 4], strides = [1, 1]} : vector<15x4xf32> to vector<1x4xf32>
    %c1_467 = arith.constant 1 : index
    %c62_468 = arith.constant 62 : index
    %c0_469 = arith.constant 0 : index
    %577 = vector.load %arg9[%c1_467, %c62_468, %c0_469] : memref<2x104x4xf32, #tpu.memory_space<vmem>>, vector<1x1x4xf32>
    %578 = vector.shape_cast %577 : vector<1x1x4xf32> to vector<1x4xf32>
    %579 = vector.shape_cast %576 : vector<1x4xf32> to vector<1x1x4xf32>
    tpu.vector_store %arg9[%c1_467, %c62_468, %c0_469], %579 {strides = array<i32>} : memref<2x104x4xf32, #tpu.memory_space<vmem>>, vector<1x1x4xf32>,
    %580 = vector.extract_strided_slice %571 {offsets = [4, 0], sizes = [1, 4], strides = [1, 1]} : vector<15x4xf32> to vector<1x4xf32>
    %c1_470 = arith.constant 1 : index
    %c63_471 = arith.constant 63 : index
    %c0_472 = arith.constant 0 : index
    %581 = vector.load %arg9[%c1_470, %c63_471, %c0_472] : memref<2x104x4xf32, #tpu.memory_space<vmem>>, vector<1x1x4xf32>
    %582 = vector.shape_cast %581 : vector<1x1x4xf32> to vector<1x4xf32>
    %583 = vector.shape_cast %580 : vector<1x4xf32> to vector<1x1x4xf32>
    tpu.vector_store %arg9[%c1_470, %c63_471, %c0_472], %583 {strides = array<i32>} : memref<2x104x4xf32, #tpu.memory_space<vmem>>, vector<1x1x4xf32>,
    %584 = vector.extract_strided_slice %571 {offsets = [6, 0], sizes = [1, 4], strides = [1, 1]} : vector<15x4xf32> to vector<1x4xf32>
    %c1_473 = arith.constant 1 : index
    %c64_474 = arith.constant 64 : index
    %c0_475 = arith.constant 0 : index
    %585 = vector.load %arg9[%c1_473, %c64_474, %c0_475] : memref<2x104x4xf32, #tpu.memory_space<vmem>>, vector<1x1x4xf32>
    %586 = vector.shape_cast %585 : vector<1x1x4xf32> to vector<1x4xf32>
    %587 = vector.shape_cast %584 : vector<1x4xf32> to vector<1x1x4xf32>
    tpu.vector_store %arg9[%c1_473, %c64_474, %c0_475], %587 {strides = array<i32>} : memref<2x104x4xf32, #tpu.memory_space<vmem>>, vector<1x1x4xf32>,
    %588 = vector.extract_strided_slice %571 {offsets = [8, 0], sizes = [1, 4], strides = [1, 1]} : vector<15x4xf32> to vector<1x4xf32>
    %c1_476 = arith.constant 1 : index
    %c65_477 = arith.constant 65 : index
    %c0_478 = arith.constant 0 : index
    %589 = vector.load %arg9[%c1_476, %c65_477, %c0_478] : memref<2x104x4xf32, #tpu.memory_space<vmem>>, vector<1x1x4xf32>
    %590 = vector.shape_cast %589 : vector<1x1x4xf32> to vector<1x4xf32>
    %591 = vector.shape_cast %588 : vector<1x4xf32> to vector<1x1x4xf32>
    tpu.vector_store %arg9[%c1_476, %c65_477, %c0_478], %591 {strides = array<i32>} : memref<2x104x4xf32, #tpu.memory_space<vmem>>, vector<1x1x4xf32>,
    %592 = vector.extract_strided_slice %571 {offsets = [10, 0], sizes = [1, 4], strides = [1, 1]} : vector<15x4xf32> to vector<1x4xf32>
    %c1_479 = arith.constant 1 : index
    %c66_480 = arith.constant 66 : index
    %c0_481 = arith.constant 0 : index
    %593 = vector.load %arg9[%c1_479, %c66_480, %c0_481] : memref<2x104x4xf32, #tpu.memory_space<vmem>>, vector<1x1x4xf32>
    %594 = vector.shape_cast %593 : vector<1x1x4xf32> to vector<1x4xf32>
    %595 = vector.shape_cast %592 : vector<1x4xf32> to vector<1x1x4xf32>
    tpu.vector_store %arg9[%c1_479, %c66_480, %c0_481], %595 {strides = array<i32>} : memref<2x104x4xf32, #tpu.memory_space<vmem>>, vector<1x1x4xf32>,
    %596 = vector.extract_strided_slice %571 {offsets = [12, 0], sizes = [1, 4], strides = [1, 1]} : vector<15x4xf32> to vector<1x4xf32>
    %c1_482 = arith.constant 1 : index
    %c67_483 = arith.constant 67 : index
    %c0_484 = arith.constant 0 : index
    %597 = vector.load %arg9[%c1_482, %c67_483, %c0_484] : memref<2x104x4xf32, #tpu.memory_space<vmem>>, vector<1x1x4xf32>
    %598 = vector.shape_cast %597 : vector<1x1x4xf32> to vector<1x4xf32>
    %599 = vector.shape_cast %596 : vector<1x4xf32> to vector<1x1x4xf32>
    tpu.vector_store %arg9[%c1_482, %c67_483, %c0_484], %599 {strides = array<i32>} : memref<2x104x4xf32, #tpu.memory_space<vmem>>, vector<1x1x4xf32>,
    %600 = vector.extract_strided_slice %571 {offsets = [14, 0], sizes = [1, 4], strides = [1, 1]} : vector<15x4xf32> to vector<1x4xf32>
    %c1_485 = arith.constant 1 : index
    %c68_486 = arith.constant 68 : index
    %c0_487 = arith.constant 0 : index
    %601 = vector.load %arg9[%c1_485, %c68_486, %c0_487] : memref<2x104x4xf32, #tpu.memory_space<vmem>>, vector<1x1x4xf32>
    %602 = vector.shape_cast %601 : vector<1x1x4xf32> to vector<1x4xf32>
    %603 = vector.shape_cast %600 : vector<1x4xf32> to vector<1x1x4xf32>
    tpu.vector_store %arg9[%c1_485, %c68_486, %c0_487], %603 {strides = array<i32>} : memref<2x104x4xf32, #tpu.memory_space<vmem>>, vector<1x1x4xf32>,
    %c1_488 = arith.constant 1 : index
    %c12_489 = arith.constant 12 : index
    %c0_490 = arith.constant 0 : index
    %c0_491 = arith.constant 0 : index
    %604 = vector.load %arg1[%c1_488, %c12_489, %c0_490, %c0_491] : memref<2x16x16x4xf32, #tpu.memory_space<vmem>>, vector<1x1x15x4xf32>
    %605 = vector.shape_cast %604 : vector<1x1x15x4xf32> to vector<15x4xf32>
    %c1_492 = arith.constant 1 : index
    %c12_493 = arith.constant 12 : index
    %c1_494 = arith.constant 1 : index
    %c0_495 = arith.constant 0 : index
    %606 = vector.load %arg1[%c1_492, %c12_493, %c1_494, %c0_495] : memref<2x16x16x4xf32, #tpu.memory_space<vmem>>, vector<1x1x15x4xf32>
    %607 = vector.shape_cast %606 : vector<1x1x15x4xf32> to vector<15x4xf32>
    %608 = arith.maximumf %605, %607 : vector<15x4xf32>
    %c1_496 = arith.constant 1 : index
    %c13_497 = arith.constant 13 : index
    %c0_498 = arith.constant 0 : index
    %c0_499 = arith.constant 0 : index
    %609 = vector.load %arg1[%c1_496, %c13_497, %c0_498, %c0_499] : memref<2x16x16x4xf32, #tpu.memory_space<vmem>>, vector<1x1x15x4xf32>
    %610 = vector.shape_cast %609 : vector<1x1x15x4xf32> to vector<15x4xf32>
    %c1_500 = arith.constant 1 : index
    %c13_501 = arith.constant 13 : index
    %c1_502 = arith.constant 1 : index
    %c0_503 = arith.constant 0 : index
    %611 = vector.load %arg1[%c1_500, %c13_501, %c1_502, %c0_503] : memref<2x16x16x4xf32, #tpu.memory_space<vmem>>, vector<1x1x15x4xf32>
    %612 = vector.shape_cast %611 : vector<1x1x15x4xf32> to vector<15x4xf32>
    %613 = arith.maximumf %610, %612 : vector<15x4xf32>
    %614 = arith.maximumf %608, %613 : vector<15x4xf32>
    %615 = vector.extract_strided_slice %614 {offsets = [0, 0], sizes = [1, 4], strides = [1, 1]} : vector<15x4xf32> to vector<1x4xf32>
    %c1_504 = arith.constant 1 : index
    %c71_505 = arith.constant 71 : index
    %c0_506 = arith.constant 0 : index
    %616 = vector.load %arg9[%c1_504, %c71_505, %c0_506] : memref<2x104x4xf32, #tpu.memory_space<vmem>>, vector<1x1x4xf32>
    %617 = vector.shape_cast %616 : vector<1x1x4xf32> to vector<1x4xf32>
    %618 = vector.shape_cast %615 : vector<1x4xf32> to vector<1x1x4xf32>
    tpu.vector_store %arg9[%c1_504, %c71_505, %c0_506], %618 {strides = array<i32>} : memref<2x104x4xf32, #tpu.memory_space<vmem>>, vector<1x1x4xf32>,
    %619 = vector.extract_strided_slice %614 {offsets = [2, 0], sizes = [1, 4], strides = [1, 1]} : vector<15x4xf32> to vector<1x4xf32>
    %c1_507 = arith.constant 1 : index
    %c72_508 = arith.constant 72 : index
    %c0_509 = arith.constant 0 : index
    %620 = vector.load %arg9[%c1_507, %c72_508, %c0_509] : memref<2x104x4xf32, #tpu.memory_space<vmem>>, vector<1x1x4xf32>
    %621 = vector.shape_cast %620 : vector<1x1x4xf32> to vector<1x4xf32>
    %622 = vector.shape_cast %619 : vector<1x4xf32> to vector<1x1x4xf32>
    tpu.vector_store %arg9[%c1_507, %c72_508, %c0_509], %622 {strides = array<i32>} : memref<2x104x4xf32, #tpu.memory_space<vmem>>, vector<1x1x4xf32>,
    %623 = vector.extract_strided_slice %614 {offsets = [4, 0], sizes = [1, 4], strides = [1, 1]} : vector<15x4xf32> to vector<1x4xf32>
    %c1_510 = arith.constant 1 : index
    %c73_511 = arith.constant 73 : index
    %c0_512 = arith.constant 0 : index
    %624 = vector.load %arg9[%c1_510, %c73_511, %c0_512] : memref<2x104x4xf32, #tpu.memory_space<vmem>>, vector<1x1x4xf32>
    %625 = vector.shape_cast %624 : vector<1x1x4xf32> to vector<1x4xf32>
    %626 = vector.shape_cast %623 : vector<1x4xf32> to vector<1x1x4xf32>
    tpu.vector_store %arg9[%c1_510, %c73_511, %c0_512], %626 {strides = array<i32>} : memref<2x104x4xf32, #tpu.memory_space<vmem>>, vector<1x1x4xf32>,
    %627 = vector.extract_strided_slice %614 {offsets = [6, 0], sizes = [1, 4], strides = [1, 1]} : vector<15x4xf32> to vector<1x4xf32>
    %c1_513 = arith.constant 1 : index
    %c74_514 = arith.constant 74 : index
    %c0_515 = arith.constant 0 : index
    %628 = vector.load %arg9[%c1_513, %c74_514, %c0_515] : memref<2x104x4xf32, #tpu.memory_space<vmem>>, vector<1x1x4xf32>
    %629 = vector.shape_cast %628 : vector<1x1x4xf32> to vector<1x4xf32>
    %630 = vector.shape_cast %627 : vector<1x4xf32> to vector<1x1x4xf32>
    tpu.vector_store %arg9[%c1_513, %c74_514, %c0_515], %630 {strides = array<i32>} : memref<2x104x4xf32, #tpu.memory_space<vmem>>, vector<1x1x4xf32>,
    %631 = vector.extract_strided_slice %614 {offsets = [8, 0], sizes = [1, 4], strides = [1, 1]} : vector<15x4xf32> to vector<1x4xf32>
    %c1_516 = arith.constant 1 : index
    %c75_517 = arith.constant 75 : index
    %c0_518 = arith.constant 0 : index
    %632 = vector.load %arg9[%c1_516, %c75_517, %c0_518] : memref<2x104x4xf32, #tpu.memory_space<vmem>>, vector<1x1x4xf32>
    %633 = vector.shape_cast %632 : vector<1x1x4xf32> to vector<1x4xf32>
    %634 = vector.shape_cast %631 : vector<1x4xf32> to vector<1x1x4xf32>
    tpu.vector_store %arg9[%c1_516, %c75_517, %c0_518], %634 {strides = array<i32>} : memref<2x104x4xf32, #tpu.memory_space<vmem>>, vector<1x1x4xf32>,
    %635 = vector.extract_strided_slice %614 {offsets = [10, 0], sizes = [1, 4], strides = [1, 1]} : vector<15x4xf32> to vector<1x4xf32>
    %c1_519 = arith.constant 1 : index
    %c76_520 = arith.constant 76 : index
    %c0_521 = arith.constant 0 : index
    %636 = vector.load %arg9[%c1_519, %c76_520, %c0_521] : memref<2x104x4xf32, #tpu.memory_space<vmem>>, vector<1x1x4xf32>
    %637 = vector.shape_cast %636 : vector<1x1x4xf32> to vector<1x4xf32>
    %638 = vector.shape_cast %635 : vector<1x4xf32> to vector<1x1x4xf32>
    tpu.vector_store %arg9[%c1_519, %c76_520, %c0_521], %638 {strides = array<i32>} : memref<2x104x4xf32, #tpu.memory_space<vmem>>, vector<1x1x4xf32>,
    %639 = vector.extract_strided_slice %614 {offsets = [12, 0], sizes = [1, 4], strides = [1, 1]} : vector<15x4xf32> to vector<1x4xf32>
    %c1_522 = arith.constant 1 : index
    %c77_523 = arith.constant 77 : index
    %c0_524 = arith.constant 0 : index
    %640 = vector.load %arg9[%c1_522, %c77_523, %c0_524] : memref<2x104x4xf32, #tpu.memory_space<vmem>>, vector<1x1x4xf32>
    %641 = vector.shape_cast %640 : vector<1x1x4xf32> to vector<1x4xf32>
    %642 = vector.shape_cast %639 : vector<1x4xf32> to vector<1x1x4xf32>
    tpu.vector_store %arg9[%c1_522, %c77_523, %c0_524], %642 {strides = array<i32>} : memref<2x104x4xf32, #tpu.memory_space<vmem>>, vector<1x1x4xf32>,
    %643 = vector.extract_strided_slice %614 {offsets = [14, 0], sizes = [1, 4], strides = [1, 1]} : vector<15x4xf32> to vector<1x4xf32>
    %c1_525 = arith.constant 1 : index
    %c78_526 = arith.constant 78 : index
    %c0_527 = arith.constant 0 : index
    %644 = vector.load %arg9[%c1_525, %c78_526, %c0_527] : memref<2x104x4xf32, #tpu.memory_space<vmem>>, vector<1x1x4xf32>
    %645 = vector.shape_cast %644 : vector<1x1x4xf32> to vector<1x4xf32>
    %646 = vector.shape_cast %643 : vector<1x4xf32> to vector<1x1x4xf32>
    tpu.vector_store %arg9[%c1_525, %c78_526, %c0_527], %646 {strides = array<i32>} : memref<2x104x4xf32, #tpu.memory_space<vmem>>, vector<1x1x4xf32>,
    %c1_528 = arith.constant 1 : index
    %c14_529 = arith.constant 14 : index
    %c0_530 = arith.constant 0 : index
    %c0_531 = arith.constant 0 : index
    %647 = vector.load %arg1[%c1_528, %c14_529, %c0_530, %c0_531] : memref<2x16x16x4xf32, #tpu.memory_space<vmem>>, vector<1x1x15x4xf32>
    %648 = vector.shape_cast %647 : vector<1x1x15x4xf32> to vector<15x4xf32>
    %c1_532 = arith.constant 1 : index
    %c14_533 = arith.constant 14 : index
    %c1_534 = arith.constant 1 : index
    %c0_535 = arith.constant 0 : index
    %649 = vector.load %arg1[%c1_532, %c14_533, %c1_534, %c0_535] : memref<2x16x16x4xf32, #tpu.memory_space<vmem>>, vector<1x1x15x4xf32>
    %650 = vector.shape_cast %649 : vector<1x1x15x4xf32> to vector<15x4xf32>
    %651 = arith.maximumf %648, %650 : vector<15x4xf32>
    %c1_536 = arith.constant 1 : index
    %c15_537 = arith.constant 15 : index
    %c0_538 = arith.constant 0 : index
    %c0_539 = arith.constant 0 : index
    %652 = vector.load %arg1[%c1_536, %c15_537, %c0_538, %c0_539] : memref<2x16x16x4xf32, #tpu.memory_space<vmem>>, vector<1x1x15x4xf32>
    %653 = vector.shape_cast %652 : vector<1x1x15x4xf32> to vector<15x4xf32>
    %c1_540 = arith.constant 1 : index
    %c15_541 = arith.constant 15 : index
    %c1_542 = arith.constant 1 : index
    %c0_543 = arith.constant 0 : index
    %654 = vector.load %arg1[%c1_540, %c15_541, %c1_542, %c0_543] : memref<2x16x16x4xf32, #tpu.memory_space<vmem>>, vector<1x1x15x4xf32>
    %655 = vector.shape_cast %654 : vector<1x1x15x4xf32> to vector<15x4xf32>
    %656 = arith.maximumf %653, %655 : vector<15x4xf32>
    %657 = arith.maximumf %651, %656 : vector<15x4xf32>
    %658 = vector.extract_strided_slice %657 {offsets = [0, 0], sizes = [1, 4], strides = [1, 1]} : vector<15x4xf32> to vector<1x4xf32>
    %c1_544 = arith.constant 1 : index
    %c81_545 = arith.constant 81 : index
    %c0_546 = arith.constant 0 : index
    %659 = vector.load %arg9[%c1_544, %c81_545, %c0_546] : memref<2x104x4xf32, #tpu.memory_space<vmem>>, vector<1x1x4xf32>
    %660 = vector.shape_cast %659 : vector<1x1x4xf32> to vector<1x4xf32>
    %661 = vector.shape_cast %658 : vector<1x4xf32> to vector<1x1x4xf32>
    tpu.vector_store %arg9[%c1_544, %c81_545, %c0_546], %661 {strides = array<i32>} : memref<2x104x4xf32, #tpu.memory_space<vmem>>, vector<1x1x4xf32>,
    %662 = vector.extract_strided_slice %657 {offsets = [2, 0], sizes = [1, 4], strides = [1, 1]} : vector<15x4xf32> to vector<1x4xf32>
    %c1_547 = arith.constant 1 : index
    %c82_548 = arith.constant 82 : index
    %c0_549 = arith.constant 0 : index
    %663 = vector.load %arg9[%c1_547, %c82_548, %c0_549] : memref<2x104x4xf32, #tpu.memory_space<vmem>>, vector<1x1x4xf32>
    %664 = vector.shape_cast %663 : vector<1x1x4xf32> to vector<1x4xf32>
    %665 = vector.shape_cast %662 : vector<1x4xf32> to vector<1x1x4xf32>
    tpu.vector_store %arg9[%c1_547, %c82_548, %c0_549], %665 {strides = array<i32>} : memref<2x104x4xf32, #tpu.memory_space<vmem>>, vector<1x1x4xf32>,
    %666 = vector.extract_strided_slice %657 {offsets = [4, 0], sizes = [1, 4], strides = [1, 1]} : vector<15x4xf32> to vector<1x4xf32>
    %c1_550 = arith.constant 1 : index
    %c83_551 = arith.constant 83 : index
    %c0_552 = arith.constant 0 : index
    %667 = vector.load %arg9[%c1_550, %c83_551, %c0_552] : memref<2x104x4xf32, #tpu.memory_space<vmem>>, vector<1x1x4xf32>
    %668 = vector.shape_cast %667 : vector<1x1x4xf32> to vector<1x4xf32>
    %669 = vector.shape_cast %666 : vector<1x4xf32> to vector<1x1x4xf32>
    tpu.vector_store %arg9[%c1_550, %c83_551, %c0_552], %669 {strides = array<i32>} : memref<2x104x4xf32, #tpu.memory_space<vmem>>, vector<1x1x4xf32>,
    %670 = vector.extract_strided_slice %657 {offsets = [6, 0], sizes = [1, 4], strides = [1, 1]} : vector<15x4xf32> to vector<1x4xf32>
    %c1_553 = arith.constant 1 : index
    %c84_554 = arith.constant 84 : index
    %c0_555 = arith.constant 0 : index
    %671 = vector.load %arg9[%c1_553, %c84_554, %c0_555] : memref<2x104x4xf32, #tpu.memory_space<vmem>>, vector<1x1x4xf32>
    %672 = vector.shape_cast %671 : vector<1x1x4xf32> to vector<1x4xf32>
    %673 = vector.shape_cast %670 : vector<1x4xf32> to vector<1x1x4xf32>
    tpu.vector_store %arg9[%c1_553, %c84_554, %c0_555], %673 {strides = array<i32>} : memref<2x104x4xf32, #tpu.memory_space<vmem>>, vector<1x1x4xf32>,
    %674 = vector.extract_strided_slice %657 {offsets = [8, 0], sizes = [1, 4], strides = [1, 1]} : vector<15x4xf32> to vector<1x4xf32>
    %c1_556 = arith.constant 1 : index
    %c85_557 = arith.constant 85 : index
    %c0_558 = arith.constant 0 : index
    %675 = vector.load %arg9[%c1_556, %c85_557, %c0_558] : memref<2x104x4xf32, #tpu.memory_space<vmem>>, vector<1x1x4xf32>
    %676 = vector.shape_cast %675 : vector<1x1x4xf32> to vector<1x4xf32>
    %677 = vector.shape_cast %674 : vector<1x4xf32> to vector<1x1x4xf32>
    tpu.vector_store %arg9[%c1_556, %c85_557, %c0_558], %677 {strides = array<i32>} : memref<2x104x4xf32, #tpu.memory_space<vmem>>, vector<1x1x4xf32>,
    %678 = vector.extract_strided_slice %657 {offsets = [10, 0], sizes = [1, 4], strides = [1, 1]} : vector<15x4xf32> to vector<1x4xf32>
    %c1_559 = arith.constant 1 : index
    %c86_560 = arith.constant 86 : index
    %c0_561 = arith.constant 0 : index
    %679 = vector.load %arg9[%c1_559, %c86_560, %c0_561] : memref<2x104x4xf32, #tpu.memory_space<vmem>>, vector<1x1x4xf32>
    %680 = vector.shape_cast %679 : vector<1x1x4xf32> to vector<1x4xf32>
    %681 = vector.shape_cast %678 : vector<1x4xf32> to vector<1x1x4xf32>
    tpu.vector_store %arg9[%c1_559, %c86_560, %c0_561], %681 {strides = array<i32>} : memref<2x104x4xf32, #tpu.memory_space<vmem>>, vector<1x1x4xf32>,
    %682 = vector.extract_strided_slice %657 {offsets = [12, 0], sizes = [1, 4], strides = [1, 1]} : vector<15x4xf32> to vector<1x4xf32>
    %c1_562 = arith.constant 1 : index
    %c87_563 = arith.constant 87 : index
    %c0_564 = arith.constant 0 : index
    %683 = vector.load %arg9[%c1_562, %c87_563, %c0_564] : memref<2x104x4xf32, #tpu.memory_space<vmem>>, vector<1x1x4xf32>
    %684 = vector.shape_cast %683 : vector<1x1x4xf32> to vector<1x4xf32>
    %685 = vector.shape_cast %682 : vector<1x4xf32> to vector<1x1x4xf32>
    tpu.vector_store %arg9[%c1_562, %c87_563, %c0_564], %685 {strides = array<i32>} : memref<2x104x4xf32, #tpu.memory_space<vmem>>, vector<1x1x4xf32>,
    %686 = vector.extract_strided_slice %657 {offsets = [14, 0], sizes = [1, 4], strides = [1, 1]} : vector<15x4xf32> to vector<1x4xf32>
    %c1_565 = arith.constant 1 : index
    %c88_566 = arith.constant 88 : index
    %c0_567 = arith.constant 0 : index
    %687 = vector.load %arg9[%c1_565, %c88_566, %c0_567] : memref<2x104x4xf32, #tpu.memory_space<vmem>>, vector<1x1x4xf32>
    %688 = vector.shape_cast %687 : vector<1x1x4xf32> to vector<1x4xf32>
    %689 = vector.shape_cast %686 : vector<1x4xf32> to vector<1x1x4xf32>
    tpu.vector_store %arg9[%c1_565, %c88_566, %c0_567], %689 {strides = array<i32>} : memref<2x104x4xf32, #tpu.memory_space<vmem>>, vector<1x1x4xf32>,
    %cst_568 = arith.constant 0.000000e+00 : f32
    %690 = vector.broadcast %cst_568 : f32 to vector<80x8xf32>
    %c0_569 = arith.constant 0 : index
    %c0_570 = arith.constant 0 : index
    %c0_571 = arith.constant 0 : index
    %691 = vector.load %arg9[%c0_569, %c0_570, %c0_571] : memref<2x104x4xf32, #tpu.memory_space<vmem>>, vector<1x80x4xf32>
    %692 = vector.shape_cast %691 : vector<1x80x4xf32> to vector<80x4xf32>
    %c0_572 = arith.constant 0 : index
    %c0_573 = arith.constant 0 : index
    %c0_574 = arith.constant 0 : index
    %693 = vector.load %arg2[%c0_572, %c0_573, %c0_574] : memref<9x4x8xf32, #tpu.memory_space<vmem>>, vector<1x4x8xf32>
    %694 = vector.shape_cast %693 : vector<1x4x8xf32> to vector<4x8xf32>
    %cst_575 = arith.constant dense<0.000000e+00> : vector<80x8xf32>
    %695 = tpu.matmul %692, %694, %cst_575 {dimension_numbers = #tpu.dot_dimension_numbers<[1], [0], [0], [1], [0, 0, 1, 1], [], []>} : vector<80x4xf32>, vector<4x8xf32>, vector<80x8xf32> -> vector<80x8xf32>
    %696 = arith.addf %690, %695 : vector<80x8xf32>
    %c0_576 = arith.constant 0 : index
    %c1_577 = arith.constant 1 : index
    %c0_578 = arith.constant 0 : index
    %697 = vector.load %arg9[%c0_576, %c1_577, %c0_578] : memref<2x104x4xf32, #tpu.memory_space<vmem>>, vector<1x80x4xf32>
    %698 = vector.shape_cast %697 : vector<1x80x4xf32> to vector<80x4xf32>
    %c1_579 = arith.constant 1 : index
    %c0_580 = arith.constant 0 : index
    %c0_581 = arith.constant 0 : index
    %699 = vector.load %arg2[%c1_579, %c0_580, %c0_581] : memref<9x4x8xf32, #tpu.memory_space<vmem>>, vector<1x4x8xf32>
    %700 = vector.shape_cast %699 : vector<1x4x8xf32> to vector<4x8xf32>
    %cst_582 = arith.constant dense<0.000000e+00> : vector<80x8xf32>
    %701 = tpu.matmul %698, %700, %cst_582 {dimension_numbers = #tpu.dot_dimension_numbers<[1], [0], [0], [1], [0, 0, 1, 1], [], []>} : vector<80x4xf32>, vector<4x8xf32>, vector<80x8xf32> -> vector<80x8xf32>
    %702 = arith.addf %696, %701 : vector<80x8xf32>
    %c0_583 = arith.constant 0 : index
    %c2_584 = arith.constant 2 : index
    %c0_585 = arith.constant 0 : index
    %703 = vector.load %arg9[%c0_583, %c2_584, %c0_585] : memref<2x104x4xf32, #tpu.memory_space<vmem>>, vector<1x80x4xf32>
    %704 = vector.shape_cast %703 : vector<1x80x4xf32> to vector<80x4xf32>
    %c2_586 = arith.constant 2 : index
    %c0_587 = arith.constant 0 : index
    %c0_588 = arith.constant 0 : index
    %705 = vector.load %arg2[%c2_586, %c0_587, %c0_588] : memref<9x4x8xf32, #tpu.memory_space<vmem>>, vector<1x4x8xf32>
    %706 = vector.shape_cast %705 : vector<1x4x8xf32> to vector<4x8xf32>
    %cst_589 = arith.constant dense<0.000000e+00> : vector<80x8xf32>
    %707 = tpu.matmul %704, %706, %cst_589 {dimension_numbers = #tpu.dot_dimension_numbers<[1], [0], [0], [1], [0, 0, 1, 1], [], []>} : vector<80x4xf32>, vector<4x8xf32>, vector<80x8xf32> -> vector<80x8xf32>
    %708 = arith.addf %702, %707 : vector<80x8xf32>
    %c0_590 = arith.constant 0 : index
    %c10_591 = arith.constant 10 : index
    %c0_592 = arith.constant 0 : index
    %709 = vector.load %arg9[%c0_590, %c10_591, %c0_592] : memref<2x104x4xf32, #tpu.memory_space<vmem>>, vector<1x80x4xf32>
    %710 = vector.shape_cast %709 : vector<1x80x4xf32> to vector<80x4xf32>
    %c3_593 = arith.constant 3 : index
    %c0_594 = arith.constant 0 : index
    %c0_595 = arith.constant 0 : index
    %711 = vector.load %arg2[%c3_593, %c0_594, %c0_595] : memref<9x4x8xf32, #tpu.memory_space<vmem>>, vector<1x4x8xf32>
    %712 = vector.shape_cast %711 : vector<1x4x8xf32> to vector<4x8xf32>
    %cst_596 = arith.constant dense<0.000000e+00> : vector<80x8xf32>
    %713 = tpu.matmul %710, %712, %cst_596 {dimension_numbers = #tpu.dot_dimension_numbers<[1], [0], [0], [1], [0, 0, 1, 1], [], []>} : vector<80x4xf32>, vector<4x8xf32>, vector<80x8xf32> -> vector<80x8xf32>
    %714 = arith.addf %708, %713 : vector<80x8xf32>
    %c0_597 = arith.constant 0 : index
    %c11_598 = arith.constant 11 : index
    %c0_599 = arith.constant 0 : index
    %715 = vector.load %arg9[%c0_597, %c11_598, %c0_599] : memref<2x104x4xf32, #tpu.memory_space<vmem>>, vector<1x80x4xf32>
    %716 = vector.shape_cast %715 : vector<1x80x4xf32> to vector<80x4xf32>
    %c4_600 = arith.constant 4 : index
    %c0_601 = arith.constant 0 : index
    %c0_602 = arith.constant 0 : index
    %717 = vector.load %arg2[%c4_600, %c0_601, %c0_602] : memref<9x4x8xf32, #tpu.memory_space<vmem>>, vector<1x4x8xf32>
    %718 = vector.shape_cast %717 : vector<1x4x8xf32> to vector<4x8xf32>
    %cst_603 = arith.constant dense<0.000000e+00> : vector<80x8xf32>
    %719 = tpu.matmul %716, %718, %cst_603 {dimension_numbers = #tpu.dot_dimension_numbers<[1], [0], [0], [1], [0, 0, 1, 1], [], []>} : vector<80x4xf32>, vector<4x8xf32>, vector<80x8xf32> -> vector<80x8xf32>
    %720 = arith.addf %714, %719 : vector<80x8xf32>
    %c0_604 = arith.constant 0 : index
    %c12_605 = arith.constant 12 : index
    %c0_606 = arith.constant 0 : index
    %721 = vector.load %arg9[%c0_604, %c12_605, %c0_606] : memref<2x104x4xf32, #tpu.memory_space<vmem>>, vector<1x80x4xf32>
    %722 = vector.shape_cast %721 : vector<1x80x4xf32> to vector<80x4xf32>
    %c5_607 = arith.constant 5 : index
    %c0_608 = arith.constant 0 : index
    %c0_609 = arith.constant 0 : index
    %723 = vector.load %arg2[%c5_607, %c0_608, %c0_609] : memref<9x4x8xf32, #tpu.memory_space<vmem>>, vector<1x4x8xf32>
    %724 = vector.shape_cast %723 : vector<1x4x8xf32> to vector<4x8xf32>
    %cst_610 = arith.constant dense<0.000000e+00> : vector<80x8xf32>
    %725 = tpu.matmul %722, %724, %cst_610 {dimension_numbers = #tpu.dot_dimension_numbers<[1], [0], [0], [1], [0, 0, 1, 1], [], []>} : vector<80x4xf32>, vector<4x8xf32>, vector<80x8xf32> -> vector<80x8xf32>
    %726 = arith.addf %720, %725 : vector<80x8xf32>
    %c0_611 = arith.constant 0 : index
    %c20 = arith.constant 20 : index
    %c0_612 = arith.constant 0 : index
    %727 = vector.load %arg9[%c0_611, %c20, %c0_612] : memref<2x104x4xf32, #tpu.memory_space<vmem>>, vector<1x80x4xf32>
    %728 = vector.shape_cast %727 : vector<1x80x4xf32> to vector<80x4xf32>
    %c6_613 = arith.constant 6 : index
    %c0_614 = arith.constant 0 : index
    %c0_615 = arith.constant 0 : index
    %729 = vector.load %arg2[%c6_613, %c0_614, %c0_615] : memref<9x4x8xf32, #tpu.memory_space<vmem>>, vector<1x4x8xf32>
    %730 = vector.shape_cast %729 : vector<1x4x8xf32> to vector<4x8xf32>
    %cst_616 = arith.constant dense<0.000000e+00> : vector<80x8xf32>
    %731 = tpu.matmul %728, %730, %cst_616 {dimension_numbers = #tpu.dot_dimension_numbers<[1], [0], [0], [1], [0, 0, 1, 1], [], []>} : vector<80x4xf32>, vector<4x8xf32>, vector<80x8xf32> -> vector<80x8xf32>
    %732 = arith.addf %726, %731 : vector<80x8xf32>
    %c0_617 = arith.constant 0 : index
    %c21_618 = arith.constant 21 : index
    %c0_619 = arith.constant 0 : index
    %733 = vector.load %arg9[%c0_617, %c21_618, %c0_619] : memref<2x104x4xf32, #tpu.memory_space<vmem>>, vector<1x80x4xf32>
    %734 = vector.shape_cast %733 : vector<1x80x4xf32> to vector<80x4xf32>
    %c7_620 = arith.constant 7 : index
    %c0_621 = arith.constant 0 : index
    %c0_622 = arith.constant 0 : index
    %735 = vector.load %arg2[%c7_620, %c0_621, %c0_622] : memref<9x4x8xf32, #tpu.memory_space<vmem>>, vector<1x4x8xf32>
    %736 = vector.shape_cast %735 : vector<1x4x8xf32> to vector<4x8xf32>
    %cst_623 = arith.constant dense<0.000000e+00> : vector<80x8xf32>
    %737 = tpu.matmul %734, %736, %cst_623 {dimension_numbers = #tpu.dot_dimension_numbers<[1], [0], [0], [1], [0, 0, 1, 1], [], []>} : vector<80x4xf32>, vector<4x8xf32>, vector<80x8xf32> -> vector<80x8xf32>
    %738 = arith.addf %732, %737 : vector<80x8xf32>
    %c0_624 = arith.constant 0 : index
    %c22_625 = arith.constant 22 : index
    %c0_626 = arith.constant 0 : index
    %739 = vector.load %arg9[%c0_624, %c22_625, %c0_626] : memref<2x104x4xf32, #tpu.memory_space<vmem>>, vector<1x80x4xf32>
    %740 = vector.shape_cast %739 : vector<1x80x4xf32> to vector<80x4xf32>
    %c8_627 = arith.constant 8 : index
    %c0_628 = arith.constant 0 : index
    %c0_629 = arith.constant 0 : index
    %741 = vector.load %arg2[%c8_627, %c0_628, %c0_629] : memref<9x4x8xf32, #tpu.memory_space<vmem>>, vector<1x4x8xf32>
    %742 = vector.shape_cast %741 : vector<1x4x8xf32> to vector<4x8xf32>
    %cst_630 = arith.constant dense<0.000000e+00> : vector<80x8xf32>
    %743 = tpu.matmul %740, %742, %cst_630 {dimension_numbers = #tpu.dot_dimension_numbers<[1], [0], [0], [1], [0, 0, 1, 1], [], []>} : vector<80x4xf32>, vector<4x8xf32>, vector<80x8xf32> -> vector<80x8xf32>
    %744 = arith.addf %738, %743 : vector<80x8xf32>
    %c0_631 = arith.constant 0 : index
    %c0_632 = arith.constant 0 : index
    %c0_633 = arith.constant 0 : index
    %745 = vector.load %arg10[%c0_631, %c0_632, %c0_633] : memref<2x80x8xf32, #tpu.memory_space<vmem>>, vector<1x80x8xf32>
    %746 = vector.shape_cast %745 : vector<1x80x8xf32> to vector<80x8xf32>
    %747 = vector.shape_cast %744 : vector<80x8xf32> to vector<1x80x8xf32>
    tpu.vector_store %arg10[%c0_631, %c0_632, %c0_633], %747 {strides = array<i32>} : memref<2x80x8xf32, #tpu.memory_space<vmem>>, vector<1x80x8xf32>,
    %cst_634 = arith.constant 0.000000e+00 : f32
    %748 = vector.broadcast %cst_634 : f32 to vector<80x8xf32>
    %c1_635 = arith.constant 1 : index
    %c0_636 = arith.constant 0 : index
    %c0_637 = arith.constant 0 : index
    %749 = vector.load %arg9[%c1_635, %c0_636, %c0_637] : memref<2x104x4xf32, #tpu.memory_space<vmem>>, vector<1x80x4xf32>
    %750 = vector.shape_cast %749 : vector<1x80x4xf32> to vector<80x4xf32>
    %c0_638 = arith.constant 0 : index
    %c0_639 = arith.constant 0 : index
    %c0_640 = arith.constant 0 : index
    %751 = vector.load %arg2[%c0_638, %c0_639, %c0_640] : memref<9x4x8xf32, #tpu.memory_space<vmem>>, vector<1x4x8xf32>
    %752 = vector.shape_cast %751 : vector<1x4x8xf32> to vector<4x8xf32>
    %cst_641 = arith.constant dense<0.000000e+00> : vector<80x8xf32>
    %753 = tpu.matmul %750, %752, %cst_641 {dimension_numbers = #tpu.dot_dimension_numbers<[1], [0], [0], [1], [0, 0, 1, 1], [], []>} : vector<80x4xf32>, vector<4x8xf32>, vector<80x8xf32> -> vector<80x8xf32>
    %754 = arith.addf %748, %753 : vector<80x8xf32>
    %c1_642 = arith.constant 1 : index
    %c1_643 = arith.constant 1 : index
    %c0_644 = arith.constant 0 : index
    %755 = vector.load %arg9[%c1_642, %c1_643, %c0_644] : memref<2x104x4xf32, #tpu.memory_space<vmem>>, vector<1x80x4xf32>
    %756 = vector.shape_cast %755 : vector<1x80x4xf32> to vector<80x4xf32>
    %c1_645 = arith.constant 1 : index
    %c0_646 = arith.constant 0 : index
    %c0_647 = arith.constant 0 : index
    %757 = vector.load %arg2[%c1_645, %c0_646, %c0_647] : memref<9x4x8xf32, #tpu.memory_space<vmem>>, vector<1x4x8xf32>
    %758 = vector.shape_cast %757 : vector<1x4x8xf32> to vector<4x8xf32>
    %cst_648 = arith.constant dense<0.000000e+00> : vector<80x8xf32>
    %759 = tpu.matmul %756, %758, %cst_648 {dimension_numbers = #tpu.dot_dimension_numbers<[1], [0], [0], [1], [0, 0, 1, 1], [], []>} : vector<80x4xf32>, vector<4x8xf32>, vector<80x8xf32> -> vector<80x8xf32>
    %760 = arith.addf %754, %759 : vector<80x8xf32>
    %c1_649 = arith.constant 1 : index
    %c2_650 = arith.constant 2 : index
    %c0_651 = arith.constant 0 : index
    %761 = vector.load %arg9[%c1_649, %c2_650, %c0_651] : memref<2x104x4xf32, #tpu.memory_space<vmem>>, vector<1x80x4xf32>
    %762 = vector.shape_cast %761 : vector<1x80x4xf32> to vector<80x4xf32>
    %c2_652 = arith.constant 2 : index
    %c0_653 = arith.constant 0 : index
    %c0_654 = arith.constant 0 : index
    %763 = vector.load %arg2[%c2_652, %c0_653, %c0_654] : memref<9x4x8xf32, #tpu.memory_space<vmem>>, vector<1x4x8xf32>
    %764 = vector.shape_cast %763 : vector<1x4x8xf32> to vector<4x8xf32>
    %cst_655 = arith.constant dense<0.000000e+00> : vector<80x8xf32>
    %765 = tpu.matmul %762, %764, %cst_655 {dimension_numbers = #tpu.dot_dimension_numbers<[1], [0], [0], [1], [0, 0, 1, 1], [], []>} : vector<80x4xf32>, vector<4x8xf32>, vector<80x8xf32> -> vector<80x8xf32>
    %766 = arith.addf %760, %765 : vector<80x8xf32>
    %c1_656 = arith.constant 1 : index
    %c10_657 = arith.constant 10 : index
    %c0_658 = arith.constant 0 : index
    %767 = vector.load %arg9[%c1_656, %c10_657, %c0_658] : memref<2x104x4xf32, #tpu.memory_space<vmem>>, vector<1x80x4xf32>
    %768 = vector.shape_cast %767 : vector<1x80x4xf32> to vector<80x4xf32>
    %c3_659 = arith.constant 3 : index
    %c0_660 = arith.constant 0 : index
    %c0_661 = arith.constant 0 : index
    %769 = vector.load %arg2[%c3_659, %c0_660, %c0_661] : memref<9x4x8xf32, #tpu.memory_space<vmem>>, vector<1x4x8xf32>
    %770 = vector.shape_cast %769 : vector<1x4x8xf32> to vector<4x8xf32>
    %cst_662 = arith.constant dense<0.000000e+00> : vector<80x8xf32>
    %771 = tpu.matmul %768, %770, %cst_662 {dimension_numbers = #tpu.dot_dimension_numbers<[1], [0], [0], [1], [0, 0, 1, 1], [], []>} : vector<80x4xf32>, vector<4x8xf32>, vector<80x8xf32> -> vector<80x8xf32>
    %772 = arith.addf %766, %771 : vector<80x8xf32>
    %c1_663 = arith.constant 1 : index
    %c11_664 = arith.constant 11 : index
    %c0_665 = arith.constant 0 : index
    %773 = vector.load %arg9[%c1_663, %c11_664, %c0_665] : memref<2x104x4xf32, #tpu.memory_space<vmem>>, vector<1x80x4xf32>
    %774 = vector.shape_cast %773 : vector<1x80x4xf32> to vector<80x4xf32>
    %c4_666 = arith.constant 4 : index
    %c0_667 = arith.constant 0 : index
    %c0_668 = arith.constant 0 : index
    %775 = vector.load %arg2[%c4_666, %c0_667, %c0_668] : memref<9x4x8xf32, #tpu.memory_space<vmem>>, vector<1x4x8xf32>
    %776 = vector.shape_cast %775 : vector<1x4x8xf32> to vector<4x8xf32>
    %cst_669 = arith.constant dense<0.000000e+00> : vector<80x8xf32>
    %777 = tpu.matmul %774, %776, %cst_669 {dimension_numbers = #tpu.dot_dimension_numbers<[1], [0], [0], [1], [0, 0, 1, 1], [], []>} : vector<80x4xf32>, vector<4x8xf32>, vector<80x8xf32> -> vector<80x8xf32>
    %778 = arith.addf %772, %777 : vector<80x8xf32>
    %c1_670 = arith.constant 1 : index
    %c12_671 = arith.constant 12 : index
    %c0_672 = arith.constant 0 : index
    %779 = vector.load %arg9[%c1_670, %c12_671, %c0_672] : memref<2x104x4xf32, #tpu.memory_space<vmem>>, vector<1x80x4xf32>
    %780 = vector.shape_cast %779 : vector<1x80x4xf32> to vector<80x4xf32>
    %c5_673 = arith.constant 5 : index
    %c0_674 = arith.constant 0 : index
    %c0_675 = arith.constant 0 : index
    %781 = vector.load %arg2[%c5_673, %c0_674, %c0_675] : memref<9x4x8xf32, #tpu.memory_space<vmem>>, vector<1x4x8xf32>
    %782 = vector.shape_cast %781 : vector<1x4x8xf32> to vector<4x8xf32>
    %cst_676 = arith.constant dense<0.000000e+00> : vector<80x8xf32>
    %783 = tpu.matmul %780, %782, %cst_676 {dimension_numbers = #tpu.dot_dimension_numbers<[1], [0], [0], [1], [0, 0, 1, 1], [], []>} : vector<80x4xf32>, vector<4x8xf32>, vector<80x8xf32> -> vector<80x8xf32>
    %784 = arith.addf %778, %783 : vector<80x8xf32>
    %c1_677 = arith.constant 1 : index
    %c20_678 = arith.constant 20 : index
    %c0_679 = arith.constant 0 : index
    %785 = vector.load %arg9[%c1_677, %c20_678, %c0_679] : memref<2x104x4xf32, #tpu.memory_space<vmem>>, vector<1x80x4xf32>
    %786 = vector.shape_cast %785 : vector<1x80x4xf32> to vector<80x4xf32>
    %c6_680 = arith.constant 6 : index
    %c0_681 = arith.constant 0 : index
    %c0_682 = arith.constant 0 : index
    %787 = vector.load %arg2[%c6_680, %c0_681, %c0_682] : memref<9x4x8xf32, #tpu.memory_space<vmem>>, vector<1x4x8xf32>
    %788 = vector.shape_cast %787 : vector<1x4x8xf32> to vector<4x8xf32>
    %cst_683 = arith.constant dense<0.000000e+00> : vector<80x8xf32>
    %789 = tpu.matmul %786, %788, %cst_683 {dimension_numbers = #tpu.dot_dimension_numbers<[1], [0], [0], [1], [0, 0, 1, 1], [], []>} : vector<80x4xf32>, vector<4x8xf32>, vector<80x8xf32> -> vector<80x8xf32>
    %790 = arith.addf %784, %789 : vector<80x8xf32>
    %c1_684 = arith.constant 1 : index
    %c21_685 = arith.constant 21 : index
    %c0_686 = arith.constant 0 : index
    %791 = vector.load %arg9[%c1_684, %c21_685, %c0_686] : memref<2x104x4xf32, #tpu.memory_space<vmem>>, vector<1x80x4xf32>
    %792 = vector.shape_cast %791 : vector<1x80x4xf32> to vector<80x4xf32>
    %c7_687 = arith.constant 7 : index
    %c0_688 = arith.constant 0 : index
    %c0_689 = arith.constant 0 : index
    %793 = vector.load %arg2[%c7_687, %c0_688, %c0_689] : memref<9x4x8xf32, #tpu.memory_space<vmem>>, vector<1x4x8xf32>
    %794 = vector.shape_cast %793 : vector<1x4x8xf32> to vector<4x8xf32>
    %cst_690 = arith.constant dense<0.000000e+00> : vector<80x8xf32>
    %795 = tpu.matmul %792, %794, %cst_690 {dimension_numbers = #tpu.dot_dimension_numbers<[1], [0], [0], [1], [0, 0, 1, 1], [], []>} : vector<80x4xf32>, vector<4x8xf32>, vector<80x8xf32> -> vector<80x8xf32>
    %796 = arith.addf %790, %795 : vector<80x8xf32>
    %c1_691 = arith.constant 1 : index
    %c22_692 = arith.constant 22 : index
    %c0_693 = arith.constant 0 : index
    %797 = vector.load %arg9[%c1_691, %c22_692, %c0_693] : memref<2x104x4xf32, #tpu.memory_space<vmem>>, vector<1x80x4xf32>
    %798 = vector.shape_cast %797 : vector<1x80x4xf32> to vector<80x4xf32>
    %c8_694 = arith.constant 8 : index
    %c0_695 = arith.constant 0 : index
    %c0_696 = arith.constant 0 : index
    %799 = vector.load %arg2[%c8_694, %c0_695, %c0_696] : memref<9x4x8xf32, #tpu.memory_space<vmem>>, vector<1x4x8xf32>
    %800 = vector.shape_cast %799 : vector<1x4x8xf32> to vector<4x8xf32>
    %cst_697 = arith.constant dense<0.000000e+00> : vector<80x8xf32>
    %801 = tpu.matmul %798, %800, %cst_697 {dimension_numbers = #tpu.dot_dimension_numbers<[1], [0], [0], [1], [0, 0, 1, 1], [], []>} : vector<80x4xf32>, vector<4x8xf32>, vector<80x8xf32> -> vector<80x8xf32>
    %802 = arith.addf %796, %801 : vector<80x8xf32>
    %c1_698 = arith.constant 1 : index
    %c0_699 = arith.constant 0 : index
    %c0_700 = arith.constant 0 : index
    %803 = vector.load %arg10[%c1_698, %c0_699, %c0_700] : memref<2x80x8xf32, #tpu.memory_space<vmem>>, vector<1x80x8xf32>
    %804 = vector.shape_cast %803 : vector<1x80x8xf32> to vector<80x8xf32>
    %805 = vector.shape_cast %802 : vector<80x8xf32> to vector<1x80x8xf32>
    tpu.vector_store %arg10[%c1_698, %c0_699, %c0_700], %805 {strides = array<i32>} : memref<2x80x8xf32, #tpu.memory_space<vmem>>, vector<1x80x8xf32>,
    %cst_701 = arith.constant 0.000000e+00 : f32
    %806 = vector.broadcast %cst_701 : f32 to vector<1x8xf32>
    %cst_702 = arith.constant 0.000000e+00 : f32
    %807 = vector.broadcast %cst_702 : f32 to vector<1x8xf32>
    %c0_703 = arith.constant 0 : index
    %c0_704 = arith.constant 0 : index
    %c0_705 = arith.constant 0 : index
    %808 = vector.load %arg10[%c0_703, %c0_704, %c0_705] : memref<2x80x8xf32, #tpu.memory_space<vmem>>, vector<1x8x8xf32>
    %809 = vector.shape_cast %808 : vector<1x8x8xf32> to vector<8x8xf32>
    %cst_706 = arith.constant dense<0.000000e+00> : vector<8xf32>
    %810 = vector.multi_reduction <add>, %809, %cst_706 [0] : vector<8x8xf32> to vector<8xf32>
    %811 = vector.shape_cast %810 : vector<8xf32> to vector<1x8xf32>
    %812 = arith.addf %806, %811 : vector<1x8xf32>
    %813 = arith.mulf %809, %809 : vector<8x8xf32>
    %cst_707 = arith.constant dense<0.000000e+00> : vector<8xf32>
    %814 = vector.multi_reduction <add>, %813, %cst_707 [0] : vector<8x8xf32> to vector<8xf32>
    %815 = vector.shape_cast %814 : vector<8xf32> to vector<1x8xf32>
    %816 = arith.addf %807, %815 : vector<1x8xf32>
    %c0_708 = arith.constant 0 : index
    %c10_709 = arith.constant 10 : index
    %c0_710 = arith.constant 0 : index
    %817 = vector.load %arg10[%c0_708, %c10_709, %c0_710] : memref<2x80x8xf32, #tpu.memory_space<vmem>>, vector<1x8x8xf32>
    %818 = vector.shape_cast %817 : vector<1x8x8xf32> to vector<8x8xf32>
    %cst_711 = arith.constant dense<0.000000e+00> : vector<8xf32>
    %819 = vector.multi_reduction <add>, %818, %cst_711 [0] : vector<8x8xf32> to vector<8xf32>
    %820 = vector.shape_cast %819 : vector<8xf32> to vector<1x8xf32>
    %821 = arith.addf %812, %820 : vector<1x8xf32>
    %822 = arith.mulf %818, %818 : vector<8x8xf32>
    %cst_712 = arith.constant dense<0.000000e+00> : vector<8xf32>
    %823 = vector.multi_reduction <add>, %822, %cst_712 [0] : vector<8x8xf32> to vector<8xf32>
    %824 = vector.shape_cast %823 : vector<8xf32> to vector<1x8xf32>
    %825 = arith.addf %816, %824 : vector<1x8xf32>
    %c0_713 = arith.constant 0 : index
    %c20_714 = arith.constant 20 : index
    %c0_715 = arith.constant 0 : index
    %826 = vector.load %arg10[%c0_713, %c20_714, %c0_715] : memref<2x80x8xf32, #tpu.memory_space<vmem>>, vector<1x8x8xf32>
    %827 = vector.shape_cast %826 : vector<1x8x8xf32> to vector<8x8xf32>
    %cst_716 = arith.constant dense<0.000000e+00> : vector<8xf32>
    %828 = vector.multi_reduction <add>, %827, %cst_716 [0] : vector<8x8xf32> to vector<8xf32>
    %829 = vector.shape_cast %828 : vector<8xf32> to vector<1x8xf32>
    %830 = arith.addf %821, %829 : vector<1x8xf32>
    %831 = arith.mulf %827, %827 : vector<8x8xf32>
    %cst_717 = arith.constant dense<0.000000e+00> : vector<8xf32>
    %832 = vector.multi_reduction <add>, %831, %cst_717 [0] : vector<8x8xf32> to vector<8xf32>
    %833 = vector.shape_cast %832 : vector<8xf32> to vector<1x8xf32>
    %834 = arith.addf %825, %833 : vector<1x8xf32>
    %c0_718 = arith.constant 0 : index
    %c30 = arith.constant 30 : index
    %c0_719 = arith.constant 0 : index
    %835 = vector.load %arg10[%c0_718, %c30, %c0_719] : memref<2x80x8xf32, #tpu.memory_space<vmem>>, vector<1x8x8xf32>
    %836 = vector.shape_cast %835 : vector<1x8x8xf32> to vector<8x8xf32>
    %cst_720 = arith.constant dense<0.000000e+00> : vector<8xf32>
    %837 = vector.multi_reduction <add>, %836, %cst_720 [0] : vector<8x8xf32> to vector<8xf32>
    %838 = vector.shape_cast %837 : vector<8xf32> to vector<1x8xf32>
    %839 = arith.addf %830, %838 : vector<1x8xf32>
    %840 = arith.mulf %836, %836 : vector<8x8xf32>
    %cst_721 = arith.constant dense<0.000000e+00> : vector<8xf32>
    %841 = vector.multi_reduction <add>, %840, %cst_721 [0] : vector<8x8xf32> to vector<8xf32>
    %842 = vector.shape_cast %841 : vector<8xf32> to vector<1x8xf32>
    %843 = arith.addf %834, %842 : vector<1x8xf32>
    %c0_722 = arith.constant 0 : index
    %c40 = arith.constant 40 : index
    %c0_723 = arith.constant 0 : index
    %844 = vector.load %arg10[%c0_722, %c40, %c0_723] : memref<2x80x8xf32, #tpu.memory_space<vmem>>, vector<1x8x8xf32>
    %845 = vector.shape_cast %844 : vector<1x8x8xf32> to vector<8x8xf32>
    %cst_724 = arith.constant dense<0.000000e+00> : vector<8xf32>
    %846 = vector.multi_reduction <add>, %845, %cst_724 [0] : vector<8x8xf32> to vector<8xf32>
    %847 = vector.shape_cast %846 : vector<8xf32> to vector<1x8xf32>
    %848 = arith.addf %839, %847 : vector<1x8xf32>
    %849 = arith.mulf %845, %845 : vector<8x8xf32>
    %cst_725 = arith.constant dense<0.000000e+00> : vector<8xf32>
    %850 = vector.multi_reduction <add>, %849, %cst_725 [0] : vector<8x8xf32> to vector<8xf32>
    %851 = vector.shape_cast %850 : vector<8xf32> to vector<1x8xf32>
    %852 = arith.addf %843, %851 : vector<1x8xf32>
    %c0_726 = arith.constant 0 : index
    %c50 = arith.constant 50 : index
    %c0_727 = arith.constant 0 : index
    %853 = vector.load %arg10[%c0_726, %c50, %c0_727] : memref<2x80x8xf32, #tpu.memory_space<vmem>>, vector<1x8x8xf32>
    %854 = vector.shape_cast %853 : vector<1x8x8xf32> to vector<8x8xf32>
    %cst_728 = arith.constant dense<0.000000e+00> : vector<8xf32>
    %855 = vector.multi_reduction <add>, %854, %cst_728 [0] : vector<8x8xf32> to vector<8xf32>
    %856 = vector.shape_cast %855 : vector<8xf32> to vector<1x8xf32>
    %857 = arith.addf %848, %856 : vector<1x8xf32>
    %858 = arith.mulf %854, %854 : vector<8x8xf32>
    %cst_729 = arith.constant dense<0.000000e+00> : vector<8xf32>
    %859 = vector.multi_reduction <add>, %858, %cst_729 [0] : vector<8x8xf32> to vector<8xf32>
    %860 = vector.shape_cast %859 : vector<8xf32> to vector<1x8xf32>
    %861 = arith.addf %852, %860 : vector<1x8xf32>
    %c0_730 = arith.constant 0 : index
    %c60 = arith.constant 60 : index
    %c0_731 = arith.constant 0 : index
    %862 = vector.load %arg10[%c0_730, %c60, %c0_731] : memref<2x80x8xf32, #tpu.memory_space<vmem>>, vector<1x8x8xf32>
    %863 = vector.shape_cast %862 : vector<1x8x8xf32> to vector<8x8xf32>
    %cst_732 = arith.constant dense<0.000000e+00> : vector<8xf32>
    %864 = vector.multi_reduction <add>, %863, %cst_732 [0] : vector<8x8xf32> to vector<8xf32>
    %865 = vector.shape_cast %864 : vector<8xf32> to vector<1x8xf32>
    %866 = arith.addf %857, %865 : vector<1x8xf32>
    %867 = arith.mulf %863, %863 : vector<8x8xf32>
    %cst_733 = arith.constant dense<0.000000e+00> : vector<8xf32>
    %868 = vector.multi_reduction <add>, %867, %cst_733 [0] : vector<8x8xf32> to vector<8xf32>
    %869 = vector.shape_cast %868 : vector<8xf32> to vector<1x8xf32>
    %870 = arith.addf %861, %869 : vector<1x8xf32>
    %c0_734 = arith.constant 0 : index
    %c70 = arith.constant 70 : index
    %c0_735 = arith.constant 0 : index
    %871 = vector.load %arg10[%c0_734, %c70, %c0_735] : memref<2x80x8xf32, #tpu.memory_space<vmem>>, vector<1x8x8xf32>
    %872 = vector.shape_cast %871 : vector<1x8x8xf32> to vector<8x8xf32>
    %cst_736 = arith.constant dense<0.000000e+00> : vector<8xf32>
    %873 = vector.multi_reduction <add>, %872, %cst_736 [0] : vector<8x8xf32> to vector<8xf32>
    %874 = vector.shape_cast %873 : vector<8xf32> to vector<1x8xf32>
    %875 = arith.addf %866, %874 : vector<1x8xf32>
    %876 = arith.mulf %872, %872 : vector<8x8xf32>
    %cst_737 = arith.constant dense<0.000000e+00> : vector<8xf32>
    %877 = vector.multi_reduction <add>, %876, %cst_737 [0] : vector<8x8xf32> to vector<8xf32>
    %878 = vector.shape_cast %877 : vector<8xf32> to vector<1x8xf32>
    %879 = arith.addf %870, %878 : vector<1x8xf32>
    %c1_738 = arith.constant 1 : index
    %c0_739 = arith.constant 0 : index
    %c0_740 = arith.constant 0 : index
    %880 = vector.load %arg10[%c1_738, %c0_739, %c0_740] : memref<2x80x8xf32, #tpu.memory_space<vmem>>, vector<1x8x8xf32>
    %881 = vector.shape_cast %880 : vector<1x8x8xf32> to vector<8x8xf32>
    %cst_741 = arith.constant dense<0.000000e+00> : vector<8xf32>
    %882 = vector.multi_reduction <add>, %881, %cst_741 [0] : vector<8x8xf32> to vector<8xf32>
    %883 = vector.shape_cast %882 : vector<8xf32> to vector<1x8xf32>
    %884 = arith.addf %875, %883 : vector<1x8xf32>
    %885 = arith.mulf %881, %881 : vector<8x8xf32>
    %cst_742 = arith.constant dense<0.000000e+00> : vector<8xf32>
    %886 = vector.multi_reduction <add>, %885, %cst_742 [0] : vector<8x8xf32> to vector<8xf32>
    %887 = vector.shape_cast %886 : vector<8xf32> to vector<1x8xf32>
    %888 = arith.addf %879, %887 : vector<1x8xf32>
    %c1_743 = arith.constant 1 : index
    %c10_744 = arith.constant 10 : index
    %c0_745 = arith.constant 0 : index
    %889 = vector.load %arg10[%c1_743, %c10_744, %c0_745] : memref<2x80x8xf32, #tpu.memory_space<vmem>>, vector<1x8x8xf32>
    %890 = vector.shape_cast %889 : vector<1x8x8xf32> to vector<8x8xf32>
    %cst_746 = arith.constant dense<0.000000e+00> : vector<8xf32>
    %891 = vector.multi_reduction <add>, %890, %cst_746 [0] : vector<8x8xf32> to vector<8xf32>
    %892 = vector.shape_cast %891 : vector<8xf32> to vector<1x8xf32>
    %893 = arith.addf %884, %892 : vector<1x8xf32>
    %894 = arith.mulf %890, %890 : vector<8x8xf32>
    %cst_747 = arith.constant dense<0.000000e+00> : vector<8xf32>
    %895 = vector.multi_reduction <add>, %894, %cst_747 [0] : vector<8x8xf32> to vector<8xf32>
    %896 = vector.shape_cast %895 : vector<8xf32> to vector<1x8xf32>
    %897 = arith.addf %888, %896 : vector<1x8xf32>
    %c1_748 = arith.constant 1 : index
    %c20_749 = arith.constant 20 : index
    %c0_750 = arith.constant 0 : index
    %898 = vector.load %arg10[%c1_748, %c20_749, %c0_750] : memref<2x80x8xf32, #tpu.memory_space<vmem>>, vector<1x8x8xf32>
    %899 = vector.shape_cast %898 : vector<1x8x8xf32> to vector<8x8xf32>
    %cst_751 = arith.constant dense<0.000000e+00> : vector<8xf32>
    %900 = vector.multi_reduction <add>, %899, %cst_751 [0] : vector<8x8xf32> to vector<8xf32>
    %901 = vector.shape_cast %900 : vector<8xf32> to vector<1x8xf32>
    %902 = arith.addf %893, %901 : vector<1x8xf32>
    %903 = arith.mulf %899, %899 : vector<8x8xf32>
    %cst_752 = arith.constant dense<0.000000e+00> : vector<8xf32>
    %904 = vector.multi_reduction <add>, %903, %cst_752 [0] : vector<8x8xf32> to vector<8xf32>
    %905 = vector.shape_cast %904 : vector<8xf32> to vector<1x8xf32>
    %906 = arith.addf %897, %905 : vector<1x8xf32>
    %c1_753 = arith.constant 1 : index
    %c30_754 = arith.constant 30 : index
    %c0_755 = arith.constant 0 : index
    %907 = vector.load %arg10[%c1_753, %c30_754, %c0_755] : memref<2x80x8xf32, #tpu.memory_space<vmem>>, vector<1x8x8xf32>
    %908 = vector.shape_cast %907 : vector<1x8x8xf32> to vector<8x8xf32>
    %cst_756 = arith.constant dense<0.000000e+00> : vector<8xf32>
    %909 = vector.multi_reduction <add>, %908, %cst_756 [0] : vector<8x8xf32> to vector<8xf32>
    %910 = vector.shape_cast %909 : vector<8xf32> to vector<1x8xf32>
    %911 = arith.addf %902, %910 : vector<1x8xf32>
    %912 = arith.mulf %908, %908 : vector<8x8xf32>
    %cst_757 = arith.constant dense<0.000000e+00> : vector<8xf32>
    %913 = vector.multi_reduction <add>, %912, %cst_757 [0] : vector<8x8xf32> to vector<8xf32>
    %914 = vector.shape_cast %913 : vector<8xf32> to vector<1x8xf32>
    %915 = arith.addf %906, %914 : vector<1x8xf32>
    %c1_758 = arith.constant 1 : index
    %c40_759 = arith.constant 40 : index
    %c0_760 = arith.constant 0 : index
    %916 = vector.load %arg10[%c1_758, %c40_759, %c0_760] : memref<2x80x8xf32, #tpu.memory_space<vmem>>, vector<1x8x8xf32>
    %917 = vector.shape_cast %916 : vector<1x8x8xf32> to vector<8x8xf32>
    %cst_761 = arith.constant dense<0.000000e+00> : vector<8xf32>
    %918 = vector.multi_reduction <add>, %917, %cst_761 [0] : vector<8x8xf32> to vector<8xf32>
    %919 = vector.shape_cast %918 : vector<8xf32> to vector<1x8xf32>
    %920 = arith.addf %911, %919 : vector<1x8xf32>
    %921 = arith.mulf %917, %917 : vector<8x8xf32>
    %cst_762 = arith.constant dense<0.000000e+00> : vector<8xf32>
    %922 = vector.multi_reduction <add>, %921, %cst_762 [0] : vector<8x8xf32> to vector<8xf32>
    %923 = vector.shape_cast %922 : vector<8xf32> to vector<1x8xf32>
    %924 = arith.addf %915, %923 : vector<1x8xf32>
    %c1_763 = arith.constant 1 : index
    %c50_764 = arith.constant 50 : index
    %c0_765 = arith.constant 0 : index
    %925 = vector.load %arg10[%c1_763, %c50_764, %c0_765] : memref<2x80x8xf32, #tpu.memory_space<vmem>>, vector<1x8x8xf32>
    %926 = vector.shape_cast %925 : vector<1x8x8xf32> to vector<8x8xf32>
    %cst_766 = arith.constant dense<0.000000e+00> : vector<8xf32>
    %927 = vector.multi_reduction <add>, %926, %cst_766 [0] : vector<8x8xf32> to vector<8xf32>
    %928 = vector.shape_cast %927 : vector<8xf32> to vector<1x8xf32>
    %929 = arith.addf %920, %928 : vector<1x8xf32>
    %930 = arith.mulf %926, %926 : vector<8x8xf32>
    %cst_767 = arith.constant dense<0.000000e+00> : vector<8xf32>
    %931 = vector.multi_reduction <add>, %930, %cst_767 [0] : vector<8x8xf32> to vector<8xf32>
    %932 = vector.shape_cast %931 : vector<8xf32> to vector<1x8xf32>
    %933 = arith.addf %924, %932 : vector<1x8xf32>
    %c1_768 = arith.constant 1 : index
    %c60_769 = arith.constant 60 : index
    %c0_770 = arith.constant 0 : index
    %934 = vector.load %arg10[%c1_768, %c60_769, %c0_770] : memref<2x80x8xf32, #tpu.memory_space<vmem>>, vector<1x8x8xf32>
    %935 = vector.shape_cast %934 : vector<1x8x8xf32> to vector<8x8xf32>
    %cst_771 = arith.constant dense<0.000000e+00> : vector<8xf32>
    %936 = vector.multi_reduction <add>, %935, %cst_771 [0] : vector<8x8xf32> to vector<8xf32>
    %937 = vector.shape_cast %936 : vector<8xf32> to vector<1x8xf32>
    %938 = arith.addf %929, %937 : vector<1x8xf32>
    %939 = arith.mulf %935, %935 : vector<8x8xf32>
    %cst_772 = arith.constant dense<0.000000e+00> : vector<8xf32>
    %940 = vector.multi_reduction <add>, %939, %cst_772 [0] : vector<8x8xf32> to vector<8xf32>
    %941 = vector.shape_cast %940 : vector<8xf32> to vector<1x8xf32>
    %942 = arith.addf %933, %941 : vector<1x8xf32>
    %c1_773 = arith.constant 1 : index
    %c70_774 = arith.constant 70 : index
    %c0_775 = arith.constant 0 : index
    %943 = vector.load %arg10[%c1_773, %c70_774, %c0_775] : memref<2x80x8xf32, #tpu.memory_space<vmem>>, vector<1x8x8xf32>
    %944 = vector.shape_cast %943 : vector<1x8x8xf32> to vector<8x8xf32>
    %cst_776 = arith.constant dense<0.000000e+00> : vector<8xf32>
    %945 = vector.multi_reduction <add>, %944, %cst_776 [0] : vector<8x8xf32> to vector<8xf32>
    %946 = vector.shape_cast %945 : vector<8xf32> to vector<1x8xf32>
    %947 = arith.addf %938, %946 : vector<1x8xf32>
    %948 = arith.mulf %944, %944 : vector<8x8xf32>
    %cst_777 = arith.constant dense<0.000000e+00> : vector<8xf32>
    %949 = vector.multi_reduction <add>, %948, %cst_777 [0] : vector<8x8xf32> to vector<8xf32>
    %950 = vector.shape_cast %949 : vector<8xf32> to vector<1x8xf32>
    %951 = arith.addf %942, %950 : vector<1x8xf32>
    %cst_778 = arith.constant 7.812500e-03 : f32
    %952 = vector.broadcast %cst_778 : f32 to vector<1x8xf32>
    %953 = arith.mulf %947, %952 : vector<1x8xf32>
    %cst_779 = arith.constant 7.812500e-03 : f32
    %954 = vector.broadcast %cst_779 : f32 to vector<1x8xf32>
    %955 = arith.mulf %951, %954 : vector<1x8xf32>
    %956 = arith.mulf %953, %953 : vector<1x8xf32>
    %957 = arith.subf %955, %956 : vector<1x8xf32>
    %cst_780 = arith.constant 0.000000e+00 : f32
    %958 = vector.broadcast %cst_780 : f32 to vector<1x8xf32>
    %959 = arith.maximumf %957, %958 : vector<1x8xf32>
    %c0_781 = arith.constant 0 : index
    %c0_782 = arith.constant 0 : index
    %960 = vector.load %arg4[%c0_781, %c0_782] : memref<1x8xf32, #tpu.memory_space<vmem>>, vector<1x8xf32>
    %cst_783 = arith.constant 9.99999974E-6 : f32
    %961 = vector.broadcast %cst_783 : f32 to vector<1x8xf32>
    %962 = arith.addf %959, %961 : vector<1x8xf32>
    %963 = math.rsqrt %962 : vector<1x8xf32>
    %964 = arith.mulf %960, %963 : vector<1x8xf32>
    %c0_784 = arith.constant 0 : index
    %c0_785 = arith.constant 0 : index
    %965 = vector.load %arg5[%c0_784, %c0_785] : memref<1x8xf32, #tpu.memory_space<vmem>>, vector<1x8xf32>
    %966 = arith.mulf %953, %964 : vector<1x8xf32>
    %967 = arith.subf %965, %966 : vector<1x8xf32>
    %cst_786 = arith.constant 0.000000e+00 : f32
    %968 = vector.broadcast %cst_786 : f32 to vector<2x104x8xf32>
    %c0_787 = arith.constant 0 : index
    %c0_788 = arith.constant 0 : index
    %c0_789 = arith.constant 0 : index
    %969 = vector.load %arg11[%c0_787, %c0_788, %c0_789] : memref<2x104x8xf32, #tpu.memory_space<vmem>>, vector<2x104x8xf32>
    tpu.vector_store %arg11[%c0_787, %c0_788, %c0_789], %968 {strides = array<i32>} : memref<2x104x8xf32, #tpu.memory_space<vmem>>, vector<2x104x8xf32>,
    %c0_790 = arith.constant 0 : index
    %c0_791 = arith.constant 0 : index
    %c0_792 = arith.constant 0 : index
    %970 = vector.load %arg10[%c0_790, %c0_791, %c0_792] : memref<2x80x8xf32, #tpu.memory_space<vmem>>, vector<1x8x8xf32>
    %971 = vector.shape_cast %970 : vector<1x8x8xf32> to vector<8x8xf32>
    %972 = vector.broadcast %964 : vector<1x8xf32> to vector<8x8xf32>
    %973 = arith.mulf %971, %972 : vector<8x8xf32>
    %974 = vector.broadcast %967 : vector<1x8xf32> to vector<8x8xf32>
    %975 = arith.addf %973, %974 : vector<8x8xf32>
    %cst_793 = arith.constant 0.000000e+00 : f32
    %976 = vector.broadcast %cst_793 : f32 to vector<8x8xf32>
    %977 = arith.maximumf %975, %976 : vector<8x8xf32>
    %c0_794 = arith.constant 0 : index
    %c11_795 = arith.constant 11 : index
    %c0_796 = arith.constant 0 : index
    %978 = vector.load %arg11[%c0_794, %c11_795, %c0_796] : memref<2x104x8xf32, #tpu.memory_space<vmem>>, vector<1x8x8xf32>
    %979 = vector.shape_cast %978 : vector<1x8x8xf32> to vector<8x8xf32>
    %980 = vector.shape_cast %977 : vector<8x8xf32> to vector<1x8x8xf32>
    tpu.vector_store %arg11[%c0_794, %c11_795, %c0_796], %980 {strides = array<i32>} : memref<2x104x8xf32, #tpu.memory_space<vmem>>, vector<1x8x8xf32>,
    %c0_797 = arith.constant 0 : index
    %c10_798 = arith.constant 10 : index
    %c0_799 = arith.constant 0 : index
    %981 = vector.load %arg10[%c0_797, %c10_798, %c0_799] : memref<2x80x8xf32, #tpu.memory_space<vmem>>, vector<1x8x8xf32>
    %982 = vector.shape_cast %981 : vector<1x8x8xf32> to vector<8x8xf32>
    %983 = vector.broadcast %964 : vector<1x8xf32> to vector<8x8xf32>
    %984 = arith.mulf %982, %983 : vector<8x8xf32>
    %985 = vector.broadcast %967 : vector<1x8xf32> to vector<8x8xf32>
    %986 = arith.addf %984, %985 : vector<8x8xf32>
    %cst_800 = arith.constant 0.000000e+00 : f32
    %987 = vector.broadcast %cst_800 : f32 to vector<8x8xf32>
    %988 = arith.maximumf %986, %987 : vector<8x8xf32>
    %c0_801 = arith.constant 0 : index
    %c21_802 = arith.constant 21 : index
    %c0_803 = arith.constant 0 : index
    %989 = vector.load %arg11[%c0_801, %c21_802, %c0_803] : memref<2x104x8xf32, #tpu.memory_space<vmem>>, vector<1x8x8xf32>
    %990 = vector.shape_cast %989 : vector<1x8x8xf32> to vector<8x8xf32>
    %991 = vector.shape_cast %988 : vector<8x8xf32> to vector<1x8x8xf32>
    tpu.vector_store %arg11[%c0_801, %c21_802, %c0_803], %991 {strides = array<i32>} : memref<2x104x8xf32, #tpu.memory_space<vmem>>, vector<1x8x8xf32>,
    %c0_804 = arith.constant 0 : index
    %c20_805 = arith.constant 20 : index
    %c0_806 = arith.constant 0 : index
    %992 = vector.load %arg10[%c0_804, %c20_805, %c0_806] : memref<2x80x8xf32, #tpu.memory_space<vmem>>, vector<1x8x8xf32>
    %993 = vector.shape_cast %992 : vector<1x8x8xf32> to vector<8x8xf32>
    %994 = vector.broadcast %964 : vector<1x8xf32> to vector<8x8xf32>
    %995 = arith.mulf %993, %994 : vector<8x8xf32>
    %996 = vector.broadcast %967 : vector<1x8xf32> to vector<8x8xf32>
    %997 = arith.addf %995, %996 : vector<8x8xf32>
    %cst_807 = arith.constant 0.000000e+00 : f32
    %998 = vector.broadcast %cst_807 : f32 to vector<8x8xf32>
    %999 = arith.maximumf %997, %998 : vector<8x8xf32>
    %c0_808 = arith.constant 0 : index
    %c31_809 = arith.constant 31 : index
    %c0_810 = arith.constant 0 : index
    %1000 = vector.load %arg11[%c0_808, %c31_809, %c0_810] : memref<2x104x8xf32, #tpu.memory_space<vmem>>, vector<1x8x8xf32>
    %1001 = vector.shape_cast %1000 : vector<1x8x8xf32> to vector<8x8xf32>
    %1002 = vector.shape_cast %999 : vector<8x8xf32> to vector<1x8x8xf32>
    tpu.vector_store %arg11[%c0_808, %c31_809, %c0_810], %1002 {strides = array<i32>} : memref<2x104x8xf32, #tpu.memory_space<vmem>>, vector<1x8x8xf32>,
    %c0_811 = arith.constant 0 : index
    %c30_812 = arith.constant 30 : index
    %c0_813 = arith.constant 0 : index
    %1003 = vector.load %arg10[%c0_811, %c30_812, %c0_813] : memref<2x80x8xf32, #tpu.memory_space<vmem>>, vector<1x8x8xf32>
    %1004 = vector.shape_cast %1003 : vector<1x8x8xf32> to vector<8x8xf32>
    %1005 = vector.broadcast %964 : vector<1x8xf32> to vector<8x8xf32>
    %1006 = arith.mulf %1004, %1005 : vector<8x8xf32>
    %1007 = vector.broadcast %967 : vector<1x8xf32> to vector<8x8xf32>
    %1008 = arith.addf %1006, %1007 : vector<8x8xf32>
    %cst_814 = arith.constant 0.000000e+00 : f32
    %1009 = vector.broadcast %cst_814 : f32 to vector<8x8xf32>
    %1010 = arith.maximumf %1008, %1009 : vector<8x8xf32>
    %c0_815 = arith.constant 0 : index
    %c41_816 = arith.constant 41 : index
    %c0_817 = arith.constant 0 : index
    %1011 = vector.load %arg11[%c0_815, %c41_816, %c0_817] : memref<2x104x8xf32, #tpu.memory_space<vmem>>, vector<1x8x8xf32>
    %1012 = vector.shape_cast %1011 : vector<1x8x8xf32> to vector<8x8xf32>
    %1013 = vector.shape_cast %1010 : vector<8x8xf32> to vector<1x8x8xf32>
    tpu.vector_store %arg11[%c0_815, %c41_816, %c0_817], %1013 {strides = array<i32>} : memref<2x104x8xf32, #tpu.memory_space<vmem>>, vector<1x8x8xf32>,
    %c0_818 = arith.constant 0 : index
    %c40_819 = arith.constant 40 : index
    %c0_820 = arith.constant 0 : index
    %1014 = vector.load %arg10[%c0_818, %c40_819, %c0_820] : memref<2x80x8xf32, #tpu.memory_space<vmem>>, vector<1x8x8xf32>
    %1015 = vector.shape_cast %1014 : vector<1x8x8xf32> to vector<8x8xf32>
    %1016 = vector.broadcast %964 : vector<1x8xf32> to vector<8x8xf32>
    %1017 = arith.mulf %1015, %1016 : vector<8x8xf32>
    %1018 = vector.broadcast %967 : vector<1x8xf32> to vector<8x8xf32>
    %1019 = arith.addf %1017, %1018 : vector<8x8xf32>
    %cst_821 = arith.constant 0.000000e+00 : f32
    %1020 = vector.broadcast %cst_821 : f32 to vector<8x8xf32>
    %1021 = arith.maximumf %1019, %1020 : vector<8x8xf32>
    %c0_822 = arith.constant 0 : index
    %c51_823 = arith.constant 51 : index
    %c0_824 = arith.constant 0 : index
    %1022 = vector.load %arg11[%c0_822, %c51_823, %c0_824] : memref<2x104x8xf32, #tpu.memory_space<vmem>>, vector<1x8x8xf32>
    %1023 = vector.shape_cast %1022 : vector<1x8x8xf32> to vector<8x8xf32>
    %1024 = vector.shape_cast %1021 : vector<8x8xf32> to vector<1x8x8xf32>
    tpu.vector_store %arg11[%c0_822, %c51_823, %c0_824], %1024 {strides = array<i32>} : memref<2x104x8xf32, #tpu.memory_space<vmem>>, vector<1x8x8xf32>,
    %c0_825 = arith.constant 0 : index
    %c50_826 = arith.constant 50 : index
    %c0_827 = arith.constant 0 : index
    %1025 = vector.load %arg10[%c0_825, %c50_826, %c0_827] : memref<2x80x8xf32, #tpu.memory_space<vmem>>, vector<1x8x8xf32>
    %1026 = vector.shape_cast %1025 : vector<1x8x8xf32> to vector<8x8xf32>
    %1027 = vector.broadcast %964 : vector<1x8xf32> to vector<8x8xf32>
    %1028 = arith.mulf %1026, %1027 : vector<8x8xf32>
    %1029 = vector.broadcast %967 : vector<1x8xf32> to vector<8x8xf32>
    %1030 = arith.addf %1028, %1029 : vector<8x8xf32>
    %cst_828 = arith.constant 0.000000e+00 : f32
    %1031 = vector.broadcast %cst_828 : f32 to vector<8x8xf32>
    %1032 = arith.maximumf %1030, %1031 : vector<8x8xf32>
    %c0_829 = arith.constant 0 : index
    %c61_830 = arith.constant 61 : index
    %c0_831 = arith.constant 0 : index
    %1033 = vector.load %arg11[%c0_829, %c61_830, %c0_831] : memref<2x104x8xf32, #tpu.memory_space<vmem>>, vector<1x8x8xf32>
    %1034 = vector.shape_cast %1033 : vector<1x8x8xf32> to vector<8x8xf32>
    %1035 = vector.shape_cast %1032 : vector<8x8xf32> to vector<1x8x8xf32>
    tpu.vector_store %arg11[%c0_829, %c61_830, %c0_831], %1035 {strides = array<i32>} : memref<2x104x8xf32, #tpu.memory_space<vmem>>, vector<1x8x8xf32>,
    %c0_832 = arith.constant 0 : index
    %c60_833 = arith.constant 60 : index
    %c0_834 = arith.constant 0 : index
    %1036 = vector.load %arg10[%c0_832, %c60_833, %c0_834] : memref<2x80x8xf32, #tpu.memory_space<vmem>>, vector<1x8x8xf32>
    %1037 = vector.shape_cast %1036 : vector<1x8x8xf32> to vector<8x8xf32>
    %1038 = vector.broadcast %964 : vector<1x8xf32> to vector<8x8xf32>
    %1039 = arith.mulf %1037, %1038 : vector<8x8xf32>
    %1040 = vector.broadcast %967 : vector<1x8xf32> to vector<8x8xf32>
    %1041 = arith.addf %1039, %1040 : vector<8x8xf32>
    %cst_835 = arith.constant 0.000000e+00 : f32
    %1042 = vector.broadcast %cst_835 : f32 to vector<8x8xf32>
    %1043 = arith.maximumf %1041, %1042 : vector<8x8xf32>
    %c0_836 = arith.constant 0 : index
    %c71_837 = arith.constant 71 : index
    %c0_838 = arith.constant 0 : index
    %1044 = vector.load %arg11[%c0_836, %c71_837, %c0_838] : memref<2x104x8xf32, #tpu.memory_space<vmem>>, vector<1x8x8xf32>
    %1045 = vector.shape_cast %1044 : vector<1x8x8xf32> to vector<8x8xf32>
    %1046 = vector.shape_cast %1043 : vector<8x8xf32> to vector<1x8x8xf32>
    tpu.vector_store %arg11[%c0_836, %c71_837, %c0_838], %1046 {strides = array<i32>} : memref<2x104x8xf32, #tpu.memory_space<vmem>>, vector<1x8x8xf32>,
    %c0_839 = arith.constant 0 : index
    %c70_840 = arith.constant 70 : index
    %c0_841 = arith.constant 0 : index
    %1047 = vector.load %arg10[%c0_839, %c70_840, %c0_841] : memref<2x80x8xf32, #tpu.memory_space<vmem>>, vector<1x8x8xf32>
    %1048 = vector.shape_cast %1047 : vector<1x8x8xf32> to vector<8x8xf32>
    %1049 = vector.broadcast %964 : vector<1x8xf32> to vector<8x8xf32>
    %1050 = arith.mulf %1048, %1049 : vector<8x8xf32>
    %1051 = vector.broadcast %967 : vector<1x8xf32> to vector<8x8xf32>
    %1052 = arith.addf %1050, %1051 : vector<8x8xf32>
    %cst_842 = arith.constant 0.000000e+00 : f32
    %1053 = vector.broadcast %cst_842 : f32 to vector<8x8xf32>
    %1054 = arith.maximumf %1052, %1053 : vector<8x8xf32>
    %c0_843 = arith.constant 0 : index
    %c81_844 = arith.constant 81 : index
    %c0_845 = arith.constant 0 : index
    %1055 = vector.load %arg11[%c0_843, %c81_844, %c0_845] : memref<2x104x8xf32, #tpu.memory_space<vmem>>, vector<1x8x8xf32>
    %1056 = vector.shape_cast %1055 : vector<1x8x8xf32> to vector<8x8xf32>
    %1057 = vector.shape_cast %1054 : vector<8x8xf32> to vector<1x8x8xf32>
    tpu.vector_store %arg11[%c0_843, %c81_844, %c0_845], %1057 {strides = array<i32>} : memref<2x104x8xf32, #tpu.memory_space<vmem>>, vector<1x8x8xf32>,
    %c1_846 = arith.constant 1 : index
    %c0_847 = arith.constant 0 : index
    %c0_848 = arith.constant 0 : index
    %1058 = vector.load %arg10[%c1_846, %c0_847, %c0_848] : memref<2x80x8xf32, #tpu.memory_space<vmem>>, vector<1x8x8xf32>
    %1059 = vector.shape_cast %1058 : vector<1x8x8xf32> to vector<8x8xf32>
    %1060 = vector.broadcast %964 : vector<1x8xf32> to vector<8x8xf32>
    %1061 = arith.mulf %1059, %1060 : vector<8x8xf32>
    %1062 = vector.broadcast %967 : vector<1x8xf32> to vector<8x8xf32>
    %1063 = arith.addf %1061, %1062 : vector<8x8xf32>
    %cst_849 = arith.constant 0.000000e+00 : f32
    %1064 = vector.broadcast %cst_849 : f32 to vector<8x8xf32>
    %1065 = arith.maximumf %1063, %1064 : vector<8x8xf32>
    %c1_850 = arith.constant 1 : index
    %c11_851 = arith.constant 11 : index
    %c0_852 = arith.constant 0 : index
    %1066 = vector.load %arg11[%c1_850, %c11_851, %c0_852] : memref<2x104x8xf32, #tpu.memory_space<vmem>>, vector<1x8x8xf32>
    %1067 = vector.shape_cast %1066 : vector<1x8x8xf32> to vector<8x8xf32>
    %1068 = vector.shape_cast %1065 : vector<8x8xf32> to vector<1x8x8xf32>
    tpu.vector_store %arg11[%c1_850, %c11_851, %c0_852], %1068 {strides = array<i32>} : memref<2x104x8xf32, #tpu.memory_space<vmem>>, vector<1x8x8xf32>,
    %c1_853 = arith.constant 1 : index
    %c10_854 = arith.constant 10 : index
    %c0_855 = arith.constant 0 : index
    %1069 = vector.load %arg10[%c1_853, %c10_854, %c0_855] : memref<2x80x8xf32, #tpu.memory_space<vmem>>, vector<1x8x8xf32>
    %1070 = vector.shape_cast %1069 : vector<1x8x8xf32> to vector<8x8xf32>
    %1071 = vector.broadcast %964 : vector<1x8xf32> to vector<8x8xf32>
    %1072 = arith.mulf %1070, %1071 : vector<8x8xf32>
    %1073 = vector.broadcast %967 : vector<1x8xf32> to vector<8x8xf32>
    %1074 = arith.addf %1072, %1073 : vector<8x8xf32>
    %cst_856 = arith.constant 0.000000e+00 : f32
    %1075 = vector.broadcast %cst_856 : f32 to vector<8x8xf32>
    %1076 = arith.maximumf %1074, %1075 : vector<8x8xf32>
    %c1_857 = arith.constant 1 : index
    %c21_858 = arith.constant 21 : index
    %c0_859 = arith.constant 0 : index
    %1077 = vector.load %arg11[%c1_857, %c21_858, %c0_859] : memref<2x104x8xf32, #tpu.memory_space<vmem>>, vector<1x8x8xf32>
    %1078 = vector.shape_cast %1077 : vector<1x8x8xf32> to vector<8x8xf32>
    %1079 = vector.shape_cast %1076 : vector<8x8xf32> to vector<1x8x8xf32>
    tpu.vector_store %arg11[%c1_857, %c21_858, %c0_859], %1079 {strides = array<i32>} : memref<2x104x8xf32, #tpu.memory_space<vmem>>, vector<1x8x8xf32>,
    %c1_860 = arith.constant 1 : index
    %c20_861 = arith.constant 20 : index
    %c0_862 = arith.constant 0 : index
    %1080 = vector.load %arg10[%c1_860, %c20_861, %c0_862] : memref<2x80x8xf32, #tpu.memory_space<vmem>>, vector<1x8x8xf32>
    %1081 = vector.shape_cast %1080 : vector<1x8x8xf32> to vector<8x8xf32>
    %1082 = vector.broadcast %964 : vector<1x8xf32> to vector<8x8xf32>
    %1083 = arith.mulf %1081, %1082 : vector<8x8xf32>
    %1084 = vector.broadcast %967 : vector<1x8xf32> to vector<8x8xf32>
    %1085 = arith.addf %1083, %1084 : vector<8x8xf32>
    %cst_863 = arith.constant 0.000000e+00 : f32
    %1086 = vector.broadcast %cst_863 : f32 to vector<8x8xf32>
    %1087 = arith.maximumf %1085, %1086 : vector<8x8xf32>
    %c1_864 = arith.constant 1 : index
    %c31_865 = arith.constant 31 : index
    %c0_866 = arith.constant 0 : index
    %1088 = vector.load %arg11[%c1_864, %c31_865, %c0_866] : memref<2x104x8xf32, #tpu.memory_space<vmem>>, vector<1x8x8xf32>
    %1089 = vector.shape_cast %1088 : vector<1x8x8xf32> to vector<8x8xf32>
    %1090 = vector.shape_cast %1087 : vector<8x8xf32> to vector<1x8x8xf32>
    tpu.vector_store %arg11[%c1_864, %c31_865, %c0_866], %1090 {strides = array<i32>} : memref<2x104x8xf32, #tpu.memory_space<vmem>>, vector<1x8x8xf32>,
    %c1_867 = arith.constant 1 : index
    %c30_868 = arith.constant 30 : index
    %c0_869 = arith.constant 0 : index
    %1091 = vector.load %arg10[%c1_867, %c30_868, %c0_869] : memref<2x80x8xf32, #tpu.memory_space<vmem>>, vector<1x8x8xf32>
    %1092 = vector.shape_cast %1091 : vector<1x8x8xf32> to vector<8x8xf32>
    %1093 = vector.broadcast %964 : vector<1x8xf32> to vector<8x8xf32>
    %1094 = arith.mulf %1092, %1093 : vector<8x8xf32>
    %1095 = vector.broadcast %967 : vector<1x8xf32> to vector<8x8xf32>
    %1096 = arith.addf %1094, %1095 : vector<8x8xf32>
    %cst_870 = arith.constant 0.000000e+00 : f32
    %1097 = vector.broadcast %cst_870 : f32 to vector<8x8xf32>
    %1098 = arith.maximumf %1096, %1097 : vector<8x8xf32>
    %c1_871 = arith.constant 1 : index
    %c41_872 = arith.constant 41 : index
    %c0_873 = arith.constant 0 : index
    %1099 = vector.load %arg11[%c1_871, %c41_872, %c0_873] : memref<2x104x8xf32, #tpu.memory_space<vmem>>, vector<1x8x8xf32>
    %1100 = vector.shape_cast %1099 : vector<1x8x8xf32> to vector<8x8xf32>
    %1101 = vector.shape_cast %1098 : vector<8x8xf32> to vector<1x8x8xf32>
    tpu.vector_store %arg11[%c1_871, %c41_872, %c0_873], %1101 {strides = array<i32>} : memref<2x104x8xf32, #tpu.memory_space<vmem>>, vector<1x8x8xf32>,
    %c1_874 = arith.constant 1 : index
    %c40_875 = arith.constant 40 : index
    %c0_876 = arith.constant 0 : index
    %1102 = vector.load %arg10[%c1_874, %c40_875, %c0_876] : memref<2x80x8xf32, #tpu.memory_space<vmem>>, vector<1x8x8xf32>
    %1103 = vector.shape_cast %1102 : vector<1x8x8xf32> to vector<8x8xf32>
    %1104 = vector.broadcast %964 : vector<1x8xf32> to vector<8x8xf32>
    %1105 = arith.mulf %1103, %1104 : vector<8x8xf32>
    %1106 = vector.broadcast %967 : vector<1x8xf32> to vector<8x8xf32>
    %1107 = arith.addf %1105, %1106 : vector<8x8xf32>
    %cst_877 = arith.constant 0.000000e+00 : f32
    %1108 = vector.broadcast %cst_877 : f32 to vector<8x8xf32>
    %1109 = arith.maximumf %1107, %1108 : vector<8x8xf32>
    %c1_878 = arith.constant 1 : index
    %c51_879 = arith.constant 51 : index
    %c0_880 = arith.constant 0 : index
    %1110 = vector.load %arg11[%c1_878, %c51_879, %c0_880] : memref<2x104x8xf32, #tpu.memory_space<vmem>>, vector<1x8x8xf32>
    %1111 = vector.shape_cast %1110 : vector<1x8x8xf32> to vector<8x8xf32>
    %1112 = vector.shape_cast %1109 : vector<8x8xf32> to vector<1x8x8xf32>
    tpu.vector_store %arg11[%c1_878, %c51_879, %c0_880], %1112 {strides = array<i32>} : memref<2x104x8xf32, #tpu.memory_space<vmem>>, vector<1x8x8xf32>,
    %c1_881 = arith.constant 1 : index
    %c50_882 = arith.constant 50 : index
    %c0_883 = arith.constant 0 : index
    %1113 = vector.load %arg10[%c1_881, %c50_882, %c0_883] : memref<2x80x8xf32, #tpu.memory_space<vmem>>, vector<1x8x8xf32>
    %1114 = vector.shape_cast %1113 : vector<1x8x8xf32> to vector<8x8xf32>
    %1115 = vector.broadcast %964 : vector<1x8xf32> to vector<8x8xf32>
    %1116 = arith.mulf %1114, %1115 : vector<8x8xf32>
    %1117 = vector.broadcast %967 : vector<1x8xf32> to vector<8x8xf32>
    %1118 = arith.addf %1116, %1117 : vector<8x8xf32>
    %cst_884 = arith.constant 0.000000e+00 : f32
    %1119 = vector.broadcast %cst_884 : f32 to vector<8x8xf32>
    %1120 = arith.maximumf %1118, %1119 : vector<8x8xf32>
    %c1_885 = arith.constant 1 : index
    %c61_886 = arith.constant 61 : index
    %c0_887 = arith.constant 0 : index
    %1121 = vector.load %arg11[%c1_885, %c61_886, %c0_887] : memref<2x104x8xf32, #tpu.memory_space<vmem>>, vector<1x8x8xf32>
    %1122 = vector.shape_cast %1121 : vector<1x8x8xf32> to vector<8x8xf32>
    %1123 = vector.shape_cast %1120 : vector<8x8xf32> to vector<1x8x8xf32>
    tpu.vector_store %arg11[%c1_885, %c61_886, %c0_887], %1123 {strides = array<i32>} : memref<2x104x8xf32, #tpu.memory_space<vmem>>, vector<1x8x8xf32>,
    %c1_888 = arith.constant 1 : index
    %c60_889 = arith.constant 60 : index
    %c0_890 = arith.constant 0 : index
    %1124 = vector.load %arg10[%c1_888, %c60_889, %c0_890] : memref<2x80x8xf32, #tpu.memory_space<vmem>>, vector<1x8x8xf32>
    %1125 = vector.shape_cast %1124 : vector<1x8x8xf32> to vector<8x8xf32>
    %1126 = vector.broadcast %964 : vector<1x8xf32> to vector<8x8xf32>
    %1127 = arith.mulf %1125, %1126 : vector<8x8xf32>
    %1128 = vector.broadcast %967 : vector<1x8xf32> to vector<8x8xf32>
    %1129 = arith.addf %1127, %1128 : vector<8x8xf32>
    %cst_891 = arith.constant 0.000000e+00 : f32
    %1130 = vector.broadcast %cst_891 : f32 to vector<8x8xf32>
    %1131 = arith.maximumf %1129, %1130 : vector<8x8xf32>
    %c1_892 = arith.constant 1 : index
    %c71_893 = arith.constant 71 : index
    %c0_894 = arith.constant 0 : index
    %1132 = vector.load %arg11[%c1_892, %c71_893, %c0_894] : memref<2x104x8xf32, #tpu.memory_space<vmem>>, vector<1x8x8xf32>
    %1133 = vector.shape_cast %1132 : vector<1x8x8xf32> to vector<8x8xf32>
    %1134 = vector.shape_cast %1131 : vector<8x8xf32> to vector<1x8x8xf32>
    tpu.vector_store %arg11[%c1_892, %c71_893, %c0_894], %1134 {strides = array<i32>} : memref<2x104x8xf32, #tpu.memory_space<vmem>>, vector<1x8x8xf32>,
    %c1_895 = arith.constant 1 : index
    %c70_896 = arith.constant 70 : index
    %c0_897 = arith.constant 0 : index
    %1135 = vector.load %arg10[%c1_895, %c70_896, %c0_897] : memref<2x80x8xf32, #tpu.memory_space<vmem>>, vector<1x8x8xf32>
    %1136 = vector.shape_cast %1135 : vector<1x8x8xf32> to vector<8x8xf32>
    %1137 = vector.broadcast %964 : vector<1x8xf32> to vector<8x8xf32>
    %1138 = arith.mulf %1136, %1137 : vector<8x8xf32>
    %1139 = vector.broadcast %967 : vector<1x8xf32> to vector<8x8xf32>
    %1140 = arith.addf %1138, %1139 : vector<8x8xf32>
    %cst_898 = arith.constant 0.000000e+00 : f32
    %1141 = vector.broadcast %cst_898 : f32 to vector<8x8xf32>
    %1142 = arith.maximumf %1140, %1141 : vector<8x8xf32>
    %c1_899 = arith.constant 1 : index
    %c81_900 = arith.constant 81 : index
    %c0_901 = arith.constant 0 : index
    %1143 = vector.load %arg11[%c1_899, %c81_900, %c0_901] : memref<2x104x8xf32, #tpu.memory_space<vmem>>, vector<1x8x8xf32>
    %1144 = vector.shape_cast %1143 : vector<1x8x8xf32> to vector<8x8xf32>
    %1145 = vector.shape_cast %1142 : vector<8x8xf32> to vector<1x8x8xf32>
    tpu.vector_store %arg11[%c1_899, %c81_900, %c0_901], %1145 {strides = array<i32>} : memref<2x104x8xf32, #tpu.memory_space<vmem>>, vector<1x8x8xf32>,
    %cst_902 = arith.constant 0.000000e+00 : f32
    %1146 = vector.broadcast %cst_902 : f32 to vector<80x8xf32>
    %c0_903 = arith.constant 0 : index
    %c0_904 = arith.constant 0 : index
    %c0_905 = arith.constant 0 : index
    %1147 = vector.load %arg11[%c0_903, %c0_904, %c0_905] : memref<2x104x8xf32, #tpu.memory_space<vmem>>, vector<1x80x8xf32>
    %1148 = vector.shape_cast %1147 : vector<1x80x8xf32> to vector<80x8xf32>
    %c0_906 = arith.constant 0 : index
    %c0_907 = arith.constant 0 : index
    %c0_908 = arith.constant 0 : index
    %1149 = vector.load %arg3[%c0_906, %c0_907, %c0_908] : memref<9x8x8xf32, #tpu.memory_space<vmem>>, vector<1x8x8xf32>
    %1150 = vector.shape_cast %1149 : vector<1x8x8xf32> to vector<8x8xf32>
    %cst_909 = arith.constant dense<0.000000e+00> : vector<80x8xf32>
    %1151 = tpu.matmul %1148, %1150, %cst_909 {dimension_numbers = #tpu.dot_dimension_numbers<[1], [0], [0], [1], [0, 0, 1, 1], [], []>} : vector<80x8xf32>, vector<8x8xf32>, vector<80x8xf32> -> vector<80x8xf32>
    %1152 = arith.addf %1146, %1151 : vector<80x8xf32>
    %c0_910 = arith.constant 0 : index
    %c1_911 = arith.constant 1 : index
    %c0_912 = arith.constant 0 : index
    %1153 = vector.load %arg11[%c0_910, %c1_911, %c0_912] : memref<2x104x8xf32, #tpu.memory_space<vmem>>, vector<1x80x8xf32>
    %1154 = vector.shape_cast %1153 : vector<1x80x8xf32> to vector<80x8xf32>
    %c1_913 = arith.constant 1 : index
    %c0_914 = arith.constant 0 : index
    %c0_915 = arith.constant 0 : index
    %1155 = vector.load %arg3[%c1_913, %c0_914, %c0_915] : memref<9x8x8xf32, #tpu.memory_space<vmem>>, vector<1x8x8xf32>
    %1156 = vector.shape_cast %1155 : vector<1x8x8xf32> to vector<8x8xf32>
    %cst_916 = arith.constant dense<0.000000e+00> : vector<80x8xf32>
    %1157 = tpu.matmul %1154, %1156, %cst_916 {dimension_numbers = #tpu.dot_dimension_numbers<[1], [0], [0], [1], [0, 0, 1, 1], [], []>} : vector<80x8xf32>, vector<8x8xf32>, vector<80x8xf32> -> vector<80x8xf32>
    %1158 = arith.addf %1152, %1157 : vector<80x8xf32>
    %c0_917 = arith.constant 0 : index
    %c2_918 = arith.constant 2 : index
    %c0_919 = arith.constant 0 : index
    %1159 = vector.load %arg11[%c0_917, %c2_918, %c0_919] : memref<2x104x8xf32, #tpu.memory_space<vmem>>, vector<1x80x8xf32>
    %1160 = vector.shape_cast %1159 : vector<1x80x8xf32> to vector<80x8xf32>
    %c2_920 = arith.constant 2 : index
    %c0_921 = arith.constant 0 : index
    %c0_922 = arith.constant 0 : index
    %1161 = vector.load %arg3[%c2_920, %c0_921, %c0_922] : memref<9x8x8xf32, #tpu.memory_space<vmem>>, vector<1x8x8xf32>
    %1162 = vector.shape_cast %1161 : vector<1x8x8xf32> to vector<8x8xf32>
    %cst_923 = arith.constant dense<0.000000e+00> : vector<80x8xf32>
    %1163 = tpu.matmul %1160, %1162, %cst_923 {dimension_numbers = #tpu.dot_dimension_numbers<[1], [0], [0], [1], [0, 0, 1, 1], [], []>} : vector<80x8xf32>, vector<8x8xf32>, vector<80x8xf32> -> vector<80x8xf32>
    %1164 = arith.addf %1158, %1163 : vector<80x8xf32>
    %c0_924 = arith.constant 0 : index
    %c10_925 = arith.constant 10 : index
    %c0_926 = arith.constant 0 : index
    %1165 = vector.load %arg11[%c0_924, %c10_925, %c0_926] : memref<2x104x8xf32, #tpu.memory_space<vmem>>, vector<1x80x8xf32>
    %1166 = vector.shape_cast %1165 : vector<1x80x8xf32> to vector<80x8xf32>
    %c3_927 = arith.constant 3 : index
    %c0_928 = arith.constant 0 : index
    %c0_929 = arith.constant 0 : index
    %1167 = vector.load %arg3[%c3_927, %c0_928, %c0_929] : memref<9x8x8xf32, #tpu.memory_space<vmem>>, vector<1x8x8xf32>
    %1168 = vector.shape_cast %1167 : vector<1x8x8xf32> to vector<8x8xf32>
    %cst_930 = arith.constant dense<0.000000e+00> : vector<80x8xf32>
    %1169 = tpu.matmul %1166, %1168, %cst_930 {dimension_numbers = #tpu.dot_dimension_numbers<[1], [0], [0], [1], [0, 0, 1, 1], [], []>} : vector<80x8xf32>, vector<8x8xf32>, vector<80x8xf32> -> vector<80x8xf32>
    %1170 = arith.addf %1164, %1169 : vector<80x8xf32>
    %c0_931 = arith.constant 0 : index
    %c11_932 = arith.constant 11 : index
    %c0_933 = arith.constant 0 : index
    %1171 = vector.load %arg11[%c0_931, %c11_932, %c0_933] : memref<2x104x8xf32, #tpu.memory_space<vmem>>, vector<1x80x8xf32>
    %1172 = vector.shape_cast %1171 : vector<1x80x8xf32> to vector<80x8xf32>
    %c4_934 = arith.constant 4 : index
    %c0_935 = arith.constant 0 : index
    %c0_936 = arith.constant 0 : index
    %1173 = vector.load %arg3[%c4_934, %c0_935, %c0_936] : memref<9x8x8xf32, #tpu.memory_space<vmem>>, vector<1x8x8xf32>
    %1174 = vector.shape_cast %1173 : vector<1x8x8xf32> to vector<8x8xf32>
    %cst_937 = arith.constant dense<0.000000e+00> : vector<80x8xf32>
    %1175 = tpu.matmul %1172, %1174, %cst_937 {dimension_numbers = #tpu.dot_dimension_numbers<[1], [0], [0], [1], [0, 0, 1, 1], [], []>} : vector<80x8xf32>, vector<8x8xf32>, vector<80x8xf32> -> vector<80x8xf32>
    %1176 = arith.addf %1170, %1175 : vector<80x8xf32>
    %c0_938 = arith.constant 0 : index
    %c12_939 = arith.constant 12 : index
    %c0_940 = arith.constant 0 : index
    %1177 = vector.load %arg11[%c0_938, %c12_939, %c0_940] : memref<2x104x8xf32, #tpu.memory_space<vmem>>, vector<1x80x8xf32>
    %1178 = vector.shape_cast %1177 : vector<1x80x8xf32> to vector<80x8xf32>
    %c5_941 = arith.constant 5 : index
    %c0_942 = arith.constant 0 : index
    %c0_943 = arith.constant 0 : index
    %1179 = vector.load %arg3[%c5_941, %c0_942, %c0_943] : memref<9x8x8xf32, #tpu.memory_space<vmem>>, vector<1x8x8xf32>
    %1180 = vector.shape_cast %1179 : vector<1x8x8xf32> to vector<8x8xf32>
    %cst_944 = arith.constant dense<0.000000e+00> : vector<80x8xf32>
    %1181 = tpu.matmul %1178, %1180, %cst_944 {dimension_numbers = #tpu.dot_dimension_numbers<[1], [0], [0], [1], [0, 0, 1, 1], [], []>} : vector<80x8xf32>, vector<8x8xf32>, vector<80x8xf32> -> vector<80x8xf32>
    %1182 = arith.addf %1176, %1181 : vector<80x8xf32>
    %c0_945 = arith.constant 0 : index
    %c20_946 = arith.constant 20 : index
    %c0_947 = arith.constant 0 : index
    %1183 = vector.load %arg11[%c0_945, %c20_946, %c0_947] : memref<2x104x8xf32, #tpu.memory_space<vmem>>, vector<1x80x8xf32>
    %1184 = vector.shape_cast %1183 : vector<1x80x8xf32> to vector<80x8xf32>
    %c6_948 = arith.constant 6 : index
    %c0_949 = arith.constant 0 : index
    %c0_950 = arith.constant 0 : index
    %1185 = vector.load %arg3[%c6_948, %c0_949, %c0_950] : memref<9x8x8xf32, #tpu.memory_space<vmem>>, vector<1x8x8xf32>
    %1186 = vector.shape_cast %1185 : vector<1x8x8xf32> to vector<8x8xf32>
    %cst_951 = arith.constant dense<0.000000e+00> : vector<80x8xf32>
    %1187 = tpu.matmul %1184, %1186, %cst_951 {dimension_numbers = #tpu.dot_dimension_numbers<[1], [0], [0], [1], [0, 0, 1, 1], [], []>} : vector<80x8xf32>, vector<8x8xf32>, vector<80x8xf32> -> vector<80x8xf32>
    %1188 = arith.addf %1182, %1187 : vector<80x8xf32>
    %c0_952 = arith.constant 0 : index
    %c21_953 = arith.constant 21 : index
    %c0_954 = arith.constant 0 : index
    %1189 = vector.load %arg11[%c0_952, %c21_953, %c0_954] : memref<2x104x8xf32, #tpu.memory_space<vmem>>, vector<1x80x8xf32>
    %1190 = vector.shape_cast %1189 : vector<1x80x8xf32> to vector<80x8xf32>
    %c7_955 = arith.constant 7 : index
    %c0_956 = arith.constant 0 : index
    %c0_957 = arith.constant 0 : index
    %1191 = vector.load %arg3[%c7_955, %c0_956, %c0_957] : memref<9x8x8xf32, #tpu.memory_space<vmem>>, vector<1x8x8xf32>
    %1192 = vector.shape_cast %1191 : vector<1x8x8xf32> to vector<8x8xf32>
    %cst_958 = arith.constant dense<0.000000e+00> : vector<80x8xf32>
    %1193 = tpu.matmul %1190, %1192, %cst_958 {dimension_numbers = #tpu.dot_dimension_numbers<[1], [0], [0], [1], [0, 0, 1, 1], [], []>} : vector<80x8xf32>, vector<8x8xf32>, vector<80x8xf32> -> vector<80x8xf32>
    %1194 = arith.addf %1188, %1193 : vector<80x8xf32>
    %c0_959 = arith.constant 0 : index
    %c22_960 = arith.constant 22 : index
    %c0_961 = arith.constant 0 : index
    %1195 = vector.load %arg11[%c0_959, %c22_960, %c0_961] : memref<2x104x8xf32, #tpu.memory_space<vmem>>, vector<1x80x8xf32>
    %1196 = vector.shape_cast %1195 : vector<1x80x8xf32> to vector<80x8xf32>
    %c8_962 = arith.constant 8 : index
    %c0_963 = arith.constant 0 : index
    %c0_964 = arith.constant 0 : index
    %1197 = vector.load %arg3[%c8_962, %c0_963, %c0_964] : memref<9x8x8xf32, #tpu.memory_space<vmem>>, vector<1x8x8xf32>
    %1198 = vector.shape_cast %1197 : vector<1x8x8xf32> to vector<8x8xf32>
    %cst_965 = arith.constant dense<0.000000e+00> : vector<80x8xf32>
    %1199 = tpu.matmul %1196, %1198, %cst_965 {dimension_numbers = #tpu.dot_dimension_numbers<[1], [0], [0], [1], [0, 0, 1, 1], [], []>} : vector<80x8xf32>, vector<8x8xf32>, vector<80x8xf32> -> vector<80x8xf32>
    %1200 = arith.addf %1194, %1199 : vector<80x8xf32>
    %c0_966 = arith.constant 0 : index
    %c0_967 = arith.constant 0 : index
    %c0_968 = arith.constant 0 : index
    %1201 = vector.load %arg12[%c0_966, %c0_967, %c0_968] : memref<2x80x8xf32, #tpu.memory_space<vmem>>, vector<1x80x8xf32>
    %1202 = vector.shape_cast %1201 : vector<1x80x8xf32> to vector<80x8xf32>
    %1203 = vector.shape_cast %1200 : vector<80x8xf32> to vector<1x80x8xf32>
    tpu.vector_store %arg12[%c0_966, %c0_967, %c0_968], %1203 {strides = array<i32>} : memref<2x80x8xf32, #tpu.memory_space<vmem>>, vector<1x80x8xf32>,
    %cst_969 = arith.constant 0.000000e+00 : f32
    %1204 = vector.broadcast %cst_969 : f32 to vector<80x8xf32>
    %c1_970 = arith.constant 1 : index
    %c0_971 = arith.constant 0 : index
    %c0_972 = arith.constant 0 : index
    %1205 = vector.load %arg11[%c1_970, %c0_971, %c0_972] : memref<2x104x8xf32, #tpu.memory_space<vmem>>, vector<1x80x8xf32>
    %1206 = vector.shape_cast %1205 : vector<1x80x8xf32> to vector<80x8xf32>
    %c0_973 = arith.constant 0 : index
    %c0_974 = arith.constant 0 : index
    %c0_975 = arith.constant 0 : index
    %1207 = vector.load %arg3[%c0_973, %c0_974, %c0_975] : memref<9x8x8xf32, #tpu.memory_space<vmem>>, vector<1x8x8xf32>
    %1208 = vector.shape_cast %1207 : vector<1x8x8xf32> to vector<8x8xf32>
    %cst_976 = arith.constant dense<0.000000e+00> : vector<80x8xf32>
    %1209 = tpu.matmul %1206, %1208, %cst_976 {dimension_numbers = #tpu.dot_dimension_numbers<[1], [0], [0], [1], [0, 0, 1, 1], [], []>} : vector<80x8xf32>, vector<8x8xf32>, vector<80x8xf32> -> vector<80x8xf32>
    %1210 = arith.addf %1204, %1209 : vector<80x8xf32>
    %c1_977 = arith.constant 1 : index
    %c1_978 = arith.constant 1 : index
    %c0_979 = arith.constant 0 : index
    %1211 = vector.load %arg11[%c1_977, %c1_978, %c0_979] : memref<2x104x8xf32, #tpu.memory_space<vmem>>, vector<1x80x8xf32>
    %1212 = vector.shape_cast %1211 : vector<1x80x8xf32> to vector<80x8xf32>
    %c1_980 = arith.constant 1 : index
    %c0_981 = arith.constant 0 : index
    %c0_982 = arith.constant 0 : index
    %1213 = vector.load %arg3[%c1_980, %c0_981, %c0_982] : memref<9x8x8xf32, #tpu.memory_space<vmem>>, vector<1x8x8xf32>
    %1214 = vector.shape_cast %1213 : vector<1x8x8xf32> to vector<8x8xf32>
    %cst_983 = arith.constant dense<0.000000e+00> : vector<80x8xf32>
    %1215 = tpu.matmul %1212, %1214, %cst_983 {dimension_numbers = #tpu.dot_dimension_numbers<[1], [0], [0], [1], [0, 0, 1, 1], [], []>} : vector<80x8xf32>, vector<8x8xf32>, vector<80x8xf32> -> vector<80x8xf32>
    %1216 = arith.addf %1210, %1215 : vector<80x8xf32>
    %c1_984 = arith.constant 1 : index
    %c2_985 = arith.constant 2 : index
    %c0_986 = arith.constant 0 : index
    %1217 = vector.load %arg11[%c1_984, %c2_985, %c0_986] : memref<2x104x8xf32, #tpu.memory_space<vmem>>, vector<1x80x8xf32>
    %1218 = vector.shape_cast %1217 : vector<1x80x8xf32> to vector<80x8xf32>
    %c2_987 = arith.constant 2 : index
    %c0_988 = arith.constant 0 : index
    %c0_989 = arith.constant 0 : index
    %1219 = vector.load %arg3[%c2_987, %c0_988, %c0_989] : memref<9x8x8xf32, #tpu.memory_space<vmem>>, vector<1x8x8xf32>
    %1220 = vector.shape_cast %1219 : vector<1x8x8xf32> to vector<8x8xf32>
    %cst_990 = arith.constant dense<0.000000e+00> : vector<80x8xf32>
    %1221 = tpu.matmul %1218, %1220, %cst_990 {dimension_numbers = #tpu.dot_dimension_numbers<[1], [0], [0], [1], [0, 0, 1, 1], [], []>} : vector<80x8xf32>, vector<8x8xf32>, vector<80x8xf32> -> vector<80x8xf32>
    %1222 = arith.addf %1216, %1221 : vector<80x8xf32>
    %c1_991 = arith.constant 1 : index
    %c10_992 = arith.constant 10 : index
    %c0_993 = arith.constant 0 : index
    %1223 = vector.load %arg11[%c1_991, %c10_992, %c0_993] : memref<2x104x8xf32, #tpu.memory_space<vmem>>, vector<1x80x8xf32>
    %1224 = vector.shape_cast %1223 : vector<1x80x8xf32> to vector<80x8xf32>
    %c3_994 = arith.constant 3 : index
    %c0_995 = arith.constant 0 : index
    %c0_996 = arith.constant 0 : index
    %1225 = vector.load %arg3[%c3_994, %c0_995, %c0_996] : memref<9x8x8xf32, #tpu.memory_space<vmem>>, vector<1x8x8xf32>
    %1226 = vector.shape_cast %1225 : vector<1x8x8xf32> to vector<8x8xf32>
    %cst_997 = arith.constant dense<0.000000e+00> : vector<80x8xf32>
    %1227 = tpu.matmul %1224, %1226, %cst_997 {dimension_numbers = #tpu.dot_dimension_numbers<[1], [0], [0], [1], [0, 0, 1, 1], [], []>} : vector<80x8xf32>, vector<8x8xf32>, vector<80x8xf32> -> vector<80x8xf32>
    %1228 = arith.addf %1222, %1227 : vector<80x8xf32>
    %c1_998 = arith.constant 1 : index
    %c11_999 = arith.constant 11 : index
    %c0_1000 = arith.constant 0 : index
    %1229 = vector.load %arg11[%c1_998, %c11_999, %c0_1000] : memref<2x104x8xf32, #tpu.memory_space<vmem>>, vector<1x80x8xf32>
    %1230 = vector.shape_cast %1229 : vector<1x80x8xf32> to vector<80x8xf32>
    %c4_1001 = arith.constant 4 : index
    %c0_1002 = arith.constant 0 : index
    %c0_1003 = arith.constant 0 : index
    %1231 = vector.load %arg3[%c4_1001, %c0_1002, %c0_1003] : memref<9x8x8xf32, #tpu.memory_space<vmem>>, vector<1x8x8xf32>
    %1232 = vector.shape_cast %1231 : vector<1x8x8xf32> to vector<8x8xf32>
    %cst_1004 = arith.constant dense<0.000000e+00> : vector<80x8xf32>
    %1233 = tpu.matmul %1230, %1232, %cst_1004 {dimension_numbers = #tpu.dot_dimension_numbers<[1], [0], [0], [1], [0, 0, 1, 1], [], []>} : vector<80x8xf32>, vector<8x8xf32>, vector<80x8xf32> -> vector<80x8xf32>
    %1234 = arith.addf %1228, %1233 : vector<80x8xf32>
    %c1_1005 = arith.constant 1 : index
    %c12_1006 = arith.constant 12 : index
    %c0_1007 = arith.constant 0 : index
    %1235 = vector.load %arg11[%c1_1005, %c12_1006, %c0_1007] : memref<2x104x8xf32, #tpu.memory_space<vmem>>, vector<1x80x8xf32>
    %1236 = vector.shape_cast %1235 : vector<1x80x8xf32> to vector<80x8xf32>
    %c5_1008 = arith.constant 5 : index
    %c0_1009 = arith.constant 0 : index
    %c0_1010 = arith.constant 0 : index
    %1237 = vector.load %arg3[%c5_1008, %c0_1009, %c0_1010] : memref<9x8x8xf32, #tpu.memory_space<vmem>>, vector<1x8x8xf32>
    %1238 = vector.shape_cast %1237 : vector<1x8x8xf32> to vector<8x8xf32>
    %cst_1011 = arith.constant dense<0.000000e+00> : vector<80x8xf32>
    %1239 = tpu.matmul %1236, %1238, %cst_1011 {dimension_numbers = #tpu.dot_dimension_numbers<[1], [0], [0], [1], [0, 0, 1, 1], [], []>} : vector<80x8xf32>, vector<8x8xf32>, vector<80x8xf32> -> vector<80x8xf32>
    %1240 = arith.addf %1234, %1239 : vector<80x8xf32>
    %c1_1012 = arith.constant 1 : index
    %c20_1013 = arith.constant 20 : index
    %c0_1014 = arith.constant 0 : index
    %1241 = vector.load %arg11[%c1_1012, %c20_1013, %c0_1014] : memref<2x104x8xf32, #tpu.memory_space<vmem>>, vector<1x80x8xf32>
    %1242 = vector.shape_cast %1241 : vector<1x80x8xf32> to vector<80x8xf32>
    %c6_1015 = arith.constant 6 : index
    %c0_1016 = arith.constant 0 : index
    %c0_1017 = arith.constant 0 : index
    %1243 = vector.load %arg3[%c6_1015, %c0_1016, %c0_1017] : memref<9x8x8xf32, #tpu.memory_space<vmem>>, vector<1x8x8xf32>
    %1244 = vector.shape_cast %1243 : vector<1x8x8xf32> to vector<8x8xf32>
    %cst_1018 = arith.constant dense<0.000000e+00> : vector<80x8xf32>
    %1245 = tpu.matmul %1242, %1244, %cst_1018 {dimension_numbers = #tpu.dot_dimension_numbers<[1], [0], [0], [1], [0, 0, 1, 1], [], []>} : vector<80x8xf32>, vector<8x8xf32>, vector<80x8xf32> -> vector<80x8xf32>
    %1246 = arith.addf %1240, %1245 : vector<80x8xf32>
    %c1_1019 = arith.constant 1 : index
    %c21_1020 = arith.constant 21 : index
    %c0_1021 = arith.constant 0 : index
    %1247 = vector.load %arg11[%c1_1019, %c21_1020, %c0_1021] : memref<2x104x8xf32, #tpu.memory_space<vmem>>, vector<1x80x8xf32>
    %1248 = vector.shape_cast %1247 : vector<1x80x8xf32> to vector<80x8xf32>
    %c7_1022 = arith.constant 7 : index
    %c0_1023 = arith.constant 0 : index
    %c0_1024 = arith.constant 0 : index
    %1249 = vector.load %arg3[%c7_1022, %c0_1023, %c0_1024] : memref<9x8x8xf32, #tpu.memory_space<vmem>>, vector<1x8x8xf32>
    %1250 = vector.shape_cast %1249 : vector<1x8x8xf32> to vector<8x8xf32>
    %cst_1025 = arith.constant dense<0.000000e+00> : vector<80x8xf32>
    %1251 = tpu.matmul %1248, %1250, %cst_1025 {dimension_numbers = #tpu.dot_dimension_numbers<[1], [0], [0], [1], [0, 0, 1, 1], [], []>} : vector<80x8xf32>, vector<8x8xf32>, vector<80x8xf32> -> vector<80x8xf32>
    %1252 = arith.addf %1246, %1251 : vector<80x8xf32>
    %c1_1026 = arith.constant 1 : index
    %c22_1027 = arith.constant 22 : index
    %c0_1028 = arith.constant 0 : index
    %1253 = vector.load %arg11[%c1_1026, %c22_1027, %c0_1028] : memref<2x104x8xf32, #tpu.memory_space<vmem>>, vector<1x80x8xf32>
    %1254 = vector.shape_cast %1253 : vector<1x80x8xf32> to vector<80x8xf32>
    %c8_1029 = arith.constant 8 : index
    %c0_1030 = arith.constant 0 : index
    %c0_1031 = arith.constant 0 : index
    %1255 = vector.load %arg3[%c8_1029, %c0_1030, %c0_1031] : memref<9x8x8xf32, #tpu.memory_space<vmem>>, vector<1x8x8xf32>
    %1256 = vector.shape_cast %1255 : vector<1x8x8xf32> to vector<8x8xf32>
    %cst_1032 = arith.constant dense<0.000000e+00> : vector<80x8xf32>
    %1257 = tpu.matmul %1254, %1256, %cst_1032 {dimension_numbers = #tpu.dot_dimension_numbers<[1], [0], [0], [1], [0, 0, 1, 1], [], []>} : vector<80x8xf32>, vector<8x8xf32>, vector<80x8xf32> -> vector<80x8xf32>
    %1258 = arith.addf %1252, %1257 : vector<80x8xf32>
    %c1_1033 = arith.constant 1 : index
    %c0_1034 = arith.constant 0 : index
    %c0_1035 = arith.constant 0 : index
    %1259 = vector.load %arg12[%c1_1033, %c0_1034, %c0_1035] : memref<2x80x8xf32, #tpu.memory_space<vmem>>, vector<1x80x8xf32>
    %1260 = vector.shape_cast %1259 : vector<1x80x8xf32> to vector<80x8xf32>
    %1261 = vector.shape_cast %1258 : vector<80x8xf32> to vector<1x80x8xf32>
    tpu.vector_store %arg12[%c1_1033, %c0_1034, %c0_1035], %1261 {strides = array<i32>} : memref<2x80x8xf32, #tpu.memory_space<vmem>>, vector<1x80x8xf32>,
    %cst_1036 = arith.constant 0.000000e+00 : f32
    %1262 = vector.broadcast %cst_1036 : f32 to vector<1x8xf32>
    %cst_1037 = arith.constant 0.000000e+00 : f32
    %1263 = vector.broadcast %cst_1037 : f32 to vector<1x8xf32>
    %c0_1038 = arith.constant 0 : index
    %c0_1039 = arith.constant 0 : index
    %c0_1040 = arith.constant 0 : index
    %1264 = vector.load %arg12[%c0_1038, %c0_1039, %c0_1040] : memref<2x80x8xf32, #tpu.memory_space<vmem>>, vector<1x8x8xf32>
    %1265 = vector.shape_cast %1264 : vector<1x8x8xf32> to vector<8x8xf32>
    %cst_1041 = arith.constant dense<0.000000e+00> : vector<8xf32>
    %1266 = vector.multi_reduction <add>, %1265, %cst_1041 [0] : vector<8x8xf32> to vector<8xf32>
    %1267 = vector.shape_cast %1266 : vector<8xf32> to vector<1x8xf32>
    %1268 = arith.addf %1262, %1267 : vector<1x8xf32>
    %1269 = arith.mulf %1265, %1265 : vector<8x8xf32>
    %cst_1042 = arith.constant dense<0.000000e+00> : vector<8xf32>
    %1270 = vector.multi_reduction <add>, %1269, %cst_1042 [0] : vector<8x8xf32> to vector<8xf32>
    %1271 = vector.shape_cast %1270 : vector<8xf32> to vector<1x8xf32>
    %1272 = arith.addf %1263, %1271 : vector<1x8xf32>
    %c0_1043 = arith.constant 0 : index
    %c10_1044 = arith.constant 10 : index
    %c0_1045 = arith.constant 0 : index
    %1273 = vector.load %arg12[%c0_1043, %c10_1044, %c0_1045] : memref<2x80x8xf32, #tpu.memory_space<vmem>>, vector<1x8x8xf32>
    %1274 = vector.shape_cast %1273 : vector<1x8x8xf32> to vector<8x8xf32>
    %cst_1046 = arith.constant dense<0.000000e+00> : vector<8xf32>
    %1275 = vector.multi_reduction <add>, %1274, %cst_1046 [0] : vector<8x8xf32> to vector<8xf32>
    %1276 = vector.shape_cast %1275 : vector<8xf32> to vector<1x8xf32>
    %1277 = arith.addf %1268, %1276 : vector<1x8xf32>
    %1278 = arith.mulf %1274, %1274 : vector<8x8xf32>
    %cst_1047 = arith.constant dense<0.000000e+00> : vector<8xf32>
    %1279 = vector.multi_reduction <add>, %1278, %cst_1047 [0] : vector<8x8xf32> to vector<8xf32>
    %1280 = vector.shape_cast %1279 : vector<8xf32> to vector<1x8xf32>
    %1281 = arith.addf %1272, %1280 : vector<1x8xf32>
    %c0_1048 = arith.constant 0 : index
    %c20_1049 = arith.constant 20 : index
    %c0_1050 = arith.constant 0 : index
    %1282 = vector.load %arg12[%c0_1048, %c20_1049, %c0_1050] : memref<2x80x8xf32, #tpu.memory_space<vmem>>, vector<1x8x8xf32>
    %1283 = vector.shape_cast %1282 : vector<1x8x8xf32> to vector<8x8xf32>
    %cst_1051 = arith.constant dense<0.000000e+00> : vector<8xf32>
    %1284 = vector.multi_reduction <add>, %1283, %cst_1051 [0] : vector<8x8xf32> to vector<8xf32>
    %1285 = vector.shape_cast %1284 : vector<8xf32> to vector<1x8xf32>
    %1286 = arith.addf %1277, %1285 : vector<1x8xf32>
    %1287 = arith.mulf %1283, %1283 : vector<8x8xf32>
    %cst_1052 = arith.constant dense<0.000000e+00> : vector<8xf32>
    %1288 = vector.multi_reduction <add>, %1287, %cst_1052 [0] : vector<8x8xf32> to vector<8xf32>
    %1289 = vector.shape_cast %1288 : vector<8xf32> to vector<1x8xf32>
    %1290 = arith.addf %1281, %1289 : vector<1x8xf32>
    %c0_1053 = arith.constant 0 : index
    %c30_1054 = arith.constant 30 : index
    %c0_1055 = arith.constant 0 : index
    %1291 = vector.load %arg12[%c0_1053, %c30_1054, %c0_1055] : memref<2x80x8xf32, #tpu.memory_space<vmem>>, vector<1x8x8xf32>
    %1292 = vector.shape_cast %1291 : vector<1x8x8xf32> to vector<8x8xf32>
    %cst_1056 = arith.constant dense<0.000000e+00> : vector<8xf32>
    %1293 = vector.multi_reduction <add>, %1292, %cst_1056 [0] : vector<8x8xf32> to vector<8xf32>
    %1294 = vector.shape_cast %1293 : vector<8xf32> to vector<1x8xf32>
    %1295 = arith.addf %1286, %1294 : vector<1x8xf32>
    %1296 = arith.mulf %1292, %1292 : vector<8x8xf32>
    %cst_1057 = arith.constant dense<0.000000e+00> : vector<8xf32>
    %1297 = vector.multi_reduction <add>, %1296, %cst_1057 [0] : vector<8x8xf32> to vector<8xf32>
    %1298 = vector.shape_cast %1297 : vector<8xf32> to vector<1x8xf32>
    %1299 = arith.addf %1290, %1298 : vector<1x8xf32>
    %c0_1058 = arith.constant 0 : index
    %c40_1059 = arith.constant 40 : index
    %c0_1060 = arith.constant 0 : index
    %1300 = vector.load %arg12[%c0_1058, %c40_1059, %c0_1060] : memref<2x80x8xf32, #tpu.memory_space<vmem>>, vector<1x8x8xf32>
    %1301 = vector.shape_cast %1300 : vector<1x8x8xf32> to vector<8x8xf32>
    %cst_1061 = arith.constant dense<0.000000e+00> : vector<8xf32>
    %1302 = vector.multi_reduction <add>, %1301, %cst_1061 [0] : vector<8x8xf32> to vector<8xf32>
    %1303 = vector.shape_cast %1302 : vector<8xf32> to vector<1x8xf32>
    %1304 = arith.addf %1295, %1303 : vector<1x8xf32>
    %1305 = arith.mulf %1301, %1301 : vector<8x8xf32>
    %cst_1062 = arith.constant dense<0.000000e+00> : vector<8xf32>
    %1306 = vector.multi_reduction <add>, %1305, %cst_1062 [0] : vector<8x8xf32> to vector<8xf32>
    %1307 = vector.shape_cast %1306 : vector<8xf32> to vector<1x8xf32>
    %1308 = arith.addf %1299, %1307 : vector<1x8xf32>
    %c0_1063 = arith.constant 0 : index
    %c50_1064 = arith.constant 50 : index
    %c0_1065 = arith.constant 0 : index
    %1309 = vector.load %arg12[%c0_1063, %c50_1064, %c0_1065] : memref<2x80x8xf32, #tpu.memory_space<vmem>>, vector<1x8x8xf32>
    %1310 = vector.shape_cast %1309 : vector<1x8x8xf32> to vector<8x8xf32>
    %cst_1066 = arith.constant dense<0.000000e+00> : vector<8xf32>
    %1311 = vector.multi_reduction <add>, %1310, %cst_1066 [0] : vector<8x8xf32> to vector<8xf32>
    %1312 = vector.shape_cast %1311 : vector<8xf32> to vector<1x8xf32>
    %1313 = arith.addf %1304, %1312 : vector<1x8xf32>
    %1314 = arith.mulf %1310, %1310 : vector<8x8xf32>
    %cst_1067 = arith.constant dense<0.000000e+00> : vector<8xf32>
    %1315 = vector.multi_reduction <add>, %1314, %cst_1067 [0] : vector<8x8xf32> to vector<8xf32>
    %1316 = vector.shape_cast %1315 : vector<8xf32> to vector<1x8xf32>
    %1317 = arith.addf %1308, %1316 : vector<1x8xf32>
    %c0_1068 = arith.constant 0 : index
    %c60_1069 = arith.constant 60 : index
    %c0_1070 = arith.constant 0 : index
    %1318 = vector.load %arg12[%c0_1068, %c60_1069, %c0_1070] : memref<2x80x8xf32, #tpu.memory_space<vmem>>, vector<1x8x8xf32>
    %1319 = vector.shape_cast %1318 : vector<1x8x8xf32> to vector<8x8xf32>
    %cst_1071 = arith.constant dense<0.000000e+00> : vector<8xf32>
    %1320 = vector.multi_reduction <add>, %1319, %cst_1071 [0] : vector<8x8xf32> to vector<8xf32>
    %1321 = vector.shape_cast %1320 : vector<8xf32> to vector<1x8xf32>
    %1322 = arith.addf %1313, %1321 : vector<1x8xf32>
    %1323 = arith.mulf %1319, %1319 : vector<8x8xf32>
    %cst_1072 = arith.constant dense<0.000000e+00> : vector<8xf32>
    %1324 = vector.multi_reduction <add>, %1323, %cst_1072 [0] : vector<8x8xf32> to vector<8xf32>
    %1325 = vector.shape_cast %1324 : vector<8xf32> to vector<1x8xf32>
    %1326 = arith.addf %1317, %1325 : vector<1x8xf32>
    %c0_1073 = arith.constant 0 : index
    %c70_1074 = arith.constant 70 : index
    %c0_1075 = arith.constant 0 : index
    %1327 = vector.load %arg12[%c0_1073, %c70_1074, %c0_1075] : memref<2x80x8xf32, #tpu.memory_space<vmem>>, vector<1x8x8xf32>
    %1328 = vector.shape_cast %1327 : vector<1x8x8xf32> to vector<8x8xf32>
    %cst_1076 = arith.constant dense<0.000000e+00> : vector<8xf32>
    %1329 = vector.multi_reduction <add>, %1328, %cst_1076 [0] : vector<8x8xf32> to vector<8xf32>
    %1330 = vector.shape_cast %1329 : vector<8xf32> to vector<1x8xf32>
    %1331 = arith.addf %1322, %1330 : vector<1x8xf32>
    %1332 = arith.mulf %1328, %1328 : vector<8x8xf32>
    %cst_1077 = arith.constant dense<0.000000e+00> : vector<8xf32>
    %1333 = vector.multi_reduction <add>, %1332, %cst_1077 [0] : vector<8x8xf32> to vector<8xf32>
    %1334 = vector.shape_cast %1333 : vector<8xf32> to vector<1x8xf32>
    %1335 = arith.addf %1326, %1334 : vector<1x8xf32>
    %c1_1078 = arith.constant 1 : index
    %c0_1079 = arith.constant 0 : index
    %c0_1080 = arith.constant 0 : index
    %1336 = vector.load %arg12[%c1_1078, %c0_1079, %c0_1080] : memref<2x80x8xf32, #tpu.memory_space<vmem>>, vector<1x8x8xf32>
    %1337 = vector.shape_cast %1336 : vector<1x8x8xf32> to vector<8x8xf32>
    %cst_1081 = arith.constant dense<0.000000e+00> : vector<8xf32>
    %1338 = vector.multi_reduction <add>, %1337, %cst_1081 [0] : vector<8x8xf32> to vector<8xf32>
    %1339 = vector.shape_cast %1338 : vector<8xf32> to vector<1x8xf32>
    %1340 = arith.addf %1331, %1339 : vector<1x8xf32>
    %1341 = arith.mulf %1337, %1337 : vector<8x8xf32>
    %cst_1082 = arith.constant dense<0.000000e+00> : vector<8xf32>
    %1342 = vector.multi_reduction <add>, %1341, %cst_1082 [0] : vector<8x8xf32> to vector<8xf32>
    %1343 = vector.shape_cast %1342 : vector<8xf32> to vector<1x8xf32>
    %1344 = arith.addf %1335, %1343 : vector<1x8xf32>
    %c1_1083 = arith.constant 1 : index
    %c10_1084 = arith.constant 10 : index
    %c0_1085 = arith.constant 0 : index
    %1345 = vector.load %arg12[%c1_1083, %c10_1084, %c0_1085] : memref<2x80x8xf32, #tpu.memory_space<vmem>>, vector<1x8x8xf32>
    %1346 = vector.shape_cast %1345 : vector<1x8x8xf32> to vector<8x8xf32>
    %cst_1086 = arith.constant dense<0.000000e+00> : vector<8xf32>
    %1347 = vector.multi_reduction <add>, %1346, %cst_1086 [0] : vector<8x8xf32> to vector<8xf32>
    %1348 = vector.shape_cast %1347 : vector<8xf32> to vector<1x8xf32>
    %1349 = arith.addf %1340, %1348 : vector<1x8xf32>
    %1350 = arith.mulf %1346, %1346 : vector<8x8xf32>
    %cst_1087 = arith.constant dense<0.000000e+00> : vector<8xf32>
    %1351 = vector.multi_reduction <add>, %1350, %cst_1087 [0] : vector<8x8xf32> to vector<8xf32>
    %1352 = vector.shape_cast %1351 : vector<8xf32> to vector<1x8xf32>
    %1353 = arith.addf %1344, %1352 : vector<1x8xf32>
    %c1_1088 = arith.constant 1 : index
    %c20_1089 = arith.constant 20 : index
    %c0_1090 = arith.constant 0 : index
    %1354 = vector.load %arg12[%c1_1088, %c20_1089, %c0_1090] : memref<2x80x8xf32, #tpu.memory_space<vmem>>, vector<1x8x8xf32>
    %1355 = vector.shape_cast %1354 : vector<1x8x8xf32> to vector<8x8xf32>
    %cst_1091 = arith.constant dense<0.000000e+00> : vector<8xf32>
    %1356 = vector.multi_reduction <add>, %1355, %cst_1091 [0] : vector<8x8xf32> to vector<8xf32>
    %1357 = vector.shape_cast %1356 : vector<8xf32> to vector<1x8xf32>
    %1358 = arith.addf %1349, %1357 : vector<1x8xf32>
    %1359 = arith.mulf %1355, %1355 : vector<8x8xf32>
    %cst_1092 = arith.constant dense<0.000000e+00> : vector<8xf32>
    %1360 = vector.multi_reduction <add>, %1359, %cst_1092 [0] : vector<8x8xf32> to vector<8xf32>
    %1361 = vector.shape_cast %1360 : vector<8xf32> to vector<1x8xf32>
    %1362 = arith.addf %1353, %1361 : vector<1x8xf32>
    %c1_1093 = arith.constant 1 : index
    %c30_1094 = arith.constant 30 : index
    %c0_1095 = arith.constant 0 : index
    %1363 = vector.load %arg12[%c1_1093, %c30_1094, %c0_1095] : memref<2x80x8xf32, #tpu.memory_space<vmem>>, vector<1x8x8xf32>
    %1364 = vector.shape_cast %1363 : vector<1x8x8xf32> to vector<8x8xf32>
    %cst_1096 = arith.constant dense<0.000000e+00> : vector<8xf32>
    %1365 = vector.multi_reduction <add>, %1364, %cst_1096 [0] : vector<8x8xf32> to vector<8xf32>
    %1366 = vector.shape_cast %1365 : vector<8xf32> to vector<1x8xf32>
    %1367 = arith.addf %1358, %1366 : vector<1x8xf32>
    %1368 = arith.mulf %1364, %1364 : vector<8x8xf32>
    %cst_1097 = arith.constant dense<0.000000e+00> : vector<8xf32>
    %1369 = vector.multi_reduction <add>, %1368, %cst_1097 [0] : vector<8x8xf32> to vector<8xf32>
    %1370 = vector.shape_cast %1369 : vector<8xf32> to vector<1x8xf32>
    %1371 = arith.addf %1362, %1370 : vector<1x8xf32>
    %c1_1098 = arith.constant 1 : index
    %c40_1099 = arith.constant 40 : index
    %c0_1100 = arith.constant 0 : index
    %1372 = vector.load %arg12[%c1_1098, %c40_1099, %c0_1100] : memref<2x80x8xf32, #tpu.memory_space<vmem>>, vector<1x8x8xf32>
    %1373 = vector.shape_cast %1372 : vector<1x8x8xf32> to vector<8x8xf32>
    %cst_1101 = arith.constant dense<0.000000e+00> : vector<8xf32>
    %1374 = vector.multi_reduction <add>, %1373, %cst_1101 [0] : vector<8x8xf32> to vector<8xf32>
    %1375 = vector.shape_cast %1374 : vector<8xf32> to vector<1x8xf32>
    %1376 = arith.addf %1367, %1375 : vector<1x8xf32>
    %1377 = arith.mulf %1373, %1373 : vector<8x8xf32>
    %cst_1102 = arith.constant dense<0.000000e+00> : vector<8xf32>
    %1378 = vector.multi_reduction <add>, %1377, %cst_1102 [0] : vector<8x8xf32> to vector<8xf32>
    %1379 = vector.shape_cast %1378 : vector<8xf32> to vector<1x8xf32>
    %1380 = arith.addf %1371, %1379 : vector<1x8xf32>
    %c1_1103 = arith.constant 1 : index
    %c50_1104 = arith.constant 50 : index
    %c0_1105 = arith.constant 0 : index
    %1381 = vector.load %arg12[%c1_1103, %c50_1104, %c0_1105] : memref<2x80x8xf32, #tpu.memory_space<vmem>>, vector<1x8x8xf32>
    %1382 = vector.shape_cast %1381 : vector<1x8x8xf32> to vector<8x8xf32>
    %cst_1106 = arith.constant dense<0.000000e+00> : vector<8xf32>
    %1383 = vector.multi_reduction <add>, %1382, %cst_1106 [0] : vector<8x8xf32> to vector<8xf32>
    %1384 = vector.shape_cast %1383 : vector<8xf32> to vector<1x8xf32>
    %1385 = arith.addf %1376, %1384 : vector<1x8xf32>
    %1386 = arith.mulf %1382, %1382 : vector<8x8xf32>
    %cst_1107 = arith.constant dense<0.000000e+00> : vector<8xf32>
    %1387 = vector.multi_reduction <add>, %1386, %cst_1107 [0] : vector<8x8xf32> to vector<8xf32>
    %1388 = vector.shape_cast %1387 : vector<8xf32> to vector<1x8xf32>
    %1389 = arith.addf %1380, %1388 : vector<1x8xf32>
    %c1_1108 = arith.constant 1 : index
    %c60_1109 = arith.constant 60 : index
    %c0_1110 = arith.constant 0 : index
    %1390 = vector.load %arg12[%c1_1108, %c60_1109, %c0_1110] : memref<2x80x8xf32, #tpu.memory_space<vmem>>, vector<1x8x8xf32>
    %1391 = vector.shape_cast %1390 : vector<1x8x8xf32> to vector<8x8xf32>
    %cst_1111 = arith.constant dense<0.000000e+00> : vector<8xf32>
    %1392 = vector.multi_reduction <add>, %1391, %cst_1111 [0] : vector<8x8xf32> to vector<8xf32>
    %1393 = vector.shape_cast %1392 : vector<8xf32> to vector<1x8xf32>
    %1394 = arith.addf %1385, %1393 : vector<1x8xf32>
    %1395 = arith.mulf %1391, %1391 : vector<8x8xf32>
    %cst_1112 = arith.constant dense<0.000000e+00> : vector<8xf32>
    %1396 = vector.multi_reduction <add>, %1395, %cst_1112 [0] : vector<8x8xf32> to vector<8xf32>
    %1397 = vector.shape_cast %1396 : vector<8xf32> to vector<1x8xf32>
    %1398 = arith.addf %1389, %1397 : vector<1x8xf32>
    %c1_1113 = arith.constant 1 : index
    %c70_1114 = arith.constant 70 : index
    %c0_1115 = arith.constant 0 : index
    %1399 = vector.load %arg12[%c1_1113, %c70_1114, %c0_1115] : memref<2x80x8xf32, #tpu.memory_space<vmem>>, vector<1x8x8xf32>
    %1400 = vector.shape_cast %1399 : vector<1x8x8xf32> to vector<8x8xf32>
    %cst_1116 = arith.constant dense<0.000000e+00> : vector<8xf32>
    %1401 = vector.multi_reduction <add>, %1400, %cst_1116 [0] : vector<8x8xf32> to vector<8xf32>
    %1402 = vector.shape_cast %1401 : vector<8xf32> to vector<1x8xf32>
    %1403 = arith.addf %1394, %1402 : vector<1x8xf32>
    %1404 = arith.mulf %1400, %1400 : vector<8x8xf32>
    %cst_1117 = arith.constant dense<0.000000e+00> : vector<8xf32>
    %1405 = vector.multi_reduction <add>, %1404, %cst_1117 [0] : vector<8x8xf32> to vector<8xf32>
    %1406 = vector.shape_cast %1405 : vector<8xf32> to vector<1x8xf32>
    %1407 = arith.addf %1398, %1406 : vector<1x8xf32>
    %cst_1118 = arith.constant 7.812500e-03 : f32
    %1408 = vector.broadcast %cst_1118 : f32 to vector<1x8xf32>
    %1409 = arith.mulf %1403, %1408 : vector<1x8xf32>
    %cst_1119 = arith.constant 7.812500e-03 : f32
    %1410 = vector.broadcast %cst_1119 : f32 to vector<1x8xf32>
    %1411 = arith.mulf %1407, %1410 : vector<1x8xf32>
    %1412 = arith.mulf %1409, %1409 : vector<1x8xf32>
    %1413 = arith.subf %1411, %1412 : vector<1x8xf32>
    %cst_1120 = arith.constant 0.000000e+00 : f32
    %1414 = vector.broadcast %cst_1120 : f32 to vector<1x8xf32>
    %1415 = arith.maximumf %1413, %1414 : vector<1x8xf32>
    %c0_1121 = arith.constant 0 : index
    %c0_1122 = arith.constant 0 : index
    %1416 = vector.load %arg6[%c0_1121, %c0_1122] : memref<1x8xf32, #tpu.memory_space<vmem>>, vector<1x8xf32>
    %cst_1123 = arith.constant 9.99999974E-6 : f32
    %1417 = vector.broadcast %cst_1123 : f32 to vector<1x8xf32>
    %1418 = arith.addf %1415, %1417 : vector<1x8xf32>
    %1419 = math.rsqrt %1418 : vector<1x8xf32>
    %1420 = arith.mulf %1416, %1419 : vector<1x8xf32>
    %c0_1124 = arith.constant 0 : index
    %c0_1125 = arith.constant 0 : index
    %1421 = vector.load %arg7[%c0_1124, %c0_1125] : memref<1x8xf32, #tpu.memory_space<vmem>>, vector<1x8xf32>
    %1422 = arith.mulf %1409, %1420 : vector<1x8xf32>
    %1423 = arith.subf %1421, %1422 : vector<1x8xf32>
    %c0_1126 = arith.constant 0 : index
    %c0_1127 = arith.constant 0 : index
    %c0_1128 = arith.constant 0 : index
    %1424 = vector.load %arg12[%c0_1126, %c0_1127, %c0_1128] : memref<2x80x8xf32, #tpu.memory_space<vmem>>, vector<1x8x8xf32>
    %1425 = vector.shape_cast %1424 : vector<1x8x8xf32> to vector<8x8xf32>
    %1426 = vector.broadcast %1420 : vector<1x8xf32> to vector<8x8xf32>
    %1427 = arith.mulf %1425, %1426 : vector<8x8xf32>
    %1428 = vector.broadcast %1423 : vector<1x8xf32> to vector<8x8xf32>
    %1429 = arith.addf %1427, %1428 : vector<8x8xf32>
    %cst_1129 = arith.constant 0.000000e+00 : f32
    %1430 = vector.broadcast %cst_1129 : f32 to vector<8x8xf32>
    %1431 = arith.maximumf %1429, %1430 : vector<8x8xf32>
    %c0_1130 = arith.constant 0 : index
    %c0_1131 = arith.constant 0 : index
    %c0_1132 = arith.constant 0 : index
    %c0_1133 = arith.constant 0 : index
    %1432 = vector.load %arg8[%c0_1130, %c0_1131, %c0_1132, %c0_1133] : memref<2x8x8x8xf32, #tpu.memory_space<vmem>>, vector<1x1x8x8xf32>
    %1433 = vector.shape_cast %1432 : vector<1x1x8x8xf32> to vector<8x8xf32>
    %1434 = vector.shape_cast %1431 : vector<8x8xf32> to vector<1x1x8x8xf32>
    tpu.vector_store %arg8[%c0_1130, %c0_1131, %c0_1132, %c0_1133], %1434 {strides = array<i32>} : memref<2x8x8x8xf32, #tpu.memory_space<vmem>>, vector<1x1x8x8xf32>,
    %c0_1134 = arith.constant 0 : index
    %c10_1135 = arith.constant 10 : index
    %c0_1136 = arith.constant 0 : index
    %1435 = vector.load %arg12[%c0_1134, %c10_1135, %c0_1136] : memref<2x80x8xf32, #tpu.memory_space<vmem>>, vector<1x8x8xf32>
    %1436 = vector.shape_cast %1435 : vector<1x8x8xf32> to vector<8x8xf32>
    %1437 = vector.broadcast %1420 : vector<1x8xf32> to vector<8x8xf32>
    %1438 = arith.mulf %1436, %1437 : vector<8x8xf32>
    %1439 = vector.broadcast %1423 : vector<1x8xf32> to vector<8x8xf32>
    %1440 = arith.addf %1438, %1439 : vector<8x8xf32>
    %cst_1137 = arith.constant 0.000000e+00 : f32
    %1441 = vector.broadcast %cst_1137 : f32 to vector<8x8xf32>
    %1442 = arith.maximumf %1440, %1441 : vector<8x8xf32>
    %c0_1138 = arith.constant 0 : index
    %c1_1139 = arith.constant 1 : index
    %c0_1140 = arith.constant 0 : index
    %c0_1141 = arith.constant 0 : index
    %1443 = vector.load %arg8[%c0_1138, %c1_1139, %c0_1140, %c0_1141] : memref<2x8x8x8xf32, #tpu.memory_space<vmem>>, vector<1x1x8x8xf32>
    %1444 = vector.shape_cast %1443 : vector<1x1x8x8xf32> to vector<8x8xf32>
    %1445 = vector.shape_cast %1442 : vector<8x8xf32> to vector<1x1x8x8xf32>
    tpu.vector_store %arg8[%c0_1138, %c1_1139, %c0_1140, %c0_1141], %1445 {strides = array<i32>} : memref<2x8x8x8xf32, #tpu.memory_space<vmem>>, vector<1x1x8x8xf32>,
    %c0_1142 = arith.constant 0 : index
    %c20_1143 = arith.constant 20 : index
    %c0_1144 = arith.constant 0 : index
    %1446 = vector.load %arg12[%c0_1142, %c20_1143, %c0_1144] : memref<2x80x8xf32, #tpu.memory_space<vmem>>, vector<1x8x8xf32>
    %1447 = vector.shape_cast %1446 : vector<1x8x8xf32> to vector<8x8xf32>
    %1448 = vector.broadcast %1420 : vector<1x8xf32> to vector<8x8xf32>
    %1449 = arith.mulf %1447, %1448 : vector<8x8xf32>
    %1450 = vector.broadcast %1423 : vector<1x8xf32> to vector<8x8xf32>
    %1451 = arith.addf %1449, %1450 : vector<8x8xf32>
    %cst_1145 = arith.constant 0.000000e+00 : f32
    %1452 = vector.broadcast %cst_1145 : f32 to vector<8x8xf32>
    %1453 = arith.maximumf %1451, %1452 : vector<8x8xf32>
    %c0_1146 = arith.constant 0 : index
    %c2_1147 = arith.constant 2 : index
    %c0_1148 = arith.constant 0 : index
    %c0_1149 = arith.constant 0 : index
    %1454 = vector.load %arg8[%c0_1146, %c2_1147, %c0_1148, %c0_1149] : memref<2x8x8x8xf32, #tpu.memory_space<vmem>>, vector<1x1x8x8xf32>
    %1455 = vector.shape_cast %1454 : vector<1x1x8x8xf32> to vector<8x8xf32>
    %1456 = vector.shape_cast %1453 : vector<8x8xf32> to vector<1x1x8x8xf32>
    tpu.vector_store %arg8[%c0_1146, %c2_1147, %c0_1148, %c0_1149], %1456 {strides = array<i32>} : memref<2x8x8x8xf32, #tpu.memory_space<vmem>>, vector<1x1x8x8xf32>,
    %c0_1150 = arith.constant 0 : index
    %c30_1151 = arith.constant 30 : index
    %c0_1152 = arith.constant 0 : index
    %1457 = vector.load %arg12[%c0_1150, %c30_1151, %c0_1152] : memref<2x80x8xf32, #tpu.memory_space<vmem>>, vector<1x8x8xf32>
    %1458 = vector.shape_cast %1457 : vector<1x8x8xf32> to vector<8x8xf32>
    %1459 = vector.broadcast %1420 : vector<1x8xf32> to vector<8x8xf32>
    %1460 = arith.mulf %1458, %1459 : vector<8x8xf32>
    %1461 = vector.broadcast %1423 : vector<1x8xf32> to vector<8x8xf32>
    %1462 = arith.addf %1460, %1461 : vector<8x8xf32>
    %cst_1153 = arith.constant 0.000000e+00 : f32
    %1463 = vector.broadcast %cst_1153 : f32 to vector<8x8xf32>
    %1464 = arith.maximumf %1462, %1463 : vector<8x8xf32>
    %c0_1154 = arith.constant 0 : index
    %c3_1155 = arith.constant 3 : index
    %c0_1156 = arith.constant 0 : index
    %c0_1157 = arith.constant 0 : index
    %1465 = vector.load %arg8[%c0_1154, %c3_1155, %c0_1156, %c0_1157] : memref<2x8x8x8xf32, #tpu.memory_space<vmem>>, vector<1x1x8x8xf32>
    %1466 = vector.shape_cast %1465 : vector<1x1x8x8xf32> to vector<8x8xf32>
    %1467 = vector.shape_cast %1464 : vector<8x8xf32> to vector<1x1x8x8xf32>
    tpu.vector_store %arg8[%c0_1154, %c3_1155, %c0_1156, %c0_1157], %1467 {strides = array<i32>} : memref<2x8x8x8xf32, #tpu.memory_space<vmem>>, vector<1x1x8x8xf32>,
    %c0_1158 = arith.constant 0 : index
    %c40_1159 = arith.constant 40 : index
    %c0_1160 = arith.constant 0 : index
    %1468 = vector.load %arg12[%c0_1158, %c40_1159, %c0_1160] : memref<2x80x8xf32, #tpu.memory_space<vmem>>, vector<1x8x8xf32>
    %1469 = vector.shape_cast %1468 : vector<1x8x8xf32> to vector<8x8xf32>
    %1470 = vector.broadcast %1420 : vector<1x8xf32> to vector<8x8xf32>
    %1471 = arith.mulf %1469, %1470 : vector<8x8xf32>
    %1472 = vector.broadcast %1423 : vector<1x8xf32> to vector<8x8xf32>
    %1473 = arith.addf %1471, %1472 : vector<8x8xf32>
    %cst_1161 = arith.constant 0.000000e+00 : f32
    %1474 = vector.broadcast %cst_1161 : f32 to vector<8x8xf32>
    %1475 = arith.maximumf %1473, %1474 : vector<8x8xf32>
    %c0_1162 = arith.constant 0 : index
    %c4_1163 = arith.constant 4 : index
    %c0_1164 = arith.constant 0 : index
    %c0_1165 = arith.constant 0 : index
    %1476 = vector.load %arg8[%c0_1162, %c4_1163, %c0_1164, %c0_1165] : memref<2x8x8x8xf32, #tpu.memory_space<vmem>>, vector<1x1x8x8xf32>
    %1477 = vector.shape_cast %1476 : vector<1x1x8x8xf32> to vector<8x8xf32>
    %1478 = vector.shape_cast %1475 : vector<8x8xf32> to vector<1x1x8x8xf32>
    tpu.vector_store %arg8[%c0_1162, %c4_1163, %c0_1164, %c0_1165], %1478 {strides = array<i32>} : memref<2x8x8x8xf32, #tpu.memory_space<vmem>>, vector<1x1x8x8xf32>,
    %c0_1166 = arith.constant 0 : index
    %c50_1167 = arith.constant 50 : index
    %c0_1168 = arith.constant 0 : index
    %1479 = vector.load %arg12[%c0_1166, %c50_1167, %c0_1168] : memref<2x80x8xf32, #tpu.memory_space<vmem>>, vector<1x8x8xf32>
    %1480 = vector.shape_cast %1479 : vector<1x8x8xf32> to vector<8x8xf32>
    %1481 = vector.broadcast %1420 : vector<1x8xf32> to vector<8x8xf32>
    %1482 = arith.mulf %1480, %1481 : vector<8x8xf32>
    %1483 = vector.broadcast %1423 : vector<1x8xf32> to vector<8x8xf32>
    %1484 = arith.addf %1482, %1483 : vector<8x8xf32>
    %cst_1169 = arith.constant 0.000000e+00 : f32
    %1485 = vector.broadcast %cst_1169 : f32 to vector<8x8xf32>
    %1486 = arith.maximumf %1484, %1485 : vector<8x8xf32>
    %c0_1170 = arith.constant 0 : index
    %c5_1171 = arith.constant 5 : index
    %c0_1172 = arith.constant 0 : index
    %c0_1173 = arith.constant 0 : index
    %1487 = vector.load %arg8[%c0_1170, %c5_1171, %c0_1172, %c0_1173] : memref<2x8x8x8xf32, #tpu.memory_space<vmem>>, vector<1x1x8x8xf32>
    %1488 = vector.shape_cast %1487 : vector<1x1x8x8xf32> to vector<8x8xf32>
    %1489 = vector.shape_cast %1486 : vector<8x8xf32> to vector<1x1x8x8xf32>
    tpu.vector_store %arg8[%c0_1170, %c5_1171, %c0_1172, %c0_1173], %1489 {strides = array<i32>} : memref<2x8x8x8xf32, #tpu.memory_space<vmem>>, vector<1x1x8x8xf32>,
    %c0_1174 = arith.constant 0 : index
    %c60_1175 = arith.constant 60 : index
    %c0_1176 = arith.constant 0 : index
    %1490 = vector.load %arg12[%c0_1174, %c60_1175, %c0_1176] : memref<2x80x8xf32, #tpu.memory_space<vmem>>, vector<1x8x8xf32>
    %1491 = vector.shape_cast %1490 : vector<1x8x8xf32> to vector<8x8xf32>
    %1492 = vector.broadcast %1420 : vector<1x8xf32> to vector<8x8xf32>
    %1493 = arith.mulf %1491, %1492 : vector<8x8xf32>
    %1494 = vector.broadcast %1423 : vector<1x8xf32> to vector<8x8xf32>
    %1495 = arith.addf %1493, %1494 : vector<8x8xf32>
    %cst_1177 = arith.constant 0.000000e+00 : f32
    %1496 = vector.broadcast %cst_1177 : f32 to vector<8x8xf32>
    %1497 = arith.maximumf %1495, %1496 : vector<8x8xf32>
    %c0_1178 = arith.constant 0 : index
    %c6_1179 = arith.constant 6 : index
    %c0_1180 = arith.constant 0 : index
    %c0_1181 = arith.constant 0 : index
    %1498 = vector.load %arg8[%c0_1178, %c6_1179, %c0_1180, %c0_1181] : memref<2x8x8x8xf32, #tpu.memory_space<vmem>>, vector<1x1x8x8xf32>
    %1499 = vector.shape_cast %1498 : vector<1x1x8x8xf32> to vector<8x8xf32>
    %1500 = vector.shape_cast %1497 : vector<8x8xf32> to vector<1x1x8x8xf32>
    tpu.vector_store %arg8[%c0_1178, %c6_1179, %c0_1180, %c0_1181], %1500 {strides = array<i32>} : memref<2x8x8x8xf32, #tpu.memory_space<vmem>>, vector<1x1x8x8xf32>,
    %c0_1182 = arith.constant 0 : index
    %c70_1183 = arith.constant 70 : index
    %c0_1184 = arith.constant 0 : index
    %1501 = vector.load %arg12[%c0_1182, %c70_1183, %c0_1184] : memref<2x80x8xf32, #tpu.memory_space<vmem>>, vector<1x8x8xf32>
    %1502 = vector.shape_cast %1501 : vector<1x8x8xf32> to vector<8x8xf32>
    %1503 = vector.broadcast %1420 : vector<1x8xf32> to vector<8x8xf32>
    %1504 = arith.mulf %1502, %1503 : vector<8x8xf32>
    %1505 = vector.broadcast %1423 : vector<1x8xf32> to vector<8x8xf32>
    %1506 = arith.addf %1504, %1505 : vector<8x8xf32>
    %cst_1185 = arith.constant 0.000000e+00 : f32
    %1507 = vector.broadcast %cst_1185 : f32 to vector<8x8xf32>
    %1508 = arith.maximumf %1506, %1507 : vector<8x8xf32>
    %c0_1186 = arith.constant 0 : index
    %c7_1187 = arith.constant 7 : index
    %c0_1188 = arith.constant 0 : index
    %c0_1189 = arith.constant 0 : index
    %1509 = vector.load %arg8[%c0_1186, %c7_1187, %c0_1188, %c0_1189] : memref<2x8x8x8xf32, #tpu.memory_space<vmem>>, vector<1x1x8x8xf32>
    %1510 = vector.shape_cast %1509 : vector<1x1x8x8xf32> to vector<8x8xf32>
    %1511 = vector.shape_cast %1508 : vector<8x8xf32> to vector<1x1x8x8xf32>
    tpu.vector_store %arg8[%c0_1186, %c7_1187, %c0_1188, %c0_1189], %1511 {strides = array<i32>} : memref<2x8x8x8xf32, #tpu.memory_space<vmem>>, vector<1x1x8x8xf32>,
    %c1_1190 = arith.constant 1 : index
    %c0_1191 = arith.constant 0 : index
    %c0_1192 = arith.constant 0 : index
    %1512 = vector.load %arg12[%c1_1190, %c0_1191, %c0_1192] : memref<2x80x8xf32, #tpu.memory_space<vmem>>, vector<1x8x8xf32>
    %1513 = vector.shape_cast %1512 : vector<1x8x8xf32> to vector<8x8xf32>
    %1514 = vector.broadcast %1420 : vector<1x8xf32> to vector<8x8xf32>
    %1515 = arith.mulf %1513, %1514 : vector<8x8xf32>
    %1516 = vector.broadcast %1423 : vector<1x8xf32> to vector<8x8xf32>
    %1517 = arith.addf %1515, %1516 : vector<8x8xf32>
    %cst_1193 = arith.constant 0.000000e+00 : f32
    %1518 = vector.broadcast %cst_1193 : f32 to vector<8x8xf32>
    %1519 = arith.maximumf %1517, %1518 : vector<8x8xf32>
    %c1_1194 = arith.constant 1 : index
    %c0_1195 = arith.constant 0 : index
    %c0_1196 = arith.constant 0 : index
    %c0_1197 = arith.constant 0 : index
    %1520 = vector.load %arg8[%c1_1194, %c0_1195, %c0_1196, %c0_1197] : memref<2x8x8x8xf32, #tpu.memory_space<vmem>>, vector<1x1x8x8xf32>
    %1521 = vector.shape_cast %1520 : vector<1x1x8x8xf32> to vector<8x8xf32>
    %1522 = vector.shape_cast %1519 : vector<8x8xf32> to vector<1x1x8x8xf32>
    tpu.vector_store %arg8[%c1_1194, %c0_1195, %c0_1196, %c0_1197], %1522 {strides = array<i32>} : memref<2x8x8x8xf32, #tpu.memory_space<vmem>>, vector<1x1x8x8xf32>,
    %c1_1198 = arith.constant 1 : index
    %c10_1199 = arith.constant 10 : index
    %c0_1200 = arith.constant 0 : index
    %1523 = vector.load %arg12[%c1_1198, %c10_1199, %c0_1200] : memref<2x80x8xf32, #tpu.memory_space<vmem>>, vector<1x8x8xf32>
    %1524 = vector.shape_cast %1523 : vector<1x8x8xf32> to vector<8x8xf32>
    %1525 = vector.broadcast %1420 : vector<1x8xf32> to vector<8x8xf32>
    %1526 = arith.mulf %1524, %1525 : vector<8x8xf32>
    %1527 = vector.broadcast %1423 : vector<1x8xf32> to vector<8x8xf32>
    %1528 = arith.addf %1526, %1527 : vector<8x8xf32>
    %cst_1201 = arith.constant 0.000000e+00 : f32
    %1529 = vector.broadcast %cst_1201 : f32 to vector<8x8xf32>
    %1530 = arith.maximumf %1528, %1529 : vector<8x8xf32>
    %c1_1202 = arith.constant 1 : index
    %c1_1203 = arith.constant 1 : index
    %c0_1204 = arith.constant 0 : index
    %c0_1205 = arith.constant 0 : index
    %1531 = vector.load %arg8[%c1_1202, %c1_1203, %c0_1204, %c0_1205] : memref<2x8x8x8xf32, #tpu.memory_space<vmem>>, vector<1x1x8x8xf32>
    %1532 = vector.shape_cast %1531 : vector<1x1x8x8xf32> to vector<8x8xf32>
    %1533 = vector.shape_cast %1530 : vector<8x8xf32> to vector<1x1x8x8xf32>
    tpu.vector_store %arg8[%c1_1202, %c1_1203, %c0_1204, %c0_1205], %1533 {strides = array<i32>} : memref<2x8x8x8xf32, #tpu.memory_space<vmem>>, vector<1x1x8x8xf32>,
    %c1_1206 = arith.constant 1 : index
    %c20_1207 = arith.constant 20 : index
    %c0_1208 = arith.constant 0 : index
    %1534 = vector.load %arg12[%c1_1206, %c20_1207, %c0_1208] : memref<2x80x8xf32, #tpu.memory_space<vmem>>, vector<1x8x8xf32>
    %1535 = vector.shape_cast %1534 : vector<1x8x8xf32> to vector<8x8xf32>
    %1536 = vector.broadcast %1420 : vector<1x8xf32> to vector<8x8xf32>
    %1537 = arith.mulf %1535, %1536 : vector<8x8xf32>
    %1538 = vector.broadcast %1423 : vector<1x8xf32> to vector<8x8xf32>
    %1539 = arith.addf %1537, %1538 : vector<8x8xf32>
    %cst_1209 = arith.constant 0.000000e+00 : f32
    %1540 = vector.broadcast %cst_1209 : f32 to vector<8x8xf32>
    %1541 = arith.maximumf %1539, %1540 : vector<8x8xf32>
    %c1_1210 = arith.constant 1 : index
    %c2_1211 = arith.constant 2 : index
    %c0_1212 = arith.constant 0 : index
    %c0_1213 = arith.constant 0 : index
    %1542 = vector.load %arg8[%c1_1210, %c2_1211, %c0_1212, %c0_1213] : memref<2x8x8x8xf32, #tpu.memory_space<vmem>>, vector<1x1x8x8xf32>
    %1543 = vector.shape_cast %1542 : vector<1x1x8x8xf32> to vector<8x8xf32>
    %1544 = vector.shape_cast %1541 : vector<8x8xf32> to vector<1x1x8x8xf32>
    tpu.vector_store %arg8[%c1_1210, %c2_1211, %c0_1212, %c0_1213], %1544 {strides = array<i32>} : memref<2x8x8x8xf32, #tpu.memory_space<vmem>>, vector<1x1x8x8xf32>,
    %c1_1214 = arith.constant 1 : index
    %c30_1215 = arith.constant 30 : index
    %c0_1216 = arith.constant 0 : index
    %1545 = vector.load %arg12[%c1_1214, %c30_1215, %c0_1216] : memref<2x80x8xf32, #tpu.memory_space<vmem>>, vector<1x8x8xf32>
    %1546 = vector.shape_cast %1545 : vector<1x8x8xf32> to vector<8x8xf32>
    %1547 = vector.broadcast %1420 : vector<1x8xf32> to vector<8x8xf32>
    %1548 = arith.mulf %1546, %1547 : vector<8x8xf32>
    %1549 = vector.broadcast %1423 : vector<1x8xf32> to vector<8x8xf32>
    %1550 = arith.addf %1548, %1549 : vector<8x8xf32>
    %cst_1217 = arith.constant 0.000000e+00 : f32
    %1551 = vector.broadcast %cst_1217 : f32 to vector<8x8xf32>
    %1552 = arith.maximumf %1550, %1551 : vector<8x8xf32>
    %c1_1218 = arith.constant 1 : index
    %c3_1219 = arith.constant 3 : index
    %c0_1220 = arith.constant 0 : index
    %c0_1221 = arith.constant 0 : index
    %1553 = vector.load %arg8[%c1_1218, %c3_1219, %c0_1220, %c0_1221] : memref<2x8x8x8xf32, #tpu.memory_space<vmem>>, vector<1x1x8x8xf32>
    %1554 = vector.shape_cast %1553 : vector<1x1x8x8xf32> to vector<8x8xf32>
    %1555 = vector.shape_cast %1552 : vector<8x8xf32> to vector<1x1x8x8xf32>
    tpu.vector_store %arg8[%c1_1218, %c3_1219, %c0_1220, %c0_1221], %1555 {strides = array<i32>} : memref<2x8x8x8xf32, #tpu.memory_space<vmem>>, vector<1x1x8x8xf32>,
    %c1_1222 = arith.constant 1 : index
    %c40_1223 = arith.constant 40 : index
    %c0_1224 = arith.constant 0 : index
    %1556 = vector.load %arg12[%c1_1222, %c40_1223, %c0_1224] : memref<2x80x8xf32, #tpu.memory_space<vmem>>, vector<1x8x8xf32>
    %1557 = vector.shape_cast %1556 : vector<1x8x8xf32> to vector<8x8xf32>
    %1558 = vector.broadcast %1420 : vector<1x8xf32> to vector<8x8xf32>
    %1559 = arith.mulf %1557, %1558 : vector<8x8xf32>
    %1560 = vector.broadcast %1423 : vector<1x8xf32> to vector<8x8xf32>
    %1561 = arith.addf %1559, %1560 : vector<8x8xf32>
    %cst_1225 = arith.constant 0.000000e+00 : f32
    %1562 = vector.broadcast %cst_1225 : f32 to vector<8x8xf32>
    %1563 = arith.maximumf %1561, %1562 : vector<8x8xf32>
    %c1_1226 = arith.constant 1 : index
    %c4_1227 = arith.constant 4 : index
    %c0_1228 = arith.constant 0 : index
    %c0_1229 = arith.constant 0 : index
    %1564 = vector.load %arg8[%c1_1226, %c4_1227, %c0_1228, %c0_1229] : memref<2x8x8x8xf32, #tpu.memory_space<vmem>>, vector<1x1x8x8xf32>
    %1565 = vector.shape_cast %1564 : vector<1x1x8x8xf32> to vector<8x8xf32>
    %1566 = vector.shape_cast %1563 : vector<8x8xf32> to vector<1x1x8x8xf32>
    tpu.vector_store %arg8[%c1_1226, %c4_1227, %c0_1228, %c0_1229], %1566 {strides = array<i32>} : memref<2x8x8x8xf32, #tpu.memory_space<vmem>>, vector<1x1x8x8xf32>,
    %c1_1230 = arith.constant 1 : index
    %c50_1231 = arith.constant 50 : index
    %c0_1232 = arith.constant 0 : index
    %1567 = vector.load %arg12[%c1_1230, %c50_1231, %c0_1232] : memref<2x80x8xf32, #tpu.memory_space<vmem>>, vector<1x8x8xf32>
    %1568 = vector.shape_cast %1567 : vector<1x8x8xf32> to vector<8x8xf32>
    %1569 = vector.broadcast %1420 : vector<1x8xf32> to vector<8x8xf32>
    %1570 = arith.mulf %1568, %1569 : vector<8x8xf32>
    %1571 = vector.broadcast %1423 : vector<1x8xf32> to vector<8x8xf32>
    %1572 = arith.addf %1570, %1571 : vector<8x8xf32>
    %cst_1233 = arith.constant 0.000000e+00 : f32
    %1573 = vector.broadcast %cst_1233 : f32 to vector<8x8xf32>
    %1574 = arith.maximumf %1572, %1573 : vector<8x8xf32>
    %c1_1234 = arith.constant 1 : index
    %c5_1235 = arith.constant 5 : index
    %c0_1236 = arith.constant 0 : index
    %c0_1237 = arith.constant 0 : index
    %1575 = vector.load %arg8[%c1_1234, %c5_1235, %c0_1236, %c0_1237] : memref<2x8x8x8xf32, #tpu.memory_space<vmem>>, vector<1x1x8x8xf32>
    %1576 = vector.shape_cast %1575 : vector<1x1x8x8xf32> to vector<8x8xf32>
    %1577 = vector.shape_cast %1574 : vector<8x8xf32> to vector<1x1x8x8xf32>
    tpu.vector_store %arg8[%c1_1234, %c5_1235, %c0_1236, %c0_1237], %1577 {strides = array<i32>} : memref<2x8x8x8xf32, #tpu.memory_space<vmem>>, vector<1x1x8x8xf32>,
    %c1_1238 = arith.constant 1 : index
    %c60_1239 = arith.constant 60 : index
    %c0_1240 = arith.constant 0 : index
    %1578 = vector.load %arg12[%c1_1238, %c60_1239, %c0_1240] : memref<2x80x8xf32, #tpu.memory_space<vmem>>, vector<1x8x8xf32>
    %1579 = vector.shape_cast %1578 : vector<1x8x8xf32> to vector<8x8xf32>
    %1580 = vector.broadcast %1420 : vector<1x8xf32> to vector<8x8xf32>
    %1581 = arith.mulf %1579, %1580 : vector<8x8xf32>
    %1582 = vector.broadcast %1423 : vector<1x8xf32> to vector<8x8xf32>
    %1583 = arith.addf %1581, %1582 : vector<8x8xf32>
    %cst_1241 = arith.constant 0.000000e+00 : f32
    %1584 = vector.broadcast %cst_1241 : f32 to vector<8x8xf32>
    %1585 = arith.maximumf %1583, %1584 : vector<8x8xf32>
    %c1_1242 = arith.constant 1 : index
    %c6_1243 = arith.constant 6 : index
    %c0_1244 = arith.constant 0 : index
    %c0_1245 = arith.constant 0 : index
    %1586 = vector.load %arg8[%c1_1242, %c6_1243, %c0_1244, %c0_1245] : memref<2x8x8x8xf32, #tpu.memory_space<vmem>>, vector<1x1x8x8xf32>
    %1587 = vector.shape_cast %1586 : vector<1x1x8x8xf32> to vector<8x8xf32>
    %1588 = vector.shape_cast %1585 : vector<8x8xf32> to vector<1x1x8x8xf32>
    tpu.vector_store %arg8[%c1_1242, %c6_1243, %c0_1244, %c0_1245], %1588 {strides = array<i32>} : memref<2x8x8x8xf32, #tpu.memory_space<vmem>>, vector<1x1x8x8xf32>,
    %c1_1246 = arith.constant 1 : index
    %c70_1247 = arith.constant 70 : index
    %c0_1248 = arith.constant 0 : index
    %1589 = vector.load %arg12[%c1_1246, %c70_1247, %c0_1248] : memref<2x80x8xf32, #tpu.memory_space<vmem>>, vector<1x8x8xf32>
    %1590 = vector.shape_cast %1589 : vector<1x8x8xf32> to vector<8x8xf32>
    %1591 = vector.broadcast %1420 : vector<1x8xf32> to vector<8x8xf32>
    %1592 = arith.mulf %1590, %1591 : vector<8x8xf32>
    %1593 = vector.broadcast %1423 : vector<1x8xf32> to vector<8x8xf32>
    %1594 = arith.addf %1592, %1593 : vector<8x8xf32>
    %cst_1249 = arith.constant 0.000000e+00 : f32
    %1595 = vector.broadcast %cst_1249 : f32 to vector<8x8xf32>
    %1596 = arith.maximumf %1594, %1595 : vector<8x8xf32>
    %c1_1250 = arith.constant 1 : index
    %c7_1251 = arith.constant 7 : index
    %c0_1252 = arith.constant 0 : index
    %c0_1253 = arith.constant 0 : index
    %1597 = vector.load %arg8[%c1_1250, %c7_1251, %c0_1252, %c0_1253] : memref<2x8x8x8xf32, #tpu.memory_space<vmem>>, vector<1x1x8x8xf32>
    %1598 = vector.shape_cast %1597 : vector<1x1x8x8xf32> to vector<8x8xf32>
    %1599 = vector.shape_cast %1596 : vector<8x8xf32> to vector<1x1x8x8xf32>
    tpu.vector_store %arg8[%c1_1250, %c7_1251, %c0_1252, %c0_1253], %1599 {strides = array<i32>} : memref<2x8x8x8xf32, #tpu.memory_space<vmem>>, vector<1x1x8x8xf32>,
    return
  }
  func.func @transform_0(%arg0: i32) -> (i32, i32, i32, i32) {
    %c0_i32 = arith.constant 0 : i32
    %c0_i32_0 = arith.constant 0 : i32
    %c0_i32_1 = arith.constant 0 : i32
    %c0_i32_2 = arith.constant 0 : i32
    %c0_i32_3 = arith.constant 0 : i32
    return %c0_i32, %c0_i32_0, %c0_i32_1, %c0_i32_2 : i32, i32, i32, i32
  }
  func.func @transform_1(%arg0: i32) -> (i32, i32, i32) {
    %c0_i32 = arith.constant 0 : i32
    %c0_i32_0 = arith.constant 0 : i32
    %c0_i32_1 = arith.constant 0 : i32
    %c0_i32_2 = arith.constant 0 : i32
    return %c0_i32, %c0_i32_0, %c0_i32_1 : i32, i32, i32
  }
  func.func @transform_2(%arg0: i32) -> (i32, i32, i32) {
    %c0_i32 = arith.constant 0 : i32
    %c0_i32_0 = arith.constant 0 : i32
    %c0_i32_1 = arith.constant 0 : i32
    %c0_i32_2 = arith.constant 0 : i32
    return %c0_i32, %c0_i32_0, %c0_i32_1 : i32, i32, i32
  }
  func.func @transform_3(%arg0: i32) -> (i32, i32) {
    %c0_i32 = arith.constant 0 : i32
    %c0_i32_0 = arith.constant 0 : i32
    %c0_i32_1 = arith.constant 0 : i32
    return %c0_i32, %c0_i32_0 : i32, i32
  }
  func.func @transform_4(%arg0: i32) -> (i32, i32) {
    %c0_i32 = arith.constant 0 : i32
    %c0_i32_0 = arith.constant 0 : i32
    %c0_i32_1 = arith.constant 0 : i32
    return %c0_i32, %c0_i32_0 : i32, i32
  }
  func.func @transform_5(%arg0: i32) -> (i32, i32) {
    %c0_i32 = arith.constant 0 : i32
    %c0_i32_0 = arith.constant 0 : i32
    %c0_i32_1 = arith.constant 0 : i32
    return %c0_i32, %c0_i32_0 : i32, i32
  }
  func.func @transform_6(%arg0: i32) -> (i32, i32) {
    %c0_i32 = arith.constant 0 : i32
    %c0_i32_0 = arith.constant 0 : i32
    %c0_i32_1 = arith.constant 0 : i32
    return %c0_i32, %c0_i32_0 : i32, i32
  }
  func.func @transform_7(%arg0: i32) -> (i32, i32, i32, i32) {
    %c0_i32 = arith.constant 0 : i32
    %c0_i32_0 = arith.constant 0 : i32
    %c0_i32_1 = arith.constant 0 : i32
    %c0_i32_2 = arith.constant 0 : i32
    %c0_i32_3 = arith.constant 0 : i32
    return %c0_i32, %c0_i32_0, %c0_i32_1, %c0_i32_2 : i32, i32, i32, i32
  }
}

</mosaic_0001>

<llo_original>
// kernel: down_forward.1
$region0: #{down_forward.1}
  #allocation0 [shape = 'u32[]', space=smem, size = 0x4, offset = 0x4, fixed_abs, tag = 'smem constant byte address 0x4 - core index']
  #allocation1 [shape = 'u32[144,128]{1,0:T(1,128)}', space=vmem, size = 0x12000, scoped, tag = 'internal scratch']
  #allocation2 [shape = 'f32[2,104,4]{2,1,0:T(8,128)}', space=vmem, size = 0x1a000, scoped, tag = 'scratch operand']
  #allocation3 [shape = 'f32[2,80,8]{2,1,0:T(8,128)}', space=vmem, size = 0x14000, scoped, tag = 'scratch operand']
  #allocation4 [shape = 'f32[2,104,8]{2,1,0:T(8,128)}', space=vmem, size = 0x1a000, scoped, tag = 'scratch operand']
  #allocation5 [shape = 'f32[2,80,8]{2,1,0:T(8,128)}', space=vmem, size = 0x14000, scoped, tag = 'scratch operand']
  %s0 = inlined_call_operand.vmem [shape: f32[2,16,16,4], index: 0, kind: input, shape index: {}]
  %s1 = inlined_call_operand.vmem [shape: f32[9,4,8], index: 1, kind: input, shape index: {}]
  %s2 = inlined_call_operand.vmem [shape: f32[9,8,8], index: 2, kind: input, shape index: {}]
  %s3 = inlined_call_operand.vmem [shape: f32[1,8], index: 3, kind: input, shape index: {}]
  %s4 = inlined_call_operand.vmem [shape: f32[1,8], index: 4, kind: input, shape index: {}]
  %s5 = inlined_call_operand.vmem [shape: f32[1,8], index: 5, kind: input, shape index: {}]
  %s6 = inlined_call_operand.vmem [shape: f32[1,8], index: 6, kind: input, shape index: {}]
  %s7 = inlined_call_operand.vmem [shape: f32[2,8,8,8], index: 7, kind: output, shape index: {}]
  %s8 = sld [smem:[#allocation0]]
  $region38: #{down_forward.1} parent=0
    _
  %s10 = ssub.s32 1, %s8
  %s11 = scalar_select 0, %s10, %s8
  // Predicated region
  $region2: #{down_forward.1} parent=0 // pred_check
    _
  $region3: #{down_forward.1} parent=0 // pred_check_branch
    %13 = sbr.rel (0) target = $region5
  $region4: #{down_forward.1} parent=0 // pred_region
    _
  $region5: #{down_forward.1} parent=0 // pred_fallthru
    _
  // Predicated region
  $region6: #{down_forward.1} parent=0 // pred_check
    _
  $region7: #{down_forward.1} parent=0 // pred_check_branch
    %15 = sbr.rel (0) target = $region9
  $region8: #{down_forward.1} parent=0 // pred_region
    _
  $region9: #{down_forward.1} parent=0 // pred_fallthru
    _
  // Predicated region
  $region10: #{down_forward.1} parent=0 // pred_check
    _
  $region11: #{down_forward.1} parent=0 // pred_check_branch
    %17 = sbr.rel (0) target = $region13
  $region12: #{down_forward.1} parent=0 // pred_region
    _
  $region13: #{down_forward.1} parent=0 // pred_fallthru
    _
  // Predicated region
  $region14: #{down_forward.1} parent=0 // pred_check
    _
  $region15: #{down_forward.1} parent=0 // pred_check_branch
    %19 = sbr.rel (0) target = $region17
  $region16: #{down_forward.1} parent=0 // pred_region
    _
  $region17: #{down_forward.1} parent=0 // pred_fallthru
    _
  // Predicated region
  $region18: #{down_forward.1} parent=0 // pred_check
    _
  $region19: #{down_forward.1} parent=0 // pred_check_branch
    %21 = sbr.rel (0) target = $region21
  $region20: #{down_forward.1} parent=0 // pred_region
    _
  $region21: #{down_forward.1} parent=0 // pred_fallthru
    _
  // Predicated region
  $region22: #{down_forward.1} parent=0 // pred_check
    _
  $region23: #{down_forward.1} parent=0 // pred_check_branch
    %23 = sbr.rel (0) target = $region25
  $region24: #{down_forward.1} parent=0 // pred_region
    _
  $region25: #{down_forward.1} parent=0 // pred_fallthru
    _
  // Predicated region
  $region26: #{down_forward.1} parent=0 // pred_check
    _
  $region27: #{down_forward.1} parent=0 // pred_check_branch
    %25 = sbr.rel (0) target = $region29
  $region28: #{down_forward.1} parent=0 // pred_region
    _
  $region29: #{down_forward.1} parent=0 // pred_fallthru
    _
  %vm26 = vcmask 31744
  %27 = vst.msk [vmem:[#allocation2] sm:$0xff] %vm26, 0.0
  %28 = vst.msk [vmem:[#allocation2 + $0x8] sm:$0xff] %vm26, 0.0
  %29 = vst.msk [vmem:[#allocation2 + $0x10] sm:$0xff] %vm26, 0.0
  %30 = vst.msk [vmem:[#allocation2 + $0x18] sm:$0xff] %vm26, 0.0
  %31 = vst.msk [vmem:[#allocation2 + $0x20] sm:$0xff] %vm26, 0.0
  %32 = vst.msk [vmem:[#allocation2 + $0x28] sm:$0xff] %vm26, 0.0
  %33 = vst.msk [vmem:[#allocation2 + $0x30] sm:$0xff] %vm26, 0.0
  %34 = vst.msk [vmem:[#allocation2 + $0x38] sm:$0xff] %vm26, 0.0
  %35 = vst.msk [vmem:[#allocation2 + $0x40] sm:$0xff] %vm26, 0.0
  %36 = vst.msk [vmem:[#allocation2 + $0x48] sm:$0xff] %vm26, 0.0
  %37 = vst.msk [vmem:[#allocation2 + $0x50] sm:$0xff] %vm26, 0.0
  %38 = vst.msk [vmem:[#allocation2 + $0x58] sm:$0xff] %vm26, 0.0
  %39 = vst.msk [vmem:[#allocation2 + $0x60] sm:$0xff] %vm26, 0.0
  %40 = vst.msk [vmem:[#allocation2 + $0x68] sm:$0xff] %vm26, 0.0
  %41 = vst.msk [vmem:[#allocation2 + $0x70] sm:$0xff] %vm26, 0.0
  %42 = vst.msk [vmem:[#allocation2 + $0x78] sm:$0xff] %vm26, 0.0
  %43 = vst.msk [vmem:[#allocation2 + $0x80] sm:$0xff] %vm26, 0.0
  %44 = vst.msk [vmem:[#allocation2 + $0x88] sm:$0xff] %vm26, 0.0
  %45 = vst.msk [vmem:[#allocation2 + $0x90] sm:$0xff] %vm26, 0.0
  %46 = vst.msk [vmem:[#allocation2 + $0x98] sm:$0xff] %vm26, 0.0
  %47 = vst.msk [vmem:[#allocation2 + $0xa0] sm:$0xff] %vm26, 0.0
  %48 = vst.msk [vmem:[#allocation2 + $0xa8] sm:$0xff] %vm26, 0.0
  %49 = vst.msk [vmem:[#allocation2 + $0xb0] sm:$0xff] %vm26, 0.0
  %50 = vst.msk [vmem:[#allocation2 + $0xb8] sm:$0xff] %vm26, 0.0
  %51 = vst.msk [vmem:[#allocation2 + $0xc0] sm:$0xff] %vm26, 0.0
  %52 = vst.msk [vmem:[#allocation2 + $0xc8] sm:$0xff] %vm26, 0.0
  %v53 = vld [vmem:[%s0] sm:$0xff]
  %v54 = vld [vmem:[%s0 + $0x8] sm:$0x7f]
  %v55 = vld [vmem:[%s0 + $0x1] sm:$0xff]
  %v56 = vld [vmem:[%s0 + $0x9] sm:$0x7f]
  %v57 = vmax.f32 %v53, %v55
  %v58 = vmax.f32 %v54, %v56
  %s59 = scalar_lea.vmem %s0, 16
  %v60 = vld [vmem:[%s59] sm:$0xff]
  %v61 = vld [vmem:[%s59 + $0x8] sm:$0x7f]
  %v62 = vld [vmem:[%s59 + $0x1] sm:$0xff]
  %v63 = vld [vmem:[%s59 + $0x9] sm:$0x7f]
  %v64 = vmax.f32 %v60, %v62
  %v65 = vmax.f32 %v61, %v63
  %v66 = vmax.f32 %v57, %v64
  %v67 = vmax.f32 %v58, %v65
  %vm68 = vcmask 24576
  %69 = vst.msk [vmem:[#allocation2 + $0xb] sm:$0x1] %vm68, %v66
  %vm70 = vcmask 26626
  %71 = vst.msk [vmem:[#allocation2 + $0xa] sm:$0x4] %vm70, %v66
  %vm72 = vcmask 28676
  %73 = vst.msk [vmem:[#allocation2 + $0x9] sm:$0x10] %vm72, %v66
  %vm74 = vcmask 30726
  %75 = vst.msk [vmem:[#allocation2 + $0x8] sm:$0x40] %vm74, %v66
  %76 = vst.msk [vmem:[#allocation2 + $0xf] sm:$0x1] %vm68, %v67
  %77 = vst.msk [vmem:[#allocation2 + $0xe] sm:$0x4] %vm70, %v67
  %78 = vst.msk [vmem:[#allocation2 + $0xd] sm:$0x10] %vm72, %v67
  %79 = vst.msk [vmem:[#allocation2 + $0xc] sm:$0x40] %vm74, %v67
  %s80 = scalar_lea.vmem %s0, 32
  %v81 = vld [vmem:[%s80] sm:$0xff]
  %v82 = vld [vmem:[%s80 + $0x8] sm:$0x7f]
  %v83 = vld [vmem:[%s80 + $0x1] sm:$0xff]
  %v84 = vld [vmem:[%s80 + $0x9] sm:$0x7f]
  %v85 = vmax.f32 %v81, %v83
  %v86 = vmax.f32 %v82, %v84
  %s87 = scalar_lea.vmem %s0, 48
  %v88 = vld [vmem:[%s87] sm:$0xff]
  %v89 = vld [vmem:[%s87 + $0x8] sm:$0x7f]
  %v90 = vld [vmem:[%s87 + $0x1] sm:$0xff]
  %v91 = vld [vmem:[%s87 + $0x9] sm:$0x7f]
  %v92 = vmax.f32 %v88, %v90
  %v93 = vmax.f32 %v89, %v91
  %v94 = vmax.f32 %v85, %v92
  %v95 = vmax.f32 %v86, %v93
  %96 = vst.msk [vmem:[#allocation2 + $0x15] sm:$0x1] %vm68, %v94
  %97 = vst.msk [vmem:[#allocation2 + $0x14] sm:$0x4] %vm70, %v94
  %98 = vst.msk [vmem:[#allocation2 + $0x13] sm:$0x10] %vm72, %v94
  %99 = vst.msk [vmem:[#allocation2 + $0x12] sm:$0x40] %vm74, %v94
  %100 = vst.msk [vmem:[#allocation2 + $0x19] sm:$0x1] %vm68, %v95
  %101 = vst.msk [vmem:[#allocation2 + $0x18] sm:$0x4] %vm70, %v95
  %102 = vst.msk [vmem:[#allocation2 + $0x17] sm:$0x10] %vm72, %v95
  %103 = vst.msk [vmem:[#allocation2 + $0x16] sm:$0x40] %vm74, %v95
  %s104 = scalar_lea.vmem %s0, 64
  %v105 = vld [vmem:[%s104] sm:$0xff]
  %v106 = vld [vmem:[%s104 + $0x8] sm:$0x7f]
  %v107 = vld [vmem:[%s104 + $0x1] sm:$0xff]
  %v108 = vld [vmem:[%s104 + $0x9] sm:$0x7f]
  %v109 = vmax.f32 %v105, %v107
  %v110 = vmax.f32 %v106, %v108
  %s111 = scalar_lea.vmem %s0, 80
  %v112 = vld [vmem:[%s111] sm:$0xff]
  %v113 = vld [vmem:[%s111 + $0x8] sm:$0x7f]
  %v114 = vld [vmem:[%s111 + $0x1] sm:$0xff]
  %v115 = vld [vmem:[%s111 + $0x9] sm:$0x7f]
  %v116 = vmax.f32 %v112, %v114
  %v117 = vmax.f32 %v113, %v115
  %v118 = vmax.f32 %v109, %v116
  %v119 = vmax.f32 %v110, %v117
  %120 = vst.msk [vmem:[#allocation2 + $0x1f] sm:$0x1] %vm68, %v118
  %121 = vst.msk [vmem:[#allocation2 + $0x1e] sm:$0x4] %vm70, %v118
  %122 = vst.msk [vmem:[#allocation2 + $0x1d] sm:$0x10] %vm72, %v118
  %123 = vst.msk [vmem:[#allocation2 + $0x1c] sm:$0x40] %vm74, %v118
  %124 = vst.msk [vmem:[#allocation2 + $0x23] sm:$0x1] %vm68, %v119
  %125 = vst.msk [vmem:[#allocation2 + $0x22] sm:$0x4] %vm70, %v119
  %126 = vst.msk [vmem:[#allocation2 + $0x21] sm:$0x10] %vm72, %v119
  %127 = vst.msk [vmem:[#allocation2 + $0x20] sm:$0x40] %vm74, %v119
  %s128 = scalar_lea.vmem %s0, 96
  %v129 = vld [vmem:[%s128] sm:$0xff]
  %v130 = vld [vmem:[%s128 + $0x8] sm:$0x7f]
  %v131 = vld [vmem:[%s128 + $0x1] sm:$0xff]
  %v132 = vld [vmem:[%s128 + $0x9] sm:$0x7f]
  %v133 = vmax.f32 %v129, %v131
  %v134 = vmax.f32 %v130, %v132
  %s135 = scalar_lea.vmem %s0, 112
  %v136 = vld [vmem:[%s135] sm:$0xff]
  %v137 = vld [vmem:[%s135 + $0x8] sm:$0x7f]
  %v138 = vld [vmem:[%s135 + $0x1] sm:$0xff]
  %v139 = vld [vmem:[%s135 + $0x9] sm:$0x7f]
  %v140 = vmax.f32 %v136, %v138
  %v141 = vmax.f32 %v137, %v139
  %v142 = vmax.f32 %v133, %v140
  %v143 = vmax.f32 %v134, %v141
  %144 = vst.msk [vmem:[#allocation2 + $0x29] sm:$0x1] %vm68, %v142
  %145 = vst.msk [vmem:[#allocation2 + $0x28] sm:$0x4] %vm70, %v142
  %146 = vst.msk [vmem:[#allocation2 + $0x27] sm:$0x10] %vm72, %v142
  %147 = vst.msk [vmem:[#allocation2 + $0x26] sm:$0x40] %vm74, %v142
  %148 = vst.msk [vmem:[#allocation2 + $0x2d] sm:$0x1] %vm68, %v143
  %149 = vst.msk [vmem:[#allocation2 + $0x2c] sm:$0x4] %vm70, %v143
  %150 = vst.msk [vmem:[#allocation2 + $0x2b] sm:$0x10] %vm72, %v143
  %151 = vst.msk [vmem:[#allocation2 + $0x2a] sm:$0x40] %vm74, %v143
  %s152 = scalar_lea.vmem %s0, 128
  %v153 = vld [vmem:[%s152] sm:$0xff]
  %v154 = vld [vmem:[%s152 + $0x8] sm:$0x7f]
  %v155 = vld [vmem:[%s152 + $0x1] sm:$0xff]
  %v156 = vld [vmem:[%s152 + $0x9] sm:$0x7f]
  %v157 = vmax.f32 %v153, %v155
  %v158 = vmax.f32 %v154, %v156
  %s159 = scalar_lea.vmem %s0, 144
  %v160 = vld [vmem:[%s159] sm:$0xff]
  %v161 = vld [vmem:[%s159 + $0x8] sm:$0x7f]
  %v162 = vld [vmem:[%s159 + $0x1] sm:$0xff]
  %v163 = vld [vmem:[%s159 + $0x9] sm:$0x7f]
  %v164 = vmax.f32 %v160, %v162
  %v165 = vmax.f32 %v161, %v163
  %v166 = vmax.f32 %v157, %v164
  %v167 = vmax.f32 %v158, %v165
  %168 = vst.msk [vmem:[#allocation2 + $0x33] sm:$0x1] %vm68, %v166
  %169 = vst.msk [vmem:[#allocation2 + $0x32] sm:$0x4] %vm70, %v166
  %170 = vst.msk [vmem:[#allocation2 + $0x31] sm:$0x10] %vm72, %v166
  %171 = vst.msk [vmem:[#allocation2 + $0x30] sm:$0x40] %vm74, %v166
  %172 = vst.msk [vmem:[#allocation2 + $0x37] sm:$0x1] %vm68, %v167
  %173 = vst.msk [vmem:[#allocation2 + $0x36] sm:$0x4] %vm70, %v167
  %174 = vst.msk [vmem:[#allocation2 + $0x35] sm:$0x10] %vm72, %v167
  %175 = vst.msk [vmem:[#allocation2 + $0x34] sm:$0x40] %vm74, %v167
  %s176 = scalar_lea.vmem %s0, 160
  %v177 = vld [vmem:[%s176] sm:$0xff]
  %v178 = vld [vmem:[%s176 + $0x8] sm:$0x7f]
  %v179 = vld [vmem:[%s176 + $0x1] sm:$0xff]
  %v180 = vld [vmem:[%s176 + $0x9] sm:$0x7f]
  %v181 = vmax.f32 %v177, %v179
  %v182 = vmax.f32 %v178, %v180
  %s183 = scalar_lea.vmem %s0, 176
  %v184 = vld [vmem:[%s183] sm:$0xff]
  %v185 = vld [vmem:[%s183 + $0x8] sm:$0x7f]
  %v186 = vld [vmem:[%s183 + $0x1] sm:$0xff]
  %v187 = vld [vmem:[%s183 + $0x9] sm:$0x7f]
  %v188 = vmax.f32 %v184, %v186
  %v189 = vmax.f32 %v185, %v187
  %v190 = vmax.f32 %v181, %v188
  %v191 = vmax.f32 %v182, %v189
  %192 = vst.msk [vmem:[#allocation2 + $0x3d] sm:$0x1] %vm68, %v190
  %193 = vst.msk [vmem:[#allocation2 + $0x3c] sm:$0x4] %vm70, %v190
  %194 = vst.msk [vmem:[#allocation2 + $0x3b] sm:$0x10] %vm72, %v190
  %195 = vst.msk [vmem:[#allocation2 + $0x3a] sm:$0x40] %vm74, %v190
  %196 = vst.msk [vmem:[#allocation2 + $0x41] sm:$0x1] %vm68, %v191
  %197 = vst.msk [vmem:[#allocation2 + $0x40] sm:$0x4] %vm70, %v191
  %198 = vst.msk [vmem:[#allocation2 + $0x3f] sm:$0x10] %vm72, %v191
  %199 = vst.msk [vmem:[#allocation2 + $0x3e] sm:$0x40] %vm74, %v191
  %s200 = scalar_lea.vmem %s0, 192
  %v201 = vld [vmem:[%s200] sm:$0xff]
  %v202 = vld [vmem:[%s200 + $0x8] sm:$0x7f]
  %v203 = vld [vmem:[%s200 + $0x1] sm:$0xff]
  %v204 = vld [vmem:[%s200 + $0x9] sm:$0x7f]
  %v205 = vmax.f32 %v201, %v203
  %v206 = vmax.f32 %v202, %v204
  %s207 = scalar_lea.vmem %s0, 208
  %v208 = vld [vmem:[%s207] sm:$0xff]
  %v209 = vld [vmem:[%s207 + $0x8] sm:$0x7f]
  %v210 = vld [vmem:[%s207 + $0x1] sm:$0xff]
  %v211 = vld [vmem:[%s207 + $0x9] sm:$0x7f]
  %v212 = vmax.f32 %v208, %v210
  %v213 = vmax.f32 %v209, %v211
  %v214 = vmax.f32 %v205, %v212
  %v215 = vmax.f32 %v206, %v213
  %216 = vst.msk [vmem:[#allocation2 + $0x47] sm:$0x1] %vm68, %v214
  %217 = vst.msk [vmem:[#allocation2 + $0x46] sm:$0x4] %vm70, %v214
  %218 = vst.msk [vmem:[#allocation2 + $0x45] sm:$0x10] %vm72, %v214
  %219 = vst.msk [vmem:[#allocation2 + $0x44] sm:$0x40] %vm74, %v214
  %220 = vst.msk [vmem:[#allocation2 + $0x4b] sm:$0x1] %vm68, %v215
  %221 = vst.msk [vmem:[#allocation2 + $0x4a] sm:$0x4] %vm70, %v215
  %222 = vst.msk [vmem:[#allocation2 + $0x49] sm:$0x10] %vm72, %v215
  %223 = vst.msk [vmem:[#allocation2 + $0x48] sm:$0x40] %vm74, %v215
  %s224 = scalar_lea.vmem %s0, 224
  %v225 = vld [vmem:[%s224] sm:$0xff]
  %v226 = vld [vmem:[%s224 + $0x8] sm:$0x7f]
  %v227 = vld [vmem:[%s224 + $0x1] sm:$0xff]
  %v228 = vld [vmem:[%s224 + $0x9] sm:$0x7f]
  %v229 = vmax.f32 %v225, %v227
  %v230 = vmax.f32 %v226, %v228
  %s231 = scalar_lea.vmem %s0, 240
  %v232 = vld [vmem:[%s231] sm:$0xff]
  %v233 = vld [vmem:[%s231 + $0x8] sm:$0x7f]
  %v234 = vld [vmem:[%s231 + $0x1] sm:$0xff]
  %v235 = vld [vmem:[%s231 + $0x9] sm:$0x7f]
  %v236 = vmax.f32 %v232, %v234
  %v237 = vmax.f32 %v233, %v235
  %v238 = vmax.f32 %v229, %v236
  %v239 = vmax.f32 %v230, %v237
  %240 = vst.msk [vmem:[#allocation2 + $0x51] sm:$0x1] %vm68, %v238
  %241 = vst.msk [vmem:[#allocation2 + $0x50] sm:$0x4] %vm70, %v238
  %242 = vst.msk [vmem:[#allocation2 + $0x4f] sm:$0x10] %vm72, %v238
  %243 = vst.msk [vmem:[#allocation2 + $0x4e] sm:$0x40] %vm74, %v238
  %244 = vst.msk [vmem:[#allocation2 + $0x55] sm:$0x1] %vm68, %v239
  %245 = vst.msk [vmem:[#allocation2 + $0x54] sm:$0x4] %vm70, %v239
  %246 = vst.msk [vmem:[#allocation2 + $0x53] sm:$0x10] %vm72, %v239
  %247 = vst.msk [vmem:[#allocation2 + $0x52] sm:$0x40] %vm74, %v239
  %s248 = scalar_lea.vmem %s0, 256
  %v249 = vld [vmem:[%s248] sm:$0xff]
  %v250 = vld [vmem:[%s248 + $0x8] sm:$0x7f]
  %v251 = vld [vmem:[%s248 + $0x1] sm:$0xff]
  %v252 = vld [vmem:[%s248 + $0x9] sm:$0x7f]
  %v253 = vmax.f32 %v249, %v251
  %v254 = vmax.f32 %v250, %v252
  %s255 = scalar_lea.vmem %s0, 272
  %v256 = vld [vmem:[%s255] sm:$0xff]
  %v257 = vld [vmem:[%s255 + $0x8] sm:$0x7f]
  %v258 = vld [vmem:[%s255 + $0x1] sm:$0xff]
  %v259 = vld [vmem:[%s255 + $0x9] sm:$0x7f]
  %v260 = vmax.f32 %v256, %v258
  %v261 = vmax.f32 %v257, %v259
  %v262 = vmax.f32 %v253, %v260
  %v263 = vmax.f32 %v254, %v261
  %s264 = scalar_lea.vmem [#allocation2], 104
  %265 = vst.msk [vmem:[%s264 + $0xb] sm:$0x1] %vm68, %v262
  %266 = vst.msk [vmem:[%s264 + $0xa] sm:$0x4] %vm70, %v262
  %267 = vst.msk [vmem:[%s264 + $0x9] sm:$0x10] %vm72, %v262
  %268 = vst.msk [vmem:[%s264 + $0x8] sm:$0x40] %vm74, %v262
  %269 = vst.msk [vmem:[%s264 + $0xf] sm:$0x1] %vm68, %v263
  %270 = vst.msk [vmem:[%s264 + $0xe] sm:$0x4] %vm70, %v263
  %271 = vst.msk [vmem:[%s264 + $0xd] sm:$0x10] %vm72, %v263
  %272 = vst.msk [vmem:[%s264 + $0xc] sm:$0x40] %vm74, %v263
  %s273 = scalar_lea.vmem %s0, 288
  %v274 = vld [vmem:[%s273] sm:$0xff]
  %v275 = vld [vmem:[%s273 + $0x8] sm:$0x7f]
  %v276 = vld [vmem:[%s273 + $0x1] sm:$0xff]
  %v277 = vld [vmem:[%s273 + $0x9] sm:$0x7f]
  %v278 = vmax.f32 %v274, %v276
  %v279 = vmax.f32 %v275, %v277
  %s280 = scalar_lea.vmem %s0, 304
  %v281 = vld [vmem:[%s280] sm:$0xff]
  %v282 = vld [vmem:[%s280 + $0x8] sm:$0x7f]
  %v283 = vld [vmem:[%s280 + $0x1] sm:$0xff]
  %v284 = vld [vmem:[%s280 + $0x9] sm:$0x7f]
  %v285 = vmax.f32 %v281, %v283
  %v286 = vmax.f32 %v282, %v284
  %v287 = vmax.f32 %v278, %v285
  %v288 = vmax.f32 %v279, %v286
  %289 = vst.msk [vmem:[%s264 + $0x15] sm:$0x1] %vm68, %v287
  %290 = vst.msk [vmem:[%s264 + $0x14] sm:$0x4] %vm70, %v287
  %291 = vst.msk [vmem:[%s264 + $0x13] sm:$0x10] %vm72, %v287
  %292 = vst.msk [vmem:[%s264 + $0x12] sm:$0x40] %vm74, %v287
  %293 = vst.msk [vmem:[%s264 + $0x19] sm:$0x1] %vm68, %v288
  %294 = vst.msk [vmem:[%s264 + $0x18] sm:$0x4] %vm70, %v288
  %295 = vst.msk [vmem:[%s264 + $0x17] sm:$0x10] %vm72, %v288
  %296 = vst.msk [vmem:[%s264 + $0x16] sm:$0x40] %vm74, %v288
  %s297 = scalar_lea.vmem %s0, 320
  %v298 = vld [vmem:[%s297] sm:$0xff]
  %v299 = vld [vmem:[%s297 + $0x8] sm:$0x7f]
  %v300 = vld [vmem:[%s297 + $0x1] sm:$0xff]
  %v301 = vld [vmem:[%s297 + $0x9] sm:$0x7f]
  %v302 = vmax.f32 %v298, %v300
  %v303 = vmax.f32 %v299, %v301
  %s304 = scalar_lea.vmem %s0, 336
  %v305 = vld [vmem:[%s304] sm:$0xff]
  %v306 = vld [vmem:[%s304 + $0x8] sm:$0x7f]
  %v307 = vld [vmem:[%s304 + $0x1] sm:$0xff]
  %v308 = vld [vmem:[%s304 + $0x9] sm:$0x7f]
  %v309 = vmax.f32 %v305, %v307
  %v310 = vmax.f32 %v306, %v308
  %v311 = vmax.f32 %v302, %v309
  %v312 = vmax.f32 %v303, %v310
  %313 = vst.msk [vmem:[%s264 + $0x1f] sm:$0x1] %vm68, %v311
  %314 = vst.msk [vmem:[%s264 + $0x1e] sm:$0x4] %vm70, %v311
  %315 = vst.msk [vmem:[%s264 + $0x1d] sm:$0x10] %vm72, %v311
  %316 = vst.msk [vmem:[%s264 + $0x1c] sm:$0x40] %vm74, %v311
  %317 = vst.msk [vmem:[%s264 + $0x23] sm:$0x1] %vm68, %v312
  %318 = vst.msk [vmem:[%s264 + $0x22] sm:$0x4] %vm70, %v312
  %319 = vst.msk [vmem:[%s264 + $0x21] sm:$0x10] %vm72, %v312
  %320 = vst.msk [vmem:[%s264 + $0x20] sm:$0x40] %vm74, %v312
  %s321 = scalar_lea.vmem %s0, 352
  %v322 = vld [vmem:[%s321] sm:$0xff]
  %v323 = vld [vmem:[%s321 + $0x8] sm:$0x7f]
  %v324 = vld [vmem:[%s321 + $0x1] sm:$0xff]
  %v325 = vld [vmem:[%s321 + $0x9] sm:$0x7f]
  %v326 = vmax.f32 %v322, %v324
  %v327 = vmax.f32 %v323, %v325
  %s328 = scalar_lea.vmem %s0, 368
  %v329 = vld [vmem:[%s328] sm:$0xff]
  %v330 = vld [vmem:[%s328 + $0x8] sm:$0x7f]
  %v331 = vld [vmem:[%s328 + $0x1] sm:$0xff]
  %v332 = vld [vmem:[%s328 + $0x9] sm:$0x7f]
  %v333 = vmax.f32 %v329, %v331
  %v334 = vmax.f32 %v330, %v332
  %v335 = vmax.f32 %v326, %v333
  %v336 = vmax.f32 %v327, %v334
  %337 = vst.msk [vmem:[%s264 + $0x29] sm:$0x1] %vm68, %v335
  %338 = vst.msk [vmem:[%s264 + $0x28] sm:$0x4] %vm70, %v335
  %339 = vst.msk [vmem:[%s264 + $0x27] sm:$0x10] %vm72, %v335
  %340 = vst.msk [vmem:[%s264 + $0x26] sm:$0x40] %vm74, %v335
  %341 = vst.msk [vmem:[%s264 + $0x2d] sm:$0x1] %vm68, %v336
  %342 = vst.msk [vmem:[%s264 + $0x2c] sm:$0x4] %vm70, %v336
  %343 = vst.msk [vmem:[%s264 + $0x2b] sm:$0x10] %vm72, %v336
  %344 = vst.msk [vmem:[%s264 + $0x2a] sm:$0x40] %vm74, %v336
  %s345 = scalar_lea.vmem %s0, 384
  %v346 = vld [vmem:[%s345] sm:$0xff]
  %v347 = vld [vmem:[%s345 + $0x8] sm:$0x7f]
  %v348 = vld [vmem:[%s345 + $0x1] sm:$0xff]
  %v349 = vld [vmem:[%s345 + $0x9] sm:$0x7f]
  %v350 = vmax.f32 %v346, %v348
  %v351 = vmax.f32 %v347, %v349
  %s352 = scalar_lea.vmem %s0, 400
  %v353 = vld [vmem:[%s352] sm:$0xff]
  %v354 = vld [vmem:[%s352 + $0x8] sm:$0x7f]
  %v355 = vld [vmem:[%s352 + $0x1] sm:$0xff]
  %v356 = vld [vmem:[%s352 + $0x9] sm:$0x7f]
  %v357 = vmax.f32 %v353, %v355
  %v358 = vmax.f32 %v354, %v356
  %v359 = vmax.f32 %v350, %v357
  %v360 = vmax.f32 %v351, %v358
  %361 = vst.msk [vmem:[%s264 + $0x33] sm:$0x1] %vm68, %v359
  %362 = vst.msk [vmem:[%s264 + $0x32] sm:$0x4] %vm70, %v359
  %363 = vst.msk [vmem:[%s264 + $0x31] sm:$0x10] %vm72, %v359
  %364 = vst.msk [vmem:[%s264 + $0x30] sm:$0x40] %vm74, %v359
  %365 = vst.msk [vmem:[%s264 + $0x37] sm:$0x1] %vm68, %v360
  %366 = vst.msk [vmem:[%s264 + $0x36] sm:$0x4] %vm70, %v360
  %367 = vst.msk [vmem:[%s264 + $0x35] sm:$0x10] %vm72, %v360
  %368 = vst.msk [vmem:[%s264 + $0x34] sm:$0x40] %vm74, %v360
  %s369 = scalar_lea.vmem %s0, 416
  %v370 = vld [vmem:[%s369] sm:$0xff]
  %v371 = vld [vmem:[%s369 + $0x8] sm:$0x7f]
  %v372 = vld [vmem:[%s369 + $0x1] sm:$0xff]
  %v373 = vld [vmem:[%s369 + $0x9] sm:$0x7f]
  %v374 = vmax.f32 %v370, %v372
  %v375 = vmax.f32 %v371, %v373
  %s376 = scalar_lea.vmem %s0, 432
  %v377 = vld [vmem:[%s376] sm:$0xff]
  %v378 = vld [vmem:[%s376 + $0x8] sm:$0x7f]
  %v379 = vld [vmem:[%s376 + $0x1] sm:$0xff]
  %v380 = vld [vmem:[%s376 + $0x9] sm:$0x7f]
  %v381 = vmax.f32 %v377, %v379
  %v382 = vmax.f32 %v378, %v380
  %v383 = vmax.f32 %v374, %v381
  %v384 = vmax.f32 %v375, %v382
  %385 = vst.msk [vmem:[%s264 + $0x3d] sm:$0x1] %vm68, %v383
  %386 = vst.msk [vmem:[%s264 + $0x3c] sm:$0x4] %vm70, %v383
  %387 = vst.msk [vmem:[%s264 + $0x3b] sm:$0x10] %vm72, %v383
  %388 = vst.msk [vmem:[%s264 + $0x3a] sm:$0x40] %vm74, %v383
  %389 = vst.msk [vmem:[%s264 + $0x41] sm:$0x1] %vm68, %v384
  %390 = vst.msk [vmem:[%s264 + $0x40] sm:$0x4] %vm70, %v384
  %391 = vst.msk [vmem:[%s264 + $0x3f] sm:$0x10] %vm72, %v384
  %392 = vst.msk [vmem:[%s264 + $0x3e] sm:$0x40] %vm74, %v384
  %s393 = scalar_lea.vmem %s0, 448
  %v394 = vld [vmem:[%s393] sm:$0xff]
  %v395 = vld [vmem:[%s393 + $0x8] sm:$0x7f]
  %v396 = vld [vmem:[%s393 + $0x1] sm:$0xff]
  %v397 = vld [vmem:[%s393 + $0x9] sm:$0x7f]
  %v398 = vmax.f32 %v394, %v396
  %v399 = vmax.f32 %v395, %v397
  %s400 = scalar_lea.vmem %s0, 464
  %v401 = vld [vmem:[%s400] sm:$0xff]
  %v402 = vld [vmem:[%s400 + $0x8] sm:$0x7f]
  %v403 = vld [vmem:[%s400 + $0x1] sm:$0xff]
  %v404 = vld [vmem:[%s400 + $0x9] sm:$0x7f]
  %v405 = vmax.f32 %v401, %v403
  %v406 = vmax.f32 %v402, %v404
  %v407 = vmax.f32 %v398, %v405
  %v408 = vmax.f32 %v399, %v406
  %409 = vst.msk [vmem:[%s264 + $0x47] sm:$0x1] %vm68, %v407
  %410 = vst.msk [vmem:[%s264 + $0x46] sm:$0x4] %vm70, %v407
  %411 = vst.msk [vmem:[%s264 + $0x45] sm:$0x10] %vm72, %v407
  %412 = vst.msk [vmem:[%s264 + $0x44] sm:$0x40] %vm74, %v407
  %413 = vst.msk [vmem:[%s264 + $0x4b] sm:$0x1] %vm68, %v408
  %414 = vst.msk [vmem:[%s264 + $0x4a] sm:$0x4] %vm70, %v408
  %415 = vst.msk [vmem:[%s264 + $0x49] sm:$0x10] %vm72, %v408
  %416 = vst.msk [vmem:[%s264 + $0x48] sm:$0x40] %vm74, %v408
  %s417 = scalar_lea.vmem %s0, 480
  %v418 = vld [vmem:[%s417] sm:$0xff]
  %v419 = vld [vmem:[%s417 + $0x8] sm:$0x7f]
  %v420 = vld [vmem:[%s417 + $0x1] sm:$0xff]
  %v421 = vld [vmem:[%s417 + $0x9] sm:$0x7f]
  %v422 = vmax.f32 %v418, %v420
  %v423 = vmax.f32 %v419, %v421
  %s424 = scalar_lea.vmem %s0, 496
  %v425 = vld [vmem:[%s424] sm:$0xff]
  %v426 = vld [vmem:[%s424 + $0x8] sm:$0x7f]
  %v427 = vld [vmem:[%s424 + $0x1] sm:$0xff]
  %v428 = vld [vmem:[%s424 + $0x9] sm:$0x7f]
  %v429 = vmax.f32 %v425, %v427
  %v430 = vmax.f32 %v426, %v428
  %v431 = vmax.f32 %v422, %v429
  %v432 = vmax.f32 %v423, %v430
  %433 = vst.msk [vmem:[%s264 + $0x51] sm:$0x1] %vm68, %v431
  %434 = vst.msk [vmem:[%s264 + $0x50] sm:$0x4] %vm70, %v431
  %435 = vst.msk [vmem:[%s264 + $0x4f] sm:$0x10] %vm72, %v431
  %436 = vst.msk [vmem:[%s264 + $0x4e] sm:$0x40] %vm74, %v431
  %437 = vst.msk [vmem:[%s264 + $0x55] sm:$0x1] %vm68, %v432
  %438 = vst.msk [vmem:[%s264 + $0x54] sm:$0x4] %vm70, %v432
  %439 = vst.msk [vmem:[%s264 + $0x53] sm:$0x10] %vm72, %v432
  %440 = vst.msk [vmem:[%s264 + $0x52] sm:$0x40] %vm74, %v432
  %v441 = vld [vmem:[#allocation2] sm:$0xff]
  %v442 = vld [vmem:[#allocation2 + $0x8] sm:$0xff]
  %v443 = vld [vmem:[#allocation2 + $0x10] sm:$0xff]
  %v444 = vld [vmem:[#allocation2 + $0x18] sm:$0xff]
  %v445 = vld [vmem:[#allocation2 + $0x20] sm:$0xff]
  %v446 = vld [vmem:[#allocation2 + $0x28] sm:$0xff]
  %v447 = vld [vmem:[#allocation2 + $0x30] sm:$0xff]
  %v448 = vld [vmem:[#allocation2 + $0x38] sm:$0xff]
  %v449 = vld [vmem:[#allocation2 + $0x40] sm:$0xff]
  %v450 = vld [vmem:[#allocation2 + $0x48] sm:$0xff]
  %v451 = vld [vmem:[%s1] sm:$0xf]
  %v452 = vld [vmem:[#allocation2 + $0x1] sm:$0xff]
  %v453 = vld [vmem:[#allocation2 + $0x9] sm:$0xff]
  %v454 = vld [vmem:[#allocation2 + $0x11] sm:$0xff]
  %v455 = vld [vmem:[#allocation2 + $0x19] sm:$0xff]
  %v456 = vld [vmem:[#allocation2 + $0x21] sm:$0xff]
  %v457 = vld [vmem:[#allocation2 + $0x29] sm:$0xff]
  %v458 = vld [vmem:[#allocation2 + $0x31] sm:$0xff]
  %v459 = vld [vmem:[#allocation2 + $0x39] sm:$0xff]
  %v460 = vld [vmem:[#allocation2 + $0x41] sm:$0xff]
  %v461 = vld [vmem:[#allocation2 + $0x49] sm:$0xff]
  %s462 = scalar_lea.vmem %s1, 4
  %v463 = vld [vmem:[%s462] sm:$0xf]
  %v465 = vsel %vm26, %v452, 0
  %v468 = vsel %vm26, %v453, 0
  %v471 = vsel %vm26, %v454, 0
  %v474 = vsel %vm26, %v455, 0
  %v477 = vsel %vm26, %v456, 0
  %v480 = vsel %vm26, %v457, 0
  %v483 = vsel %vm26, %v458, 0
  %v486 = vsel %vm26, %v459, 0
  %v489 = vsel %vm26, %v460, 0
  %v492 = vsel %vm26, %v461, 0
  %vm494 = vcmask 1043456
  %v496 = vsel %vm494, %v463, 0
  %498 = vmatprep.subr.mxu0 0.0
  %499 = vmatpush1.msra.mxu0 %v496
  %500 = vmatprep.subr.mxu0 0.0
  %501 = vmatpush1.msra.mxu0 0.0
  %502 = vmatprep.subr.mxu0 0.0
  %503 = vmatpush1.msra.mxu0 0.0
  %504 = vmatprep.subr.mxu0 0.0
  %505 = vmatpush1.msra.mxu0 0.0
  %506 = vmatprep.subr.mxu0 0.0
  %507 = vmatpush1.msra.mxu0 0.0
  %508 = vmatprep.subr.mxu0 0.0
  %509 = vmatpush1.msra.mxu0 0.0
  %510 = vmatprep.subr.mxu0 0.0
  %511 = vmatpush1.msra.mxu0 0.0
  %512 = vmatprep.subr.mxu0 0.0
  %513 = vmatpush1.msra.mxu0 0.0
  %514 = vmatprep.subr.mxu0 0.0
  %515 = vmatpush1.msra.mxu0 0.0
  %516 = vmatprep.subr.mxu0 0.0
  %517 = vmatpush1.msra.mxu0 0.0
  %518 = vmatprep.subr.mxu0 0.0
  %519 = vmatpush1.msra.mxu0 0.0
  %520 = vmatprep.subr.mxu0 0.0
  %521 = vmatpush1.msra.mxu0 0.0
  %522 = vmatprep.subr.mxu0 0.0
  %523 = vmatpush1.msra.mxu0 0.0
  %524 = vmatprep.subr.mxu0 0.0
  %525 = vmatpush1.msra.mxu0 0.0
  %526 = vmatprep.subr.mxu0 0.0
  %527 = vmatpush1.msra.mxu0 0.0
  %528 = vmatprep.subr.mxu0 0.0
  %529 = vmatpush1.msra.mxu0 0.0
  %530 = vmatprep.subr.mxu0 0.0
  %531 = vmatpush1.msra.mxu0 0.0
  %532 = vmatprep.subr.mxu0 0.0
  %533 = vmatpush1.msra.mxu0 0.0
  %534 = vmatprep.subr.mxu0 0.0
  %535 = vmatpush1.msra.mxu0 0.0
  %536 = vmatprep.subr.mxu0 0.0
  %537 = vmatpush1.msra.mxu0 0.0
  %538 = vmatprep.subr.mxu0 0.0
  %539 = vmatpush1.msra.mxu0 0.0
  %540 = vmatprep.subr.mxu0 0.0
  %541 = vmatpush1.msra.mxu0 0.0
  %542 = vmatprep.subr.mxu0 0.0
  %543 = vmatpush1.msra.mxu0 0.0
  %544 = vmatprep.subr.mxu0 0.0
  %545 = vmatpush1.msra.mxu0 0.0
  %546 = vmatprep.subr.mxu0 0.0
  %547 = vmatpush1.msra.mxu0 0.0
  %548 = vmatprep.subr.mxu0 0.0
  %549 = vmatpush1.msra.mxu0 0.0
  %550 = vmatprep.subr.mxu0 0.0
  %551 = vmatpush1.msra.mxu0 0.0
  %552 = vmatprep.subr.mxu0 0.0
  %553 = vmatpush1.msra.mxu0 0.0
  %554 = vmatprep.subr.mxu0 0.0
  %555 = vmatpush1.msra.mxu0 0.0
  %556 = vmatprep.subr.mxu0 0.0
  %557 = vmatpush1.msra.mxu0 0.0
  %558 = vmatprep.subr.mxu0 0.0
  %559 = vmatpush1.msra.mxu0 0.0
  %560 = vmatprep.subr.mxu0 0.0
  %561 = vmatpush1.msra.mxu0 0.0
  %562 = vmatprep.mubr.f32.mxu0 0.0
  %563 = vmatmul.mubr.f32.gmra.mrb[0].mxu0 %v465
  %v564 = vpop.f32.mrb[0].mxu0
  %v565 = vadd.f32 0.0, %v564
  %v566 = vpop.f32.mrb[0].mxu0
  %567 = vmatprep.mubr.f32.mxu0 0.0
  %568 = vmatmul.mubr.f32.gmra.mrb[0].mxu0 %v468
  %v569 = vpop.f32.mrb[0].mxu0
  %v570 = vadd.f32 0.0, %v569
  %v571 = vpop.f32.mrb[0].mxu0
  %572 = vmatprep.mubr.f32.mxu0 0.0
  %573 = vmatmul.mubr.f32.gmra.mrb[0].mxu0 %v471
  %v574 = vpop.f32.mrb[0].mxu0
  %v575 = vadd.f32 0.0, %v574
  %v576 = vpop.f32.mrb[0].mxu0
  %577 = vmatprep.mubr.f32.mxu0 0.0
  %578 = vmatmul.mubr.f32.gmra.mrb[0].mxu0 %v474
  %v579 = vpop.f32.mrb[0].mxu0
  %v580 = vadd.f32 0.0, %v579
  %v581 = vpop.f32.mrb[0].mxu0
  %582 = vmatprep.mubr.f32.mxu0 0.0
  %583 = vmatmul.mubr.f32.gmra.mrb[0].mxu0 %v477
  %v584 = vpop.f32.mrb[0].mxu0
  %v585 = vadd.f32 0.0, %v584
  %v586 = vpop.f32.mrb[0].mxu0
  %587 = vmatprep.mubr.f32.mxu0 0.0
  %588 = vmatmul.mubr.f32.gmra.mrb[0].mxu0 %v480
  %v589 = vpop.f32.mrb[0].mxu0
  %v590 = vadd.f32 0.0, %v589
  %v591 = vpop.f32.mrb[0].mxu0
  %592 = vmatprep.mubr.f32.mxu0 0.0
  %593 = vmatmul.mubr.f32.gmra.mrb[0].mxu0 %v483
  %v594 = vpop.f32.mrb[0].mxu0
  %v595 = vadd.f32 0.0, %v594
  %v596 = vpop.f32.mrb[0].mxu0
  %597 = vmatprep.mubr.f32.mxu0 0.0
  %598 = vmatmul.mubr.f32.gmra.mrb[0].mxu0 %v486
  %v599 = vpop.f32.mrb[0].mxu0
  %v600 = vadd.f32 0.0, %v599
  %v601 = vpop.f32.mrb[0].mxu0
  %602 = vmatprep.mubr.f32.mxu0 0.0
  %603 = vmatmul.mubr.f32.gmra.mrb[0].mxu0 %v489
  %v604 = vpop.f32.mrb[0].mxu0
  %v605 = vadd.f32 0.0, %v604
  %v606 = vpop.f32.mrb[0].mxu0
  %607 = vmatprep.mubr.f32.mxu0 0.0
  %608 = vmatmul.mubr.f32.gmra.mrb[0].mxu0 %v492
  %v609 = vpop.f32.mrb[0].mxu0
  %v610 = vadd.f32 0.0, %v609
  %v611 = vpop.f32.mrb[0].mxu0
  %612 = vdwg.mxu0
  %v614 = vsel %vm26, %v441, 0
  %v617 = vsel %vm26, %v442, 0
  %v620 = vsel %vm26, %v443, 0
  %v623 = vsel %vm26, %v444, 0
  %v626 = vsel %vm26, %v445, 0
  %v629 = vsel %vm26, %v446, 0
  %v632 = vsel %vm26, %v447, 0
  %v635 = vsel %vm26, %v448, 0
  %v638 = vsel %vm26, %v449, 0
  %v641 = vsel %vm26, %v450, 0
  %v644 = vsel %vm494, %v451, 0
  %646 = vmatprep.subr.mxu0 0.0
  %647 = vmatpush1.msra.mxu0 %v644
  %648 = vmatprep.subr.mxu0 0.0
  %649 = vmatpush1.msra.mxu0 0.0
  %650 = vmatprep.subr.mxu0 0.0
  %651 = vmatpush1.msra.mxu0 0.0
  %652 = vmatprep.subr.mxu0 0.0
  %653 = vmatpush1.msra.mxu0 0.0
  %654 = vmatprep.subr.mxu0 0.0
  %655 = vmatpush1.msra.mxu0 0.0
  %656 = vmatprep.subr.mxu0 0.0
  %657 = vmatpush1.msra.mxu0 0.0
  %658 = vmatprep.subr.mxu0 0.0
  %659 = vmatpush1.msra.mxu0 0.0
  %660 = vmatprep.subr.mxu0 0.0
  %661 = vmatpush1.msra.mxu0 0.0
  %662 = vmatprep.subr.mxu0 0.0
  %663 = vmatpush1.msra.mxu0 0.0
  %664 = vmatprep.subr.mxu0 0.0
  %665 = vmatpush1.msra.mxu0 0.0
  %666 = vmatprep.subr.mxu0 0.0
  %667 = vmatpush1.msra.mxu0 0.0
  %668 = vmatprep.subr.mxu0 0.0
  %669 = vmatpush1.msra.mxu0 0.0
  %670 = vmatprep.subr.mxu0 0.0
  %671 = vmatpush1.msra.mxu0 0.0
  %672 = vmatprep.subr.mxu0 0.0
  %673 = vmatpush1.msra.mxu0 0.0
  %674 = vmatprep.subr.mxu0 0.0
  %675 = vmatpush1.msra.mxu0 0.0
  %676 = vmatprep.subr.mxu0 0.0
  %677 = vmatpush1.msra.mxu0 0.0
  %678 = vmatprep.subr.mxu0 0.0
  %679 = vmatpush1.msra.mxu0 0.0
  %680 = vmatprep.subr.mxu0 0.0
  %681 = vmatpush1.msra.mxu0 0.0
  %682 = vmatprep.subr.mxu0 0.0
  %683 = vmatpush1.msra.mxu0 0.0
  %684 = vmatprep.subr.mxu0 0.0
  %685 = vmatpush1.msra.mxu0 0.0
  %686 = vmatprep.subr.mxu0 0.0
  %687 = vmatpush1.msra.mxu0 0.0
  %688 = vmatprep.subr.mxu0 0.0
  %689 = vmatpush1.msra.mxu0 0.0
  %690 = vmatprep.subr.mxu0 0.0
  %691 = vmatpush1.msra.mxu0 0.0
  %692 = vmatprep.subr.mxu0 0.0
  %693 = vmatpush1.msra.mxu0 0.0
  %694 = vmatprep.subr.mxu0 0.0
  %695 = vmatpush1.msra.mxu0 0.0
  %696 = vmatprep.subr.mxu0 0.0
  %697 = vmatpush1.msra.mxu0 0.0
  %698 = vmatprep.subr.mxu0 0.0
  %699 = vmatpush1.msra.mxu0 0.0
  %700 = vmatprep.subr.mxu0 0.0
  %701 = vmatpush1.msra.mxu0 0.0
  %702 = vmatprep.subr.mxu0 0.0
  %703 = vmatpush1.msra.mxu0 0.0
  %704 = vmatprep.subr.mxu0 0.0
  %705 = vmatpush1.msra.mxu0 0.0
  %706 = vmatprep.subr.mxu0 0.0
  %707 = vmatpush1.msra.mxu0 0.0
  %708 = vmatprep.subr.mxu0 0.0
  %709 = vmatpush1.msra.mxu0 0.0
  %710 = vmatprep.mubr.f32.mxu0 0.0
  %711 = vmatmul.mubr.f32.gmra.mrb[0].mxu0 %v614
  %v712 = vpop.f32.mrb[0].mxu0
  %v713 = vadd.f32 %v565, %v712
  %v714 = vpop.f32.mrb[0].mxu0
  %715 = vmatprep.mubr.f32.mxu0 0.0
  %716 = vmatmul.mubr.f32.gmra.mrb[0].mxu0 %v617
  %v717 = vpop.f32.mrb[0].mxu0
  %v718 = vadd.f32 %v570, %v717
  %v719 = vpop.f32.mrb[0].mxu0
  %720 = vmatprep.mubr.f32.mxu0 0.0
  %721 = vmatmul.mubr.f32.gmra.mrb[0].mxu0 %v620
  %v722 = vpop.f32.mrb[0].mxu0
  %v723 = vadd.f32 %v575, %v722
  %v724 = vpop.f32.mrb[0].mxu0
  %725 = vmatprep.mubr.f32.mxu0 0.0
  %726 = vmatmul.mubr.f32.gmra.mrb[0].mxu0 %v623
  %v727 = vpop.f32.mrb[0].mxu0
  %v728 = vadd.f32 %v580, %v727
  %v729 = vpop.f32.mrb[0].mxu0
  %730 = vmatprep.mubr.f32.mxu0 0.0
  %731 = vmatmul.mubr.f32.gmra.mrb[0].mxu0 %v626
  %v732 = vpop.f32.mrb[0].mxu0
  %v733 = vadd.f32 %v585, %v732
  %v734 = vpop.f32.mrb[0].mxu0
  %735 = vmatprep.mubr.f32.mxu0 0.0
  %736 = vmatmul.mubr.f32.gmra.mrb[0].mxu0 %v629
  %v737 = vpop.f32.mrb[0].mxu0
  %v738 = vadd.f32 %v590, %v737
  %v739 = vpop.f32.mrb[0].mxu0
  %740 = vmatprep.mubr.f32.mxu0 0.0
  %741 = vmatmul.mubr.f32.gmra.mrb[0].mxu0 %v632
  %v742 = vpop.f32.mrb[0].mxu0
  %v743 = vadd.f32 %v595, %v742
  %v744 = vpop.f32.mrb[0].mxu0
  %745 = vmatprep.mubr.f32.mxu0 0.0
  %746 = vmatmul.mubr.f32.gmra.mrb[0].mxu0 %v635
  %v747 = vpop.f32.mrb[0].mxu0
  %v748 = vadd.f32 %v600, %v747
  %v749 = vpop.f32.mrb[0].mxu0
  %750 = vmatprep.mubr.f32.mxu0 0.0
  %751 = vmatmul.mubr.f32.gmra.mrb[0].mxu0 %v638
  %v752 = vpop.f32.mrb[0].mxu0
  %v753 = vadd.f32 %v605, %v752
  %v754 = vpop.f32.mrb[0].mxu0
  %755 = vmatprep.mubr.f32.mxu0 0.0
  %756 = vmatmul.mubr.f32.gmra.mrb[0].mxu0 %v641
  %v757 = vpop.f32.mrb[0].mxu0
  %v758 = vadd.f32 %v610, %v757
  %v759 = vpop.f32.mrb[0].mxu0
  %760 = vdwg.mxu0
  %v761 = vld [vmem:[#allocation2 + $0x2] sm:$0xff]
  %v762 = vld [vmem:[#allocation2 + $0xa] sm:$0xff]
  %v763 = vld [vmem:[#allocation2 + $0x12] sm:$0xff]
  %v764 = vld [vmem:[#allocation2 + $0x1a] sm:$0xff]
  %v765 = vld [vmem:[#allocation2 + $0x22] sm:$0xff]
  %v766 = vld [vmem:[#allocation2 + $0x2a] sm:$0xff]
  %v767 = vld [vmem:[#allocation2 + $0x32] sm:$0xff]
  %v768 = vld [vmem:[#allocation2 + $0x3a] sm:$0xff]
  %v769 = vld [vmem:[#allocation2 + $0x42] sm:$0xff]
  %v770 = vld [vmem:[#allocation2 + $0x4a] sm:$0xff]
  %s771 = scalar_lea.vmem %s1, 8
  %v772 = vld [vmem:[%s771] sm:$0xf]
  %v774 = vsel %vm26, %v761, 0
  %v777 = vsel %vm26, %v762, 0
  %v780 = vsel %vm26, %v763, 0
  %v783 = vsel %vm26, %v764, 0
  %v786 = vsel %vm26, %v765, 0
  %v789 = vsel %vm26, %v766, 0
  %v792 = vsel %vm26, %v767, 0
  %v795 = vsel %vm26, %v768, 0
  %v798 = vsel %vm26, %v769, 0
  %v801 = vsel %vm26, %v770, 0
  %v804 = vsel %vm494, %v772, 0
  %806 = vmatprep.subr.mxu0 0.0
  %807 = vmatpush1.msra.mxu0 %v804
  %808 = vmatprep.subr.mxu0 0.0
  %809 = vmatpush1.msra.mxu0 0.0
  %810 = vmatprep.subr.mxu0 0.0
  %811 = vmatpush1.msra.mxu0 0.0
  %812 = vmatprep.subr.mxu0 0.0
  %813 = vmatpush1.msra.mxu0 0.0
  %814 = vmatprep.subr.mxu0 0.0
  %815 = vmatpush1.msra.mxu0 0.0
  %816 = vmatprep.subr.mxu0 0.0
  %817 = vmatpush1.msra.mxu0 0.0
  %818 = vmatprep.subr.mxu0 0.0
  %819 = vmatpush1.msra.mxu0 0.0
  %820 = vmatprep.subr.mxu0 0.0
  %821 = vmatpush1.msra.mxu0 0.0
  %822 = vmatprep.subr.mxu0 0.0
  %823 = vmatpush1.msra.mxu0 0.0
  %824 = vmatprep.subr.mxu0 0.0
  %825 = vmatpush1.msra.mxu0 0.0
  %826 = vmatprep.subr.mxu0 0.0
  %827 = vmatpush1.msra.mxu0 0.0
  %828 = vmatprep.subr.mxu0 0.0
  %829 = vmatpush1.msra.mxu0 0.0
  %830 = vmatprep.subr.mxu0 0.0
  %831 = vmatpush1.msra.mxu0 0.0
  %832 = vmatprep.subr.mxu0 0.0
  %833 = vmatpush1.msra.mxu0 0.0
  %834 = vmatprep.subr.mxu0 0.0
  %835 = vmatpush1.msra.mxu0 0.0
  %836 = vmatprep.subr.mxu0 0.0
  %837 = vmatpush1.msra.mxu0 0.0
  %838 = vmatprep.subr.mxu0 0.0
  %839 = vmatpush1.msra.mxu0 0.0
  %840 = vmatprep.subr.mxu0 0.0
  %841 = vmatpush1.msra.mxu0 0.0
  %842 = vmatprep.subr.mxu0 0.0
  %843 = vmatpush1.msra.mxu0 0.0
  %844 = vmatprep.subr.mxu0 0.0
  %845 = vmatpush1.msra.mxu0 0.0
  %846 = vmatprep.subr.mxu0 0.0
  %847 = vmatpush1.msra.mxu0 0.0
  %848 = vmatprep.subr.mxu0 0.0
  %849 = vmatpush1.msra.mxu0 0.0
  %850 = vmatprep.subr.mxu0 0.0
  %851 = vmatpush1.msra.mxu0 0.0
  %852 = vmatprep.subr.mxu0 0.0
  %853 = vmatpush1.msra.mxu0 0.0
  %854 = vmatprep.subr.mxu0 0.0
  %855 = vmatpush1.msra.mxu0 0.0
  %856 = vmatprep.subr.mxu0 0.0
  %857 = vmatpush1.msra.mxu0 0.0
  %858 = vmatprep.subr.mxu0 0.0
  %859 = vmatpush1.msra.mxu0 0.0
  %860 = vmatprep.subr.mxu0 0.0
  %861 = vmatpush1.msra.mxu0 0.0
  %862 = vmatprep.subr.mxu0 0.0
  %863 = vmatpush1.msra.mxu0 0.0
  %864 = vmatprep.subr.mxu0 0.0
  %865 = vmatpush1.msra.mxu0 0.0
  %866 = vmatprep.subr.mxu0 0.0
  %867 = vmatpush1.msra.mxu0 0.0
  %868 = vmatprep.subr.mxu0 0.0
  %869 = vmatpush1.msra.mxu0 0.0
  %870 = vmatprep.mubr.f32.mxu0 0.0
  %871 = vmatmul.mubr.f32.gmra.mrb[0].mxu0 %v774
  %v872 = vpop.f32.mrb[0].mxu0
  %v873 = vadd.f32 0.0, %v872
  %v874 = vpop.f32.mrb[0].mxu0
  %875 = vmatprep.mubr.f32.mxu0 0.0
  %876 = vmatmul.mubr.f32.gmra.mrb[0].mxu0 %v777
  %v877 = vpop.f32.mrb[0].mxu0
  %v878 = vadd.f32 0.0, %v877
  %v879 = vpop.f32.mrb[0].mxu0
  %880 = vmatprep.mubr.f32.mxu0 0.0
  %881 = vmatmul.mubr.f32.gmra.mrb[0].mxu0 %v780
  %v882 = vpop.f32.mrb[0].mxu0
  %v883 = vadd.f32 0.0, %v882
  %v884 = vpop.f32.mrb[0].mxu0
  %885 = vmatprep.mubr.f32.mxu0 0.0
  %886 = vmatmul.mubr.f32.gmra.mrb[0].mxu0 %v783
  %v887 = vpop.f32.mrb[0].mxu0
  %v888 = vadd.f32 0.0, %v887
  %v889 = vpop.f32.mrb[0].mxu0
  %890 = vmatprep.mubr.f32.mxu0 0.0
  %891 = vmatmul.mubr.f32.gmra.mrb[0].mxu0 %v786
  %v892 = vpop.f32.mrb[0].mxu0
  %v893 = vadd.f32 0.0, %v892
  %v894 = vpop.f32.mrb[0].mxu0
  %895 = vmatprep.mubr.f32.mxu0 0.0
  %896 = vmatmul.mubr.f32.gmra.mrb[0].mxu0 %v789
  %v897 = vpop.f32.mrb[0].mxu0
  %v898 = vadd.f32 0.0, %v897
  %v899 = vpop.f32.mrb[0].mxu0
  %900 = vmatprep.mubr.f32.mxu0 0.0
  %901 = vmatmul.mubr.f32.gmra.mrb[0].mxu0 %v792
  %v902 = vpop.f32.mrb[0].mxu0
  %v903 = vadd.f32 0.0, %v902
  %v904 = vpop.f32.mrb[0].mxu0
  %905 = vmatprep.mubr.f32.mxu0 0.0
  %906 = vmatmul.mubr.f32.gmra.mrb[0].mxu0 %v795
  %v907 = vpop.f32.mrb[0].mxu0
  %v908 = vadd.f32 0.0, %v907
  %v909 = vpop.f32.mrb[0].mxu0
  %910 = vmatprep.mubr.f32.mxu0 0.0
  %911 = vmatmul.mubr.f32.gmra.mrb[0].mxu0 %v798
  %v912 = vpop.f32.mrb[0].mxu0
  %v913 = vadd.f32 0.0, %v912
  %v914 = vpop.f32.mrb[0].mxu0
  %915 = vmatprep.mubr.f32.mxu0 0.0
  %916 = vmatmul.mubr.f32.gmra.mrb[0].mxu0 %v801
  %v917 = vpop.f32.mrb[0].mxu0
  %v918 = vadd.f32 0.0, %v917
  %v919 = vpop.f32.mrb[0].mxu0
  %920 = vdwg.mxu0
  %v921 = vadd.f32 %v713, %v873
  %v922 = vadd.f32 %v718, %v878
  %v923 = vadd.f32 %v723, %v883
  %v924 = vadd.f32 %v728, %v888
  %v925 = vadd.f32 %v733, %v893
  %v926 = vadd.f32 %v738, %v898
  %v927 = vadd.f32 %v743, %v903
  %v928 = vadd.f32 %v748, %v908
  %v929 = vadd.f32 %v753, %v913
  %v930 = vadd.f32 %v758, %v918
  %v931 = vld [vmem:[#allocation2 + $0xa] sm:$0xff]
  %v932 = vld [vmem:[#allocation2 + $0x12] sm:$0xff]
  %v933 = vld [vmem:[#allocation2 + $0x1a] sm:$0xff]
  %v934 = vld [vmem:[#allocation2 + $0x22] sm:$0xff]
  %v935 = vld [vmem:[#allocation2 + $0x2a] sm:$0xff]
  %v936 = vld [vmem:[#allocation2 + $0x32] sm:$0xff]
  %v937 = vld [vmem:[#allocation2 + $0x3a] sm:$0xff]
  %v938 = vld [vmem:[#allocation2 + $0x42] sm:$0xff]
  %v939 = vld [vmem:[#allocation2 + $0x4a] sm:$0xff]
  %v940 = vld [vmem:[#allocation2 + $0x52] sm:$0xff]
  %s941 = scalar_lea.vmem %s1, 12
  %v942 = vld [vmem:[%s941] sm:$0xf]
  %v944 = vsel %vm26, %v931, 0
  %v947 = vsel %vm26, %v932, 0
  %v950 = vsel %vm26, %v933, 0
  %v953 = vsel %vm26, %v934, 0
  %v956 = vsel %vm26, %v935, 0
  %v959 = vsel %vm26, %v936, 0
  %v962 = vsel %vm26, %v937, 0
  %v965 = vsel %vm26, %v938, 0
  %v968 = vsel %vm26, %v939, 0
  %v971 = vsel %vm26, %v940, 0
  %v974 = vsel %vm494, %v942, 0
  %976 = vmatprep.subr.mxu0 0.0
  %977 = vmatpush1.msra.mxu0 %v974
  %978 = vmatprep.subr.mxu0 0.0
  %979 = vmatpush1.msra.mxu0 0.0
  %980 = vmatprep.subr.mxu0 0.0
  %981 = vmatpush1.msra.mxu0 0.0
  %982 = vmatprep.subr.mxu0 0.0
  %983 = vmatpush1.msra.mxu0 0.0
  %984 = vmatprep.subr.mxu0 0.0
  %985 = vmatpush1.msra.mxu0 0.0
  %986 = vmatprep.subr.mxu0 0.0
  %987 = vmatpush1.msra.mxu0 0.0
  %988 = vmatprep.subr.mxu0 0.0
  %989 = vmatpush1.msra.mxu0 0.0
  %990 = vmatprep.subr.mxu0 0.0
  %991 = vmatpush1.msra.mxu0 0.0
  %992 = vmatprep.subr.mxu0 0.0
  %993 = vmatpush1.msra.mxu0 0.0
  %994 = vmatprep.subr.mxu0 0.0
  %995 = vmatpush1.msra.mxu0 0.0
  %996 = vmatprep.subr.mxu0 0.0
  %997 = vmatpush1.msra.mxu0 0.0
  %998 = vmatprep.subr.mxu0 0.0
  %999 = vmatpush1.msra.mxu0 0.0
  %1000 = vmatprep.subr.mxu0 0.0
  %1001 = vmatpush1.msra.mxu0 0.0
  %1002 = vmatprep.subr.mxu0 0.0
  %1003 = vmatpush1.msra.mxu0 0.0
  %1004 = vmatprep.subr.mxu0 0.0
  %1005 = vmatpush1.msra.mxu0 0.0
  %1006 = vmatprep.subr.mxu0 0.0
  %1007 = vmatpush1.msra.mxu0 0.0
  %1008 = vmatprep.subr.mxu0 0.0
  %1009 = vmatpush1.msra.mxu0 0.0
  %1010 = vmatprep.subr.mxu0 0.0
  %1011 = vmatpush1.msra.mxu0 0.0
  %1012 = vmatprep.subr.mxu0 0.0
  %1013 = vmatpush1.msra.mxu0 0.0
  %1014 = vmatprep.subr.mxu0 0.0
  %1015 = vmatpush1.msra.mxu0 0.0
  %1016 = vmatprep.subr.mxu0 0.0
  %1017 = vmatpush1.msra.mxu0 0.0
  %1018 = vmatprep.subr.mxu0 0.0
  %1019 = vmatpush1.msra.mxu0 0.0
  %1020 = vmatprep.subr.mxu0 0.0
  %1021 = vmatpush1.msra.mxu0 0.0
  %1022 = vmatprep.subr.mxu0 0.0
  %1023 = vmatpush1.msra.mxu0 0.0
  %1024 = vmatprep.subr.mxu0 0.0
  %1025 = vmatpush1.msra.mxu0 0.0
  %1026 = vmatprep.subr.mxu0 0.0
  %1027 = vmatpush1.msra.mxu0 0.0
  %1028 = vmatprep.subr.mxu0 0.0
  %1029 = vmatpush1.msra.mxu0 0.0
  %1030 = vmatprep.subr.mxu0 0.0
  %1031 = vmatpush1.msra.mxu0 0.0
  %1032 = vmatprep.subr.mxu0 0.0
  %1033 = vmatpush1.msra.mxu0 0.0
  %1034 = vmatprep.subr.mxu0 0.0
  %1035 = vmatpush1.msra.mxu0 0.0
  %1036 = vmatprep.subr.mxu0 0.0
  %1037 = vmatpush1.msra.mxu0 0.0
  %1038 = vmatprep.subr.mxu0 0.0
  %1039 = vmatpush1.msra.mxu0 0.0
  %1040 = vmatprep.mubr.f32.mxu0 0.0
  %1041 = vmatmul.mubr.f32.gmra.mrb[0].mxu0 %v944
  %v1042 = vpop.f32.mrb[0].mxu0
  %v1043 = vadd.f32 0.0, %v1042
  %v1044 = vpop.f32.mrb[0].mxu0
  %1045 = vmatprep.mubr.f32.mxu0 0.0
  %1046 = vmatmul.mubr.f32.gmra.mrb[0].mxu0 %v947
  %v1047 = vpop.f32.mrb[0].mxu0
  %v1048 = vadd.f32 0.0, %v1047
  %v1049 = vpop.f32.mrb[0].mxu0
  %1050 = vmatprep.mubr.f32.mxu0 0.0
  %1051 = vmatmul.mubr.f32.gmra.mrb[0].mxu0 %v950
  %v1052 = vpop.f32.mrb[0].mxu0
  %v1053 = vadd.f32 0.0, %v1052
  %v1054 = vpop.f32.mrb[0].mxu0
  %1055 = vmatprep.mubr.f32.mxu0 0.0
  %1056 = vmatmul.mubr.f32.gmra.mrb[0].mxu0 %v953
  %v1057 = vpop.f32.mrb[0].mxu0
  %v1058 = vadd.f32 0.0, %v1057
  %v1059 = vpop.f32.mrb[0].mxu0
  %1060 = vmatprep.mubr.f32.mxu0 0.0
  %1061 = vmatmul.mubr.f32.gmra.mrb[0].mxu0 %v956
  %v1062 = vpop.f32.mrb[0].mxu0
  %v1063 = vadd.f32 0.0, %v1062
  %v1064 = vpop.f32.mrb[0].mxu0
  %1065 = vmatprep.mubr.f32.mxu0 0.0
  %1066 = vmatmul.mubr.f32.gmra.mrb[0].mxu0 %v959
  %v1067 = vpop.f32.mrb[0].mxu0
  %v1068 = vadd.f32 0.0, %v1067
  %v1069 = vpop.f32.mrb[0].mxu0
  %1070 = vmatprep.mubr.f32.mxu0 0.0
  %1071 = vmatmul.mubr.f32.gmra.mrb[0].mxu0 %v962
  %v1072 = vpop.f32.mrb[0].mxu0
  %v1073 = vadd.f32 0.0, %v1072
  %v1074 = vpop.f32.mrb[0].mxu0
  %1075 = vmatprep.mubr.f32.mxu0 0.0
  %1076 = vmatmul.mubr.f32.gmra.mrb[0].mxu0 %v965
  %v1077 = vpop.f32.mrb[0].mxu0
  %v1078 = vadd.f32 0.0, %v1077
  %v1079 = vpop.f32.mrb[0].mxu0
  %1080 = vmatprep.mubr.f32.mxu0 0.0
  %1081 = vmatmul.mubr.f32.gmra.mrb[0].mxu0 %v968
  %v1082 = vpop.f32.mrb[0].mxu0
  %v1083 = vadd.f32 0.0, %v1082
  %v1084 = vpop.f32.mrb[0].mxu0
  %1085 = vmatprep.mubr.f32.mxu0 0.0
  %1086 = vmatmul.mubr.f32.gmra.mrb[0].mxu0 %v971
  %v1087 = vpop.f32.mrb[0].mxu0
  %v1088 = vadd.f32 0.0, %v1087
  %v1089 = vpop.f32.mrb[0].mxu0
  %1090 = vdwg.mxu0
  %v1091 = vadd.f32 %v921, %v1043
  %v1092 = vadd.f32 %v922, %v1048
  %v1093 = vadd.f32 %v923, %v1053
  %v1094 = vadd.f32 %v924, %v1058
  %v1095 = vadd.f32 %v925, %v1063
  %v1096 = vadd.f32 %v926, %v1068
  %v1097 = vadd.f32 %v927, %v1073
  %v1098 = vadd.f32 %v928, %v1078
  %v1099 = vadd.f32 %v929, %v1083
  %v1100 = vadd.f32 %v930, %v1088
  %v1101 = vld [vmem:[#allocation2 + $0xb] sm:$0xff]
  %v1102 = vld [vmem:[#allocation2 + $0x13] sm:$0xff]
  %v1103 = vld [vmem:[#allocation2 + $0x1b] sm:$0xff]
  %v1104 = vld [vmem:[#allocation2 + $0x23] sm:$0xff]
  %v1105 = vld [vmem:[#allocation2 + $0x2b] sm:$0xff]
  %v1106 = vld [vmem:[#allocation2 + $0x33] sm:$0xff]
  %v1107 = vld [vmem:[#allocation2 + $0x3b] sm:$0xff]
  %v1108 = vld [vmem:[#allocation2 + $0x43] sm:$0xff]
  %v1109 = vld [vmem:[#allocation2 + $0x4b] sm:$0xff]
  %v1110 = vld [vmem:[#allocation2 + $0x53] sm:$0xff]
  %s1111 = scalar_lea.vmem %s1, 16
  %v1112 = vld [vmem:[%s1111] sm:$0xf]
  %v1114 = vsel %vm26, %v1101, 0
  %v1117 = vsel %vm26, %v1102, 0
  %v1120 = vsel %vm26, %v1103, 0
  %v1123 = vsel %vm26, %v1104, 0
  %v1126 = vsel %vm26, %v1105, 0
  %v1129 = vsel %vm26, %v1106, 0
  %v1132 = vsel %vm26, %v1107, 0
  %v1135 = vsel %vm26, %v1108, 0
  %v1138 = vsel %vm26, %v1109, 0
  %v1141 = vsel %vm26, %v1110, 0
  %v1144 = vsel %vm494, %v1112, 0
  %1146 = vmatprep.subr.mxu0 0.0
  %1147 = vmatpush1.msra.mxu0 %v1144
  %1148 = vmatprep.subr.mxu0 0.0
  %1149 = vmatpush1.msra.mxu0 0.0
  %1150 = vmatprep.subr.mxu0 0.0
  %1151 = vmatpush1.msra.mxu0 0.0
  %1152 = vmatprep.subr.mxu0 0.0
  %1153 = vmatpush1.msra.mxu0 0.0
  %1154 = vmatprep.subr.mxu0 0.0
  %1155 = vmatpush1.msra.mxu0 0.0
  %1156 = vmatprep.subr.mxu0 0.0
  %1157 = vmatpush1.msra.mxu0 0.0
  %1158 = vmatprep.subr.mxu0 0.0
  %1159 = vmatpush1.msra.mxu0 0.0
  %1160 = vmatprep.subr.mxu0 0.0
  %1161 = vmatpush1.msra.mxu0 0.0
  %1162 = vmatprep.subr.mxu0 0.0
  %1163 = vmatpush1.msra.mxu0 0.0
  %1164 = vmatprep.subr.mxu0 0.0
  %1165 = vmatpush1.msra.mxu0 0.0
  %1166 = vmatprep.subr.mxu0 0.0
  %1167 = vmatpush1.msra.mxu0 0.0
  %1168 = vmatprep.subr.mxu0 0.0
  %1169 = vmatpush1.msra.mxu0 0.0
  %1170 = vmatprep.subr.mxu0 0.0
  %1171 = vmatpush1.msra.mxu0 0.0
  %1172 = vmatprep.subr.mxu0 0.0
  %1173 = vmatpush1.msra.mxu0 0.0
  %1174 = vmatprep.subr.mxu0 0.0
  %1175 = vmatpush1.msra.mxu0 0.0
  %1176 = vmatprep.subr.mxu0 0.0
  %1177 = vmatpush1.msra.mxu0 0.0
  %1178 = vmatprep.subr.mxu0 0.0
  %1179 = vmatpush1.msra.mxu0 0.0
  %1180 = vmatprep.subr.mxu0 0.0
  %1181 = vmatpush1.msra.mxu0 0.0
  %1182 = vmatprep.subr.mxu0 0.0
  %1183 = vmatpush1.msra.mxu0 0.0
  %1184 = vmatprep.subr.mxu0 0.0
  %1185 = vmatpush1.msra.mxu0 0.0
  %1186 = vmatprep.subr.mxu0 0.0
  %1187 = vmatpush1.msra.mxu0 0.0
  %1188 = vmatprep.subr.mxu0 0.0
  %1189 = vmatpush1.msra.mxu0 0.0
  %1190 = vmatprep.subr.mxu0 0.0
  %1191 = vmatpush1.msra.mxu0 0.0
  %1192 = vmatprep.subr.mxu0 0.0
  %1193 = vmatpush1.msra.mxu0 0.0
  %1194 = vmatprep.subr.mxu0 0.0
  %1195 = vmatpush1.msra.mxu0 0.0
  %1196 = vmatprep.subr.mxu0 0.0
  %1197 = vmatpush1.msra.mxu0 0.0
  %1198 = vmatprep.subr.mxu0 0.0
  %1199 = vmatpush1.msra.mxu0 0.0
  %1200 = vmatprep.subr.mxu0 0.0
  %1201 = vmatpush1.msra.mxu0 0.0
  %1202 = vmatprep.subr.mxu0 0.0
  %1203 = vmatpush1.msra.mxu0 0.0
  %1204 = vmatprep.subr.mxu0 0.0
  %1205 = vmatpush1.msra.mxu0 0.0
  %1206 = vmatprep.subr.mxu0 0.0
  %1207 = vmatpush1.msra.mxu0 0.0
  %1208 = vmatprep.subr.mxu0 0.0
  %1209 = vmatpush1.msra.mxu0 0.0
  %1210 = vmatprep.mubr.f32.mxu0 0.0
  %1211 = vmatmul.mubr.f32.gmra.mrb[0].mxu0 %v1114
  %v1212 = vpop.f32.mrb[0].mxu0
  %v1213 = vadd.f32 0.0, %v1212
  %v1214 = vpop.f32.mrb[0].mxu0
  %1215 = vmatprep.mubr.f32.mxu0 0.0
  %1216 = vmatmul.mubr.f32.gmra.mrb[0].mxu0 %v1117
  %v1217 = vpop.f32.mrb[0].mxu0
  %v1218 = vadd.f32 0.0, %v1217
  %v1219 = vpop.f32.mrb[0].mxu0
  %1220 = vmatprep.mubr.f32.mxu0 0.0
  %1221 = vmatmul.mubr.f32.gmra.mrb[0].mxu0 %v1120
  %v1222 = vpop.f32.mrb[0].mxu0
  %v1223 = vadd.f32 0.0, %v1222
  %v1224 = vpop.f32.mrb[0].mxu0
  %1225 = vmatprep.mubr.f32.mxu0 0.0
  %1226 = vmatmul.mubr.f32.gmra.mrb[0].mxu0 %v1123
  %v1227 = vpop.f32.mrb[0].mxu0
  %v1228 = vadd.f32 0.0, %v1227
  %v1229 = vpop.f32.mrb[0].mxu0
  %1230 = vmatprep.mubr.f32.mxu0 0.0
  %1231 = vmatmul.mubr.f32.gmra.mrb[0].mxu0 %v1126
  %v1232 = vpop.f32.mrb[0].mxu0
  %v1233 = vadd.f32 0.0, %v1232
  %v1234 = vpop.f32.mrb[0].mxu0
  %1235 = vmatprep.mubr.f32.mxu0 0.0
  %1236 = vmatmul.mubr.f32.gmra.mrb[0].mxu0 %v1129
  %v1237 = vpop.f32.mrb[0].mxu0
  %v1238 = vadd.f32 0.0, %v1237
  %v1239 = vpop.f32.mrb[0].mxu0
  %1240 = vmatprep.mubr.f32.mxu0 0.0
  %1241 = vmatmul.mubr.f32.gmra.mrb[0].mxu0 %v1132
  %v1242 = vpop.f32.mrb[0].mxu0
  %v1243 = vadd.f32 0.0, %v1242
  %v1244 = vpop.f32.mrb[0].mxu0
  %1245 = vmatprep.mubr.f32.mxu0 0.0
  %1246 = vmatmul.mubr.f32.gmra.mrb[0].mxu0 %v1135
  %v1247 = vpop.f32.mrb[0].mxu0
  %v1248 = vadd.f32 0.0, %v1247
  %v1249 = vpop.f32.mrb[0].mxu0
  %1250 = vmatprep.mubr.f32.mxu0 0.0
  %1251 = vmatmul.mubr.f32.gmra.mrb[0].mxu0 %v1138
  %v1252 = vpop.f32.mrb[0].mxu0
  %v1253 = vadd.f32 0.0, %v1252
  %v1254 = vpop.f32.mrb[0].mxu0
  %1255 = vmatprep.mubr.f32.mxu0 0.0
  %1256 = vmatmul.mubr.f32.gmra.mrb[0].mxu0 %v1141
  %v1257 = vpop.f32.mrb[0].mxu0
  %v1258 = vadd.f32 0.0, %v1257
  %v1259 = vpop.f32.mrb[0].mxu0
  %1260 = vdwg.mxu0
  %v1261 = vadd.f32 %v1091, %v1213
  %v1262 = vadd.f32 %v1092, %v1218
  %v1263 = vadd.f32 %v1093, %v1223
  %v1264 = vadd.f32 %v1094, %v1228
  %v1265 = vadd.f32 %v1095, %v1233
  %v1266 = vadd.f32 %v1096, %v1238
  %v1267 = vadd.f32 %v1097, %v1243
  %v1268 = vadd.f32 %v1098, %v1248
  %v1269 = vadd.f32 %v1099, %v1253
  %v1270 = vadd.f32 %v1100, %v1258
  %v1271 = vld [vmem:[#allocation2 + $0xc] sm:$0xff]
  %v1272 = vld [vmem:[#allocation2 + $0x14] sm:$0xff]
  %v1273 = vld [vmem:[#allocation2 + $0x1c] sm:$0xff]
  %v1274 = vld [vmem:[#allocation2 + $0x24] sm:$0xff]
  %v1275 = vld [vmem:[#allocation2 + $0x2c] sm:$0xff]
  %v1276 = vld [vmem:[#allocation2 + $0x34] sm:$0xff]
  %v1277 = vld [vmem:[#allocation2 + $0x3c] sm:$0xff]
  %v1278 = vld [vmem:[#allocation2 + $0x44] sm:$0xff]
  %v1279 = vld [vmem:[#allocation2 + $0x4c] sm:$0xff]
  %v1280 = vld [vmem:[#allocation2 + $0x54] sm:$0xff]
  %s1281 = scalar_lea.vmem %s1, 20
  %v1282 = vld [vmem:[%s1281] sm:$0xf]
  %v1284 = vsel %vm26, %v1271, 0
  %v1287 = vsel %vm26, %v1272, 0
  %v1290 = vsel %vm26, %v1273, 0
  %v1293 = vsel %vm26, %v1274, 0
  %v1296 = vsel %vm26, %v1275, 0
  %v1299 = vsel %vm26, %v1276, 0
  %v1302 = vsel %vm26, %v1277, 0
  %v1305 = vsel %vm26, %v1278, 0
  %v1308 = vsel %vm26, %v1279, 0
  %v1311 = vsel %vm26, %v1280, 0
  %v1314 = vsel %vm494, %v1282, 0
  %1316 = vmatprep.subr.mxu0 0.0
  %1317 = vmatpush1.msra.mxu0 %v1314
  %1318 = vmatprep.subr.mxu0 0.0
  %1319 = vmatpush1.msra.mxu0 0.0
  %1320 = vmatprep.subr.mxu0 0.0
  %1321 = vmatpush1.msra.mxu0 0.0
  %1322 = vmatprep.subr.mxu0 0.0
  %1323 = vmatpush1.msra.mxu0 0.0
  %1324 = vmatprep.subr.mxu0 0.0
  %1325 = vmatpush1.msra.mxu0 0.0
  %1326 = vmatprep.subr.mxu0 0.0
  %1327 = vmatpush1.msra.mxu0 0.0
  %1328 = vmatprep.subr.mxu0 0.0
  %1329 = vmatpush1.msra.mxu0 0.0
  %1330 = vmatprep.subr.mxu0 0.0
  %1331 = vmatpush1.msra.mxu0 0.0
  %1332 = vmatprep.subr.mxu0 0.0
  %1333 = vmatpush1.msra.mxu0 0.0
  %1334 = vmatprep.subr.mxu0 0.0
  %1335 = vmatpush1.msra.mxu0 0.0
  %1336 = vmatprep.subr.mxu0 0.0
  %1337 = vmatpush1.msra.mxu0 0.0
  %1338 = vmatprep.subr.mxu0 0.0
  %1339 = vmatpush1.msra.mxu0 0.0
  %1340 = vmatprep.subr.mxu0 0.0
  %1341 = vmatpush1.msra.mxu0 0.0
  %1342 = vmatprep.subr.mxu0 0.0
  %1343 = vmatpush1.msra.mxu0 0.0
  %1344 = vmatprep.subr.mxu0 0.0
  %1345 = vmatpush1.msra.mxu0 0.0
  %1346 = vmatprep.subr.mxu0 0.0
  %1347 = vmatpush1.msra.mxu0 0.0
  %1348 = vmatprep.subr.mxu0 0.0
  %1349 = vmatpush1.msra.mxu0 0.0
  %1350 = vmatprep.subr.mxu0 0.0
  %1351 = vmatpush1.msra.mxu0 0.0
  %1352 = vmatprep.subr.mxu0 0.0
  %1353 = vmatpush1.msra.mxu0 0.0
  %1354 = vmatprep.subr.mxu0 0.0
  %1355 = vmatpush1.msra.mxu0 0.0
  %1356 = vmatprep.subr.mxu0 0.0
  %1357 = vmatpush1.msra.mxu0 0.0
  %1358 = vmatprep.subr.mxu0 0.0
  %1359 = vmatpush1.msra.mxu0 0.0
  %1360 = vmatprep.subr.mxu0 0.0
  %1361 = vmatpush1.msra.mxu0 0.0
  %1362 = vmatprep.subr.mxu0 0.0
  %1363 = vmatpush1.msra.mxu0 0.0
  %1364 = vmatprep.subr.mxu0 0.0
  %1365 = vmatpush1.msra.mxu0 0.0
  %1366 = vmatprep.subr.mxu0 0.0
  %1367 = vmatpush1.msra.mxu0 0.0
  %1368 = vmatprep.subr.mxu0 0.0
  %1369 = vmatpush1.msra.mxu0 0.0
  %1370 = vmatprep.subr.mxu0 0.0
  %1371 = vmatpush1.msra.mxu0 0.0
  %1372 = vmatprep.subr.mxu0 0.0
  %1373 = vmatpush1.msra.mxu0 0.0
  %1374 = vmatprep.subr.mxu0 0.0
  %1375 = vmatpush1.msra.mxu0 0.0
  %1376 = vmatprep.subr.mxu0 0.0
  %1377 = vmatpush1.msra.mxu0 0.0
  %1378 = vmatprep.subr.mxu0 0.0
  %1379 = vmatpush1.msra.mxu0 0.0
  %1380 = vmatprep.mubr.f32.mxu0 0.0
  %1381 = vmatmul.mubr.f32.gmra.mrb[0].mxu0 %v1284
  %v1382 = vpop.f32.mrb[0].mxu0
  %v1383 = vadd.f32 0.0, %v1382
  %v1384 = vpop.f32.mrb[0].mxu0
  %1385 = vmatprep.mubr.f32.mxu0 0.0
  %1386 = vmatmul.mubr.f32.gmra.mrb[0].mxu0 %v1287
  %v1387 = vpop.f32.mrb[0].mxu0
  %v1388 = vadd.f32 0.0, %v1387
  %v1389 = vpop.f32.mrb[0].mxu0
  %1390 = vmatprep.mubr.f32.mxu0 0.0
  %1391 = vmatmul.mubr.f32.gmra.mrb[0].mxu0 %v1290
  %v1392 = vpop.f32.mrb[0].mxu0
  %v1393 = vadd.f32 0.0, %v1392
  %v1394 = vpop.f32.mrb[0].mxu0
  %1395 = vmatprep.mubr.f32.mxu0 0.0
  %1396 = vmatmul.mubr.f32.gmra.mrb[0].mxu0 %v1293
  %v1397 = vpop.f32.mrb[0].mxu0
  %v1398 = vadd.f32 0.0, %v1397
  %v1399 = vpop.f32.mrb[0].mxu0
  %1400 = vmatprep.mubr.f32.mxu0 0.0
  %1401 = vmatmul.mubr.f32.gmra.mrb[0].mxu0 %v1296
  %v1402 = vpop.f32.mrb[0].mxu0
  %v1403 = vadd.f32 0.0, %v1402
  %v1404 = vpop.f32.mrb[0].mxu0
  %1405 = vmatprep.mubr.f32.mxu0 0.0
  %1406 = vmatmul.mubr.f32.gmra.mrb[0].mxu0 %v1299
  %v1407 = vpop.f32.mrb[0].mxu0
  %v1408 = vadd.f32 0.0, %v1407
  %v1409 = vpop.f32.mrb[0].mxu0
  %1410 = vmatprep.mubr.f32.mxu0 0.0
  %1411 = vmatmul.mubr.f32.gmra.mrb[0].mxu0 %v1302
  %v1412 = vpop.f32.mrb[0].mxu0
  %v1413 = vadd.f32 0.0, %v1412
  %v1414 = vpop.f32.mrb[0].mxu0
  %1415 = vmatprep.mubr.f32.mxu0 0.0
  %1416 = vmatmul.mubr.f32.gmra.mrb[0].mxu0 %v1305
  %v1417 = vpop.f32.mrb[0].mxu0
  %v1418 = vadd.f32 0.0, %v1417
  %v1419 = vpop.f32.mrb[0].mxu0
  %1420 = vmatprep.mubr.f32.mxu0 0.0
  %1421 = vmatmul.mubr.f32.gmra.mrb[0].mxu0 %v1308
  %v1422 = vpop.f32.mrb[0].mxu0
  %v1423 = vadd.f32 0.0, %v1422
  %v1424 = vpop.f32.mrb[0].mxu0
  %1425 = vmatprep.mubr.f32.mxu0 0.0
  %1426 = vmatmul.mubr.f32.gmra.mrb[0].mxu0 %v1311
  %v1427 = vpop.f32.mrb[0].mxu0
  %v1428 = vadd.f32 0.0, %v1427
  %v1429 = vpop.f32.mrb[0].mxu0
  %1430 = vdwg.mxu0
  %v1431 = vadd.f32 %v1261, %v1383
  %v1432 = vadd.f32 %v1262, %v1388
  %v1433 = vadd.f32 %v1263, %v1393
  %v1434 = vadd.f32 %v1264, %v1398
  %v1435 = vadd.f32 %v1265, %v1403
  %v1436 = vadd.f32 %v1266, %v1408
  %v1437 = vadd.f32 %v1267, %v1413
  %v1438 = vadd.f32 %v1268, %v1418
  %v1439 = vadd.f32 %v1269, %v1423
  %v1440 = vadd.f32 %v1270, %v1428
  %v1441 = vld [vmem:[#allocation2 + $0x14] sm:$0xff]
  %v1442 = vld [vmem:[#allocation2 + $0x1c] sm:$0xff]
  %v1443 = vld [vmem:[#allocation2 + $0x24] sm:$0xff]
  %v1444 = vld [vmem:[#allocation2 + $0x2c] sm:$0xff]
  %v1445 = vld [vmem:[#allocation2 + $0x34] sm:$0xff]
  %v1446 = vld [vmem:[#allocation2 + $0x3c] sm:$0xff]
  %v1447 = vld [vmem:[#allocation2 + $0x44] sm:$0xff]
  %v1448 = vld [vmem:[#allocation2 + $0x4c] sm:$0xff]
  %v1449 = vld [vmem:[#allocation2 + $0x54] sm:$0xff]
  %v1450 = vld [vmem:[#allocation2 + $0x5c] sm:$0xff]
  %s1451 = scalar_lea.vmem %s1, 24
  %v1452 = vld [vmem:[%s1451] sm:$0xf]
  %v1454 = vsel %vm26, %v1441, 0
  %v1457 = vsel %vm26, %v1442, 0
  %v1460 = vsel %vm26, %v1443, 0
  %v1463 = vsel %vm26, %v1444, 0
  %v1466 = vsel %vm26, %v1445, 0
  %v1469 = vsel %vm26, %v1446, 0
  %v1472 = vsel %vm26, %v1447, 0
  %v1475 = vsel %vm26, %v1448, 0
  %v1478 = vsel %vm26, %v1449, 0
  %v1481 = vsel %vm26, %v1450, 0
  %v1484 = vsel %vm494, %v1452, 0
  %1486 = vmatprep.subr.mxu0 0.0
  %1487 = vmatpush1.msra.mxu0 %v1484
  %1488 = vmatprep.subr.mxu0 0.0
  %1489 = vmatpush1.msra.mxu0 0.0
  %1490 = vmatprep.subr.mxu0 0.0
  %1491 = vmatpush1.msra.mxu0 0.0
  %1492 = vmatprep.subr.mxu0 0.0
  %1493 = vmatpush1.msra.mxu0 0.0
  %1494 = vmatprep.subr.mxu0 0.0
  %1495 = vmatpush1.msra.mxu0 0.0
  %1496 = vmatprep.subr.mxu0 0.0
  %1497 = vmatpush1.msra.mxu0 0.0
  %1498 = vmatprep.subr.mxu0 0.0
  %1499 = vmatpush1.msra.mxu0 0.0
  %1500 = vmatprep.subr.mxu0 0.0
  %1501 = vmatpush1.msra.mxu0 0.0
  %1502 = vmatprep.subr.mxu0 0.0
  %1503 = vmatpush1.msra.mxu0 0.0
  %1504 = vmatprep.subr.mxu0 0.0
  %1505 = vmatpush1.msra.mxu0 0.0
  %1506 = vmatprep.subr.mxu0 0.0
  %1507 = vmatpush1.msra.mxu0 0.0
  %1508 = vmatprep.subr.mxu0 0.0
  %1509 = vmatpush1.msra.mxu0 0.0
  %1510 = vmatprep.subr.mxu0 0.0
  %1511 = vmatpush1.msra.mxu0 0.0
  %1512 = vmatprep.subr.mxu0 0.0
  %1513 = vmatpush1.msra.mxu0 0.0
  %1514 = vmatprep.subr.mxu0 0.0
  %1515 = vmatpush1.msra.mxu0 0.0
  %1516 = vmatprep.subr.mxu0 0.0
  %1517 = vmatpush1.msra.mxu0 0.0
  %1518 = vmatprep.subr.mxu0 0.0
  %1519 = vmatpush1.msra.mxu0 0.0
  %1520 = vmatprep.subr.mxu0 0.0
  %1521 = vmatpush1.msra.mxu0 0.0
  %1522 = vmatprep.subr.mxu0 0.0
  %1523 = vmatpush1.msra.mxu0 0.0
  %1524 = vmatprep.subr.mxu0 0.0
  %1525 = vmatpush1.msra.mxu0 0.0
  %1526 = vmatprep.subr.mxu0 0.0
  %1527 = vmatpush1.msra.mxu0 0.0
  %1528 = vmatprep.subr.mxu0 0.0
  %1529 = vmatpush1.msra.mxu0 0.0
  %1530 = vmatprep.subr.mxu0 0.0
  %1531 = vmatpush1.msra.mxu0 0.0
  %1532 = vmatprep.subr.mxu0 0.0
  %1533 = vmatpush1.msra.mxu0 0.0
  %1534 = vmatprep.subr.mxu0 0.0
  %1535 = vmatpush1.msra.mxu0 0.0
  %1536 = vmatprep.subr.mxu0 0.0
  %1537 = vmatpush1.msra.mxu0 0.0
  %1538 = vmatprep.subr.mxu0 0.0
  %1539 = vmatpush1.msra.mxu0 0.0
  %1540 = vmatprep.subr.mxu0 0.0
  %1541 = vmatpush1.msra.mxu0 0.0
  %1542 = vmatprep.subr.mxu0 0.0
  %1543 = vmatpush1.msra.mxu0 0.0
  %1544 = vmatprep.subr.mxu0 0.0
  %1545 = vmatpush1.msra.mxu0 0.0
  %1546 = vmatprep.subr.mxu0 0.0
  %1547 = vmatpush1.msra.mxu0 0.0
  %1548 = vmatprep.subr.mxu0 0.0
  %1549 = vmatpush1.msra.mxu0 0.0
  %1550 = vmatprep.mubr.f32.mxu0 0.0
  %1551 = vmatmul.mubr.f32.gmra.mrb[0].mxu0 %v1454
  %v1552 = vpop.f32.mrb[0].mxu0
  %v1553 = vadd.f32 0.0, %v1552
  %v1554 = vpop.f32.mrb[0].mxu0
  %1555 = vmatprep.mubr.f32.mxu0 0.0
  %1556 = vmatmul.mubr.f32.gmra.mrb[0].mxu0 %v1457
  %v1557 = vpop.f32.mrb[0].mxu0
  %v1558 = vadd.f32 0.0, %v1557
  %v1559 = vpop.f32.mrb[0].mxu0
  %1560 = vmatprep.mubr.f32.mxu0 0.0
  %1561 = vmatmul.mubr.f32.gmra.mrb[0].mxu0 %v1460
  %v1562 = vpop.f32.mrb[0].mxu0
  %v1563 = vadd.f32 0.0, %v1562
  %v1564 = vpop.f32.mrb[0].mxu0
  %1565 = vmatprep.mubr.f32.mxu0 0.0
  %1566 = vmatmul.mubr.f32.gmra.mrb[0].mxu0 %v1463
  %v1567 = vpop.f32.mrb[0].mxu0
  %v1568 = vadd.f32 0.0, %v1567
  %v1569 = vpop.f32.mrb[0].mxu0
  %1570 = vmatprep.mubr.f32.mxu0 0.0
  %1571 = vmatmul.mubr.f32.gmra.mrb[0].mxu0 %v1466
  %v1572 = vpop.f32.mrb[0].mxu0
  %v1573 = vadd.f32 0.0, %v1572
  %v1574 = vpop.f32.mrb[0].mxu0
  %1575 = vmatprep.mubr.f32.mxu0 0.0
  %1576 = vmatmul.mubr.f32.gmra.mrb[0].mxu0 %v1469
  %v1577 = vpop.f32.mrb[0].mxu0
  %v1578 = vadd.f32 0.0, %v1577
  %v1579 = vpop.f32.mrb[0].mxu0
  %1580 = vmatprep.mubr.f32.mxu0 0.0
  %1581 = vmatmul.mubr.f32.gmra.mrb[0].mxu0 %v1472
  %v1582 = vpop.f32.mrb[0].mxu0
  %v1583 = vadd.f32 0.0, %v1582
  %v1584 = vpop.f32.mrb[0].mxu0
  %1585 = vmatprep.mubr.f32.mxu0 0.0
  %1586 = vmatmul.mubr.f32.gmra.mrb[0].mxu0 %v1475
  %v1587 = vpop.f32.mrb[0].mxu0
  %v1588 = vadd.f32 0.0, %v1587
  %v1589 = vpop.f32.mrb[0].mxu0
  %1590 = vmatprep.mubr.f32.mxu0 0.0
  %1591 = vmatmul.mubr.f32.gmra.mrb[0].mxu0 %v1478
  %v1592 = vpop.f32.mrb[0].mxu0
  %v1593 = vadd.f32 0.0, %v1592
  %v1594 = vpop.f32.mrb[0].mxu0
  %1595 = vmatprep.mubr.f32.mxu0 0.0
  %1596 = vmatmul.mubr.f32.gmra.mrb[0].mxu0 %v1481
  %v1597 = vpop.f32.mrb[0].mxu0
  %v1598 = vadd.f32 0.0, %v1597
  %v1599 = vpop.f32.mrb[0].mxu0
  %1600 = vdwg.mxu0
  %v1601 = vadd.f32 %v1431, %v1553
  %v1602 = vadd.f32 %v1432, %v1558
  %v1603 = vadd.f32 %v1433, %v1563
  %v1604 = vadd.f32 %v1434, %v1568
  %v1605 = vadd.f32 %v1435, %v1573
  %v1606 = vadd.f32 %v1436, %v1578
  %v1607 = vadd.f32 %v1437, %v1583
  %v1608 = vadd.f32 %v1438, %v1588
  %v1609 = vadd.f32 %v1439, %v1593
  %v1610 = vadd.f32 %v1440, %v1598
  %v1611 = vld [vmem:[#allocation2 + $0x15] sm:$0xff]
  %v1612 = vld [vmem:[#allocation2 + $0x1d] sm:$0xff]
  %v1613 = vld [vmem:[#allocation2 + $0x25] sm:$0xff]
  %v1614 = vld [vmem:[#allocation2 + $0x2d] sm:$0xff]
  %v1615 = vld [vmem:[#allocation2 + $0x35] sm:$0xff]
  %v1616 = vld [vmem:[#allocation2 + $0x3d] sm:$0xff]
  %v1617 = vld [vmem:[#allocation2 + $0x45] sm:$0xff]
  %v1618 = vld [vmem:[#allocation2 + $0x4d] sm:$0xff]
  %v1619 = vld [vmem:[#allocation2 + $0x55] sm:$0xff]
  %v1620 = vld [vmem:[#allocation2 + $0x5d] sm:$0xff]
  %s1621 = scalar_lea.vmem %s1, 28
  %v1622 = vld [vmem:[%s1621] sm:$0xf]
  %v1624 = vsel %vm26, %v1611, 0
  %v1627 = vsel %vm26, %v1612, 0
  %v1630 = vsel %vm26, %v1613, 0
  %v1633 = vsel %vm26, %v1614, 0
  %v1636 = vsel %vm26, %v1615, 0
  %v1639 = vsel %vm26, %v1616, 0
  %v1642 = vsel %vm26, %v1617, 0
  %v1645 = vsel %vm26, %v1618, 0
  %v1648 = vsel %vm26, %v1619, 0
  %v1651 = vsel %vm26, %v1620, 0
  %v1654 = vsel %vm494, %v1622, 0
  %1656 = vmatprep.subr.mxu0 0.0
  %1657 = vmatpush1.msra.mxu0 %v1654
  %1658 = vmatprep.subr.mxu0 0.0
  %1659 = vmatpush1.msra.mxu0 0.0
  %1660 = vmatprep.subr.mxu0 0.0
  %1661 = vmatpush1.msra.mxu0 0.0
  %1662 = vmatprep.subr.mxu0 0.0
  %1663 = vmatpush1.msra.mxu0 0.0
  %1664 = vmatprep.subr.mxu0 0.0
  %1665 = vmatpush1.msra.mxu0 0.0
  %1666 = vmatprep.subr.mxu0 0.0
  %1667 = vmatpush1.msra.mxu0 0.0
  %1668 = vmatprep.subr.mxu0 0.0
  %1669 = vmatpush1.msra.mxu0 0.0
  %1670 = vmatprep.subr.mxu0 0.0
  %1671 = vmatpush1.msra.mxu0 0.0
  %1672 = vmatprep.subr.mxu0 0.0
  %1673 = vmatpush1.msra.mxu0 0.0
  %1674 = vmatprep.subr.mxu0 0.0
  %1675 = vmatpush1.msra.mxu0 0.0
  %1676 = vmatprep.subr.mxu0 0.0
  %1677 = vmatpush1.msra.mxu0 0.0
  %1678 = vmatprep.subr.mxu0 0.0
  %1679 = vmatpush1.msra.mxu0 0.0
  %1680 = vmatprep.subr.mxu0 0.0
  %1681 = vmatpush1.msra.mxu0 0.0
  %1682 = vmatprep.subr.mxu0 0.0
  %1683 = vmatpush1.msra.mxu0 0.0
  %1684 = vmatprep.subr.mxu0 0.0
  %1685 = vmatpush1.msra.mxu0 0.0
  %1686 = vmatprep.subr.mxu0 0.0
  %1687 = vmatpush1.msra.mxu0 0.0
  %1688 = vmatprep.subr.mxu0 0.0
  %1689 = vmatpush1.msra.mxu0 0.0
  %1690 = vmatprep.subr.mxu0 0.0
  %1691 = vmatpush1.msra.mxu0 0.0
  %1692 = vmatprep.subr.mxu0 0.0
  %1693 = vmatpush1.msra.mxu0 0.0
  %1694 = vmatprep.subr.mxu0 0.0
  %1695 = vmatpush1.msra.mxu0 0.0
  %1696 = vmatprep.subr.mxu0 0.0
  %1697 = vmatpush1.msra.mxu0 0.0
  %1698 = vmatprep.subr.mxu0 0.0
  %1699 = vmatpush1.msra.mxu0 0.0
  %1700 = vmatprep.subr.mxu0 0.0
  %1701 = vmatpush1.msra.mxu0 0.0
  %1702 = vmatprep.subr.mxu0 0.0
  %1703 = vmatpush1.msra.mxu0 0.0
  %1704 = vmatprep.subr.mxu0 0.0
  %1705 = vmatpush1.msra.mxu0 0.0
  %1706 = vmatprep.subr.mxu0 0.0
  %1707 = vmatpush1.msra.mxu0 0.0
  %1708 = vmatprep.subr.mxu0 0.0
  %1709 = vmatpush1.msra.mxu0 0.0
  %1710 = vmatprep.subr.mxu0 0.0
  %1711 = vmatpush1.msra.mxu0 0.0
  %1712 = vmatprep.subr.mxu0 0.0
  %1713 = vmatpush1.msra.mxu0 0.0
  %1714 = vmatprep.subr.mxu0 0.0
  %1715 = vmatpush1.msra.mxu0 0.0
  %1716 = vmatprep.subr.mxu0 0.0
  %1717 = vmatpush1.msra.mxu0 0.0
  %1718 = vmatprep.subr.mxu0 0.0
  %1719 = vmatpush1.msra.mxu0 0.0
  %1720 = vmatprep.mubr.f32.mxu0 0.0
  %1721 = vmatmul.mubr.f32.gmra.mrb[0].mxu0 %v1624
  %v1722 = vpop.f32.mrb[0].mxu0
  %v1723 = vadd.f32 0.0, %v1722
  %v1724 = vpop.f32.mrb[0].mxu0
  %1725 = vmatprep.mubr.f32.mxu0 0.0
  %1726 = vmatmul.mubr.f32.gmra.mrb[0].mxu0 %v1627
  %v1727 = vpop.f32.mrb[0].mxu0
  %v1728 = vadd.f32 0.0, %v1727
  %v1729 = vpop.f32.mrb[0].mxu0
  %1730 = vmatprep.mubr.f32.mxu0 0.0
  %1731 = vmatmul.mubr.f32.gmra.mrb[0].mxu0 %v1630
  %v1732 = vpop.f32.mrb[0].mxu0
  %v1733 = vadd.f32 0.0, %v1732
  %v1734 = vpop.f32.mrb[0].mxu0
  %1735 = vmatprep.mubr.f32.mxu0 0.0
  %1736 = vmatmul.mubr.f32.gmra.mrb[0].mxu0 %v1633
  %v1737 = vpop.f32.mrb[0].mxu0
  %v1738 = vadd.f32 0.0, %v1737
  %v1739 = vpop.f32.mrb[0].mxu0
  %1740 = vmatprep.mubr.f32.mxu0 0.0
  %1741 = vmatmul.mubr.f32.gmra.mrb[0].mxu0 %v1636
  %v1742 = vpop.f32.mrb[0].mxu0
  %v1743 = vadd.f32 0.0, %v1742
  %v1744 = vpop.f32.mrb[0].mxu0
  %1745 = vmatprep.mubr.f32.mxu0 0.0
  %1746 = vmatmul.mubr.f32.gmra.mrb[0].mxu0 %v1639
  %v1747 = vpop.f32.mrb[0].mxu0
  %v1748 = vadd.f32 0.0, %v1747
  %v1749 = vpop.f32.mrb[0].mxu0
  %1750 = vmatprep.mubr.f32.mxu0 0.0
  %1751 = vmatmul.mubr.f32.gmra.mrb[0].mxu0 %v1642
  %v1752 = vpop.f32.mrb[0].mxu0
  %v1753 = vadd.f32 0.0, %v1752
  %v1754 = vpop.f32.mrb[0].mxu0
  %1755 = vmatprep.mubr.f32.mxu0 0.0
  %1756 = vmatmul.mubr.f32.gmra.mrb[0].mxu0 %v1645
  %v1757 = vpop.f32.mrb[0].mxu0
  %v1758 = vadd.f32 0.0, %v1757
  %v1759 = vpop.f32.mrb[0].mxu0
  %1760 = vmatprep.mubr.f32.mxu0 0.0
  %1761 = vmatmul.mubr.f32.gmra.mrb[0].mxu0 %v1648
  %v1762 = vpop.f32.mrb[0].mxu0
  %v1763 = vadd.f32 0.0, %v1762
  %v1764 = vpop.f32.mrb[0].mxu0
  %1765 = vmatprep.mubr.f32.mxu0 0.0
  %1766 = vmatmul.mubr.f32.gmra.mrb[0].mxu0 %v1651
  %v1767 = vpop.f32.mrb[0].mxu0
  %v1768 = vadd.f32 0.0, %v1767
  %v1769 = vpop.f32.mrb[0].mxu0
  %1770 = vdwg.mxu0
  %v1771 = vadd.f32 %v1601, %v1723
  %v1772 = vadd.f32 %v1602, %v1728
  %v1773 = vadd.f32 %v1603, %v1733
  %v1774 = vadd.f32 %v1604, %v1738
  %v1775 = vadd.f32 %v1605, %v1743
  %v1776 = vadd.f32 %v1606, %v1748
  %v1777 = vadd.f32 %v1607, %v1753
  %v1778 = vadd.f32 %v1608, %v1758
  %v1779 = vadd.f32 %v1609, %v1763
  %v1780 = vadd.f32 %v1610, %v1768
  %v1781 = vld [vmem:[#allocation2 + $0x16] sm:$0xff]
  %v1782 = vld [vmem:[#allocation2 + $0x1e] sm:$0xff]
  %v1783 = vld [vmem:[#allocation2 + $0x26] sm:$0xff]
  %v1784 = vld [vmem:[#allocation2 + $0x2e] sm:$0xff]
  %v1785 = vld [vmem:[#allocation2 + $0x36] sm:$0xff]
  %v1786 = vld [vmem:[#allocation2 + $0x3e] sm:$0xff]
  %v1787 = vld [vmem:[#allocation2 + $0x46] sm:$0xff]
  %v1788 = vld [vmem:[#allocation2 + $0x4e] sm:$0xff]
  %v1789 = vld [vmem:[#allocation2 + $0x56] sm:$0xff]
  %v1790 = vld [vmem:[#allocation2 + $0x5e] sm:$0xff]
  %s1791 = scalar_lea.vmem %s1, 32
  %v1792 = vld [vmem:[%s1791] sm:$0xf]
  %v1794 = vsel %vm26, %v1781, 0
  %v1797 = vsel %vm26, %v1782, 0
  %v1800 = vsel %vm26, %v1783, 0
  %v1803 = vsel %vm26, %v1784, 0
  %v1806 = vsel %vm26, %v1785, 0
  %v1809 = vsel %vm26, %v1786, 0
  %v1812 = vsel %vm26, %v1787, 0
  %v1815 = vsel %vm26, %v1788, 0
  %v1818 = vsel %vm26, %v1789, 0
  %v1821 = vsel %vm26, %v1790, 0
  %v1824 = vsel %vm494, %v1792, 0
  %1826 = vmatprep.subr.mxu0 0.0
  %1827 = vmatpush1.msra.mxu0 %v1824
  %1828 = vmatprep.subr.mxu0 0.0
  %1829 = vmatpush1.msra.mxu0 0.0
  %1830 = vmatprep.subr.mxu0 0.0
  %1831 = vmatpush1.msra.mxu0 0.0
  %1832 = vmatprep.subr.mxu0 0.0
  %1833 = vmatpush1.msra.mxu0 0.0
  %1834 = vmatprep.subr.mxu0 0.0
  %1835 = vmatpush1.msra.mxu0 0.0
  %1836 = vmatprep.subr.mxu0 0.0
  %1837 = vmatpush1.msra.mxu0 0.0
  %1838 = vmatprep.subr.mxu0 0.0
  %1839 = vmatpush1.msra.mxu0 0.0
  %1840 = vmatprep.subr.mxu0 0.0
  %1841 = vmatpush1.msra.mxu0 0.0
  %1842 = vmatprep.subr.mxu0 0.0
  %1843 = vmatpush1.msra.mxu0 0.0
  %1844 = vmatprep.subr.mxu0 0.0
  %1845 = vmatpush1.msra.mxu0 0.0
  %1846 = vmatprep.subr.mxu0 0.0
  %1847 = vmatpush1.msra.mxu0 0.0
  %1848 = vmatprep.subr.mxu0 0.0
  %1849 = vmatpush1.msra.mxu0 0.0
  %1850 = vmatprep.subr.mxu0 0.0
  %1851 = vmatpush1.msra.mxu0 0.0
  %1852 = vmatprep.subr.mxu0 0.0
  %1853 = vmatpush1.msra.mxu0 0.0
  %1854 = vmatprep.subr.mxu0 0.0
  %1855 = vmatpush1.msra.mxu0 0.0
  %1856 = vmatprep.subr.mxu0 0.0
  %1857 = vmatpush1.msra.mxu0 0.0
  %1858 = vmatprep.subr.mxu0 0.0
  %1859 = vmatpush1.msra.mxu0 0.0
  %1860 = vmatprep.subr.mxu0 0.0
  %1861 = vmatpush1.msra.mxu0 0.0
  %1862 = vmatprep.subr.mxu0 0.0
  %1863 = vmatpush1.msra.mxu0 0.0
  %1864 = vmatprep.subr.mxu0 0.0
  %1865 = vmatpush1.msra.mxu0 0.0
  %1866 = vmatprep.subr.mxu0 0.0
  %1867 = vmatpush1.msra.mxu0 0.0
  %1868 = vmatprep.subr.mxu0 0.0
  %1869 = vmatpush1.msra.mxu0 0.0
  %1870 = vmatprep.subr.mxu0 0.0
  %1871 = vmatpush1.msra.mxu0 0.0
  %1872 = vmatprep.subr.mxu0 0.0
  %1873 = vmatpush1.msra.mxu0 0.0
  %1874 = vmatprep.subr.mxu0 0.0
  %1875 = vmatpush1.msra.mxu0 0.0
  %1876 = vmatprep.subr.mxu0 0.0
  %1877 = vmatpush1.msra.mxu0 0.0
  %1878 = vmatprep.subr.mxu0 0.0
  %1879 = vmatpush1.msra.mxu0 0.0
  %1880 = vmatprep.subr.mxu0 0.0
  %1881 = vmatpush1.msra.mxu0 0.0
  %1882 = vmatprep.subr.mxu0 0.0
  %1883 = vmatpush1.msra.mxu0 0.0
  %1884 = vmatprep.subr.mxu0 0.0
  %1885 = vmatpush1.msra.mxu0 0.0
  %1886 = vmatprep.subr.mxu0 0.0
  %1887 = vmatpush1.msra.mxu0 0.0
  %1888 = vmatprep.subr.mxu0 0.0
  %1889 = vmatpush1.msra.mxu0 0.0
  %1890 = vmatprep.mubr.f32.mxu0 0.0
  %1891 = vmatmul.mubr.f32.gmra.mrb[0].mxu0 %v1794
  %v1892 = vpop.f32.mrb[0].mxu0
  %v1893 = vadd.f32 0.0, %v1892
  %v1894 = vpop.f32.mrb[0].mxu0
  %1895 = vmatprep.mubr.f32.mxu0 0.0
  %1896 = vmatmul.mubr.f32.gmra.mrb[0].mxu0 %v1797
  %v1897 = vpop.f32.mrb[0].mxu0
  %v1898 = vadd.f32 0.0, %v1897
  %v1899 = vpop.f32.mrb[0].mxu0
  %1900 = vmatprep.mubr.f32.mxu0 0.0
  %1901 = vmatmul.mubr.f32.gmra.mrb[0].mxu0 %v1800
  %v1902 = vpop.f32.mrb[0].mxu0
  %v1903 = vadd.f32 0.0, %v1902
  %v1904 = vpop.f32.mrb[0].mxu0
  %1905 = vmatprep.mubr.f32.mxu0 0.0
  %1906 = vmatmul.mubr.f32.gmra.mrb[0].mxu0 %v1803
  %v1907 = vpop.f32.mrb[0].mxu0
  %v1908 = vadd.f32 0.0, %v1907
  %v1909 = vpop.f32.mrb[0].mxu0
  %1910 = vmatprep.mubr.f32.mxu0 0.0
  %1911 = vmatmul.mubr.f32.gmra.mrb[0].mxu0 %v1806
  %v1912 = vpop.f32.mrb[0].mxu0
  %v1913 = vadd.f32 0.0, %v1912
  %v1914 = vpop.f32.mrb[0].mxu0
  %1915 = vmatprep.mubr.f32.mxu0 0.0
  %1916 = vmatmul.mubr.f32.gmra.mrb[0].mxu0 %v1809
  %v1917 = vpop.f32.mrb[0].mxu0
  %v1918 = vadd.f32 0.0, %v1917
  %v1919 = vpop.f32.mrb[0].mxu0
  %1920 = vmatprep.mubr.f32.mxu0 0.0
  %1921 = vmatmul.mubr.f32.gmra.mrb[0].mxu0 %v1812
  %v1922 = vpop.f32.mrb[0].mxu0
  %v1923 = vadd.f32 0.0, %v1922
  %v1924 = vpop.f32.mrb[0].mxu0
  %1925 = vmatprep.mubr.f32.mxu0 0.0
  %1926 = vmatmul.mubr.f32.gmra.mrb[0].mxu0 %v1815
  %v1927 = vpop.f32.mrb[0].mxu0
  %v1928 = vadd.f32 0.0, %v1927
  %v1929 = vpop.f32.mrb[0].mxu0
  %1930 = vmatprep.mubr.f32.mxu0 0.0
  %1931 = vmatmul.mubr.f32.gmra.mrb[0].mxu0 %v1818
  %v1932 = vpop.f32.mrb[0].mxu0
  %v1933 = vadd.f32 0.0, %v1932
  %v1934 = vpop.f32.mrb[0].mxu0
  %1935 = vmatprep.mubr.f32.mxu0 0.0
  %1936 = vmatmul.mubr.f32.gmra.mrb[0].mxu0 %v1821
  %v1937 = vpop.f32.mrb[0].mxu0
  %v1938 = vadd.f32 0.0, %v1937
  %v1939 = vpop.f32.mrb[0].mxu0
  %1940 = vdwg.mxu0
  %v1941 = vadd.f32 %v1771, %v1893
  %v1942 = vadd.f32 %v1772, %v1898
  %v1943 = vadd.f32 %v1773, %v1903
  %v1944 = vadd.f32 %v1774, %v1908
  %v1945 = vadd.f32 %v1775, %v1913
  %v1946 = vadd.f32 %v1776, %v1918
  %v1947 = vadd.f32 %v1777, %v1923
  %v1948 = vadd.f32 %v1778, %v1928
  %v1949 = vadd.f32 %v1779, %v1933
  %v1950 = vadd.f32 %v1780, %v1938
  %vm1951 = vcmask 64512
  %1952 = vst.msk [vmem:[#allocation3] sm:$0xff] %vm1951, %v1941
  %1953 = vst.msk [vmem:[#allocation3 + $0x8] sm:$0xff] %vm1951, %v1942
  %1954 = vst.msk [vmem:[#allocation3 + $0x10] sm:$0xff] %vm1951, %v1943
  %1955 = vst.msk [vmem:[#allocation3 + $0x18] sm:$0xff] %vm1951, %v1944
  %1956 = vst.msk [vmem:[#allocation3 + $0x20] sm:$0xff] %vm1951, %v1945
  %1957 = vst.msk [vmem:[#allocation3 + $0x28] sm:$0xff] %vm1951, %v1946
  %1958 = vst.msk [vmem:[#allocation3 + $0x30] sm:$0xff] %vm1951, %v1947
  %1959 = vst.msk [vmem:[#allocation3 + $0x38] sm:$0xff] %vm1951, %v1948
  %1960 = vst.msk [vmem:[#allocation3 + $0x40] sm:$0xff] %vm1951, %v1949
  %1961 = vst.msk [vmem:[#allocation3 + $0x48] sm:$0xff] %vm1951, %v1950
  %v1962 = vld [vmem:[%s264] sm:$0xff]
  %v1963 = vld [vmem:[%s264 + $0x8] sm:$0xff]
  %v1964 = vld [vmem:[%s264 + $0x10] sm:$0xff]
  %v1965 = vld [vmem:[%s264 + $0x18] sm:$0xff]
  %v1966 = vld [vmem:[%s264 + $0x20] sm:$0xff]
  %v1967 = vld [vmem:[%s264 + $0x28] sm:$0xff]
  %v1968 = vld [vmem:[%s264 + $0x30] sm:$0xff]
  %v1969 = vld [vmem:[%s264 + $0x38] sm:$0xff]
  %v1970 = vld [vmem:[%s264 + $0x40] sm:$0xff]
  %v1971 = vld [vmem:[%s264 + $0x48] sm:$0xff]
  %v1972 = vld [vmem:[%s1] sm:$0xf]
  %v1973 = vld [vmem:[%s264 + $0x1] sm:$0xff]
  %v1974 = vld [vmem:[%s264 + $0x9] sm:$0xff]
  %v1975 = vld [vmem:[%s264 + $0x11] sm:$0xff]
  %v1976 = vld [vmem:[%s264 + $0x19] sm:$0xff]
  %v1977 = vld [vmem:[%s264 + $0x21] sm:$0xff]
  %v1978 = vld [vmem:[%s264 + $0x29] sm:$0xff]
  %v1979 = vld [vmem:[%s264 + $0x31] sm:$0xff]
  %v1980 = vld [vmem:[%s264 + $0x39] sm:$0xff]
  %v1981 = vld [vmem:[%s264 + $0x41] sm:$0xff]
  %v1982 = vld [vmem:[%s264 + $0x49] sm:$0xff]
  %v1983 = vld [vmem:[%s462] sm:$0xf]
  %v1985 = vsel %vm26, %v1973, 0
  %v1988 = vsel %vm26, %v1974, 0
  %v1991 = vsel %vm26, %v1975, 0
  %v1994 = vsel %vm26, %v1976, 0
  %v1997 = vsel %vm26, %v1977, 0
  %v2000 = vsel %vm26, %v1978, 0
  %v2003 = vsel %vm26, %v1979, 0
  %v2006 = vsel %vm26, %v1980, 0
  %v2009 = vsel %vm26, %v1981, 0
  %v2012 = vsel %vm26, %v1982, 0
  %v2015 = vsel %vm494, %v1983, 0
  %2017 = vmatprep.subr.mxu0 0.0
  %2018 = vmatpush1.msra.mxu0 %v2015
  %2019 = vmatprep.subr.mxu0 0.0
  %2020 = vmatpush1.msra.mxu0 0.0
  %2021 = vmatprep.subr.mxu0 0.0
  %2022 = vmatpush1.msra.mxu0 0.0
  %2023 = vmatprep.subr.mxu0 0.0
  %2024 = vmatpush1.msra.mxu0 0.0
  %2025 = vmatprep.subr.mxu0 0.0
  %2026 = vmatpush1.msra.mxu0 0.0
  %2027 = vmatprep.subr.mxu0 0.0
  %2028 = vmatpush1.msra.mxu0 0.0
  %2029 = vmatprep.subr.mxu0 0.0
  %2030 = vmatpush1.msra.mxu0 0.0
  %2031 = vmatprep.subr.mxu0 0.0
  %2032 = vmatpush1.msra.mxu0 0.0
  %2033 = vmatprep.subr.mxu0 0.0
  %2034 = vmatpush1.msra.mxu0 0.0
  %2035 = vmatprep.subr.mxu0 0.0
  %2036 = vmatpush1.msra.mxu0 0.0
  %2037 = vmatprep.subr.mxu0 0.0
  %2038 = vmatpush1.msra.mxu0 0.0
  %2039 = vmatprep.subr.mxu0 0.0
  %2040 = vmatpush1.msra.mxu0 0.0
  %2041 = vmatprep.subr.mxu0 0.0
  %2042 = vmatpush1.msra.mxu0 0.0
  %2043 = vmatprep.subr.mxu0 0.0
  %2044 = vmatpush1.msra.mxu0 0.0
  %2045 = vmatprep.subr.mxu0 0.0
  %2046 = vmatpush1.msra.mxu0 0.0
  %2047 = vmatprep.subr.mxu0 0.0
  %2048 = vmatpush1.msra.mxu0 0.0
  %2049 = vmatprep.subr.mxu0 0.0
  %2050 = vmatpush1.msra.mxu0 0.0
  %2051 = vmatprep.subr.mxu0 0.0
  %2052 = vmatpush1.msra.mxu0 0.0
  %2053 = vmatprep.subr.mxu0 0.0
  %2054 = vmatpush1.msra.mxu0 0.0
  %2055 = vmatprep.subr.mxu0 0.0
  %2056 = vmatpush1.msra.mxu0 0.0
  %2057 = vmatprep.subr.mxu0 0.0
  %2058 = vmatpush1.msra.mxu0 0.0
  %2059 = vmatprep.subr.mxu0 0.0
  %2060 = vmatpush1.msra.mxu0 0.0
  %2061 = vmatprep.subr.mxu0 0.0
  %2062 = vmatpush1.msra.mxu0 0.0
  %2063 = vmatprep.subr.mxu0 0.0
  %2064 = vmatpush1.msra.mxu0 0.0
  %2065 = vmatprep.subr.mxu0 0.0
  %2066 = vmatpush1.msra.mxu0 0.0
  %2067 = vmatprep.subr.mxu0 0.0
  %2068 = vmatpush1.msra.mxu0 0.0
  %2069 = vmatprep.subr.mxu0 0.0
  %2070 = vmatpush1.msra.mxu0 0.0
  %2071 = vmatprep.subr.mxu0 0.0
  %2072 = vmatpush1.msra.mxu0 0.0
  %2073 = vmatprep.subr.mxu0 0.0
  %2074 = vmatpush1.msra.mxu0 0.0
  %2075 = vmatprep.subr.mxu0 0.0
  %2076 = vmatpush1.msra.mxu0 0.0
  %2077 = vmatprep.subr.mxu0 0.0
  %2078 = vmatpush1.msra.mxu0 0.0
  %2079 = vmatprep.subr.mxu0 0.0
  %2080 = vmatpush1.msra.mxu0 0.0
  %2081 = vmatprep.mubr.f32.mxu0 0.0
  %2082 = vmatmul.mubr.f32.gmra.mrb[0].mxu0 %v1985
  %v2083 = vpop.f32.mrb[0].mxu0
  %v2084 = vadd.f32 0.0, %v2083
  %v2085 = vpop.f32.mrb[0].mxu0
  %2086 = vmatprep.mubr.f32.mxu0 0.0
  %2087 = vmatmul.mubr.f32.gmra.mrb[0].mxu0 %v1988
  %v2088 = vpop.f32.mrb[0].mxu0
  %v2089 = vadd.f32 0.0, %v2088
  %v2090 = vpop.f32.mrb[0].mxu0
  %2091 = vmatprep.mubr.f32.mxu0 0.0
  %2092 = vmatmul.mubr.f32.gmra.mrb[0].mxu0 %v1991
  %v2093 = vpop.f32.mrb[0].mxu0
  %v2094 = vadd.f32 0.0, %v2093
  %v2095 = vpop.f32.mrb[0].mxu0
  %2096 = vmatprep.mubr.f32.mxu0 0.0
  %2097 = vmatmul.mubr.f32.gmra.mrb[0].mxu0 %v1994
  %v2098 = vpop.f32.mrb[0].mxu0
  %v2099 = vadd.f32 0.0, %v2098
  %v2100 = vpop.f32.mrb[0].mxu0
  %2101 = vmatprep.mubr.f32.mxu0 0.0
  %2102 = vmatmul.mubr.f32.gmra.mrb[0].mxu0 %v1997
  %v2103 = vpop.f32.mrb[0].mxu0
  %v2104 = vadd.f32 0.0, %v2103
  %v2105 = vpop.f32.mrb[0].mxu0
  %2106 = vmatprep.mubr.f32.mxu0 0.0
  %2107 = vmatmul.mubr.f32.gmra.mrb[0].mxu0 %v2000
  %v2108 = vpop.f32.mrb[0].mxu0
  %v2109 = vadd.f32 0.0, %v2108
  %v2110 = vpop.f32.mrb[0].mxu0
  %2111 = vmatprep.mubr.f32.mxu0 0.0
  %2112 = vmatmul.mubr.f32.gmra.mrb[0].mxu0 %v2003
  %v2113 = vpop.f32.mrb[0].mxu0
  %v2114 = vadd.f32 0.0, %v2113
  %v2115 = vpop.f32.mrb[0].mxu0
  %2116 = vmatprep.mubr.f32.mxu0 0.0
  %2117 = vmatmul.mubr.f32.gmra.mrb[0].mxu0 %v2006
  %v2118 = vpop.f32.mrb[0].mxu0
  %v2119 = vadd.f32 0.0, %v2118
  %v2120 = vpop.f32.mrb[0].mxu0
  %2121 = vmatprep.mubr.f32.mxu0 0.0
  %2122 = vmatmul.mubr.f32.gmra.mrb[0].mxu0 %v2009
  %v2123 = vpop.f32.mrb[0].mxu0
  %v2124 = vadd.f32 0.0, %v2123
  %v2125 = vpop.f32.mrb[0].mxu0
  %2126 = vmatprep.mubr.f32.mxu0 0.0
  %2127 = vmatmul.mubr.f32.gmra.mrb[0].mxu0 %v2012
  %v2128 = vpop.f32.mrb[0].mxu0
  %v2129 = vadd.f32 0.0, %v2128
  %v2130 = vpop.f32.mrb[0].mxu0
  %2131 = vdwg.mxu0
  %v2133 = vsel %vm26, %v1962, 0
  %v2136 = vsel %vm26, %v1963, 0
  %v2139 = vsel %vm26, %v1964, 0
  %v2142 = vsel %vm26, %v1965, 0
  %v2145 = vsel %vm26, %v1966, 0
  %v2148 = vsel %vm26, %v1967, 0
  %v2151 = vsel %vm26, %v1968, 0
  %v2154 = vsel %vm26, %v1969, 0
  %v2157 = vsel %vm26, %v1970, 0
  %v2160 = vsel %vm26, %v1971, 0
  %v2163 = vsel %vm494, %v1972, 0
  %2165 = vmatprep.subr.mxu0 0.0
  %2166 = vmatpush1.msra.mxu0 %v2163
  %2167 = vmatprep.subr.mxu0 0.0
  %2168 = vmatpush1.msra.mxu0 0.0
  %2169 = vmatprep.subr.mxu0 0.0
  %2170 = vmatpush1.msra.mxu0 0.0
  %2171 = vmatprep.subr.mxu0 0.0
  %2172 = vmatpush1.msra.mxu0 0.0
  %2173 = vmatprep.subr.mxu0 0.0
  %2174 = vmatpush1.msra.mxu0 0.0
  %2175 = vmatprep.subr.mxu0 0.0
  %2176 = vmatpush1.msra.mxu0 0.0
  %2177 = vmatprep.subr.mxu0 0.0
  %2178 = vmatpush1.msra.mxu0 0.0
  %2179 = vmatprep.subr.mxu0 0.0
  %2180 = vmatpush1.msra.mxu0 0.0
  %2181 = vmatprep.subr.mxu0 0.0
  %2182 = vmatpush1.msra.mxu0 0.0
  %2183 = vmatprep.subr.mxu0 0.0
  %2184 = vmatpush1.msra.mxu0 0.0
  %2185 = vmatprep.subr.mxu0 0.0
  %2186 = vmatpush1.msra.mxu0 0.0
  %2187 = vmatprep.subr.mxu0 0.0
  %2188 = vmatpush1.msra.mxu0 0.0
  %2189 = vmatprep.subr.mxu0 0.0
  %2190 = vmatpush1.msra.mxu0 0.0
  %2191 = vmatprep.subr.mxu0 0.0
  %2192 = vmatpush1.msra.mxu0 0.0
  %2193 = vmatprep.subr.mxu0 0.0
  %2194 = vmatpush1.msra.mxu0 0.0
  %2195 = vmatprep.subr.mxu0 0.0
  %2196 = vmatpush1.msra.mxu0 0.0
  %2197 = vmatprep.subr.mxu0 0.0
  %2198 = vmatpush1.msra.mxu0 0.0
  %2199 = vmatprep.subr.mxu0 0.0
  %2200 = vmatpush1.msra.mxu0 0.0
  %2201 = vmatprep.subr.mxu0 0.0
  %2202 = vmatpush1.msra.mxu0 0.0
  %2203 = vmatprep.subr.mxu0 0.0
  %2204 = vmatpush1.msra.mxu0 0.0
  %2205 = vmatprep.subr.mxu0 0.0
  %2206 = vmatpush1.msra.mxu0 0.0
  %2207 = vmatprep.subr.mxu0 0.0
  %2208 = vmatpush1.msra.mxu0 0.0
  %2209 = vmatprep.subr.mxu0 0.0
  %2210 = vmatpush1.msra.mxu0 0.0
  %2211 = vmatprep.subr.mxu0 0.0
  %2212 = vmatpush1.msra.mxu0 0.0
  %2213 = vmatprep.subr.mxu0 0.0
  %2214 = vmatpush1.msra.mxu0 0.0
  %2215 = vmatprep.subr.mxu0 0.0
  %2216 = vmatpush1.msra.mxu0 0.0
  %2217 = vmatprep.subr.mxu0 0.0
  %2218 = vmatpush1.msra.mxu0 0.0
  %2219 = vmatprep.subr.mxu0 0.0
  %2220 = vmatpush1.msra.mxu0 0.0
  %2221 = vmatprep.subr.mxu0 0.0
  %2222 = vmatpush1.msra.mxu0 0.0
  %2223 = vmatprep.subr.mxu0 0.0
  %2224 = vmatpush1.msra.mxu0 0.0
  %2225 = vmatprep.subr.mxu0 0.0
  %2226 = vmatpush1.msra.mxu0 0.0
  %2227 = vmatprep.subr.mxu0 0.0
  %2228 = vmatpush1.msra.mxu0 0.0
  %2229 = vmatprep.mubr.f32.mxu0 0.0
  %2230 = vmatmul.mubr.f32.gmra.mrb[0].mxu0 %v2133
  %v2231 = vpop.f32.mrb[0].mxu0
  %v2232 = vadd.f32 %v2084, %v2231
  %v2233 = vpop.f32.mrb[0].mxu0
  %2234 = vmatprep.mubr.f32.mxu0 0.0
  %2235 = vmatmul.mubr.f32.gmra.mrb[0].mxu0 %v2136
  %v2236 = vpop.f32.mrb[0].mxu0
  %v2237 = vadd.f32 %v2089, %v2236
  %v2238 = vpop.f32.mrb[0].mxu0
  %2239 = vmatprep.mubr.f32.mxu0 0.0
  %2240 = vmatmul.mubr.f32.gmra.mrb[0].mxu0 %v2139
  %v2241 = vpop.f32.mrb[0].mxu0
  %v2242 = vadd.f32 %v2094, %v2241
  %v2243 = vpop.f32.mrb[0].mxu0
  %2244 = vmatprep.mubr.f32.mxu0 0.0
  %2245 = vmatmul.mubr.f32.gmra.mrb[0].mxu0 %v2142
  %v2246 = vpop.f32.mrb[0].mxu0
  %v2247 = vadd.f32 %v2099, %v2246
  %v2248 = vpop.f32.mrb[0].mxu0
  %2249 = vmatprep.mubr.f32.mxu0 0.0
  %2250 = vmatmul.mubr.f32.gmra.mrb[0].mxu0 %v2145
  %v2251 = vpop.f32.mrb[0].mxu0
  %v2252 = vadd.f32 %v2104, %v2251
  %v2253 = vpop.f32.mrb[0].mxu0
  %2254 = vmatprep.mubr.f32.mxu0 0.0
  %2255 = vmatmul.mubr.f32.gmra.mrb[0].mxu0 %v2148
  %v2256 = vpop.f32.mrb[0].mxu0
  %v2257 = vadd.f32 %v2109, %v2256
  %v2258 = vpop.f32.mrb[0].mxu0
  %2259 = vmatprep.mubr.f32.mxu0 0.0
  %2260 = vmatmul.mubr.f32.gmra.mrb[0].mxu0 %v2151
  %v2261 = vpop.f32.mrb[0].mxu0
  %v2262 = vadd.f32 %v2114, %v2261
  %v2263 = vpop.f32.mrb[0].mxu0
  %2264 = vmatprep.mubr.f32.mxu0 0.0
  %2265 = vmatmul.mubr.f32.gmra.mrb[0].mxu0 %v2154
  %v2266 = vpop.f32.mrb[0].mxu0
  %v2267 = vadd.f32 %v2119, %v2266
  %v2268 = vpop.f32.mrb[0].mxu0
  %2269 = vmatprep.mubr.f32.mxu0 0.0
  %2270 = vmatmul.mubr.f32.gmra.mrb[0].mxu0 %v2157
  %v2271 = vpop.f32.mrb[0].mxu0
  %v2272 = vadd.f32 %v2124, %v2271
  %v2273 = vpop.f32.mrb[0].mxu0
  %2274 = vmatprep.mubr.f32.mxu0 0.0
  %2275 = vmatmul.mubr.f32.gmra.mrb[0].mxu0 %v2160
  %v2276 = vpop.f32.mrb[0].mxu0
  %v2277 = vadd.f32 %v2129, %v2276
  %v2278 = vpop.f32.mrb[0].mxu0
  %2279 = vdwg.mxu0
  %v2280 = vld [vmem:[%s264 + $0x2] sm:$0xff]
  %v2281 = vld [vmem:[%s264 + $0xa] sm:$0xff]
  %v2282 = vld [vmem:[%s264 + $0x12] sm:$0xff]
  %v2283 = vld [vmem:[%s264 + $0x1a] sm:$0xff]
  %v2284 = vld [vmem:[%s264 + $0x22] sm:$0xff]
  %v2285 = vld [vmem:[%s264 + $0x2a] sm:$0xff]
  %v2286 = vld [vmem:[%s264 + $0x32] sm:$0xff]
  %v2287 = vld [vmem:[%s264 + $0x3a] sm:$0xff]
  %v2288 = vld [vmem:[%s264 + $0x42] sm:$0xff]
  %v2289 = vld [vmem:[%s264 + $0x4a] sm:$0xff]
  %v2290 = vld [vmem:[%s771] sm:$0xf]
  %v2292 = vsel %vm26, %v2280, 0
  %v2295 = vsel %vm26, %v2281, 0
  %v2298 = vsel %vm26, %v2282, 0
  %v2301 = vsel %vm26, %v2283, 0
  %v2304 = vsel %vm26, %v2284, 0
  %v2307 = vsel %vm26, %v2285, 0
  %v2310 = vsel %vm26, %v2286, 0
  %v2313 = vsel %vm26, %v2287, 0
  %v2316 = vsel %vm26, %v2288, 0
  %v2319 = vsel %vm26, %v2289, 0
  %v2322 = vsel %vm494, %v2290, 0
  %2324 = vmatprep.subr.mxu0 0.0
  %2325 = vmatpush1.msra.mxu0 %v2322
  %2326 = vmatprep.subr.mxu0 0.0
  %2327 = vmatpush1.msra.mxu0 0.0
  %2328 = vmatprep.subr.mxu0 0.0
  %2329 = vmatpush1.msra.mxu0 0.0
  %2330 = vmatprep.subr.mxu0 0.0
  %2331 = vmatpush1.msra.mxu0 0.0
  %2332 = vmatprep.subr.mxu0 0.0
  %2333 = vmatpush1.msra.mxu0 0.0
  %2334 = vmatprep.subr.mxu0 0.0
  %2335 = vmatpush1.msra.mxu0 0.0
  %2336 = vmatprep.subr.mxu0 0.0
  %2337 = vmatpush1.msra.mxu0 0.0
  %2338 = vmatprep.subr.mxu0 0.0
  %2339 = vmatpush1.msra.mxu0 0.0
  %2340 = vmatprep.subr.mxu0 0.0
  %2341 = vmatpush1.msra.mxu0 0.0
  %2342 = vmatprep.subr.mxu0 0.0
  %2343 = vmatpush1.msra.mxu0 0.0
  %2344 = vmatprep.subr.mxu0 0.0
  %2345 = vmatpush1.msra.mxu0 0.0
  %2346 = vmatprep.subr.mxu0 0.0
  %2347 = vmatpush1.msra.mxu0 0.0
  %2348 = vmatprep.subr.mxu0 0.0
  %2349 = vmatpush1.msra.mxu0 0.0
  %2350 = vmatprep.subr.mxu0 0.0
  %2351 = vmatpush1.msra.mxu0 0.0
  %2352 = vmatprep.subr.mxu0 0.0
  %2353 = vmatpush1.msra.mxu0 0.0
  %2354 = vmatprep.subr.mxu0 0.0
  %2355 = vmatpush1.msra.mxu0 0.0
  %2356 = vmatprep.subr.mxu0 0.0
  %2357 = vmatpush1.msra.mxu0 0.0
  %2358 = vmatprep.subr.mxu0 0.0
  %2359 = vmatpush1.msra.mxu0 0.0
  %2360 = vmatprep.subr.mxu0 0.0
  %2361 = vmatpush1.msra.mxu0 0.0
  %2362 = vmatprep.subr.mxu0 0.0
  %2363 = vmatpush1.msra.mxu0 0.0
  %2364 = vmatprep.subr.mxu0 0.0
  %2365 = vmatpush1.msra.mxu0 0.0
  %2366 = vmatprep.subr.mxu0 0.0
  %2367 = vmatpush1.msra.mxu0 0.0
  %2368 = vmatprep.subr.mxu0 0.0
  %2369 = vmatpush1.msra.mxu0 0.0
  %2370 = vmatprep.subr.mxu0 0.0
  %2371 = vmatpush1.msra.mxu0 0.0
  %2372 = vmatprep.subr.mxu0 0.0
  %2373 = vmatpush1.msra.mxu0 0.0
  %2374 = vmatprep.subr.mxu0 0.0
  %2375 = vmatpush1.msra.mxu0 0.0
  %2376 = vmatprep.subr.mxu0 0.0
  %2377 = vmatpush1.msra.mxu0 0.0
  %2378 = vmatprep.subr.mxu0 0.0
  %2379 = vmatpush1.msra.mxu0 0.0
  %2380 = vmatprep.subr.mxu0 0.0
  %2381 = vmatpush1.msra.mxu0 0.0
  %2382 = vmatprep.subr.mxu0 0.0
  %2383 = vmatpush1.msra.mxu0 0.0
  %2384 = vmatprep.subr.mxu0 0.0
  %2385 = vmatpush1.msra.mxu0 0.0
  %2386 = vmatprep.subr.mxu0 0.0
  %2387 = vmatpush1.msra.mxu0 0.0
  %2388 = vmatprep.mubr.f32.mxu0 0.0
  %2389 = vmatmul.mubr.f32.gmra.mrb[0].mxu0 %v2292
  %v2390 = vpop.f32.mrb[0].mxu0
  %v2391 = vadd.f32 0.0, %v2390
  %v2392 = vpop.f32.mrb[0].mxu0
  %2393 = vmatprep.mubr.f32.mxu0 0.0
  %2394 = vmatmul.mubr.f32.gmra.mrb[0].mxu0 %v2295
  %v2395 = vpop.f32.mrb[0].mxu0
  %v2396 = vadd.f32 0.0, %v2395
  %v2397 = vpop.f32.mrb[0].mxu0
  %2398 = vmatprep.mubr.f32.mxu0 0.0
  %2399 = vmatmul.mubr.f32.gmra.mrb[0].mxu0 %v2298
  %v2400 = vpop.f32.mrb[0].mxu0
  %v2401 = vadd.f32 0.0, %v2400
  %v2402 = vpop.f32.mrb[0].mxu0
  %2403 = vmatprep.mubr.f32.mxu0 0.0
  %2404 = vmatmul.mubr.f32.gmra.mrb[0].mxu0 %v2301
  %v2405 = vpop.f32.mrb[0].mxu0
  %v2406 = vadd.f32 0.0, %v2405
  %v2407 = vpop.f32.mrb[0].mxu0
  %2408 = vmatprep.mubr.f32.mxu0 0.0
  %2409 = vmatmul.mubr.f32.gmra.mrb[0].mxu0 %v2304
  %v2410 = vpop.f32.mrb[0].mxu0
  %v2411 = vadd.f32 0.0, %v2410
  %v2412 = vpop.f32.mrb[0].mxu0
  %2413 = vmatprep.mubr.f32.mxu0 0.0
  %2414 = vmatmul.mubr.f32.gmra.mrb[0].mxu0 %v2307
  %v2415 = vpop.f32.mrb[0].mxu0
  %v2416 = vadd.f32 0.0, %v2415
  %v2417 = vpop.f32.mrb[0].mxu0
  %2418 = vmatprep.mubr.f32.mxu0 0.0
  %2419 = vmatmul.mubr.f32.gmra.mrb[0].mxu0 %v2310
  %v2420 = vpop.f32.mrb[0].mxu0
  %v2421 = vadd.f32 0.0, %v2420
  %v2422 = vpop.f32.mrb[0].mxu0
  %2423 = vmatprep.mubr.f32.mxu0 0.0
  %2424 = vmatmul.mubr.f32.gmra.mrb[0].mxu0 %v2313
  %v2425 = vpop.f32.mrb[0].mxu0
  %v2426 = vadd.f32 0.0, %v2425
  %v2427 = vpop.f32.mrb[0].mxu0
  %2428 = vmatprep.mubr.f32.mxu0 0.0
  %2429 = vmatmul.mubr.f32.gmra.mrb[0].mxu0 %v2316
  %v2430 = vpop.f32.mrb[0].mxu0
  %v2431 = vadd.f32 0.0, %v2430
  %v2432 = vpop.f32.mrb[0].mxu0
  %2433 = vmatprep.mubr.f32.mxu0 0.0
  %2434 = vmatmul.mubr.f32.gmra.mrb[0].mxu0 %v2319
  %v2435 = vpop.f32.mrb[0].mxu0
  %v2436 = vadd.f32 0.0, %v2435
  %v2437 = vpop.f32.mrb[0].mxu0
  %2438 = vdwg.mxu0
  %v2439 = vadd.f32 %v2232, %v2391
  %v2440 = vadd.f32 %v2237, %v2396
  %v2441 = vadd.f32 %v2242, %v2401
  %v2442 = vadd.f32 %v2247, %v2406
  %v2443 = vadd.f32 %v2252, %v2411
  %v2444 = vadd.f32 %v2257, %v2416
  %v2445 = vadd.f32 %v2262, %v2421
  %v2446 = vadd.f32 %v2267, %v2426
  %v2447 = vadd.f32 %v2272, %v2431
  %v2448 = vadd.f32 %v2277, %v2436
  %v2449 = vld [vmem:[%s264 + $0xa] sm:$0xff]
  %v2450 = vld [vmem:[%s264 + $0x12] sm:$0xff]
  %v2451 = vld [vmem:[%s264 + $0x1a] sm:$0xff]
  %v2452 = vld [vmem:[%s264 + $0x22] sm:$0xff]
  %v2453 = vld [vmem:[%s264 + $0x2a] sm:$0xff]
  %v2454 = vld [vmem:[%s264 + $0x32] sm:$0xff]
  %v2455 = vld [vmem:[%s264 + $0x3a] sm:$0xff]
  %v2456 = vld [vmem:[%s264 + $0x42] sm:$0xff]
  %v2457 = vld [vmem:[%s264 + $0x4a] sm:$0xff]
  %v2458 = vld [vmem:[%s264 + $0x52] sm:$0xff]
  %v2459 = vld [vmem:[%s941] sm:$0xf]
  %v2461 = vsel %vm26, %v2449, 0
  %v2464 = vsel %vm26, %v2450, 0
  %v2467 = vsel %vm26, %v2451, 0
  %v2470 = vsel %vm26, %v2452, 0
  %v2473 = vsel %vm26, %v2453, 0
  %v2476 = vsel %vm26, %v2454, 0
  %v2479 = vsel %vm26, %v2455, 0
  %v2482 = vsel %vm26, %v2456, 0
  %v2485 = vsel %vm26, %v2457, 0
  %v2488 = vsel %vm26, %v2458, 0
  %v2491 = vsel %vm494, %v2459, 0
  %2493 = vmatprep.subr.mxu0 0.0
  %2494 = vmatpush1.msra.mxu0 %v2491
  %2495 = vmatprep.subr.mxu0 0.0
  %2496 = vmatpush1.msra.mxu0 0.0
  %2497 = vmatprep.subr.mxu0 0.0
  %2498 = vmatpush1.msra.mxu0 0.0
  %2499 = vmatprep.subr.mxu0 0.0
  %2500 = vmatpush1.msra.mxu0 0.0
  %2501 = vmatprep.subr.mxu0 0.0
  %2502 = vmatpush1.msra.mxu0 0.0
  %2503 = vmatprep.subr.mxu0 0.0
  %2504 = vmatpush1.msra.mxu0 0.0
  %2505 = vmatprep.subr.mxu0 0.0
  %2506 = vmatpush1.msra.mxu0 0.0
  %2507 = vmatprep.subr.mxu0 0.0
  %2508 = vmatpush1.msra.mxu0 0.0
  %2509 = vmatprep.subr.mxu0 0.0
  %2510 = vmatpush1.msra.mxu0 0.0
  %2511 = vmatprep.subr.mxu0 0.0
  %2512 = vmatpush1.msra.mxu0 0.0
  %2513 = vmatprep.subr.mxu0 0.0
  %2514 = vmatpush1.msra.mxu0 0.0
  %2515 = vmatprep.subr.mxu0 0.0
  %2516 = vmatpush1.msra.mxu0 0.0
  %2517 = vmatprep.subr.mxu0 0.0
  %2518 = vmatpush1.msra.mxu0 0.0
  %2519 = vmatprep.subr.mxu0 0.0
  %2520 = vmatpush1.msra.mxu0 0.0
  %2521 = vmatprep.subr.mxu0 0.0
  %2522 = vmatpush1.msra.mxu0 0.0
  %2523 = vmatprep.subr.mxu0 0.0
  %2524 = vmatpush1.msra.mxu0 0.0
  %2525 = vmatprep.subr.mxu0 0.0
  %2526 = vmatpush1.msra.mxu0 0.0
  %2527 = vmatprep.subr.mxu0 0.0
  %2528 = vmatpush1.msra.mxu0 0.0
  %2529 = vmatprep.subr.mxu0 0.0
  %2530 = vmatpush1.msra.mxu0 0.0
  %2531 = vmatprep.subr.mxu0 0.0
  %2532 = vmatpush1.msra.mxu0 0.0
  %2533 = vmatprep.subr.mxu0 0.0
  %2534 = vmatpush1.msra.mxu0 0.0
  %2535 = vmatprep.subr.mxu0 0.0
  %2536 = vmatpush1.msra.mxu0 0.0
  %2537 = vmatprep.subr.mxu0 0.0
  %2538 = vmatpush1.msra.mxu0 0.0
  %2539 = vmatprep.subr.mxu0 0.0
  %2540 = vmatpush1.msra.mxu0 0.0
  %2541 = vmatprep.subr.mxu0 0.0
  %2542 = vmatpush1.msra.mxu0 0.0
  %2543 = vmatprep.subr.mxu0 0.0
  %2544 = vmatpush1.msra.mxu0 0.0
  %2545 = vmatprep.subr.mxu0 0.0
  %2546 = vmatpush1.msra.mxu0 0.0
  %2547 = vmatprep.subr.mxu0 0.0
  %2548 = vmatpush1.msra.mxu0 0.0
  %2549 = vmatprep.subr.mxu0 0.0
  %2550 = vmatpush1.msra.mxu0 0.0
  %2551 = vmatprep.subr.mxu0 0.0
  %2552 = vmatpush1.msra.mxu0 0.0
  %2553 = vmatprep.subr.mxu0 0.0
  %2554 = vmatpush1.msra.mxu0 0.0
  %2555 = vmatprep.subr.mxu0 0.0
  %2556 = vmatpush1.msra.mxu0 0.0
  %2557 = vmatprep.mubr.f32.mxu0 0.0
  %2558 = vmatmul.mubr.f32.gmra.mrb[0].mxu0 %v2461
  %v2559 = vpop.f32.mrb[0].mxu0
  %v2560 = vadd.f32 0.0, %v2559
  %v2561 = vpop.f32.mrb[0].mxu0
  %2562 = vmatprep.mubr.f32.mxu0 0.0
  %2563 = vmatmul.mubr.f32.gmra.mrb[0].mxu0 %v2464
  %v2564 = vpop.f32.mrb[0].mxu0
  %v2565 = vadd.f32 0.0, %v2564
  %v2566 = vpop.f32.mrb[0].mxu0
  %2567 = vmatprep.mubr.f32.mxu0 0.0
  %2568 = vmatmul.mubr.f32.gmra.mrb[0].mxu0 %v2467
  %v2569 = vpop.f32.mrb[0].mxu0
  %v2570 = vadd.f32 0.0, %v2569
  %v2571 = vpop.f32.mrb[0].mxu0
  %2572 = vmatprep.mubr.f32.mxu0 0.0
  %2573 = vmatmul.mubr.f32.gmra.mrb[0].mxu0 %v2470
  %v2574 = vpop.f32.mrb[0].mxu0
  %v2575 = vadd.f32 0.0, %v2574
  %v2576 = vpop.f32.mrb[0].mxu0
  %2577 = vmatprep.mubr.f32.mxu0 0.0
  %2578 = vmatmul.mubr.f32.gmra.mrb[0].mxu0 %v2473
  %v2579 = vpop.f32.mrb[0].mxu0
  %v2580 = vadd.f32 0.0, %v2579
  %v2581 = vpop.f32.mrb[0].mxu0
  %2582 = vmatprep.mubr.f32.mxu0 0.0
  %2583 = vmatmul.mubr.f32.gmra.mrb[0].mxu0 %v2476
  %v2584 = vpop.f32.mrb[0].mxu0
  %v2585 = vadd.f32 0.0, %v2584
  %v2586 = vpop.f32.mrb[0].mxu0
  %2587 = vmatprep.mubr.f32.mxu0 0.0
  %2588 = vmatmul.mubr.f32.gmra.mrb[0].mxu0 %v2479
  %v2589 = vpop.f32.mrb[0].mxu0
  %v2590 = vadd.f32 0.0, %v2589
  %v2591 = vpop.f32.mrb[0].mxu0
  %2592 = vmatprep.mubr.f32.mxu0 0.0
  %2593 = vmatmul.mubr.f32.gmra.mrb[0].mxu0 %v2482
  %v2594 = vpop.f32.mrb[0].mxu0
  %v2595 = vadd.f32 0.0, %v2594
  %v2596 = vpop.f32.mrb[0].mxu0
  %2597 = vmatprep.mubr.f32.mxu0 0.0
  %2598 = vmatmul.mubr.f32.gmra.mrb[0].mxu0 %v2485
  %v2599 = vpop.f32.mrb[0].mxu0
  %v2600 = vadd.f32 0.0, %v2599
  %v2601 = vpop.f32.mrb[0].mxu0
  %2602 = vmatprep.mubr.f32.mxu0 0.0
  %2603 = vmatmul.mubr.f32.gmra.mrb[0].mxu0 %v2488
  %v2604 = vpop.f32.mrb[0].mxu0
  %v2605 = vadd.f32 0.0, %v2604
  %v2606 = vpop.f32.mrb[0].mxu0
  %2607 = vdwg.mxu0
  %v2608 = vadd.f32 %v2439, %v2560
  %v2609 = vadd.f32 %v2440, %v2565
  %v2610 = vadd.f32 %v2441, %v2570
  %v2611 = vadd.f32 %v2442, %v2575
  %v2612 = vadd.f32 %v2443, %v2580
  %v2613 = vadd.f32 %v2444, %v2585
  %v2614 = vadd.f32 %v2445, %v2590
  %v2615 = vadd.f32 %v2446, %v2595
  %v2616 = vadd.f32 %v2447, %v2600
  %v2617 = vadd.f32 %v2448, %v2605
  %v2618 = vld [vmem:[%s264 + $0xb] sm:$0xff]
  %v2619 = vld [vmem:[%s264 + $0x13] sm:$0xff]
  %v2620 = vld [vmem:[%s264 + $0x1b] sm:$0xff]
  %v2621 = vld [vmem:[%s264 + $0x23] sm:$0xff]
  %v2622 = vld [vmem:[%s264 + $0x2b] sm:$0xff]
  %v2623 = vld [vmem:[%s264 + $0x33] sm:$0xff]
  %v2624 = vld [vmem:[%s264 + $0x3b] sm:$0xff]
  %v2625 = vld [vmem:[%s264 + $0x43] sm:$0xff]
  %v2626 = vld [vmem:[%s264 + $0x4b] sm:$0xff]
  %v2627 = vld [vmem:[%s264 + $0x53] sm:$0xff]
  %v2628 = vld [vmem:[%s1111] sm:$0xf]
  %v2630 = vsel %vm26, %v2618, 0
  %v2633 = vsel %vm26, %v2619, 0
  %v2636 = vsel %vm26, %v2620, 0
  %v2639 = vsel %vm26, %v2621, 0
  %v2642 = vsel %vm26, %v2622, 0
  %v2645 = vsel %vm26, %v2623, 0
  %v2648 = vsel %vm26, %v2624, 0
  %v2651 = vsel %vm26, %v2625, 0
  %v2654 = vsel %vm26, %v2626, 0
  %v2657 = vsel %vm26, %v2627, 0
  %v2660 = vsel %vm494, %v2628, 0
  %2662 = vmatprep.subr.mxu0 0.0
  %2663 = vmatpush1.msra.mxu0 %v2660
  %2664 = vmatprep.subr.mxu0 0.0
  %2665 = vmatpush1.msra.mxu0 0.0
  %2666 = vmatprep.subr.mxu0 0.0
  %2667 = vmatpush1.msra.mxu0 0.0
  %2668 = vmatprep.subr.mxu0 0.0
  %2669 = vmatpush1.msra.mxu0 0.0
  %2670 = vmatprep.subr.mxu0 0.0
  %2671 = vmatpush1.msra.mxu0 0.0
  %2672 = vmatprep.subr.mxu0 0.0
  %2673 = vmatpush1.msra.mxu0 0.0
  %2674 = vmatprep.subr.mxu0 0.0
  %2675 = vmatpush1.msra.mxu0 0.0
  %2676 = vmatprep.subr.mxu0 0.0
  %2677 = vmatpush1.msra.mxu0 0.0
  %2678 = vmatprep.subr.mxu0 0.0
  %2679 = vmatpush1.msra.mxu0 0.0
  %2680 = vmatprep.subr.mxu0 0.0
  %2681 = vmatpush1.msra.mxu0 0.0
  %2682 = vmatprep.subr.mxu0 0.0
  %2683 = vmatpush1.msra.mxu0 0.0
  %2684 = vmatprep.subr.mxu0 0.0
  %2685 = vmatpush1.msra.mxu0 0.0
  %2686 = vmatprep.subr.mxu0 0.0
  %2687 = vmatpush1.msra.mxu0 0.0
  %2688 = vmatprep.subr.mxu0 0.0
  %2689 = vmatpush1.msra.mxu0 0.0
  %2690 = vmatprep.subr.mxu0 0.0
  %2691 = vmatpush1.msra.mxu0 0.0
  %2692 = vmatprep.subr.mxu0 0.0
  %2693 = vmatpush1.msra.mxu0 0.0
  %2694 = vmatprep.subr.mxu0 0.0
  %2695 = vmatpush1.msra.mxu0 0.0
  %2696 = vmatprep.subr.mxu0 0.0
  %2697 = vmatpush1.msra.mxu0 0.0
  %2698 = vmatprep.subr.mxu0 0.0
  %2699 = vmatpush1.msra.mxu0 0.0
  %2700 = vmatprep.subr.mxu0 0.0
  %2701 = vmatpush1.msra.mxu0 0.0
  %2702 = vmatprep.subr.mxu0 0.0
  %2703 = vmatpush1.msra.mxu0 0.0
  %2704 = vmatprep.subr.mxu0 0.0
  %2705 = vmatpush1.msra.mxu0 0.0
  %2706 = vmatprep.subr.mxu0 0.0
  %2707 = vmatpush1.msra.mxu0 0.0
  %2708 = vmatprep.subr.mxu0 0.0
  %2709 = vmatpush1.msra.mxu0 0.0
  %2710 = vmatprep.subr.mxu0 0.0
  %2711 = vmatpush1.msra.mxu0 0.0
  %2712 = vmatprep.subr.mxu0 0.0
  %2713 = vmatpush1.msra.mxu0 0.0
  %2714 = vmatprep.subr.mxu0 0.0
  %2715 = vmatpush1.msra.mxu0 0.0
  %2716 = vmatprep.subr.mxu0 0.0
  %2717 = vmatpush1.msra.mxu0 0.0
  %2718 = vmatprep.subr.mxu0 0.0
  %2719 = vmatpush1.msra.mxu0 0.0
  %2720 = vmatprep.subr.mxu0 0.0
  %2721 = vmatpush1.msra.mxu0 0.0
  %2722 = vmatprep.subr.mxu0 0.0
  %2723 = vmatpush1.msra.mxu0 0.0
  %2724 = vmatprep.subr.mxu0 0.0
  %2725 = vmatpush1.msra.mxu0 0.0
  %2726 = vmatprep.mubr.f32.mxu0 0.0
  %2727 = vmatmul.mubr.f32.gmra.mrb[0].mxu0 %v2630
  %v2728 = vpop.f32.mrb[0].mxu0
  %v2729 = vadd.f32 0.0, %v2728
  %v2730 = vpop.f32.mrb[0].mxu0
  %2731 = vmatprep.mubr.f32.mxu0 0.0
  %2732 = vmatmul.mubr.f32.gmra.mrb[0].mxu0 %v2633
  %v2733 = vpop.f32.mrb[0].mxu0
  %v2734 = vadd.f32 0.0, %v2733
  %v2735 = vpop.f32.mrb[0].mxu0
  %2736 = vmatprep.mubr.f32.mxu0 0.0
  %2737 = vmatmul.mubr.f32.gmra.mrb[0].mxu0 %v2636
  %v2738 = vpop.f32.mrb[0].mxu0
  %v2739 = vadd.f32 0.0, %v2738
  %v2740 = vpop.f32.mrb[0].mxu0
  %2741 = vmatprep.mubr.f32.mxu0 0.0
  %2742 = vmatmul.mubr.f32.gmra.mrb[0].mxu0 %v2639
  %v2743 = vpop.f32.mrb[0].mxu0
  %v2744 = vadd.f32 0.0, %v2743
  %v2745 = vpop.f32.mrb[0].mxu0
  %2746 = vmatprep.mubr.f32.mxu0 0.0
  %2747 = vmatmul.mubr.f32.gmra.mrb[0].mxu0 %v2642
  %v2748 = vpop.f32.mrb[0].mxu0
  %v2749 = vadd.f32 0.0, %v2748
  %v2750 = vpop.f32.mrb[0].mxu0
  %2751 = vmatprep.mubr.f32.mxu0 0.0
  %2752 = vmatmul.mubr.f32.gmra.mrb[0].mxu0 %v2645
  %v2753 = vpop.f32.mrb[0].mxu0
  %v2754 = vadd.f32 0.0, %v2753
  %v2755 = vpop.f32.mrb[0].mxu0
  %2756 = vmatprep.mubr.f32.mxu0 0.0
  %2757 = vmatmul.mubr.f32.gmra.mrb[0].mxu0 %v2648
  %v2758 = vpop.f32.mrb[0].mxu0
  %v2759 = vadd.f32 0.0, %v2758
  %v2760 = vpop.f32.mrb[0].mxu0
  %2761 = vmatprep.mubr.f32.mxu0 0.0
  %2762 = vmatmul.mubr.f32.gmra.mrb[0].mxu0 %v2651
  %v2763 = vpop.f32.mrb[0].mxu0
  %v2764 = vadd.f32 0.0, %v2763
  %v2765 = vpop.f32.mrb[0].mxu0
  %2766 = vmatprep.mubr.f32.mxu0 0.0
  %2767 = vmatmul.mubr.f32.gmra.mrb[0].mxu0 %v2654
  %v2768 = vpop.f32.mrb[0].mxu0
  %v2769 = vadd.f32 0.0, %v2768
  %v2770 = vpop.f32.mrb[0].mxu0
  %2771 = vmatprep.mubr.f32.mxu0 0.0
  %2772 = vmatmul.mubr.f32.gmra.mrb[0].mxu0 %v2657
  %v2773 = vpop.f32.mrb[0].mxu0
  %v2774 = vadd.f32 0.0, %v2773
  %v2775 = vpop.f32.mrb[0].mxu0
  %2776 = vdwg.mxu0
  %v2777 = vadd.f32 %v2608, %v2729
  %v2778 = vadd.f32 %v2609, %v2734
  %v2779 = vadd.f32 %v2610, %v2739
  %v2780 = vadd.f32 %v2611, %v2744
  %v2781 = vadd.f32 %v2612, %v2749
  %v2782 = vadd.f32 %v2613, %v2754
  %v2783 = vadd.f32 %v2614, %v2759
  %v2784 = vadd.f32 %v2615, %v2764
  %v2785 = vadd.f32 %v2616, %v2769
  %v2786 = vadd.f32 %v2617, %v2774
  %v2787 = vld [vmem:[%s264 + $0xc] sm:$0xff]
  %v2788 = vld [vmem:[%s264 + $0x14] sm:$0xff]
  %v2789 = vld [vmem:[%s264 + $0x1c] sm:$0xff]
  %v2790 = vld [vmem:[%s264 + $0x24] sm:$0xff]
  %v2791 = vld [vmem:[%s264 + $0x2c] sm:$0xff]
  %v2792 = vld [vmem:[%s264 + $0x34] sm:$0xff]
  %v2793 = vld [vmem:[%s264 + $0x3c] sm:$0xff]
  %v2794 = vld [vmem:[%s264 + $0x44] sm:$0xff]
  %v2795 = vld [vmem:[%s264 + $0x4c] sm:$0xff]
  %v2796 = vld [vmem:[%s264 + $0x54] sm:$0xff]
  %v2797 = vld [vmem:[%s1281] sm:$0xf]
  %v2799 = vsel %vm26, %v2787, 0
  %v2802 = vsel %vm26, %v2788, 0
  %v2805 = vsel %vm26, %v2789, 0
  %v2808 = vsel %vm26, %v2790, 0
  %v2811 = vsel %vm26, %v2791, 0
  %v2814 = vsel %vm26, %v2792, 0
  %v2817 = vsel %vm26, %v2793, 0
  %v2820 = vsel %vm26, %v2794, 0
  %v2823 = vsel %vm26, %v2795, 0
  %v2826 = vsel %vm26, %v2796, 0
  %v2829 = vsel %vm494, %v2797, 0
  %2831 = vmatprep.subr.mxu0 0.0
  %2832 = vmatpush1.msra.mxu0 %v2829
  %2833 = vmatprep.subr.mxu0 0.0
  %2834 = vmatpush1.msra.mxu0 0.0
  %2835 = vmatprep.subr.mxu0 0.0
  %2836 = vmatpush1.msra.mxu0 0.0
  %2837 = vmatprep.subr.mxu0 0.0
  %2838 = vmatpush1.msra.mxu0 0.0
  %2839 = vmatprep.subr.mxu0 0.0
  %2840 = vmatpush1.msra.mxu0 0.0
  %2841 = vmatprep.subr.mxu0 0.0
  %2842 = vmatpush1.msra.mxu0 0.0
  %2843 = vmatprep.subr.mxu0 0.0
  %2844 = vmatpush1.msra.mxu0 0.0
  %2845 = vmatprep.subr.mxu0 0.0
  %2846 = vmatpush1.msra.mxu0 0.0
  %2847 = vmatprep.subr.mxu0 0.0
  %2848 = vmatpush1.msra.mxu0 0.0
  %2849 = vmatprep.subr.mxu0 0.0
  %2850 = vmatpush1.msra.mxu0 0.0
  %2851 = vmatprep.subr.mxu0 0.0
  %2852 = vmatpush1.msra.mxu0 0.0
  %2853 = vmatprep.subr.mxu0 0.0
  %2854 = vmatpush1.msra.mxu0 0.0
  %2855 = vmatprep.subr.mxu0 0.0
  %2856 = vmatpush1.msra.mxu0 0.0
  %2857 = vmatprep.subr.mxu0 0.0
  %2858 = vmatpush1.msra.mxu0 0.0
  %2859 = vmatprep.subr.mxu0 0.0
  %2860 = vmatpush1.msra.mxu0 0.0
  %2861 = vmatprep.subr.mxu0 0.0
  %2862 = vmatpush1.msra.mxu0 0.0
  %2863 = vmatprep.subr.mxu0 0.0
  %2864 = vmatpush1.msra.mxu0 0.0
  %2865 = vmatprep.subr.mxu0 0.0
  %2866 = vmatpush1.msra.mxu0 0.0
  %2867 = vmatprep.subr.mxu0 0.0
  %2868 = vmatpush1.msra.mxu0 0.0
  %2869 = vmatprep.subr.mxu0 0.0
  %2870 = vmatpush1.msra.mxu0 0.0
  %2871 = vmatprep.subr.mxu0 0.0
  %2872 = vmatpush1.msra.mxu0 0.0
  %2873 = vmatprep.subr.mxu0 0.0
  %2874 = vmatpush1.msra.mxu0 0.0
  %2875 = vmatprep.subr.mxu0 0.0
  %2876 = vmatpush1.msra.mxu0 0.0
  %2877 = vmatprep.subr.mxu0 0.0
  %2878 = vmatpush1.msra.mxu0 0.0
  %2879 = vmatprep.subr.mxu0 0.0
  %2880 = vmatpush1.msra.mxu0 0.0
  %2881 = vmatprep.subr.mxu0 0.0
  %2882 = vmatpush1.msra.mxu0 0.0
  %2883 = vmatprep.subr.mxu0 0.0
  %2884 = vmatpush1.msra.mxu0 0.0
  %2885 = vmatprep.subr.mxu0 0.0
  %2886 = vmatpush1.msra.mxu0 0.0
  %2887 = vmatprep.subr.mxu0 0.0
  %2888 = vmatpush1.msra.mxu0 0.0
  %2889 = vmatprep.subr.mxu0 0.0
  %2890 = vmatpush1.msra.mxu0 0.0
  %2891 = vmatprep.subr.mxu0 0.0
  %2892 = vmatpush1.msra.mxu0 0.0
  %2893 = vmatprep.subr.mxu0 0.0
  %2894 = vmatpush1.msra.mxu0 0.0
  %2895 = vmatprep.mubr.f32.mxu0 0.0
  %2896 = vmatmul.mubr.f32.gmra.mrb[0].mxu0 %v2799
  %v2897 = vpop.f32.mrb[0].mxu0
  %v2898 = vadd.f32 0.0, %v2897
  %v2899 = vpop.f32.mrb[0].mxu0
  %2900 = vmatprep.mubr.f32.mxu0 0.0
  %2901 = vmatmul.mubr.f32.gmra.mrb[0].mxu0 %v2802
  %v2902 = vpop.f32.mrb[0].mxu0
  %v2903 = vadd.f32 0.0, %v2902
  %v2904 = vpop.f32.mrb[0].mxu0
  %2905 = vmatprep.mubr.f32.mxu0 0.0
  %2906 = vmatmul.mubr.f32.gmra.mrb[0].mxu0 %v2805
  %v2907 = vpop.f32.mrb[0].mxu0
  %v2908 = vadd.f32 0.0, %v2907
  %v2909 = vpop.f32.mrb[0].mxu0
  %2910 = vmatprep.mubr.f32.mxu0 0.0
  %2911 = vmatmul.mubr.f32.gmra.mrb[0].mxu0 %v2808
  %v2912 = vpop.f32.mrb[0].mxu0
  %v2913 = vadd.f32 0.0, %v2912
  %v2914 = vpop.f32.mrb[0].mxu0
  %2915 = vmatprep.mubr.f32.mxu0 0.0
  %2916 = vmatmul.mubr.f32.gmra.mrb[0].mxu0 %v2811
  %v2917 = vpop.f32.mrb[0].mxu0
  %v2918 = vadd.f32 0.0, %v2917
  %v2919 = vpop.f32.mrb[0].mxu0
  %2920 = vmatprep.mubr.f32.mxu0 0.0
  %2921 = vmatmul.mubr.f32.gmra.mrb[0].mxu0 %v2814
  %v2922 = vpop.f32.mrb[0].mxu0
  %v2923 = vadd.f32 0.0, %v2922
  %v2924 = vpop.f32.mrb[0].mxu0
  %2925 = vmatprep.mubr.f32.mxu0 0.0
  %2926 = vmatmul.mubr.f32.gmra.mrb[0].mxu0 %v2817
  %v2927 = vpop.f32.mrb[0].mxu0
  %v2928 = vadd.f32 0.0, %v2927
  %v2929 = vpop.f32.mrb[0].mxu0
  %2930 = vmatprep.mubr.f32.mxu0 0.0
  %2931 = vmatmul.mubr.f32.gmra.mrb[0].mxu0 %v2820
  %v2932 = vpop.f32.mrb[0].mxu0
  %v2933 = vadd.f32 0.0, %v2932
  %v2934 = vpop.f32.mrb[0].mxu0
  %2935 = vmatprep.mubr.f32.mxu0 0.0
  %2936 = vmatmul.mubr.f32.gmra.mrb[0].mxu0 %v2823
  %v2937 = vpop.f32.mrb[0].mxu0
  %v2938 = vadd.f32 0.0, %v2937
  %v2939 = vpop.f32.mrb[0].mxu0
  %2940 = vmatprep.mubr.f32.mxu0 0.0
  %2941 = vmatmul.mubr.f32.gmra.mrb[0].mxu0 %v2826
  %v2942 = vpop.f32.mrb[0].mxu0
  %v2943 = vadd.f32 0.0, %v2942
  %v2944 = vpop.f32.mrb[0].mxu0
  %2945 = vdwg.mxu0
  %v2946 = vadd.f32 %v2777, %v2898
  %v2947 = vadd.f32 %v2778, %v2903
  %v2948 = vadd.f32 %v2779, %v2908
  %v2949 = vadd.f32 %v2780, %v2913
  %v2950 = vadd.f32 %v2781, %v2918
  %v2951 = vadd.f32 %v2782, %v2923
  %v2952 = vadd.f32 %v2783, %v2928
  %v2953 = vadd.f32 %v2784, %v2933
  %v2954 = vadd.f32 %v2785, %v2938
  %v2955 = vadd.f32 %v2786, %v2943
  %v2956 = vld [vmem:[%s264 + $0x14] sm:$0xff]
  %v2957 = vld [vmem:[%s264 + $0x1c] sm:$0xff]
  %v2958 = vld [vmem:[%s264 + $0x24] sm:$0xff]
  %v2959 = vld [vmem:[%s264 + $0x2c] sm:$0xff]
  %v2960 = vld [vmem:[%s264 + $0x34] sm:$0xff]
  %v2961 = vld [vmem:[%s264 + $0x3c] sm:$0xff]
  %v2962 = vld [vmem:[%s264 + $0x44] sm:$0xff]
  %v2963 = vld [vmem:[%s264 + $0x4c] sm:$0xff]
  %v2964 = vld [vmem:[%s264 + $0x54] sm:$0xff]
  %v2965 = vld [vmem:[%s264 + $0x5c] sm:$0xff]
  %v2966 = vld [vmem:[%s1451] sm:$0xf]
  %v2968 = vsel %vm26, %v2956, 0
  %v2971 = vsel %vm26, %v2957, 0
  %v2974 = vsel %vm26, %v2958, 0
  %v2977 = vsel %vm26, %v2959, 0
  %v2980 = vsel %vm26, %v2960, 0
  %v2983 = vsel %vm26, %v2961, 0
  %v2986 = vsel %vm26, %v2962, 0
  %v2989 = vsel %vm26, %v2963, 0
  %v2992 = vsel %vm26, %v2964, 0
  %v2995 = vsel %vm26, %v2965, 0
  %v2998 = vsel %vm494, %v2966, 0
  %3000 = vmatprep.subr.mxu0 0.0
  %3001 = vmatpush1.msra.mxu0 %v2998
  %3002 = vmatprep.subr.mxu0 0.0
  %3003 = vmatpush1.msra.mxu0 0.0
  %3004 = vmatprep.subr.mxu0 0.0
  %3005 = vmatpush1.msra.mxu0 0.0
  %3006 = vmatprep.subr.mxu0 0.0
  %3007 = vmatpush1.msra.mxu0 0.0
  %3008 = vmatprep.subr.mxu0 0.0
  %3009 = vmatpush1.msra.mxu0 0.0
  %3010 = vmatprep.subr.mxu0 0.0
  %3011 = vmatpush1.msra.mxu0 0.0
  %3012 = vmatprep.subr.mxu0 0.0
  %3013 = vmatpush1.msra.mxu0 0.0
  %3014 = vmatprep.subr.mxu0 0.0
  %3015 = vmatpush1.msra.mxu0 0.0
  %3016 = vmatprep.subr.mxu0 0.0
  %3017 = vmatpush1.msra.mxu0 0.0
  %3018 = vmatprep.subr.mxu0 0.0
  %3019 = vmatpush1.msra.mxu0 0.0
  %3020 = vmatprep.subr.mxu0 0.0
  %3021 = vmatpush1.msra.mxu0 0.0
  %3022 = vmatprep.subr.mxu0 0.0
  %3023 = vmatpush1.msra.mxu0 0.0
  %3024 = vmatprep.subr.mxu0 0.0
  %3025 = vmatpush1.msra.mxu0 0.0
  %3026 = vmatprep.subr.mxu0 0.0
  %3027 = vmatpush1.msra.mxu0 0.0
  %3028 = vmatprep.subr.mxu0 0.0
  %3029 = vmatpush1.msra.mxu0 0.0
  %3030 = vmatprep.subr.mxu0 0.0
  %3031 = vmatpush1.msra.mxu0 0.0
  %3032 = vmatprep.subr.mxu0 0.0
  %3033 = vmatpush1.msra.mxu0 0.0
  %3034 = vmatprep.subr.mxu0 0.0
  %3035 = vmatpush1.msra.mxu0 0.0
  %3036 = vmatprep.subr.mxu0 0.0
  %3037 = vmatpush1.msra.mxu0 0.0
  %3038 = vmatprep.subr.mxu0 0.0
  %3039 = vmatpush1.msra.mxu0 0.0
  %3040 = vmatprep.subr.mxu0 0.0
  %3041 = vmatpush1.msra.mxu0 0.0
  %3042 = vmatprep.subr.mxu0 0.0
  %3043 = vmatpush1.msra.mxu0 0.0
  %3044 = vmatprep.subr.mxu0 0.0
  %3045 = vmatpush1.msra.mxu0 0.0
  %3046 = vmatprep.subr.mxu0 0.0
  %3047 = vmatpush1.msra.mxu0 0.0
  %3048 = vmatprep.subr.mxu0 0.0
  %3049 = vmatpush1.msra.mxu0 0.0
  %3050 = vmatprep.subr.mxu0 0.0
  %3051 = vmatpush1.msra.mxu0 0.0
  %3052 = vmatprep.subr.mxu0 0.0
  %3053 = vmatpush1.msra.mxu0 0.0
  %3054 = vmatprep.subr.mxu0 0.0
  %3055 = vmatpush1.msra.mxu0 0.0
  %3056 = vmatprep.subr.mxu0 0.0
  %3057 = vmatpush1.msra.mxu0 0.0
  %3058 = vmatprep.subr.mxu0 0.0
  %3059 = vmatpush1.msra.mxu0 0.0
  %3060 = vmatprep.subr.mxu0 0.0
  %3061 = vmatpush1.msra.mxu0 0.0
  %3062 = vmatprep.subr.mxu0 0.0
  %3063 = vmatpush1.msra.mxu0 0.0
  %3064 = vmatprep.mubr.f32.mxu0 0.0
  %3065 = vmatmul.mubr.f32.gmra.mrb[0].mxu0 %v2968
  %v3066 = vpop.f32.mrb[0].mxu0
  %v3067 = vadd.f32 0.0, %v3066
  %v3068 = vpop.f32.mrb[0].mxu0
  %3069 = vmatprep.mubr.f32.mxu0 0.0
  %3070 = vmatmul.mubr.f32.gmra.mrb[0].mxu0 %v2971
  %v3071 = vpop.f32.mrb[0].mxu0
  %v3072 = vadd.f32 0.0, %v3071
  %v3073 = vpop.f32.mrb[0].mxu0
  %3074 = vmatprep.mubr.f32.mxu0 0.0
  %3075 = vmatmul.mubr.f32.gmra.mrb[0].mxu0 %v2974
  %v3076 = vpop.f32.mrb[0].mxu0
  %v3077 = vadd.f32 0.0, %v3076
  %v3078 = vpop.f32.mrb[0].mxu0
  %3079 = vmatprep.mubr.f32.mxu0 0.0
  %3080 = vmatmul.mubr.f32.gmra.mrb[0].mxu0 %v2977
  %v3081 = vpop.f32.mrb[0].mxu0
  %v3082 = vadd.f32 0.0, %v3081
  %v3083 = vpop.f32.mrb[0].mxu0
  %3084 = vmatprep.mubr.f32.mxu0 0.0
  %3085 = vmatmul.mubr.f32.gmra.mrb[0].mxu0 %v2980
  %v3086 = vpop.f32.mrb[0].mxu0
  %v3087 = vadd.f32 0.0, %v3086
  %v3088 = vpop.f32.mrb[0].mxu0
  %3089 = vmatprep.mubr.f32.mxu0 0.0
  %3090 = vmatmul.mubr.f32.gmra.mrb[0].mxu0 %v2983
  %v3091 = vpop.f32.mrb[0].mxu0
  %v3092 = vadd.f32 0.0, %v3091
  %v3093 = vpop.f32.mrb[0].mxu0
  %3094 = vmatprep.mubr.f32.mxu0 0.0
  %3095 = vmatmul.mubr.f32.gmra.mrb[0].mxu0 %v2986
  %v3096 = vpop.f32.mrb[0].mxu0
  %v3097 = vadd.f32 0.0, %v3096
  %v3098 = vpop.f32.mrb[0].mxu0
  %3099 = vmatprep.mubr.f32.mxu0 0.0
  %3100 = vmatmul.mubr.f32.gmra.mrb[0].mxu0 %v2989
  %v3101 = vpop.f32.mrb[0].mxu0
  %v3102 = vadd.f32 0.0, %v3101
  %v3103 = vpop.f32.mrb[0].mxu0
  %3104 = vmatprep.mubr.f32.mxu0 0.0
  %3105 = vmatmul.mubr.f32.gmra.mrb[0].mxu0 %v2992
  %v3106 = vpop.f32.mrb[0].mxu0
  %v3107 = vadd.f32 0.0, %v3106
  %v3108 = vpop.f32.mrb[0].mxu0
  %3109 = vmatprep.mubr.f32.mxu0 0.0
  %3110 = vmatmul.mubr.f32.gmra.mrb[0].mxu0 %v2995
  %v3111 = vpop.f32.mrb[0].mxu0
  %v3112 = vadd.f32 0.0, %v3111
  %v3113 = vpop.f32.mrb[0].mxu0
  %3114 = vdwg.mxu0
  %v3115 = vadd.f32 %v2946, %v3067
  %v3116 = vadd.f32 %v2947, %v3072
  %v3117 = vadd.f32 %v2948, %v3077
  %v3118 = vadd.f32 %v2949, %v3082
  %v3119 = vadd.f32 %v2950, %v3087
  %v3120 = vadd.f32 %v2951, %v3092
  %v3121 = vadd.f32 %v2952, %v3097
  %v3122 = vadd.f32 %v2953, %v3102
  %v3123 = vadd.f32 %v2954, %v3107
  %v3124 = vadd.f32 %v2955, %v3112
  %v3125 = vld [vmem:[%s264 + $0x15] sm:$0xff]
  %v3126 = vld [vmem:[%s264 + $0x1d] sm:$0xff]
  %v3127 = vld [vmem:[%s264 + $0x25] sm:$0xff]
  %v3128 = vld [vmem:[%s264 + $0x2d] sm:$0xff]
  %v3129 = vld [vmem:[%s264 + $0x35] sm:$0xff]
  %v3130 = vld [vmem:[%s264 + $0x3d] sm:$0xff]
  %v3131 = vld [vmem:[%s264 + $0x45] sm:$0xff]
  %v3132 = vld [vmem:[%s264 + $0x4d] sm:$0xff]
  %v3133 = vld [vmem:[%s264 + $0x55] sm:$0xff]
  %v3134 = vld [vmem:[%s264 + $0x5d] sm:$0xff]
  %v3135 = vld [vmem:[%s1621] sm:$0xf]
  %v3137 = vsel %vm26, %v3125, 0
  %v3140 = vsel %vm26, %v3126, 0
  %v3143 = vsel %vm26, %v3127, 0
  %v3146 = vsel %vm26, %v3128, 0
  %v3149 = vsel %vm26, %v3129, 0
  %v3152 = vsel %vm26, %v3130, 0
  %v3155 = vsel %vm26, %v3131, 0
  %v3158 = vsel %vm26, %v3132, 0
  %v3161 = vsel %vm26, %v3133, 0
  %v3164 = vsel %vm26, %v3134, 0
  %v3167 = vsel %vm494, %v3135, 0
  %3169 = vmatprep.subr.mxu0 0.0
  %3170 = vmatpush1.msra.mxu0 %v3167
  %3171 = vmatprep.subr.mxu0 0.0
  %3172 = vmatpush1.msra.mxu0 0.0
  %3173 = vmatprep.subr.mxu0 0.0
  %3174 = vmatpush1.msra.mxu0 0.0
  %3175 = vmatprep.subr.mxu0 0.0
  %3176 = vmatpush1.msra.mxu0 0.0
  %3177 = vmatprep.subr.mxu0 0.0
  %3178 = vmatpush1.msra.mxu0 0.0
  %3179 = vmatprep.subr.mxu0 0.0
  %3180 = vmatpush1.msra.mxu0 0.0
  %3181 = vmatprep.subr.mxu0 0.0
  %3182 = vmatpush1.msra.mxu0 0.0
  %3183 = vmatprep.subr.mxu0 0.0
  %3184 = vmatpush1.msra.mxu0 0.0
  %3185 = vmatprep.subr.mxu0 0.0
  %3186 = vmatpush1.msra.mxu0 0.0
  %3187 = vmatprep.subr.mxu0 0.0
  %3188 = vmatpush1.msra.mxu0 0.0
  %3189 = vmatprep.subr.mxu0 0.0
  %3190 = vmatpush1.msra.mxu0 0.0
  %3191 = vmatprep.subr.mxu0 0.0
  %3192 = vmatpush1.msra.mxu0 0.0
  %3193 = vmatprep.subr.mxu0 0.0
  %3194 = vmatpush1.msra.mxu0 0.0
  %3195 = vmatprep.subr.mxu0 0.0
  %3196 = vmatpush1.msra.mxu0 0.0
  %3197 = vmatprep.subr.mxu0 0.0
  %3198 = vmatpush1.msra.mxu0 0.0
  %3199 = vmatprep.subr.mxu0 0.0
  %3200 = vmatpush1.msra.mxu0 0.0
  %3201 = vmatprep.subr.mxu0 0.0
  %3202 = vmatpush1.msra.mxu0 0.0
  %3203 = vmatprep.subr.mxu0 0.0
  %3204 = vmatpush1.msra.mxu0 0.0
  %3205 = vmatprep.subr.mxu0 0.0
  %3206 = vmatpush1.msra.mxu0 0.0
  %3207 = vmatprep.subr.mxu0 0.0
  %3208 = vmatpush1.msra.mxu0 0.0
  %3209 = vmatprep.subr.mxu0 0.0
  %3210 = vmatpush1.msra.mxu0 0.0
  %3211 = vmatprep.subr.mxu0 0.0
  %3212 = vmatpush1.msra.mxu0 0.0
  %3213 = vmatprep.subr.mxu0 0.0
  %3214 = vmatpush1.msra.mxu0 0.0
  %3215 = vmatprep.subr.mxu0 0.0
  %3216 = vmatpush1.msra.mxu0 0.0
  %3217 = vmatprep.subr.mxu0 0.0
  %3218 = vmatpush1.msra.mxu0 0.0
  %3219 = vmatprep.subr.mxu0 0.0
  %3220 = vmatpush1.msra.mxu0 0.0
  %3221 = vmatprep.subr.mxu0 0.0
  %3222 = vmatpush1.msra.mxu0 0.0
  %3223 = vmatprep.subr.mxu0 0.0
  %3224 = vmatpush1.msra.mxu0 0.0
  %3225 = vmatprep.subr.mxu0 0.0
  %3226 = vmatpush1.msra.mxu0 0.0
  %3227 = vmatprep.subr.mxu0 0.0
  %3228 = vmatpush1.msra.mxu0 0.0
  %3229 = vmatprep.subr.mxu0 0.0
  %3230 = vmatpush1.msra.mxu0 0.0
  %3231 = vmatprep.subr.mxu0 0.0
  %3232 = vmatpush1.msra.mxu0 0.0
  %3233 = vmatprep.mubr.f32.mxu0 0.0
  %3234 = vmatmul.mubr.f32.gmra.mrb[0].mxu0 %v3137
  %v3235 = vpop.f32.mrb[0].mxu0
  %v3236 = vadd.f32 0.0, %v3235
  %v3237 = vpop.f32.mrb[0].mxu0
  %3238 = vmatprep.mubr.f32.mxu0 0.0
  %3239 = vmatmul.mubr.f32.gmra.mrb[0].mxu0 %v3140
  %v3240 = vpop.f32.mrb[0].mxu0
  %v3241 = vadd.f32 0.0, %v3240
  %v3242 = vpop.f32.mrb[0].mxu0
  %3243 = vmatprep.mubr.f32.mxu0 0.0
  %3244 = vmatmul.mubr.f32.gmra.mrb[0].mxu0 %v3143
  %v3245 = vpop.f32.mrb[0].mxu0
  %v3246 = vadd.f32 0.0, %v3245
  %v3247 = vpop.f32.mrb[0].mxu0
  %3248 = vmatprep.mubr.f32.mxu0 0.0
  %3249 = vmatmul.mubr.f32.gmra.mrb[0].mxu0 %v3146
  %v3250 = vpop.f32.mrb[0].mxu0
  %v3251 = vadd.f32 0.0, %v3250
  %v3252 = vpop.f32.mrb[0].mxu0
  %3253 = vmatprep.mubr.f32.mxu0 0.0
  %3254 = vmatmul.mubr.f32.gmra.mrb[0].mxu0 %v3149
  %v3255 = vpop.f32.mrb[0].mxu0
  %v3256 = vadd.f32 0.0, %v3255
  %v3257 = vpop.f32.mrb[0].mxu0
  %3258 = vmatprep.mubr.f32.mxu0 0.0
  %3259 = vmatmul.mubr.f32.gmra.mrb[0].mxu0 %v3152
  %v3260 = vpop.f32.mrb[0].mxu0
  %v3261 = vadd.f32 0.0, %v3260
  %v3262 = vpop.f32.mrb[0].mxu0
  %3263 = vmatprep.mubr.f32.mxu0 0.0
  %3264 = vmatmul.mubr.f32.gmra.mrb[0].mxu0 %v3155
  %v3265 = vpop.f32.mrb[0].mxu0
  %v3266 = vadd.f32 0.0, %v3265
  %v3267 = vpop.f32.mrb[0].mxu0
  %3268 = vmatprep.mubr.f32.mxu0 0.0
  %3269 = vmatmul.mubr.f32.gmra.mrb[0].mxu0 %v3158
  %v3270 = vpop.f32.mrb[0].mxu0
  %v3271 = vadd.f32 0.0, %v3270
  %v3272 = vpop.f32.mrb[0].mxu0
  %3273 = vmatprep.mubr.f32.mxu0 0.0
  %3274 = vmatmul.mubr.f32.gmra.mrb[0].mxu0 %v3161
  %v3275 = vpop.f32.mrb[0].mxu0
  %v3276 = vadd.f32 0.0, %v3275
  %v3277 = vpop.f32.mrb[0].mxu0
  %3278 = vmatprep.mubr.f32.mxu0 0.0
  %3279 = vmatmul.mubr.f32.gmra.mrb[0].mxu0 %v3164
  %v3280 = vpop.f32.mrb[0].mxu0
  %v3281 = vadd.f32 0.0, %v3280
  %v3282 = vpop.f32.mrb[0].mxu0
  %3283 = vdwg.mxu0
  %v3284 = vadd.f32 %v3115, %v3236
  %v3285 = vadd.f32 %v3116, %v3241
  %v3286 = vadd.f32 %v3117, %v3246
  %v3287 = vadd.f32 %v3118, %v3251
  %v3288 = vadd.f32 %v3119, %v3256
  %v3289 = vadd.f32 %v3120, %v3261
  %v3290 = vadd.f32 %v3121, %v3266
  %v3291 = vadd.f32 %v3122, %v3271
  %v3292 = vadd.f32 %v3123, %v3276
  %v3293 = vadd.f32 %v3124, %v3281
  %v3294 = vld [vmem:[%s264 + $0x16] sm:$0xff]
  %v3295 = vld [vmem:[%s264 + $0x1e] sm:$0xff]
  %v3296 = vld [vmem:[%s264 + $0x26] sm:$0xff]
  %v3297 = vld [vmem:[%s264 + $0x2e] sm:$0xff]
  %v3298 = vld [vmem:[%s264 + $0x36] sm:$0xff]
  %v3299 = vld [vmem:[%s264 + $0x3e] sm:$0xff]
  %v3300 = vld [vmem:[%s264 + $0x46] sm:$0xff]
  %v3301 = vld [vmem:[%s264 + $0x4e] sm:$0xff]
  %v3302 = vld [vmem:[%s264 + $0x56] sm:$0xff]
  %v3303 = vld [vmem:[%s264 + $0x5e] sm:$0xff]
  %v3304 = vld [vmem:[%s1791] sm:$0xf]
  %v3306 = vsel %vm26, %v3294, 0
  %v3309 = vsel %vm26, %v3295, 0
  %v3312 = vsel %vm26, %v3296, 0
  %v3315 = vsel %vm26, %v3297, 0
  %v3318 = vsel %vm26, %v3298, 0
  %v3321 = vsel %vm26, %v3299, 0
  %v3324 = vsel %vm26, %v3300, 0
  %v3327 = vsel %vm26, %v3301, 0
  %v3330 = vsel %vm26, %v3302, 0
  %v3333 = vsel %vm26, %v3303, 0
  %v3336 = vsel %vm494, %v3304, 0
  %3338 = vmatprep.subr.mxu0 0.0
  %3339 = vmatpush1.msra.mxu0 %v3336
  %3340 = vmatprep.subr.mxu0 0.0
  %3341 = vmatpush1.msra.mxu0 0.0
  %3342 = vmatprep.subr.mxu0 0.0
  %3343 = vmatpush1.msra.mxu0 0.0
  %3344 = vmatprep.subr.mxu0 0.0
  %3345 = vmatpush1.msra.mxu0 0.0
  %3346 = vmatprep.subr.mxu0 0.0
  %3347 = vmatpush1.msra.mxu0 0.0
  %3348 = vmatprep.subr.mxu0 0.0
  %3349 = vmatpush1.msra.mxu0 0.0
  %3350 = vmatprep.subr.mxu0 0.0
  %3351 = vmatpush1.msra.mxu0 0.0
  %3352 = vmatprep.subr.mxu0 0.0
  %3353 = vmatpush1.msra.mxu0 0.0
  %3354 = vmatprep.subr.mxu0 0.0
  %3355 = vmatpush1.msra.mxu0 0.0
  %3356 = vmatprep.subr.mxu0 0.0
  %3357 = vmatpush1.msra.mxu0 0.0
  %3358 = vmatprep.subr.mxu0 0.0
  %3359 = vmatpush1.msra.mxu0 0.0
  %3360 = vmatprep.subr.mxu0 0.0
  %3361 = vmatpush1.msra.mxu0 0.0
  %3362 = vmatprep.subr.mxu0 0.0
  %3363 = vmatpush1.msra.mxu0 0.0
  %3364 = vmatprep.subr.mxu0 0.0
  %3365 = vmatpush1.msra.mxu0 0.0
  %3366 = vmatprep.subr.mxu0 0.0
  %3367 = vmatpush1.msra.mxu0 0.0
  %3368 = vmatprep.subr.mxu0 0.0
  %3369 = vmatpush1.msra.mxu0 0.0
  %3370 = vmatprep.subr.mxu0 0.0
  %3371 = vmatpush1.msra.mxu0 0.0
  %3372 = vmatprep.subr.mxu0 0.0
  %3373 = vmatpush1.msra.mxu0 0.0
  %3374 = vmatprep.subr.mxu0 0.0
  %3375 = vmatpush1.msra.mxu0 0.0
  %3376 = vmatprep.subr.mxu0 0.0
  %3377 = vmatpush1.msra.mxu0 0.0
  %3378 = vmatprep.subr.mxu0 0.0
  %3379 = vmatpush1.msra.mxu0 0.0
  %3380 = vmatprep.subr.mxu0 0.0
  %3381 = vmatpush1.msra.mxu0 0.0
  %3382 = vmatprep.subr.mxu0 0.0
  %3383 = vmatpush1.msra.mxu0 0.0
  %3384 = vmatprep.subr.mxu0 0.0
  %3385 = vmatpush1.msra.mxu0 0.0
  %3386 = vmatprep.subr.mxu0 0.0
  %3387 = vmatpush1.msra.mxu0 0.0
  %3388 = vmatprep.subr.mxu0 0.0
  %3389 = vmatpush1.msra.mxu0 0.0
  %3390 = vmatprep.subr.mxu0 0.0
  %3391 = vmatpush1.msra.mxu0 0.0
  %3392 = vmatprep.subr.mxu0 0.0
  %3393 = vmatpush1.msra.mxu0 0.0
  %3394 = vmatprep.subr.mxu0 0.0
  %3395 = vmatpush1.msra.mxu0 0.0
  %3396 = vmatprep.subr.mxu0 0.0
  %3397 = vmatpush1.msra.mxu0 0.0
  %3398 = vmatprep.subr.mxu0 0.0
  %3399 = vmatpush1.msra.mxu0 0.0
  %3400 = vmatprep.subr.mxu0 0.0
  %3401 = vmatpush1.msra.mxu0 0.0
  %3402 = vmatprep.mubr.f32.mxu0 0.0
  %3403 = vmatmul.mubr.f32.gmra.mrb[0].mxu0 %v3306
  %v3404 = vpop.f32.mrb[0].mxu0
  %v3405 = vadd.f32 0.0, %v3404
  %v3406 = vpop.f32.mrb[0].mxu0
  %3407 = vmatprep.mubr.f32.mxu0 0.0
  %3408 = vmatmul.mubr.f32.gmra.mrb[0].mxu0 %v3309
  %v3409 = vpop.f32.mrb[0].mxu0
  %v3410 = vadd.f32 0.0, %v3409
  %v3411 = vpop.f32.mrb[0].mxu0
  %3412 = vmatprep.mubr.f32.mxu0 0.0
  %3413 = vmatmul.mubr.f32.gmra.mrb[0].mxu0 %v3312
  %v3414 = vpop.f32.mrb[0].mxu0
  %v3415 = vadd.f32 0.0, %v3414
  %v3416 = vpop.f32.mrb[0].mxu0
  %3417 = vmatprep.mubr.f32.mxu0 0.0
  %3418 = vmatmul.mubr.f32.gmra.mrb[0].mxu0 %v3315
  %v3419 = vpop.f32.mrb[0].mxu0
  %v3420 = vadd.f32 0.0, %v3419
  %v3421 = vpop.f32.mrb[0].mxu0
  %3422 = vmatprep.mubr.f32.mxu0 0.0
  %3423 = vmatmul.mubr.f32.gmra.mrb[0].mxu0 %v3318
  %v3424 = vpop.f32.mrb[0].mxu0
  %v3425 = vadd.f32 0.0, %v3424
  %v3426 = vpop.f32.mrb[0].mxu0
  %3427 = vmatprep.mubr.f32.mxu0 0.0
  %3428 = vmatmul.mubr.f32.gmra.mrb[0].mxu0 %v3321
  %v3429 = vpop.f32.mrb[0].mxu0
  %v3430 = vadd.f32 0.0, %v3429
  %v3431 = vpop.f32.mrb[0].mxu0
  %3432 = vmatprep.mubr.f32.mxu0 0.0
  %3433 = vmatmul.mubr.f32.gmra.mrb[0].mxu0 %v3324
  %v3434 = vpop.f32.mrb[0].mxu0
  %v3435 = vadd.f32 0.0, %v3434
  %v3436 = vpop.f32.mrb[0].mxu0
  %3437 = vmatprep.mubr.f32.mxu0 0.0
  %3438 = vmatmul.mubr.f32.gmra.mrb[0].mxu0 %v3327
  %v3439 = vpop.f32.mrb[0].mxu0
  %v3440 = vadd.f32 0.0, %v3439
  %v3441 = vpop.f32.mrb[0].mxu0
  %3442 = vmatprep.mubr.f32.mxu0 0.0
  %3443 = vmatmul.mubr.f32.gmra.mrb[0].mxu0 %v3330
  %v3444 = vpop.f32.mrb[0].mxu0
  %v3445 = vadd.f32 0.0, %v3444
  %v3446 = vpop.f32.mrb[0].mxu0
  %3447 = vmatprep.mubr.f32.mxu0 0.0
  %3448 = vmatmul.mubr.f32.gmra.mrb[0].mxu0 %v3333
  %v3449 = vpop.f32.mrb[0].mxu0
  %v3450 = vadd.f32 0.0, %v3449
  %v3451 = vpop.f32.mrb[0].mxu0
  %3452 = vdwg.mxu0
  %v3453 = vadd.f32 %v3284, %v3405
  %v3454 = vadd.f32 %v3285, %v3410
  %v3455 = vadd.f32 %v3286, %v3415
  %v3456 = vadd.f32 %v3287, %v3420
  %v3457 = vadd.f32 %v3288, %v3425
  %v3458 = vadd.f32 %v3289, %v3430
  %v3459 = vadd.f32 %v3290, %v3435
  %v3460 = vadd.f32 %v3291, %v3440
  %v3461 = vadd.f32 %v3292, %v3445
  %v3462 = vadd.f32 %v3293, %v3450
  %s3463 = scalar_lea.vmem [#allocation3], 80
  %3464 = vst.msk [vmem:[%s3463] sm:$0xff] %vm1951, %v3453
  %3465 = vst.msk [vmem:[%s3463 + $0x8] sm:$0xff] %vm1951, %v3454
  %3466 = vst.msk [vmem:[%s3463 + $0x10] sm:$0xff] %vm1951, %v3455
  %3467 = vst.msk [vmem:[%s3463 + $0x18] sm:$0xff] %vm1951, %v3456
  %3468 = vst.msk [vmem:[%s3463 + $0x20] sm:$0xff] %vm1951, %v3457
  %3469 = vst.msk [vmem:[%s3463 + $0x28] sm:$0xff] %vm1951, %v3458
  %3470 = vst.msk [vmem:[%s3463 + $0x30] sm:$0xff] %vm1951, %v3459
  %3471 = vst.msk [vmem:[%s3463 + $0x38] sm:$0xff] %vm1951, %v3460
  %3472 = vst.msk [vmem:[%s3463 + $0x40] sm:$0xff] %vm1951, %v3461
  %3473 = vst.msk [vmem:[%s3463 + $0x48] sm:$0xff] %vm1951, %v3462
  %v3474 = vld [vmem:[#allocation3] sm:$0xff]
  %v3475 = vsel %vm1951, %v3474, 0.0
  %v3476 = vrot.slane %v3475, 4
  %v3477 = vadd.f32 %v3475, %v3476
  %v3478 = vrot.slane %v3477, 2
  %v3479 = vadd.f32 %v3477, %v3478
  %v3480 = vrot.slane %v3479, 1
  %v3481 = vadd.f32 %v3479, %v3480
  %v3482 = vadd.f32 %v3481, 0.0
  %v3483 = vmul.f32 %v3474, %v3474
  %v3484 = vsel %vm1951, %v3483, 0.0
  %v3485 = vrot.slane %v3484, 4
  %v3486 = vadd.f32 %v3484, %v3485
  %v3487 = vrot.slane %v3486, 2
  %v3488 = vadd.f32 %v3486, %v3487
  %v3489 = vrot.slane %v3488, 1
  %v3490 = vadd.f32 %v3488, %v3489
  %v3491 = vadd.f32 %v3490, 0.0
  %v3492 = vld [vmem:[#allocation3 + $0xa] sm:$0xff]
  %v3493 = vsel %vm1951, %v3492, 0.0
  %v3494 = vrot.slane %v3493, 4
  %v3495 = vadd.f32 %v3493, %v3494
  %v3496 = vrot.slane %v3495, 2
  %v3497 = vadd.f32 %v3495, %v3496
  %v3498 = vrot.slane %v3497, 1
  %v3499 = vadd.f32 %v3497, %v3498
  %v3500 = vadd.f32 %v3482, %v3499
  %v3501 = vmul.f32 %v3492, %v3492
  %v3502 = vsel %vm1951, %v3501, 0.0
  %v3503 = vrot.slane %v3502, 4
  %v3504 = vadd.f32 %v3502, %v3503
  %v3505 = vrot.slane %v3504, 2
  %v3506 = vadd.f32 %v3504, %v3505
  %v3507 = vrot.slane %v3506, 1
  %v3508 = vadd.f32 %v3506, %v3507
  %v3509 = vadd.f32 %v3491, %v3508
  %v3510 = vld [vmem:[#allocation3 + $0x14] sm:$0xff]
  %v3511 = vsel %vm1951, %v3510, 0.0
  %v3512 = vrot.slane %v3511, 4
  %v3513 = vadd.f32 %v3511, %v3512
  %v3514 = vrot.slane %v3513, 2
  %v3515 = vadd.f32 %v3513, %v3514
  %v3516 = vrot.slane %v3515, 1
  %v3517 = vadd.f32 %v3515, %v3516
  %v3518 = vadd.f32 %v3500, %v3517
  %v3519 = vmul.f32 %v3510, %v3510
  %v3520 = vsel %vm1951, %v3519, 0.0
  %v3521 = vrot.slane %v3520, 4
  %v3522 = vadd.f32 %v3520, %v3521
  %v3523 = vrot.slane %v3522, 2
  %v3524 = vadd.f32 %v3522, %v3523
  %v3525 = vrot.slane %v3524, 1
  %v3526 = vadd.f32 %v3524, %v3525
  %v3527 = vadd.f32 %v3509, %v3526
  %v3528 = vld [vmem:[#allocation3 + $0x1e] sm:$0xff]
  %v3529 = vsel %vm1951, %v3528, 0.0
  %v3530 = vrot.slane %v3529, 4
  %v3531 = vadd.f32 %v3529, %v3530
  %v3532 = vrot.slane %v3531, 2
  %v3533 = vadd.f32 %v3531, %v3532
  %v3534 = vrot.slane %v3533, 1
  %v3535 = vadd.f32 %v3533, %v3534
  %v3536 = vadd.f32 %v3518, %v3535
  %v3537 = vmul.f32 %v3528, %v3528
  %v3538 = vsel %vm1951, %v3537, 0.0
  %v3539 = vrot.slane %v3538, 4
  %v3540 = vadd.f32 %v3538, %v3539
  %v3541 = vrot.slane %v3540, 2
  %v3542 = vadd.f32 %v3540, %v3541
  %v3543 = vrot.slane %v3542, 1
  %v3544 = vadd.f32 %v3542, %v3543
  %v3545 = vadd.f32 %v3527, %v3544
  %v3546 = vld [vmem:[#allocation3 + $0x28] sm:$0xff]
  %v3547 = vsel %vm1951, %v3546, 0.0
  %v3548 = vrot.slane %v3547, 4
  %v3549 = vadd.f32 %v3547, %v3548
  %v3550 = vrot.slane %v3549, 2
  %v3551 = vadd.f32 %v3549, %v3550
  %v3552 = vrot.slane %v3551, 1
  %v3553 = vadd.f32 %v3551, %v3552
  %v3554 = vadd.f32 %v3536, %v3553
  %v3555 = vmul.f32 %v3546, %v3546
  %v3556 = vsel %vm1951, %v3555, 0.0
  %v3557 = vrot.slane %v3556, 4
  %v3558 = vadd.f32 %v3556, %v3557
  %v3559 = vrot.slane %v3558, 2
  %v3560 = vadd.f32 %v3558, %v3559
  %v3561 = vrot.slane %v3560, 1
  %v3562 = vadd.f32 %v3560, %v3561
  %v3563 = vadd.f32 %v3545, %v3562
  %v3564 = vld [vmem:[#allocation3 + $0x32] sm:$0xff]
  %v3565 = vsel %vm1951, %v3564, 0.0
  %v3566 = vrot.slane %v3565, 4
  %v3567 = vadd.f32 %v3565, %v3566
  %v3568 = vrot.slane %v3567, 2
  %v3569 = vadd.f32 %v3567, %v3568
  %v3570 = vrot.slane %v3569, 1
  %v3571 = vadd.f32 %v3569, %v3570
  %v3572 = vadd.f32 %v3554, %v3571
  %v3573 = vmul.f32 %v3564, %v3564
  %v3574 = vsel %vm1951, %v3573, 0.0
  %v3575 = vrot.slane %v3574, 4
  %v3576 = vadd.f32 %v3574, %v3575
  %v3577 = vrot.slane %v3576, 2
  %v3578 = vadd.f32 %v3576, %v3577
  %v3579 = vrot.slane %v3578, 1
  %v3580 = vadd.f32 %v3578, %v3579
  %v3581 = vadd.f32 %v3563, %v3580
  %v3582 = vld [vmem:[#allocation3 + $0x3c] sm:$0xff]
  %v3583 = vsel %vm1951, %v3582, 0.0
  %v3584 = vrot.slane %v3583, 4
  %v3585 = vadd.f32 %v3583, %v3584
  %v3586 = vrot.slane %v3585, 2
  %v3587 = vadd.f32 %v3585, %v3586
  %v3588 = vrot.slane %v3587, 1
  %v3589 = vadd.f32 %v3587, %v3588
  %v3590 = vadd.f32 %v3572, %v3589
  %v3591 = vmul.f32 %v3582, %v3582
  %v3592 = vsel %vm1951, %v3591, 0.0
  %v3593 = vrot.slane %v3592, 4
  %v3594 = vadd.f32 %v3592, %v3593
  %v3595 = vrot.slane %v3594, 2
  %v3596 = vadd.f32 %v3594, %v3595
  %v3597 = vrot.slane %v3596, 1
  %v3598 = vadd.f32 %v3596, %v3597
  %v3599 = vadd.f32 %v3581, %v3598
  %v3600 = vld [vmem:[#allocation3 + $0x46] sm:$0xff]
  %v3601 = vsel %vm1951, %v3600, 0.0
  %v3602 = vrot.slane %v3601, 4
  %v3603 = vadd.f32 %v3601, %v3602
  %v3604 = vrot.slane %v3603, 2
  %v3605 = vadd.f32 %v3603, %v3604
  %v3606 = vrot.slane %v3605, 1
  %v3607 = vadd.f32 %v3605, %v3606
  %v3608 = vadd.f32 %v3590, %v3607
  %v3609 = vmul.f32 %v3600, %v3600
  %v3610 = vsel %vm1951, %v3609, 0.0
  %v3611 = vrot.slane %v3610, 4
  %v3612 = vadd.f32 %v3610, %v3611
  %v3613 = vrot.slane %v3612, 2
  %v3614 = vadd.f32 %v3612, %v3613
  %v3615 = vrot.slane %v3614, 1
  %v3616 = vadd.f32 %v3614, %v3615
  %v3617 = vadd.f32 %v3599, %v3616
  %v3618 = vld [vmem:[%s3463] sm:$0xff]
  %v3619 = vsel %vm1951, %v3618, 0.0
  %v3620 = vrot.slane %v3619, 4
  %v3621 = vadd.f32 %v3619, %v3620
  %v3622 = vrot.slane %v3621, 2
  %v3623 = vadd.f32 %v3621, %v3622
  %v3624 = vrot.slane %v3623, 1
  %v3625 = vadd.f32 %v3623, %v3624
  %v3626 = vadd.f32 %v3608, %v3625
  %v3627 = vmul.f32 %v3618, %v3618
  %v3628 = vsel %vm1951, %v3627, 0.0
  %v3629 = vrot.slane %v3628, 4
  %v3630 = vadd.f32 %v3628, %v3629
  %v3631 = vrot.slane %v3630, 2
  %v3632 = vadd.f32 %v3630, %v3631
  %v3633 = vrot.slane %v3632, 1
  %v3634 = vadd.f32 %v3632, %v3633
  %v3635 = vadd.f32 %v3617, %v3634
  %v3636 = vld [vmem:[%s3463 + $0xa] sm:$0xff]
  %v3637 = vsel %vm1951, %v3636, 0.0
  %v3638 = vrot.slane %v3637, 4
  %v3639 = vadd.f32 %v3637, %v3638
  %v3640 = vrot.slane %v3639, 2
  %v3641 = vadd.f32 %v3639, %v3640
  %v3642 = vrot.slane %v3641, 1
  %v3643 = vadd.f32 %v3641, %v3642
  %v3644 = vadd.f32 %v3626, %v3643
  %v3645 = vmul.f32 %v3636, %v3636
  %v3646 = vsel %vm1951, %v3645, 0.0
  %v3647 = vrot.slane %v3646, 4
  %v3648 = vadd.f32 %v3646, %v3647
  %v3649 = vrot.slane %v3648, 2
  %v3650 = vadd.f32 %v3648, %v3649
  %v3651 = vrot.slane %v3650, 1
  %v3652 = vadd.f32 %v3650, %v3651
  %v3653 = vadd.f32 %v3635, %v3652
  %v3654 = vld [vmem:[%s3463 + $0x14] sm:$0xff]
  %v3655 = vsel %vm1951, %v3654, 0.0
  %v3656 = vrot.slane %v3655, 4
  %v3657 = vadd.f32 %v3655, %v3656
  %v3658 = vrot.slane %v3657, 2
  %v3659 = vadd.f32 %v3657, %v3658
  %v3660 = vrot.slane %v3659, 1
  %v3661 = vadd.f32 %v3659, %v3660
  %v3662 = vadd.f32 %v3644, %v3661
  %v3663 = vmul.f32 %v3654, %v3654
  %v3664 = vsel %vm1951, %v3663, 0.0
  %v3665 = vrot.slane %v3664, 4
  %v3666 = vadd.f32 %v3664, %v3665
  %v3667 = vrot.slane %v3666, 2
  %v3668 = vadd.f32 %v3666, %v3667
  %v3669 = vrot.slane %v3668, 1
  %v3670 = vadd.f32 %v3668, %v3669
  %v3671 = vadd.f32 %v3653, %v3670
  %v3672 = vld [vmem:[%s3463 + $0x1e] sm:$0xff]
  %v3673 = vsel %vm1951, %v3672, 0.0
  %v3674 = vrot.slane %v3673, 4
  %v3675 = vadd.f32 %v3673, %v3674
  %v3676 = vrot.slane %v3675, 2
  %v3677 = vadd.f32 %v3675, %v3676
  %v3678 = vrot.slane %v3677, 1
  %v3679 = vadd.f32 %v3677, %v3678
  %v3680 = vadd.f32 %v3662, %v3679
  %v3681 = vmul.f32 %v3672, %v3672
  %v3682 = vsel %vm1951, %v3681, 0.0
  %v3683 = vrot.slane %v3682, 4
  %v3684 = vadd.f32 %v3682, %v3683
  %v3685 = vrot.slane %v3684, 2
  %v3686 = vadd.f32 %v3684, %v3685
  %v3687 = vrot.slane %v3686, 1
  %v3688 = vadd.f32 %v3686, %v3687
  %v3689 = vadd.f32 %v3671, %v3688
  %v3690 = vld [vmem:[%s3463 + $0x28] sm:$0xff]
  %v3691 = vsel %vm1951, %v3690, 0.0
  %v3692 = vrot.slane %v3691, 4
  %v3693 = vadd.f32 %v3691, %v3692
  %v3694 = vrot.slane %v3693, 2
  %v3695 = vadd.f32 %v3693, %v3694
  %v3696 = vrot.slane %v3695, 1
  %v3697 = vadd.f32 %v3695, %v3696
  %v3698 = vadd.f32 %v3680, %v3697
  %v3699 = vmul.f32 %v3690, %v3690
  %v3700 = vsel %vm1951, %v3699, 0.0
  %v3701 = vrot.slane %v3700, 4
  %v3702 = vadd.f32 %v3700, %v3701
  %v3703 = vrot.slane %v3702, 2
  %v3704 = vadd.f32 %v3702, %v3703
  %v3705 = vrot.slane %v3704, 1
  %v3706 = vadd.f32 %v3704, %v3705
  %v3707 = vadd.f32 %v3689, %v3706
  %v3708 = vld [vmem:[%s3463 + $0x32] sm:$0xff]
  %v3709 = vsel %vm1951, %v3708, 0.0
  %v3710 = vrot.slane %v3709, 4
  %v3711 = vadd.f32 %v3709, %v3710
  %v3712 = vrot.slane %v3711, 2
  %v3713 = vadd.f32 %v3711, %v3712
  %v3714 = vrot.slane %v3713, 1
  %v3715 = vadd.f32 %v3713, %v3714
  %v3716 = vadd.f32 %v3698, %v3715
  %v3717 = vmul.f32 %v3708, %v3708
  %v3718 = vsel %vm1951, %v3717, 0.0
  %v3719 = vrot.slane %v3718, 4
  %v3720 = vadd.f32 %v3718, %v3719
  %v3721 = vrot.slane %v3720, 2
  %v3722 = vadd.f32 %v3720, %v3721
  %v3723 = vrot.slane %v3722, 1
  %v3724 = vadd.f32 %v3722, %v3723
  %v3725 = vadd.f32 %v3707, %v3724
  %v3726 = vld [vmem:[%s3463 + $0x3c] sm:$0xff]
  %v3727 = vsel %vm1951, %v3726, 0.0
  %v3728 = vrot.slane %v3727, 4
  %v3729 = vadd.f32 %v3727, %v3728
  %v3730 = vrot.slane %v3729, 2
  %v3731 = vadd.f32 %v3729, %v3730
  %v3732 = vrot.slane %v3731, 1
  %v3733 = vadd.f32 %v3731, %v3732
  %v3734 = vadd.f32 %v3716, %v3733
  %v3735 = vmul.f32 %v3726, %v3726
  %v3736 = vsel %vm1951, %v3735, 0.0
  %v3737 = vrot.slane %v3736, 4
  %v3738 = vadd.f32 %v3736, %v3737
  %v3739 = vrot.slane %v3738, 2
  %v3740 = vadd.f32 %v3738, %v3739
  %v3741 = vrot.slane %v3740, 1
  %v3742 = vadd.f32 %v3740, %v3741
  %v3743 = vadd.f32 %v3725, %v3742
  %v3744 = vld [vmem:[%s3463 + $0x46] sm:$0xff]
  %v3745 = vsel %vm1951, %v3744, 0.0
  %v3746 = vrot.slane %v3745, 4
  %v3747 = vadd.f32 %v3745, %v3746
  %v3748 = vrot.slane %v3747, 2
  %v3749 = vadd.f32 %v3747, %v3748
  %v3750 = vrot.slane %v3749, 1
  %v3751 = vadd.f32 %v3749, %v3750
  %v3752 = vadd.f32 %v3734, %v3751
  %v3753 = vmul.f32 %v3744, %v3744
  %v3754 = vsel %vm1951, %v3753, 0.0
  %v3755 = vrot.slane %v3754, 4
  %v3756 = vadd.f32 %v3754, %v3755
  %v3757 = vrot.slane %v3756, 2
  %v3758 = vadd.f32 %v3756, %v3757
  %v3759 = vrot.slane %v3758, 1
  %v3760 = vadd.f32 %v3758, %v3759
  %v3761 = vadd.f32 %v3743, %v3760
  %v3762 = vmul.f32 %v3752, 0.0078125
  %v3763 = vmul.f32 %v3761, 0.0078125
  %v3764 = vmul.f32 %v3762, %v3762
  %v3765 = vsub.f32 %v3763, %v3764
  %v3766 = vmax.f32 %v3765, 0.0
  %v3767 = vld [vmem:[%s3] sm:$0x1]
  %v3768 = vadd.f32 %v3766, 1e-05
  %v3769 = vrsqrt.pop %v3768
  %v3770 = vmul.f32 %v3767, %v3769
  %v3771 = vld [vmem:[%s4] sm:$0x1]
  %v3772 = vmul.f32 %v3762, %v3770
  %v3773 = vsub.f32 %v3771, %v3772
  %3774 = vst.msk [vmem:[#allocation4] sm:$0xff] %vm1951, 0.0
  %3775 = vst.msk [vmem:[#allocation4 + $0x8] sm:$0xff] %vm1951, 0.0
  %3776 = vst.msk [vmem:[#allocation4 + $0x10] sm:$0xff] %vm1951, 0.0
  %3777 = vst.msk [vmem:[#allocation4 + $0x18] sm:$0xff] %vm1951, 0.0
  %3778 = vst.msk [vmem:[#allocation4 + $0x20] sm:$0xff] %vm1951, 0.0
  %3779 = vst.msk [vmem:[#allocation4 + $0x28] sm:$0xff] %vm1951, 0.0
  %3780 = vst.msk [vmem:[#allocation4 + $0x30] sm:$0xff] %vm1951, 0.0
  %3781 = vst.msk [vmem:[#allocation4 + $0x38] sm:$0xff] %vm1951, 0.0
  %3782 = vst.msk [vmem:[#allocation4 + $0x40] sm:$0xff] %vm1951, 0.0
  %3783 = vst.msk [vmem:[#allocation4 + $0x48] sm:$0xff] %vm1951, 0.0
  %3784 = vst.msk [vmem:[#allocation4 + $0x50] sm:$0xff] %vm1951, 0.0
  %3785 = vst.msk [vmem:[#allocation4 + $0x58] sm:$0xff] %vm1951, 0.0
  %3786 = vst.msk [vmem:[#allocation4 + $0x60] sm:$0xff] %vm1951, 0.0
  %3787 = vst.msk [vmem:[#allocation4 + $0x68] sm:$0xff] %vm1951, 0.0
  %3788 = vst.msk [vmem:[#allocation4 + $0x70] sm:$0xff] %vm1951, 0.0
  %3789 = vst.msk [vmem:[#allocation4 + $0x78] sm:$0xff] %vm1951, 0.0
  %3790 = vst.msk [vmem:[#allocation4 + $0x80] sm:$0xff] %vm1951, 0.0
  %3791 = vst.msk [vmem:[#allocation4 + $0x88] sm:$0xff] %vm1951, 0.0
  %3792 = vst.msk [vmem:[#allocation4 + $0x90] sm:$0xff] %vm1951, 0.0
  %3793 = vst.msk [vmem:[#allocation4 + $0x98] sm:$0xff] %vm1951, 0.0
  %3794 = vst.msk [vmem:[#allocation4 + $0xa0] sm:$0xff] %vm1951, 0.0
  %3795 = vst.msk [vmem:[#allocation4 + $0xa8] sm:$0xff] %vm1951, 0.0
  %3796 = vst.msk [vmem:[#allocation4 + $0xb0] sm:$0xff] %vm1951, 0.0
  %3797 = vst.msk [vmem:[#allocation4 + $0xb8] sm:$0xff] %vm1951, 0.0
  %3798 = vst.msk [vmem:[#allocation4 + $0xc0] sm:$0xff] %vm1951, 0.0
  %3799 = vst.msk [vmem:[#allocation4 + $0xc8] sm:$0xff] %vm1951, 0.0
  %v3800 = vld [vmem:[#allocation3] sm:$0xff]
  %v3802 = vlaneseq
  %v3803 = vshrl.u32 %v3802, 7
  %v3804 = vsub.s32 0, %v3803
  %v3805 = vrot.slane %v3770, %v3804
  %v3807 = vmul.f32 %v3800, %v3805
  %v3809 = vlaneseq
  %v3810 = vshrl.u32 %v3809, 7
  %v3811 = vsub.s32 0, %v3810
  %v3812 = vrot.slane %v3773, %v3811
  %v3814 = vadd.f32 %v3807, %v3812
  %v3815 = vmax.f32 %v3814, 0.0
  %3816 = vst.msk [vmem:[#allocation4 + $0xb] sm:$0xff] %vm1951, %v3815
  %v3817 = vld [vmem:[#allocation3 + $0xa] sm:$0xff]
  %v3818 = vmul.f32 %v3817, %v3805
  %v3819 = vadd.f32 %v3818, %v3812
  %v3820 = vmax.f32 %v3819, 0.0
  %3821 = vst.msk [vmem:[#allocation4 + $0x15] sm:$0xff] %vm1951, %v3820
  %v3822 = vld [vmem:[#allocation3 + $0x14] sm:$0xff]
  %v3823 = vmul.f32 %v3822, %v3805
  %v3824 = vadd.f32 %v3823, %v3812
  %v3825 = vmax.f32 %v3824, 0.0
  %3826 = vst.msk [vmem:[#allocation4 + $0x1f] sm:$0xff] %vm1951, %v3825
  %v3827 = vld [vmem:[#allocation3 + $0x1e] sm:$0xff]
  %v3828 = vmul.f32 %v3827, %v3805
  %v3829 = vadd.f32 %v3828, %v3812
  %v3830 = vmax.f32 %v3829, 0.0
  %3831 = vst.msk [vmem:[#allocation4 + $0x29] sm:$0xff] %vm1951, %v3830
  %v3832 = vld [vmem:[#allocation3 + $0x28] sm:$0xff]
  %v3833 = vmul.f32 %v3832, %v3805
  %v3834 = vadd.f32 %v3833, %v3812
  %v3835 = vmax.f32 %v3834, 0.0
  %3836 = vst.msk [vmem:[#allocation4 + $0x33] sm:$0xff] %vm1951, %v3835
  %v3837 = vld [vmem:[#allocation3 + $0x32] sm:$0xff]
  %v3838 = vmul.f32 %v3837, %v3805
  %v3839 = vadd.f32 %v3838, %v3812
  %v3840 = vmax.f32 %v3839, 0.0
  %3841 = vst.msk [vmem:[#allocation4 + $0x3d] sm:$0xff] %vm1951, %v3840
  %v3842 = vld [vmem:[#allocation3 + $0x3c] sm:$0xff]
  %v3843 = vmul.f32 %v3842, %v3805
  %v3844 = vadd.f32 %v3843, %v3812
  %v3845 = vmax.f32 %v3844, 0.0
  %3846 = vst.msk [vmem:[#allocation4 + $0x47] sm:$0xff] %vm1951, %v3845
  %v3847 = vld [vmem:[#allocation3 + $0x46] sm:$0xff]
  %v3848 = vmul.f32 %v3847, %v3805
  %v3849 = vadd.f32 %v3848, %v3812
  %v3850 = vmax.f32 %v3849, 0.0
  %3851 = vst.msk [vmem:[#allocation4 + $0x51] sm:$0xff] %vm1951, %v3850
  %v3852 = vld [vmem:[%s3463] sm:$0xff]
  %v3853 = vmul.f32 %v3852, %v3805
  %v3854 = vadd.f32 %v3853, %v3812
  %v3855 = vmax.f32 %v3854, 0.0
  %s3856 = scalar_lea.vmem [#allocation4], 104
  %3857 = vst.msk [vmem:[%s3856 + $0xb] sm:$0xff] %vm1951, %v3855
  %v3858 = vld [vmem:[%s3463 + $0xa] sm:$0xff]
  %v3859 = vmul.f32 %v3858, %v3805
  %v3860 = vadd.f32 %v3859, %v3812
  %v3861 = vmax.f32 %v3860, 0.0
  %3862 = vst.msk [vmem:[%s3856 + $0x15] sm:$0xff] %vm1951, %v3861
  %v3863 = vld [vmem:[%s3463 + $0x14] sm:$0xff]
  %v3864 = vmul.f32 %v3863, %v3805
  %v3865 = vadd.f32 %v3864, %v3812
  %v3866 = vmax.f32 %v3865, 0.0
  %3867 = vst.msk [vmem:[%s3856 + $0x1f] sm:$0xff] %vm1951, %v3866
  %v3868 = vld [vmem:[%s3463 + $0x1e] sm:$0xff]
  %v3869 = vmul.f32 %v3868, %v3805
  %v3870 = vadd.f32 %v3869, %v3812
  %v3871 = vmax.f32 %v3870, 0.0
  %3872 = vst.msk [vmem:[%s3856 + $0x29] sm:$0xff] %vm1951, %v3871
  %v3873 = vld [vmem:[%s3463 + $0x28] sm:$0xff]
  %v3874 = vmul.f32 %v3873, %v3805
  %v3875 = vadd.f32 %v3874, %v3812
  %v3876 = vmax.f32 %v3875, 0.0
  %3877 = vst.msk [vmem:[%s3856 + $0x33] sm:$0xff] %vm1951, %v3876
  %v3878 = vld [vmem:[%s3463 + $0x32] sm:$0xff]
  %v3879 = vmul.f32 %v3878, %v3805
  %v3880 = vadd.f32 %v3879, %v3812
  %v3881 = vmax.f32 %v3880, 0.0
  %3882 = vst.msk [vmem:[%s3856 + $0x3d] sm:$0xff] %vm1951, %v3881
  %v3883 = vld [vmem:[%s3463 + $0x3c] sm:$0xff]
  %v3884 = vmul.f32 %v3883, %v3805
  %v3885 = vadd.f32 %v3884, %v3812
  %v3886 = vmax.f32 %v3885, 0.0
  %3887 = vst.msk [vmem:[%s3856 + $0x47] sm:$0xff] %vm1951, %v3886
  %v3888 = vld [vmem:[%s3463 + $0x46] sm:$0xff]
  %v3889 = vmul.f32 %v3888, %v3805
  %v3890 = vadd.f32 %v3889, %v3812
  %v3891 = vmax.f32 %v3890, 0.0
  %3892 = vst.msk [vmem:[%s3856 + $0x51] sm:$0xff] %vm1951, %v3891
  %v3893 = vld [vmem:[#allocation4] sm:$0xff]
  %v3894 = vld [vmem:[#allocation4 + $0x8] sm:$0xff]
  %v3895 = vld [vmem:[#allocation4 + $0x10] sm:$0xff]
  %v3896 = vld [vmem:[#allocation4 + $0x18] sm:$0xff]
  %v3897 = vld [vmem:[#allocation4 + $0x20] sm:$0xff]
  %v3898 = vld [vmem:[#allocation4 + $0x28] sm:$0xff]
  %v3899 = vld [vmem:[#allocation4 + $0x30] sm:$0xff]
  %v3900 = vld [vmem:[#allocation4 + $0x38] sm:$0xff]
  %v3901 = vld [vmem:[#allocation4 + $0x40] sm:$0xff]
  %v3902 = vld [vmem:[#allocation4 + $0x48] sm:$0xff]
  %v3903 = vld [vmem:[%s2] sm:$0xff]
  %v3904 = vld [vmem:[#allocation4 + $0x1] sm:$0xff]
  %v3905 = vld [vmem:[#allocation4 + $0x9] sm:$0xff]
  %v3906 = vld [vmem:[#allocation4 + $0x11] sm:$0xff]
  %v3907 = vld [vmem:[#allocation4 + $0x19] sm:$0xff]
  %v3908 = vld [vmem:[#allocation4 + $0x21] sm:$0xff]
  %v3909 = vld [vmem:[#allocation4 + $0x29] sm:$0xff]
  %v3910 = vld [vmem:[#allocation4 + $0x31] sm:$0xff]
  %v3911 = vld [vmem:[#allocation4 + $0x39] sm:$0xff]
  %v3912 = vld [vmem:[#allocation4 + $0x41] sm:$0xff]
  %v3913 = vld [vmem:[#allocation4 + $0x49] sm:$0xff]
  %s3914 = scalar_lea.vmem %s2, 8
  %v3915 = vld [vmem:[%s3914] sm:$0xff]
  %v3917 = vsel %vm1951, %v3904, 0
  %v3920 = vsel %vm1951, %v3905, 0
  %v3923 = vsel %vm1951, %v3906, 0
  %v3926 = vsel %vm1951, %v3907, 0
  %v3929 = vsel %vm1951, %v3908, 0
  %v3932 = vsel %vm1951, %v3909, 0
  %v3935 = vsel %vm1951, %v3910, 0
  %v3938 = vsel %vm1951, %v3911, 0
  %v3941 = vsel %vm1951, %v3912, 0
  %v3944 = vsel %vm1951, %v3913, 0
  %3946 = vmatprep.subr.mxu0 0.0
  %3947 = vmatpush1.msra.mxu0 %v3915
  %3948 = vmatprep.subr.mxu0 0.0
  %3949 = vmatpush1.msra.mxu0 0.0
  %3950 = vmatprep.subr.mxu0 0.0
  %3951 = vmatpush1.msra.mxu0 0.0
  %3952 = vmatprep.subr.mxu0 0.0
  %3953 = vmatpush1.msra.mxu0 0.0
  %3954 = vmatprep.subr.mxu0 0.0
  %3955 = vmatpush1.msra.mxu0 0.0
  %3956 = vmatprep.subr.mxu0 0.0
  %3957 = vmatpush1.msra.mxu0 0.0
  %3958 = vmatprep.subr.mxu0 0.0
  %3959 = vmatpush1.msra.mxu0 0.0
  %3960 = vmatprep.subr.mxu0 0.0
  %3961 = vmatpush1.msra.mxu0 0.0
  %3962 = vmatprep.subr.mxu0 0.0
  %3963 = vmatpush1.msra.mxu0 0.0
  %3964 = vmatprep.subr.mxu0 0.0
  %3965 = vmatpush1.msra.mxu0 0.0
  %3966 = vmatprep.subr.mxu0 0.0
  %3967 = vmatpush1.msra.mxu0 0.0
  %3968 = vmatprep.subr.mxu0 0.0
  %3969 = vmatpush1.msra.mxu0 0.0
  %3970 = vmatprep.subr.mxu0 0.0
  %3971 = vmatpush1.msra.mxu0 0.0
  %3972 = vmatprep.subr.mxu0 0.0
  %3973 = vmatpush1.msra.mxu0 0.0
  %3974 = vmatprep.subr.mxu0 0.0
  %3975 = vmatpush1.msra.mxu0 0.0
  %3976 = vmatprep.subr.mxu0 0.0
  %3977 = vmatpush1.msra.mxu0 0.0
  %3978 = vmatprep.subr.mxu0 0.0
  %3979 = vmatpush1.msra.mxu0 0.0
  %3980 = vmatprep.subr.mxu0 0.0
  %3981 = vmatpush1.msra.mxu0 0.0
  %3982 = vmatprep.subr.mxu0 0.0
  %3983 = vmatpush1.msra.mxu0 0.0
  %3984 = vmatprep.subr.mxu0 0.0
  %3985 = vmatpush1.msra.mxu0 0.0
  %3986 = vmatprep.subr.mxu0 0.0
  %3987 = vmatpush1.msra.mxu0 0.0
  %3988 = vmatprep.subr.mxu0 0.0
  %3989 = vmatpush1.msra.mxu0 0.0
  %3990 = vmatprep.subr.mxu0 0.0
  %3991 = vmatpush1.msra.mxu0 0.0
  %3992 = vmatprep.subr.mxu0 0.0
  %3993 = vmatpush1.msra.mxu0 0.0
  %3994 = vmatprep.subr.mxu0 0.0
  %3995 = vmatpush1.msra.mxu0 0.0
  %3996 = vmatprep.subr.mxu0 0.0
  %3997 = vmatpush1.msra.mxu0 0.0
  %3998 = vmatprep.subr.mxu0 0.0
  %3999 = vmatpush1.msra.mxu0 0.0
  %4000 = vmatprep.subr.mxu0 0.0
  %4001 = vmatpush1.msra.mxu0 0.0
  %4002 = vmatprep.subr.mxu0 0.0
  %4003 = vmatpush1.msra.mxu0 0.0
  %4004 = vmatprep.subr.mxu0 0.0
  %4005 = vmatpush1.msra.mxu0 0.0
  %4006 = vmatprep.subr.mxu0 0.0
  %4007 = vmatpush1.msra.mxu0 0.0
  %4008 = vmatprep.subr.mxu0 0.0
  %4009 = vmatpush1.msra.mxu0 0.0
  %4010 = vmatprep.mubr.f32.mxu0 0.0
  %4011 = vmatmul.mubr.f32.gmra.mrb[0].mxu0 %v3917
  %v4012 = vpop.f32.mrb[0].mxu0
  %v4013 = vadd.f32 0.0, %v4012
  %v4014 = vpop.f32.mrb[0].mxu0
  %4015 = vmatprep.mubr.f32.mxu0 0.0
  %4016 = vmatmul.mubr.f32.gmra.mrb[0].mxu0 %v3920
  %v4017 = vpop.f32.mrb[0].mxu0
  %v4018 = vadd.f32 0.0, %v4017
  %v4019 = vpop.f32.mrb[0].mxu0
  %4020 = vmatprep.mubr.f32.mxu0 0.0
  %4021 = vmatmul.mubr.f32.gmra.mrb[0].mxu0 %v3923
  %v4022 = vpop.f32.mrb[0].mxu0
  %v4023 = vadd.f32 0.0, %v4022
  %v4024 = vpop.f32.mrb[0].mxu0
  %4025 = vmatprep.mubr.f32.mxu0 0.0
  %4026 = vmatmul.mubr.f32.gmra.mrb[0].mxu0 %v3926
  %v4027 = vpop.f32.mrb[0].mxu0
  %v4028 = vadd.f32 0.0, %v4027
  %v4029 = vpop.f32.mrb[0].mxu0
  %4030 = vmatprep.mubr.f32.mxu0 0.0
  %4031 = vmatmul.mubr.f32.gmra.mrb[0].mxu0 %v3929
  %v4032 = vpop.f32.mrb[0].mxu0
  %v4033 = vadd.f32 0.0, %v4032
  %v4034 = vpop.f32.mrb[0].mxu0
  %4035 = vmatprep.mubr.f32.mxu0 0.0
  %4036 = vmatmul.mubr.f32.gmra.mrb[0].mxu0 %v3932
  %v4037 = vpop.f32.mrb[0].mxu0
  %v4038 = vadd.f32 0.0, %v4037
  %v4039 = vpop.f32.mrb[0].mxu0
  %4040 = vmatprep.mubr.f32.mxu0 0.0
  %4041 = vmatmul.mubr.f32.gmra.mrb[0].mxu0 %v3935
  %v4042 = vpop.f32.mrb[0].mxu0
  %v4043 = vadd.f32 0.0, %v4042
  %v4044 = vpop.f32.mrb[0].mxu0
  %4045 = vmatprep.mubr.f32.mxu0 0.0
  %4046 = vmatmul.mubr.f32.gmra.mrb[0].mxu0 %v3938
  %v4047 = vpop.f32.mrb[0].mxu0
  %v4048 = vadd.f32 0.0, %v4047
  %v4049 = vpop.f32.mrb[0].mxu0
  %4050 = vmatprep.mubr.f32.mxu0 0.0
  %4051 = vmatmul.mubr.f32.gmra.mrb[0].mxu0 %v3941
  %v4052 = vpop.f32.mrb[0].mxu0
  %v4053 = vadd.f32 0.0, %v4052
  %v4054 = vpop.f32.mrb[0].mxu0
  %4055 = vmatprep.mubr.f32.mxu0 0.0
  %4056 = vmatmul.mubr.f32.gmra.mrb[0].mxu0 %v3944
  %v4057 = vpop.f32.mrb[0].mxu0
  %v4058 = vadd.f32 0.0, %v4057
  %v4059 = vpop.f32.mrb[0].mxu0
  %4060 = vdwg.mxu0
  %v4062 = vsel %vm1951, %v3893, 0
  %v4065 = vsel %vm1951, %v3894, 0
  %v4068 = vsel %vm1951, %v3895, 0
  %v4071 = vsel %vm1951, %v3896, 0
  %v4074 = vsel %vm1951, %v3897, 0
  %v4077 = vsel %vm1951, %v3898, 0
  %v4080 = vsel %vm1951, %v3899, 0
  %v4083 = vsel %vm1951, %v3900, 0
  %v4086 = vsel %vm1951, %v3901, 0
  %v4089 = vsel %vm1951, %v3902, 0
  %4091 = vmatprep.subr.mxu0 0.0
  %4092 = vmatpush1.msra.mxu0 %v3903
  %4093 = vmatprep.subr.mxu0 0.0
  %4094 = vmatpush1.msra.mxu0 0.0
  %4095 = vmatprep.subr.mxu0 0.0
  %4096 = vmatpush1.msra.mxu0 0.0
  %4097 = vmatprep.subr.mxu0 0.0
  %4098 = vmatpush1.msra.mxu0 0.0
  %4099 = vmatprep.subr.mxu0 0.0
  %4100 = vmatpush1.msra.mxu0 0.0
  %4101 = vmatprep.subr.mxu0 0.0
  %4102 = vmatpush1.msra.mxu0 0.0
  %4103 = vmatprep.subr.mxu0 0.0
  %4104 = vmatpush1.msra.mxu0 0.0
  %4105 = vmatprep.subr.mxu0 0.0
  %4106 = vmatpush1.msra.mxu0 0.0
  %4107 = vmatprep.subr.mxu0 0.0
  %4108 = vmatpush1.msra.mxu0 0.0
  %4109 = vmatprep.subr.mxu0 0.0
  %4110 = vmatpush1.msra.mxu0 0.0
  %4111 = vmatprep.subr.mxu0 0.0
  %4112 = vmatpush1.msra.mxu0 0.0
  %4113 = vmatprep.subr.mxu0 0.0
  %4114 = vmatpush1.msra.mxu0 0.0
  %4115 = vmatprep.subr.mxu0 0.0
  %4116 = vmatpush1.msra.mxu0 0.0
  %4117 = vmatprep.subr.mxu0 0.0
  %4118 = vmatpush1.msra.mxu0 0.0
  %4119 = vmatprep.subr.mxu0 0.0
  %4120 = vmatpush1.msra.mxu0 0.0
  %4121 = vmatprep.subr.mxu0 0.0
  %4122 = vmatpush1.msra.mxu0 0.0
  %4123 = vmatprep.subr.mxu0 0.0
  %4124 = vmatpush1.msra.mxu0 0.0
  %4125 = vmatprep.subr.mxu0 0.0
  %4126 = vmatpush1.msra.mxu0 0.0
  %4127 = vmatprep.subr.mxu0 0.0
  %4128 = vmatpush1.msra.mxu0 0.0
  %4129 = vmatprep.subr.mxu0 0.0
  %4130 = vmatpush1.msra.mxu0 0.0
  %4131 = vmatprep.subr.mxu0 0.0
  %4132 = vmatpush1.msra.mxu0 0.0
  %4133 = vmatprep.subr.mxu0 0.0
  %4134 = vmatpush1.msra.mxu0 0.0
  %4135 = vmatprep.subr.mxu0 0.0
  %4136 = vmatpush1.msra.mxu0 0.0
  %4137 = vmatprep.subr.mxu0 0.0
  %4138 = vmatpush1.msra.mxu0 0.0
  %4139 = vmatprep.subr.mxu0 0.0
  %4140 = vmatpush1.msra.mxu0 0.0
  %4141 = vmatprep.subr.mxu0 0.0
  %4142 = vmatpush1.msra.mxu0 0.0
  %4143 = vmatprep.subr.mxu0 0.0
  %4144 = vmatpush1.msra.mxu0 0.0
  %4145 = vmatprep.subr.mxu0 0.0
  %4146 = vmatpush1.msra.mxu0 0.0
  %4147 = vmatprep.subr.mxu0 0.0
  %4148 = vmatpush1.msra.mxu0 0.0
  %4149 = vmatprep.subr.mxu0 0.0
  %4150 = vmatpush1.msra.mxu0 0.0
  %4151 = vmatprep.subr.mxu0 0.0
  %4152 = vmatpush1.msra.mxu0 0.0
  %4153 = vmatprep.subr.mxu0 0.0
  %4154 = vmatpush1.msra.mxu0 0.0
  %4155 = vmatprep.mubr.f32.mxu0 0.0
  %4156 = vmatmul.mubr.f32.gmra.mrb[0].mxu0 %v4062
  %v4157 = vpop.f32.mrb[0].mxu0
  %v4158 = vadd.f32 %v4013, %v4157
  %v4159 = vpop.f32.mrb[0].mxu0
  %4160 = vmatprep.mubr.f32.mxu0 0.0
  %4161 = vmatmul.mubr.f32.gmra.mrb[0].mxu0 %v4065
  %v4162 = vpop.f32.mrb[0].mxu0
  %v4163 = vadd.f32 %v4018, %v4162
  %v4164 = vpop.f32.mrb[0].mxu0
  %4165 = vmatprep.mubr.f32.mxu0 0.0
  %4166 = vmatmul.mubr.f32.gmra.mrb[0].mxu0 %v4068
  %v4167 = vpop.f32.mrb[0].mxu0
  %v4168 = vadd.f32 %v4023, %v4167
  %v4169 = vpop.f32.mrb[0].mxu0
  %4170 = vmatprep.mubr.f32.mxu0 0.0
  %4171 = vmatmul.mubr.f32.gmra.mrb[0].mxu0 %v4071
  %v4172 = vpop.f32.mrb[0].mxu0
  %v4173 = vadd.f32 %v4028, %v4172
  %v4174 = vpop.f32.mrb[0].mxu0
  %4175 = vmatprep.mubr.f32.mxu0 0.0
  %4176 = vmatmul.mubr.f32.gmra.mrb[0].mxu0 %v4074
  %v4177 = vpop.f32.mrb[0].mxu0
  %v4178 = vadd.f32 %v4033, %v4177
  %v4179 = vpop.f32.mrb[0].mxu0
  %4180 = vmatprep.mubr.f32.mxu0 0.0
  %4181 = vmatmul.mubr.f32.gmra.mrb[0].mxu0 %v4077
  %v4182 = vpop.f32.mrb[0].mxu0
  %v4183 = vadd.f32 %v4038, %v4182
  %v4184 = vpop.f32.mrb[0].mxu0
  %4185 = vmatprep.mubr.f32.mxu0 0.0
  %4186 = vmatmul.mubr.f32.gmra.mrb[0].mxu0 %v4080
  %v4187 = vpop.f32.mrb[0].mxu0
  %v4188 = vadd.f32 %v4043, %v4187
  %v4189 = vpop.f32.mrb[0].mxu0
  %4190 = vmatprep.mubr.f32.mxu0 0.0
  %4191 = vmatmul.mubr.f32.gmra.mrb[0].mxu0 %v4083
  %v4192 = vpop.f32.mrb[0].mxu0
  %v4193 = vadd.f32 %v4048, %v4192
  %v4194 = vpop.f32.mrb[0].mxu0
  %4195 = vmatprep.mubr.f32.mxu0 0.0
  %4196 = vmatmul.mubr.f32.gmra.mrb[0].mxu0 %v4086
  %v4197 = vpop.f32.mrb[0].mxu0
  %v4198 = vadd.f32 %v4053, %v4197
  %v4199 = vpop.f32.mrb[0].mxu0
  %4200 = vmatprep.mubr.f32.mxu0 0.0
  %4201 = vmatmul.mubr.f32.gmra.mrb[0].mxu0 %v4089
  %v4202 = vpop.f32.mrb[0].mxu0
  %v4203 = vadd.f32 %v4058, %v4202
  %v4204 = vpop.f32.mrb[0].mxu0
  %4205 = vdwg.mxu0
  %v4206 = vld [vmem:[#allocation4 + $0x2] sm:$0xff]
  %v4207 = vld [vmem:[#allocation4 + $0xa] sm:$0xff]
  %v4208 = vld [vmem:[#allocation4 + $0x12] sm:$0xff]
  %v4209 = vld [vmem:[#allocation4 + $0x1a] sm:$0xff]
  %v4210 = vld [vmem:[#allocation4 + $0x22] sm:$0xff]
  %v4211 = vld [vmem:[#allocation4 + $0x2a] sm:$0xff]
  %v4212 = vld [vmem:[#allocation4 + $0x32] sm:$0xff]
  %v4213 = vld [vmem:[#allocation4 + $0x3a] sm:$0xff]
  %v4214 = vld [vmem:[#allocation4 + $0x42] sm:$0xff]
  %v4215 = vld [vmem:[#allocation4 + $0x4a] sm:$0xff]
  %s4216 = scalar_lea.vmem %s2, 16
  %v4217 = vld [vmem:[%s4216] sm:$0xff]
  %v4219 = vsel %vm1951, %v4206, 0
  %v4222 = vsel %vm1951, %v4207, 0
  %v4225 = vsel %vm1951, %v4208, 0
  %v4228 = vsel %vm1951, %v4209, 0
  %v4231 = vsel %vm1951, %v4210, 0
  %v4234 = vsel %vm1951, %v4211, 0
  %v4237 = vsel %vm1951, %v4212, 0
  %v4240 = vsel %vm1951, %v4213, 0
  %v4243 = vsel %vm1951, %v4214, 0
  %v4246 = vsel %vm1951, %v4215, 0
  %4248 = vmatprep.subr.mxu0 0.0
  %4249 = vmatpush1.msra.mxu0 %v4217
  %4250 = vmatprep.subr.mxu0 0.0
  %4251 = vmatpush1.msra.mxu0 0.0
  %4252 = vmatprep.subr.mxu0 0.0
  %4253 = vmatpush1.msra.mxu0 0.0
  %4254 = vmatprep.subr.mxu0 0.0
  %4255 = vmatpush1.msra.mxu0 0.0
  %4256 = vmatprep.subr.mxu0 0.0
  %4257 = vmatpush1.msra.mxu0 0.0
  %4258 = vmatprep.subr.mxu0 0.0
  %4259 = vmatpush1.msra.mxu0 0.0
  %4260 = vmatprep.subr.mxu0 0.0
  %4261 = vmatpush1.msra.mxu0 0.0
  %4262 = vmatprep.subr.mxu0 0.0
  %4263 = vmatpush1.msra.mxu0 0.0
  %4264 = vmatprep.subr.mxu0 0.0
  %4265 = vmatpush1.msra.mxu0 0.0
  %4266 = vmatprep.subr.mxu0 0.0
  %4267 = vmatpush1.msra.mxu0 0.0
  %4268 = vmatprep.subr.mxu0 0.0
  %4269 = vmatpush1.msra.mxu0 0.0
  %4270 = vmatprep.subr.mxu0 0.0
  %4271 = vmatpush1.msra.mxu0 0.0
  %4272 = vmatprep.subr.mxu0 0.0
  %4273 = vmatpush1.msra.mxu0 0.0
  %4274 = vmatprep.subr.mxu0 0.0
  %4275 = vmatpush1.msra.mxu0 0.0
  %4276 = vmatprep.subr.mxu0 0.0
  %4277 = vmatpush1.msra.mxu0 0.0
  %4278 = vmatprep.subr.mxu0 0.0
  %4279 = vmatpush1.msra.mxu0 0.0
  %4280 = vmatprep.subr.mxu0 0.0
  %4281 = vmatpush1.msra.mxu0 0.0
  %4282 = vmatprep.subr.mxu0 0.0
  %4283 = vmatpush1.msra.mxu0 0.0
  %4284 = vmatprep.subr.mxu0 0.0
  %4285 = vmatpush1.msra.mxu0 0.0
  %4286 = vmatprep.subr.mxu0 0.0
  %4287 = vmatpush1.msra.mxu0 0.0
  %4288 = vmatprep.subr.mxu0 0.0
  %4289 = vmatpush1.msra.mxu0 0.0
  %4290 = vmatprep.subr.mxu0 0.0
  %4291 = vmatpush1.msra.mxu0 0.0
  %4292 = vmatprep.subr.mxu0 0.0
  %4293 = vmatpush1.msra.mxu0 0.0
  %4294 = vmatprep.subr.mxu0 0.0
  %4295 = vmatpush1.msra.mxu0 0.0
  %4296 = vmatprep.subr.mxu0 0.0
  %4297 = vmatpush1.msra.mxu0 0.0
  %4298 = vmatprep.subr.mxu0 0.0
  %4299 = vmatpush1.msra.mxu0 0.0
  %4300 = vmatprep.subr.mxu0 0.0
  %4301 = vmatpush1.msra.mxu0 0.0
  %4302 = vmatprep.subr.mxu0 0.0
  %4303 = vmatpush1.msra.mxu0 0.0
  %4304 = vmatprep.subr.mxu0 0.0
  %4305 = vmatpush1.msra.mxu0 0.0
  %4306 = vmatprep.subr.mxu0 0.0
  %4307 = vmatpush1.msra.mxu0 0.0
  %4308 = vmatprep.subr.mxu0 0.0
  %4309 = vmatpush1.msra.mxu0 0.0
  %4310 = vmatprep.subr.mxu0 0.0
  %4311 = vmatpush1.msra.mxu0 0.0
  %4312 = vmatprep.mubr.f32.mxu0 0.0
  %4313 = vmatmul.mubr.f32.gmra.mrb[0].mxu0 %v4219
  %v4314 = vpop.f32.mrb[0].mxu0
  %v4315 = vadd.f32 0.0, %v4314
  %v4316 = vpop.f32.mrb[0].mxu0
  %4317 = vmatprep.mubr.f32.mxu0 0.0
  %4318 = vmatmul.mubr.f32.gmra.mrb[0].mxu0 %v4222
  %v4319 = vpop.f32.mrb[0].mxu0
  %v4320 = vadd.f32 0.0, %v4319
  %v4321 = vpop.f32.mrb[0].mxu0
  %4322 = vmatprep.mubr.f32.mxu0 0.0
  %4323 = vmatmul.mubr.f32.gmra.mrb[0].mxu0 %v4225
  %v4324 = vpop.f32.mrb[0].mxu0
  %v4325 = vadd.f32 0.0, %v4324
  %v4326 = vpop.f32.mrb[0].mxu0
  %4327 = vmatprep.mubr.f32.mxu0 0.0
  %4328 = vmatmul.mubr.f32.gmra.mrb[0].mxu0 %v4228
  %v4329 = vpop.f32.mrb[0].mxu0
  %v4330 = vadd.f32 0.0, %v4329
  %v4331 = vpop.f32.mrb[0].mxu0
  %4332 = vmatprep.mubr.f32.mxu0 0.0
  %4333 = vmatmul.mubr.f32.gmra.mrb[0].mxu0 %v4231
  %v4334 = vpop.f32.mrb[0].mxu0
  %v4335 = vadd.f32 0.0, %v4334
  %v4336 = vpop.f32.mrb[0].mxu0
  %4337 = vmatprep.mubr.f32.mxu0 0.0
  %4338 = vmatmul.mubr.f32.gmra.mrb[0].mxu0 %v4234
  %v4339 = vpop.f32.mrb[0].mxu0
  %v4340 = vadd.f32 0.0, %v4339
  %v4341 = vpop.f32.mrb[0].mxu0
  %4342 = vmatprep.mubr.f32.mxu0 0.0
  %4343 = vmatmul.mubr.f32.gmra.mrb[0].mxu0 %v4237
  %v4344 = vpop.f32.mrb[0].mxu0
  %v4345 = vadd.f32 0.0, %v4344
  %v4346 = vpop.f32.mrb[0].mxu0
  %4347 = vmatprep.mubr.f32.mxu0 0.0
  %4348 = vmatmul.mubr.f32.gmra.mrb[0].mxu0 %v4240
  %v4349 = vpop.f32.mrb[0].mxu0
  %v4350 = vadd.f32 0.0, %v4349
  %v4351 = vpop.f32.mrb[0].mxu0
  %4352 = vmatprep.mubr.f32.mxu0 0.0
  %4353 = vmatmul.mubr.f32.gmra.mrb[0].mxu0 %v4243
  %v4354 = vpop.f32.mrb[0].mxu0
  %v4355 = vadd.f32 0.0, %v4354
  %v4356 = vpop.f32.mrb[0].mxu0
  %4357 = vmatprep.mubr.f32.mxu0 0.0
  %4358 = vmatmul.mubr.f32.gmra.mrb[0].mxu0 %v4246
  %v4359 = vpop.f32.mrb[0].mxu0
  %v4360 = vadd.f32 0.0, %v4359
  %v4361 = vpop.f32.mrb[0].mxu0
  %4362 = vdwg.mxu0
  %v4363 = vadd.f32 %v4158, %v4315
  %v4364 = vadd.f32 %v4163, %v4320
  %v4365 = vadd.f32 %v4168, %v4325
  %v4366 = vadd.f32 %v4173, %v4330
  %v4367 = vadd.f32 %v4178, %v4335
  %v4368 = vadd.f32 %v4183, %v4340
  %v4369 = vadd.f32 %v4188, %v4345
  %v4370 = vadd.f32 %v4193, %v4350
  %v4371 = vadd.f32 %v4198, %v4355
  %v4372 = vadd.f32 %v4203, %v4360
  %v4373 = vld [vmem:[#allocation4 + $0xa] sm:$0xff]
  %v4374 = vld [vmem:[#allocation4 + $0x12] sm:$0xff]
  %v4375 = vld [vmem:[#allocation4 + $0x1a] sm:$0xff]
  %v4376 = vld [vmem:[#allocation4 + $0x22] sm:$0xff]
  %v4377 = vld [vmem:[#allocation4 + $0x2a] sm:$0xff]
  %v4378 = vld [vmem:[#allocation4 + $0x32] sm:$0xff]
  %v4379 = vld [vmem:[#allocation4 + $0x3a] sm:$0xff]
  %v4380 = vld [vmem:[#allocation4 + $0x42] sm:$0xff]
  %v4381 = vld [vmem:[#allocation4 + $0x4a] sm:$0xff]
  %v4382 = vld [vmem:[#allocation4 + $0x52] sm:$0xff]
  %s4383 = scalar_lea.vmem %s2, 24
  %v4384 = vld [vmem:[%s4383] sm:$0xff]
  %v4386 = vsel %vm1951, %v4373, 0
  %v4389 = vsel %vm1951, %v4374, 0
  %v4392 = vsel %vm1951, %v4375, 0
  %v4395 = vsel %vm1951, %v4376, 0
  %v4398 = vsel %vm1951, %v4377, 0
  %v4401 = vsel %vm1951, %v4378, 0
  %v4404 = vsel %vm1951, %v4379, 0
  %v4407 = vsel %vm1951, %v4380, 0
  %v4410 = vsel %vm1951, %v4381, 0
  %v4413 = vsel %vm1951, %v4382, 0
  %4415 = vmatprep.subr.mxu0 0.0
  %4416 = vmatpush1.msra.mxu0 %v4384
  %4417 = vmatprep.subr.mxu0 0.0
  %4418 = vmatpush1.msra.mxu0 0.0
  %4419 = vmatprep.subr.mxu0 0.0
  %4420 = vmatpush1.msra.mxu0 0.0
  %4421 = vmatprep.subr.mxu0 0.0
  %4422 = vmatpush1.msra.mxu0 0.0
  %4423 = vmatprep.subr.mxu0 0.0
  %4424 = vmatpush1.msra.mxu0 0.0
  %4425 = vmatprep.subr.mxu0 0.0
  %4426 = vmatpush1.msra.mxu0 0.0
  %4427 = vmatprep.subr.mxu0 0.0
  %4428 = vmatpush1.msra.mxu0 0.0
  %4429 = vmatprep.subr.mxu0 0.0
  %4430 = vmatpush1.msra.mxu0 0.0
  %4431 = vmatprep.subr.mxu0 0.0
  %4432 = vmatpush1.msra.mxu0 0.0
  %4433 = vmatprep.subr.mxu0 0.0
  %4434 = vmatpush1.msra.mxu0 0.0
  %4435 = vmatprep.subr.mxu0 0.0
  %4436 = vmatpush1.msra.mxu0 0.0
  %4437 = vmatprep.subr.mxu0 0.0
  %4438 = vmatpush1.msra.mxu0 0.0
  %4439 = vmatprep.subr.mxu0 0.0
  %4440 = vmatpush1.msra.mxu0 0.0
  %4441 = vmatprep.subr.mxu0 0.0
  %4442 = vmatpush1.msra.mxu0 0.0
  %4443 = vmatprep.subr.mxu0 0.0
  %4444 = vmatpush1.msra.mxu0 0.0
  %4445 = vmatprep.subr.mxu0 0.0
  %4446 = vmatpush1.msra.mxu0 0.0
  %4447 = vmatprep.subr.mxu0 0.0
  %4448 = vmatpush1.msra.mxu0 0.0
  %4449 = vmatprep.subr.mxu0 0.0
  %4450 = vmatpush1.msra.mxu0 0.0
  %4451 = vmatprep.subr.mxu0 0.0
  %4452 = vmatpush1.msra.mxu0 0.0
  %4453 = vmatprep.subr.mxu0 0.0
  %4454 = vmatpush1.msra.mxu0 0.0
  %4455 = vmatprep.subr.mxu0 0.0
  %4456 = vmatpush1.msra.mxu0 0.0
  %4457 = vmatprep.subr.mxu0 0.0
  %4458 = vmatpush1.msra.mxu0 0.0
  %4459 = vmatprep.subr.mxu0 0.0
  %4460 = vmatpush1.msra.mxu0 0.0
  %4461 = vmatprep.subr.mxu0 0.0
  %4462 = vmatpush1.msra.mxu0 0.0
  %4463 = vmatprep.subr.mxu0 0.0
  %4464 = vmatpush1.msra.mxu0 0.0
  %4465 = vmatprep.subr.mxu0 0.0
  %4466 = vmatpush1.msra.mxu0 0.0
  %4467 = vmatprep.subr.mxu0 0.0
  %4468 = vmatpush1.msra.mxu0 0.0
  %4469 = vmatprep.subr.mxu0 0.0
  %4470 = vmatpush1.msra.mxu0 0.0
  %4471 = vmatprep.subr.mxu0 0.0
  %4472 = vmatpush1.msra.mxu0 0.0
  %4473 = vmatprep.subr.mxu0 0.0
  %4474 = vmatpush1.msra.mxu0 0.0
  %4475 = vmatprep.subr.mxu0 0.0
  %4476 = vmatpush1.msra.mxu0 0.0
  %4477 = vmatprep.subr.mxu0 0.0
  %4478 = vmatpush1.msra.mxu0 0.0
  %4479 = vmatprep.mubr.f32.mxu0 0.0
  %4480 = vmatmul.mubr.f32.gmra.mrb[0].mxu0 %v4386
  %v4481 = vpop.f32.mrb[0].mxu0
  %v4482 = vadd.f32 0.0, %v4481
  %v4483 = vpop.f32.mrb[0].mxu0
  %4484 = vmatprep.mubr.f32.mxu0 0.0
  %4485 = vmatmul.mubr.f32.gmra.mrb[0].mxu0 %v4389
  %v4486 = vpop.f32.mrb[0].mxu0
  %v4487 = vadd.f32 0.0, %v4486
  %v4488 = vpop.f32.mrb[0].mxu0
  %4489 = vmatprep.mubr.f32.mxu0 0.0
  %4490 = vmatmul.mubr.f32.gmra.mrb[0].mxu0 %v4392
  %v4491 = vpop.f32.mrb[0].mxu0
  %v4492 = vadd.f32 0.0, %v4491
  %v4493 = vpop.f32.mrb[0].mxu0
  %4494 = vmatprep.mubr.f32.mxu0 0.0
  %4495 = vmatmul.mubr.f32.gmra.mrb[0].mxu0 %v4395
  %v4496 = vpop.f32.mrb[0].mxu0
  %v4497 = vadd.f32 0.0, %v4496
  %v4498 = vpop.f32.mrb[0].mxu0
  %4499 = vmatprep.mubr.f32.mxu0 0.0
  %4500 = vmatmul.mubr.f32.gmra.mrb[0].mxu0 %v4398
  %v4501 = vpop.f32.mrb[0].mxu0
  %v4502 = vadd.f32 0.0, %v4501
  %v4503 = vpop.f32.mrb[0].mxu0
  %4504 = vmatprep.mubr.f32.mxu0 0.0
  %4505 = vmatmul.mubr.f32.gmra.mrb[0].mxu0 %v4401
  %v4506 = vpop.f32.mrb[0].mxu0
  %v4507 = vadd.f32 0.0, %v4506
  %v4508 = vpop.f32.mrb[0].mxu0
  %4509 = vmatprep.mubr.f32.mxu0 0.0
  %4510 = vmatmul.mubr.f32.gmra.mrb[0].mxu0 %v4404
  %v4511 = vpop.f32.mrb[0].mxu0
  %v4512 = vadd.f32 0.0, %v4511
  %v4513 = vpop.f32.mrb[0].mxu0
  %4514 = vmatprep.mubr.f32.mxu0 0.0
  %4515 = vmatmul.mubr.f32.gmra.mrb[0].mxu0 %v4407
  %v4516 = vpop.f32.mrb[0].mxu0
  %v4517 = vadd.f32 0.0, %v4516
  %v4518 = vpop.f32.mrb[0].mxu0
  %4519 = vmatprep.mubr.f32.mxu0 0.0
  %4520 = vmatmul.mubr.f32.gmra.mrb[0].mxu0 %v4410
  %v4521 = vpop.f32.mrb[0].mxu0
  %v4522 = vadd.f32 0.0, %v4521
  %v4523 = vpop.f32.mrb[0].mxu0
  %4524 = vmatprep.mubr.f32.mxu0 0.0
  %4525 = vmatmul.mubr.f32.gmra.mrb[0].mxu0 %v4413
  %v4526 = vpop.f32.mrb[0].mxu0
  %v4527 = vadd.f32 0.0, %v4526
  %v4528 = vpop.f32.mrb[0].mxu0
  %4529 = vdwg.mxu0
  %v4530 = vadd.f32 %v4363, %v4482
  %v4531 = vadd.f32 %v4364, %v4487
  %v4532 = vadd.f32 %v4365, %v4492
  %v4533 = vadd.f32 %v4366, %v4497
  %v4534 = vadd.f32 %v4367, %v4502
  %v4535 = vadd.f32 %v4368, %v4507
  %v4536 = vadd.f32 %v4369, %v4512
  %v4537 = vadd.f32 %v4370, %v4517
  %v4538 = vadd.f32 %v4371, %v4522
  %v4539 = vadd.f32 %v4372, %v4527
  %v4540 = vld [vmem:[#allocation4 + $0xb] sm:$0xff]
  %v4541 = vld [vmem:[#allocation4 + $0x13] sm:$0xff]
  %v4542 = vld [vmem:[#allocation4 + $0x1b] sm:$0xff]
  %v4543 = vld [vmem:[#allocation4 + $0x23] sm:$0xff]
  %v4544 = vld [vmem:[#allocation4 + $0x2b] sm:$0xff]
  %v4545 = vld [vmem:[#allocation4 + $0x33] sm:$0xff]
  %v4546 = vld [vmem:[#allocation4 + $0x3b] sm:$0xff]
  %v4547 = vld [vmem:[#allocation4 + $0x43] sm:$0xff]
  %v4548 = vld [vmem:[#allocation4 + $0x4b] sm:$0xff]
  %v4549 = vld [vmem:[#allocation4 + $0x53] sm:$0xff]
  %s4550 = scalar_lea.vmem %s2, 32
  %v4551 = vld [vmem:[%s4550] sm:$0xff]
  %v4553 = vsel %vm1951, %v4540, 0
  %v4556 = vsel %vm1951, %v4541, 0
  %v4559 = vsel %vm1951, %v4542, 0
  %v4562 = vsel %vm1951, %v4543, 0
  %v4565 = vsel %vm1951, %v4544, 0
  %v4568 = vsel %vm1951, %v4545, 0
  %v4571 = vsel %vm1951, %v4546, 0
  %v4574 = vsel %vm1951, %v4547, 0
  %v4577 = vsel %vm1951, %v4548, 0
  %v4580 = vsel %vm1951, %v4549, 0
  %4582 = vmatprep.subr.mxu0 0.0
  %4583 = vmatpush1.msra.mxu0 %v4551
  %4584 = vmatprep.subr.mxu0 0.0
  %4585 = vmatpush1.msra.mxu0 0.0
  %4586 = vmatprep.subr.mxu0 0.0
  %4587 = vmatpush1.msra.mxu0 0.0
  %4588 = vmatprep.subr.mxu0 0.0
  %4589 = vmatpush1.msra.mxu0 0.0
  %4590 = vmatprep.subr.mxu0 0.0
  %4591 = vmatpush1.msra.mxu0 0.0
  %4592 = vmatprep.subr.mxu0 0.0
  %4593 = vmatpush1.msra.mxu0 0.0
  %4594 = vmatprep.subr.mxu0 0.0
  %4595 = vmatpush1.msra.mxu0 0.0
  %4596 = vmatprep.subr.mxu0 0.0
  %4597 = vmatpush1.msra.mxu0 0.0
  %4598 = vmatprep.subr.mxu0 0.0
  %4599 = vmatpush1.msra.mxu0 0.0
  %4600 = vmatprep.subr.mxu0 0.0
  %4601 = vmatpush1.msra.mxu0 0.0
  %4602 = vmatprep.subr.mxu0 0.0
  %4603 = vmatpush1.msra.mxu0 0.0
  %4604 = vmatprep.subr.mxu0 0.0
  %4605 = vmatpush1.msra.mxu0 0.0
  %4606 = vmatprep.subr.mxu0 0.0
  %4607 = vmatpush1.msra.mxu0 0.0
  %4608 = vmatprep.subr.mxu0 0.0
  %4609 = vmatpush1.msra.mxu0 0.0
  %4610 = vmatprep.subr.mxu0 0.0
  %4611 = vmatpush1.msra.mxu0 0.0
  %4612 = vmatprep.subr.mxu0 0.0
  %4613 = vmatpush1.msra.mxu0 0.0
  %4614 = vmatprep.subr.mxu0 0.0
  %4615 = vmatpush1.msra.mxu0 0.0
  %4616 = vmatprep.subr.mxu0 0.0
  %4617 = vmatpush1.msra.mxu0 0.0
  %4618 = vmatprep.subr.mxu0 0.0
  %4619 = vmatpush1.msra.mxu0 0.0
  %4620 = vmatprep.subr.mxu0 0.0
  %4621 = vmatpush1.msra.mxu0 0.0
  %4622 = vmatprep.subr.mxu0 0.0
  %4623 = vmatpush1.msra.mxu0 0.0
  %4624 = vmatprep.subr.mxu0 0.0
  %4625 = vmatpush1.msra.mxu0 0.0
  %4626 = vmatprep.subr.mxu0 0.0
  %4627 = vmatpush1.msra.mxu0 0.0
  %4628 = vmatprep.subr.mxu0 0.0
  %4629 = vmatpush1.msra.mxu0 0.0
  %4630 = vmatprep.subr.mxu0 0.0
  %4631 = vmatpush1.msra.mxu0 0.0
  %4632 = vmatprep.subr.mxu0 0.0
  %4633 = vmatpush1.msra.mxu0 0.0
  %4634 = vmatprep.subr.mxu0 0.0
  %4635 = vmatpush1.msra.mxu0 0.0
  %4636 = vmatprep.subr.mxu0 0.0
  %4637 = vmatpush1.msra.mxu0 0.0
  %4638 = vmatprep.subr.mxu0 0.0
  %4639 = vmatpush1.msra.mxu0 0.0
  %4640 = vmatprep.subr.mxu0 0.0
  %4641 = vmatpush1.msra.mxu0 0.0
  %4642 = vmatprep.subr.mxu0 0.0
  %4643 = vmatpush1.msra.mxu0 0.0
  %4644 = vmatprep.subr.mxu0 0.0
  %4645 = vmatpush1.msra.mxu0 0.0
  %4646 = vmatprep.mubr.f32.mxu0 0.0
  %4647 = vmatmul.mubr.f32.gmra.mrb[0].mxu0 %v4553
  %v4648 = vpop.f32.mrb[0].mxu0
  %v4649 = vadd.f32 0.0, %v4648
  %v4650 = vpop.f32.mrb[0].mxu0
  %4651 = vmatprep.mubr.f32.mxu0 0.0
  %4652 = vmatmul.mubr.f32.gmra.mrb[0].mxu0 %v4556
  %v4653 = vpop.f32.mrb[0].mxu0
  %v4654 = vadd.f32 0.0, %v4653
  %v4655 = vpop.f32.mrb[0].mxu0
  %4656 = vmatprep.mubr.f32.mxu0 0.0
  %4657 = vmatmul.mubr.f32.gmra.mrb[0].mxu0 %v4559
  %v4658 = vpop.f32.mrb[0].mxu0
  %v4659 = vadd.f32 0.0, %v4658
  %v4660 = vpop.f32.mrb[0].mxu0
  %4661 = vmatprep.mubr.f32.mxu0 0.0
  %4662 = vmatmul.mubr.f32.gmra.mrb[0].mxu0 %v4562
  %v4663 = vpop.f32.mrb[0].mxu0
  %v4664 = vadd.f32 0.0, %v4663
  %v4665 = vpop.f32.mrb[0].mxu0
  %4666 = vmatprep.mubr.f32.mxu0 0.0
  %4667 = vmatmul.mubr.f32.gmra.mrb[0].mxu0 %v4565
  %v4668 = vpop.f32.mrb[0].mxu0
  %v4669 = vadd.f32 0.0, %v4668
  %v4670 = vpop.f32.mrb[0].mxu0
  %4671 = vmatprep.mubr.f32.mxu0 0.0
  %4672 = vmatmul.mubr.f32.gmra.mrb[0].mxu0 %v4568
  %v4673 = vpop.f32.mrb[0].mxu0
  %v4674 = vadd.f32 0.0, %v4673
  %v4675 = vpop.f32.mrb[0].mxu0
  %4676 = vmatprep.mubr.f32.mxu0 0.0
  %4677 = vmatmul.mubr.f32.gmra.mrb[0].mxu0 %v4571
  %v4678 = vpop.f32.mrb[0].mxu0
  %v4679 = vadd.f32 0.0, %v4678
  %v4680 = vpop.f32.mrb[0].mxu0
  %4681 = vmatprep.mubr.f32.mxu0 0.0
  %4682 = vmatmul.mubr.f32.gmra.mrb[0].mxu0 %v4574
  %v4683 = vpop.f32.mrb[0].mxu0
  %v4684 = vadd.f32 0.0, %v4683
  %v4685 = vpop.f32.mrb[0].mxu0
  %4686 = vmatprep.mubr.f32.mxu0 0.0
  %4687 = vmatmul.mubr.f32.gmra.mrb[0].mxu0 %v4577
  %v4688 = vpop.f32.mrb[0].mxu0
  %v4689 = vadd.f32 0.0, %v4688
  %v4690 = vpop.f32.mrb[0].mxu0
  %4691 = vmatprep.mubr.f32.mxu0 0.0
  %4692 = vmatmul.mubr.f32.gmra.mrb[0].mxu0 %v4580
  %v4693 = vpop.f32.mrb[0].mxu0
  %v4694 = vadd.f32 0.0, %v4693
  %v4695 = vpop.f32.mrb[0].mxu0
  %4696 = vdwg.mxu0
  %v4697 = vadd.f32 %v4530, %v4649
  %v4698 = vadd.f32 %v4531, %v4654
  %v4699 = vadd.f32 %v4532, %v4659
  %v4700 = vadd.f32 %v4533, %v4664
  %v4701 = vadd.f32 %v4534, %v4669
  %v4702 = vadd.f32 %v4535, %v4674
  %v4703 = vadd.f32 %v4536, %v4679
  %v4704 = vadd.f32 %v4537, %v4684
  %v4705 = vadd.f32 %v4538, %v4689
  %v4706 = vadd.f32 %v4539, %v4694
  %v4707 = vld [vmem:[#allocation4 + $0xc] sm:$0xff]
  %v4708 = vld [vmem:[#allocation4 + $0x14] sm:$0xff]
  %v4709 = vld [vmem:[#allocation4 + $0x1c] sm:$0xff]
  %v4710 = vld [vmem:[#allocation4 + $0x24] sm:$0xff]
  %v4711 = vld [vmem:[#allocation4 + $0x2c] sm:$0xff]
  %v4712 = vld [vmem:[#allocation4 + $0x34] sm:$0xff]
  %v4713 = vld [vmem:[#allocation4 + $0x3c] sm:$0xff]
  %v4714 = vld [vmem:[#allocation4 + $0x44] sm:$0xff]
  %v4715 = vld [vmem:[#allocation4 + $0x4c] sm:$0xff]
  %v4716 = vld [vmem:[#allocation4 + $0x54] sm:$0xff]
  %s4717 = scalar_lea.vmem %s2, 40
  %v4718 = vld [vmem:[%s4717] sm:$0xff]
  %v4720 = vsel %vm1951, %v4707, 0
  %v4723 = vsel %vm1951, %v4708, 0
  %v4726 = vsel %vm1951, %v4709, 0
  %v4729 = vsel %vm1951, %v4710, 0
  %v4732 = vsel %vm1951, %v4711, 0
  %v4735 = vsel %vm1951, %v4712, 0
  %v4738 = vsel %vm1951, %v4713, 0
  %v4741 = vsel %vm1951, %v4714, 0
  %v4744 = vsel %vm1951, %v4715, 0
  %v4747 = vsel %vm1951, %v4716, 0
  %4749 = vmatprep.subr.mxu0 0.0
  %4750 = vmatpush1.msra.mxu0 %v4718
  %4751 = vmatprep.subr.mxu0 0.0
  %4752 = vmatpush1.msra.mxu0 0.0
  %4753 = vmatprep.subr.mxu0 0.0
  %4754 = vmatpush1.msra.mxu0 0.0
  %4755 = vmatprep.subr.mxu0 0.0
  %4756 = vmatpush1.msra.mxu0 0.0
  %4757 = vmatprep.subr.mxu0 0.0
  %4758 = vmatpush1.msra.mxu0 0.0
  %4759 = vmatprep.subr.mxu0 0.0
  %4760 = vmatpush1.msra.mxu0 0.0
  %4761 = vmatprep.subr.mxu0 0.0
  %4762 = vmatpush1.msra.mxu0 0.0
  %4763 = vmatprep.subr.mxu0 0.0
  %4764 = vmatpush1.msra.mxu0 0.0
  %4765 = vmatprep.subr.mxu0 0.0
  %4766 = vmatpush1.msra.mxu0 0.0
  %4767 = vmatprep.subr.mxu0 0.0
  %4768 = vmatpush1.msra.mxu0 0.0
  %4769 = vmatprep.subr.mxu0 0.0
  %4770 = vmatpush1.msra.mxu0 0.0
  %4771 = vmatprep.subr.mxu0 0.0
  %4772 = vmatpush1.msra.mxu0 0.0
  %4773 = vmatprep.subr.mxu0 0.0
  %4774 = vmatpush1.msra.mxu0 0.0
  %4775 = vmatprep.subr.mxu0 0.0
  %4776 = vmatpush1.msra.mxu0 0.0
  %4777 = vmatprep.subr.mxu0 0.0
  %4778 = vmatpush1.msra.mxu0 0.0
  %4779 = vmatprep.subr.mxu0 0.0
  %4780 = vmatpush1.msra.mxu0 0.0
  %4781 = vmatprep.subr.mxu0 0.0
  %4782 = vmatpush1.msra.mxu0 0.0
  %4783 = vmatprep.subr.mxu0 0.0
  %4784 = vmatpush1.msra.mxu0 0.0
  %4785 = vmatprep.subr.mxu0 0.0
  %4786 = vmatpush1.msra.mxu0 0.0
  %4787 = vmatprep.subr.mxu0 0.0
  %4788 = vmatpush1.msra.mxu0 0.0
  %4789 = vmatprep.subr.mxu0 0.0
  %4790 = vmatpush1.msra.mxu0 0.0
  %4791 = vmatprep.subr.mxu0 0.0
  %4792 = vmatpush1.msra.mxu0 0.0
  %4793 = vmatprep.subr.mxu0 0.0
  %4794 = vmatpush1.msra.mxu0 0.0
  %4795 = vmatprep.subr.mxu0 0.0
  %4796 = vmatpush1.msra.mxu0 0.0
  %4797 = vmatprep.subr.mxu0 0.0
  %4798 = vmatpush1.msra.mxu0 0.0
  %4799 = vmatprep.subr.mxu0 0.0
  %4800 = vmatpush1.msra.mxu0 0.0
  %4801 = vmatprep.subr.mxu0 0.0
  %4802 = vmatpush1.msra.mxu0 0.0
  %4803 = vmatprep.subr.mxu0 0.0
  %4804 = vmatpush1.msra.mxu0 0.0
  %4805 = vmatprep.subr.mxu0 0.0
  %4806 = vmatpush1.msra.mxu0 0.0
  %4807 = vmatprep.subr.mxu0 0.0
  %4808 = vmatpush1.msra.mxu0 0.0
  %4809 = vmatprep.subr.mxu0 0.0
  %4810 = vmatpush1.msra.mxu0 0.0
  %4811 = vmatprep.subr.mxu0 0.0
  %4812 = vmatpush1.msra.mxu0 0.0
  %4813 = vmatprep.mubr.f32.mxu0 0.0
  %4814 = vmatmul.mubr.f32.gmra.mrb[0].mxu0 %v4720
  %v4815 = vpop.f32.mrb[0].mxu0
  %v4816 = vadd.f32 0.0, %v4815
  %v4817 = vpop.f32.mrb[0].mxu0
  %4818 = vmatprep.mubr.f32.mxu0 0.0
  %4819 = vmatmul.mubr.f32.gmra.mrb[0].mxu0 %v4723
  %v4820 = vpop.f32.mrb[0].mxu0
  %v4821 = vadd.f32 0.0, %v4820
  %v4822 = vpop.f32.mrb[0].mxu0
  %4823 = vmatprep.mubr.f32.mxu0 0.0
  %4824 = vmatmul.mubr.f32.gmra.mrb[0].mxu0 %v4726
  %v4825 = vpop.f32.mrb[0].mxu0
  %v4826 = vadd.f32 0.0, %v4825
  %v4827 = vpop.f32.mrb[0].mxu0
  %4828 = vmatprep.mubr.f32.mxu0 0.0
  %4829 = vmatmul.mubr.f32.gmra.mrb[0].mxu0 %v4729
  %v4830 = vpop.f32.mrb[0].mxu0
  %v4831 = vadd.f32 0.0, %v4830
  %v4832 = vpop.f32.mrb[0].mxu0
  %4833 = vmatprep.mubr.f32.mxu0 0.0
  %4834 = vmatmul.mubr.f32.gmra.mrb[0].mxu0 %v4732
  %v4835 = vpop.f32.mrb[0].mxu0
  %v4836 = vadd.f32 0.0, %v4835
  %v4837 = vpop.f32.mrb[0].mxu0
  %4838 = vmatprep.mubr.f32.mxu0 0.0
  %4839 = vmatmul.mubr.f32.gmra.mrb[0].mxu0 %v4735
  %v4840 = vpop.f32.mrb[0].mxu0
  %v4841 = vadd.f32 0.0, %v4840
  %v4842 = vpop.f32.mrb[0].mxu0
  %4843 = vmatprep.mubr.f32.mxu0 0.0
  %4844 = vmatmul.mubr.f32.gmra.mrb[0].mxu0 %v4738
  %v4845 = vpop.f32.mrb[0].mxu0
  %v4846 = vadd.f32 0.0, %v4845
  %v4847 = vpop.f32.mrb[0].mxu0
  %4848 = vmatprep.mubr.f32.mxu0 0.0
  %4849 = vmatmul.mubr.f32.gmra.mrb[0].mxu0 %v4741
  %v4850 = vpop.f32.mrb[0].mxu0
  %v4851 = vadd.f32 0.0, %v4850
  %v4852 = vpop.f32.mrb[0].mxu0
  %4853 = vmatprep.mubr.f32.mxu0 0.0
  %4854 = vmatmul.mubr.f32.gmra.mrb[0].mxu0 %v4744
  %v4855 = vpop.f32.mrb[0].mxu0
  %v4856 = vadd.f32 0.0, %v4855
  %v4857 = vpop.f32.mrb[0].mxu0
  %4858 = vmatprep.mubr.f32.mxu0 0.0
  %4859 = vmatmul.mubr.f32.gmra.mrb[0].mxu0 %v4747
  %v4860 = vpop.f32.mrb[0].mxu0
  %v4861 = vadd.f32 0.0, %v4860
  %v4862 = vpop.f32.mrb[0].mxu0
  %4863 = vdwg.mxu0
  %v4864 = vadd.f32 %v4697, %v4816
  %v4865 = vadd.f32 %v4698, %v4821
  %v4866 = vadd.f32 %v4699, %v4826
  %v4867 = vadd.f32 %v4700, %v4831
  %v4868 = vadd.f32 %v4701, %v4836
  %v4869 = vadd.f32 %v4702, %v4841
  %v4870 = vadd.f32 %v4703, %v4846
  %v4871 = vadd.f32 %v4704, %v4851
  %v4872 = vadd.f32 %v4705, %v4856
  %v4873 = vadd.f32 %v4706, %v4861
  %v4874 = vld [vmem:[#allocation4 + $0x14] sm:$0xff]
  %v4875 = vld [vmem:[#allocation4 + $0x1c] sm:$0xff]
  %v4876 = vld [vmem:[#allocation4 + $0x24] sm:$0xff]
  %v4877 = vld [vmem:[#allocation4 + $0x2c] sm:$0xff]
  %v4878 = vld [vmem:[#allocation4 + $0x34] sm:$0xff]
  %v4879 = vld [vmem:[#allocation4 + $0x3c] sm:$0xff]
  %v4880 = vld [vmem:[#allocation4 + $0x44] sm:$0xff]
  %v4881 = vld [vmem:[#allocation4 + $0x4c] sm:$0xff]
  %v4882 = vld [vmem:[#allocation4 + $0x54] sm:$0xff]
  %v4883 = vld [vmem:[#allocation4 + $0x5c] sm:$0xff]
  %s4884 = scalar_lea.vmem %s2, 48
  %v4885 = vld [vmem:[%s4884] sm:$0xff]
  %v4887 = vsel %vm1951, %v4874, 0
  %v4890 = vsel %vm1951, %v4875, 0
  %v4893 = vsel %vm1951, %v4876, 0
  %v4896 = vsel %vm1951, %v4877, 0
  %v4899 = vsel %vm1951, %v4878, 0
  %v4902 = vsel %vm1951, %v4879, 0
  %v4905 = vsel %vm1951, %v4880, 0
  %v4908 = vsel %vm1951, %v4881, 0
  %v4911 = vsel %vm1951, %v4882, 0
  %v4914 = vsel %vm1951, %v4883, 0
  %4916 = vmatprep.subr.mxu0 0.0
  %4917 = vmatpush1.msra.mxu0 %v4885
  %4918 = vmatprep.subr.mxu0 0.0
  %4919 = vmatpush1.msra.mxu0 0.0
  %4920 = vmatprep.subr.mxu0 0.0
  %4921 = vmatpush1.msra.mxu0 0.0
  %4922 = vmatprep.subr.mxu0 0.0
  %4923 = vmatpush1.msra.mxu0 0.0
  %4924 = vmatprep.subr.mxu0 0.0
  %4925 = vmatpush1.msra.mxu0 0.0
  %4926 = vmatprep.subr.mxu0 0.0
  %4927 = vmatpush1.msra.mxu0 0.0
  %4928 = vmatprep.subr.mxu0 0.0
  %4929 = vmatpush1.msra.mxu0 0.0
  %4930 = vmatprep.subr.mxu0 0.0
  %4931 = vmatpush1.msra.mxu0 0.0
  %4932 = vmatprep.subr.mxu0 0.0
  %4933 = vmatpush1.msra.mxu0 0.0
  %4934 = vmatprep.subr.mxu0 0.0
  %4935 = vmatpush1.msra.mxu0 0.0
  %4936 = vmatprep.subr.mxu0 0.0
  %4937 = vmatpush1.msra.mxu0 0.0
  %4938 = vmatprep.subr.mxu0 0.0
  %4939 = vmatpush1.msra.mxu0 0.0
  %4940 = vmatprep.subr.mxu0 0.0
  %4941 = vmatpush1.msra.mxu0 0.0
  %4942 = vmatprep.subr.mxu0 0.0
  %4943 = vmatpush1.msra.mxu0 0.0
  %4944 = vmatprep.subr.mxu0 0.0
  %4945 = vmatpush1.msra.mxu0 0.0
  %4946 = vmatprep.subr.mxu0 0.0
  %4947 = vmatpush1.msra.mxu0 0.0
  %4948 = vmatprep.subr.mxu0 0.0
  %4949 = vmatpush1.msra.mxu0 0.0
  %4950 = vmatprep.subr.mxu0 0.0
  %4951 = vmatpush1.msra.mxu0 0.0
  %4952 = vmatprep.subr.mxu0 0.0
  %4953 = vmatpush1.msra.mxu0 0.0
  %4954 = vmatprep.subr.mxu0 0.0
  %4955 = vmatpush1.msra.mxu0 0.0
  %4956 = vmatprep.subr.mxu0 0.0
  %4957 = vmatpush1.msra.mxu0 0.0
  %4958 = vmatprep.subr.mxu0 0.0
  %4959 = vmatpush1.msra.mxu0 0.0
  %4960 = vmatprep.subr.mxu0 0.0
  %4961 = vmatpush1.msra.mxu0 0.0
  %4962 = vmatprep.subr.mxu0 0.0
  %4963 = vmatpush1.msra.mxu0 0.0
  %4964 = vmatprep.subr.mxu0 0.0
  %4965 = vmatpush1.msra.mxu0 0.0
  %4966 = vmatprep.subr.mxu0 0.0
  %4967 = vmatpush1.msra.mxu0 0.0
  %4968 = vmatprep.subr.mxu0 0.0
  %4969 = vmatpush1.msra.mxu0 0.0
  %4970 = vmatprep.subr.mxu0 0.0
  %4971 = vmatpush1.msra.mxu0 0.0
  %4972 = vmatprep.subr.mxu0 0.0
  %4973 = vmatpush1.msra.mxu0 0.0
  %4974 = vmatprep.subr.mxu0 0.0
  %4975 = vmatpush1.msra.mxu0 0.0
  %4976 = vmatprep.subr.mxu0 0.0
  %4977 = vmatpush1.msra.mxu0 0.0
  %4978 = vmatprep.subr.mxu0 0.0
  %4979 = vmatpush1.msra.mxu0 0.0
  %4980 = vmatprep.mubr.f32.mxu0 0.0
  %4981 = vmatmul.mubr.f32.gmra.mrb[0].mxu0 %v4887
  %v4982 = vpop.f32.mrb[0].mxu0
  %v4983 = vadd.f32 0.0, %v4982
  %v4984 = vpop.f32.mrb[0].mxu0
  %4985 = vmatprep.mubr.f32.mxu0 0.0
  %4986 = vmatmul.mubr.f32.gmra.mrb[0].mxu0 %v4890
  %v4987 = vpop.f32.mrb[0].mxu0
  %v4988 = vadd.f32 0.0, %v4987
  %v4989 = vpop.f32.mrb[0].mxu0
  %4990 = vmatprep.mubr.f32.mxu0 0.0
  %4991 = vmatmul.mubr.f32.gmra.mrb[0].mxu0 %v4893
  %v4992 = vpop.f32.mrb[0].mxu0
  %v4993 = vadd.f32 0.0, %v4992
  %v4994 = vpop.f32.mrb[0].mxu0
  %4995 = vmatprep.mubr.f32.mxu0 0.0
  %4996 = vmatmul.mubr.f32.gmra.mrb[0].mxu0 %v4896
  %v4997 = vpop.f32.mrb[0].mxu0
  %v4998 = vadd.f32 0.0, %v4997
  %v4999 = vpop.f32.mrb[0].mxu0
  %5000 = vmatprep.mubr.f32.mxu0 0.0
  %5001 = vmatmul.mubr.f32.gmra.mrb[0].mxu0 %v4899
  %v5002 = vpop.f32.mrb[0].mxu0
  %v5003 = vadd.f32 0.0, %v5002
  %v5004 = vpop.f32.mrb[0].mxu0
  %5005 = vmatprep.mubr.f32.mxu0 0.0
  %5006 = vmatmul.mubr.f32.gmra.mrb[0].mxu0 %v4902
  %v5007 = vpop.f32.mrb[0].mxu0
  %v5008 = vadd.f32 0.0, %v5007
  %v5009 = vpop.f32.mrb[0].mxu0
  %5010 = vmatprep.mubr.f32.mxu0 0.0
  %5011 = vmatmul.mubr.f32.gmra.mrb[0].mxu0 %v4905
  %v5012 = vpop.f32.mrb[0].mxu0
  %v5013 = vadd.f32 0.0, %v5012
  %v5014 = vpop.f32.mrb[0].mxu0
  %5015 = vmatprep.mubr.f32.mxu0 0.0
  %5016 = vmatmul.mubr.f32.gmra.mrb[0].mxu0 %v4908
  %v5017 = vpop.f32.mrb[0].mxu0
  %v5018 = vadd.f32 0.0, %v5017
  %v5019 = vpop.f32.mrb[0].mxu0
  %5020 = vmatprep.mubr.f32.mxu0 0.0
  %5021 = vmatmul.mubr.f32.gmra.mrb[0].mxu0 %v4911
  %v5022 = vpop.f32.mrb[0].mxu0
  %v5023 = vadd.f32 0.0, %v5022
  %v5024 = vpop.f32.mrb[0].mxu0
  %5025 = vmatprep.mubr.f32.mxu0 0.0
  %5026 = vmatmul.mubr.f32.gmra.mrb[0].mxu0 %v4914
  %v5027 = vpop.f32.mrb[0].mxu0
  %v5028 = vadd.f32 0.0, %v5027
  %v5029 = vpop.f32.mrb[0].mxu0
  %5030 = vdwg.mxu0
  %v5031 = vadd.f32 %v4864, %v4983
  %v5032 = vadd.f32 %v4865, %v4988
  %v5033 = vadd.f32 %v4866, %v4993
  %v5034 = vadd.f32 %v4867, %v4998
  %v5035 = vadd.f32 %v4868, %v5003
  %v5036 = vadd.f32 %v4869, %v5008
  %v5037 = vadd.f32 %v4870, %v5013
  %v5038 = vadd.f32 %v4871, %v5018
  %v5039 = vadd.f32 %v4872, %v5023
  %v5040 = vadd.f32 %v4873, %v5028
  %v5041 = vld [vmem:[#allocation4 + $0x15] sm:$0xff]
  %v5042 = vld [vmem:[#allocation4 + $0x1d] sm:$0xff]
  %v5043 = vld [vmem:[#allocation4 + $0x25] sm:$0xff]
  %v5044 = vld [vmem:[#allocation4 + $0x2d] sm:$0xff]
  %v5045 = vld [vmem:[#allocation4 + $0x35] sm:$0xff]
  %v5046 = vld [vmem:[#allocation4 + $0x3d] sm:$0xff]
  %v5047 = vld [vmem:[#allocation4 + $0x45] sm:$0xff]
  %v5048 = vld [vmem:[#allocation4 + $0x4d] sm:$0xff]
  %v5049 = vld [vmem:[#allocation4 + $0x55] sm:$0xff]
  %v5050 = vld [vmem:[#allocation4 + $0x5d] sm:$0xff]
  %s5051 = scalar_lea.vmem %s2, 56
  %v5052 = vld [vmem:[%s5051] sm:$0xff]
  %v5054 = vsel %vm1951, %v5041, 0
  %v5057 = vsel %vm1951, %v5042, 0
  %v5060 = vsel %vm1951, %v5043, 0
  %v5063 = vsel %vm1951, %v5044, 0
  %v5066 = vsel %vm1951, %v5045, 0
  %v5069 = vsel %vm1951, %v5046, 0
  %v5072 = vsel %vm1951, %v5047, 0
  %v5075 = vsel %vm1951, %v5048, 0
  %v5078 = vsel %vm1951, %v5049, 0
  %v5081 = vsel %vm1951, %v5050, 0
  %5083 = vmatprep.subr.mxu0 0.0
  %5084 = vmatpush1.msra.mxu0 %v5052
  %5085 = vmatprep.subr.mxu0 0.0
  %5086 = vmatpush1.msra.mxu0 0.0
  %5087 = vmatprep.subr.mxu0 0.0
  %5088 = vmatpush1.msra.mxu0 0.0
  %5089 = vmatprep.subr.mxu0 0.0
  %5090 = vmatpush1.msra.mxu0 0.0
  %5091 = vmatprep.subr.mxu0 0.0
  %5092 = vmatpush1.msra.mxu0 0.0
  %5093 = vmatprep.subr.mxu0 0.0
  %5094 = vmatpush1.msra.mxu0 0.0
  %5095 = vmatprep.subr.mxu0 0.0
  %5096 = vmatpush1.msra.mxu0 0.0
  %5097 = vmatprep.subr.mxu0 0.0
  %5098 = vmatpush1.msra.mxu0 0.0
  %5099 = vmatprep.subr.mxu0 0.0
  %5100 = vmatpush1.msra.mxu0 0.0
  %5101 = vmatprep.subr.mxu0 0.0
  %5102 = vmatpush1.msra.mxu0 0.0
  %5103 = vmatprep.subr.mxu0 0.0
  %5104 = vmatpush1.msra.mxu0 0.0
  %5105 = vmatprep.subr.mxu0 0.0
  %5106 = vmatpush1.msra.mxu0 0.0
  %5107 = vmatprep.subr.mxu0 0.0
  %5108 = vmatpush1.msra.mxu0 0.0
  %5109 = vmatprep.subr.mxu0 0.0
  %5110 = vmatpush1.msra.mxu0 0.0
  %5111 = vmatprep.subr.mxu0 0.0
  %5112 = vmatpush1.msra.mxu0 0.0
  %5113 = vmatprep.subr.mxu0 0.0
  %5114 = vmatpush1.msra.mxu0 0.0
  %5115 = vmatprep.subr.mxu0 0.0
  %5116 = vmatpush1.msra.mxu0 0.0
  %5117 = vmatprep.subr.mxu0 0.0
  %5118 = vmatpush1.msra.mxu0 0.0
  %5119 = vmatprep.subr.mxu0 0.0
  %5120 = vmatpush1.msra.mxu0 0.0
  %5121 = vmatprep.subr.mxu0 0.0
  %5122 = vmatpush1.msra.mxu0 0.0
  %5123 = vmatprep.subr.mxu0 0.0
  %5124 = vmatpush1.msra.mxu0 0.0
  %5125 = vmatprep.subr.mxu0 0.0
  %5126 = vmatpush1.msra.mxu0 0.0
  %5127 = vmatprep.subr.mxu0 0.0
  %5128 = vmatpush1.msra.mxu0 0.0
  %5129 = vmatprep.subr.mxu0 0.0
  %5130 = vmatpush1.msra.mxu0 0.0
  %5131 = vmatprep.subr.mxu0 0.0
  %5132 = vmatpush1.msra.mxu0 0.0
  %5133 = vmatprep.subr.mxu0 0.0
  %5134 = vmatpush1.msra.mxu0 0.0
  %5135 = vmatprep.subr.mxu0 0.0
  %5136 = vmatpush1.msra.mxu0 0.0
  %5137 = vmatprep.subr.mxu0 0.0
  %5138 = vmatpush1.msra.mxu0 0.0
  %5139 = vmatprep.subr.mxu0 0.0
  %5140 = vmatpush1.msra.mxu0 0.0
  %5141 = vmatprep.subr.mxu0 0.0
  %5142 = vmatpush1.msra.mxu0 0.0
  %5143 = vmatprep.subr.mxu0 0.0
  %5144 = vmatpush1.msra.mxu0 0.0
  %5145 = vmatprep.subr.mxu0 0.0
  %5146 = vmatpush1.msra.mxu0 0.0
  %5147 = vmatprep.mubr.f32.mxu0 0.0
  %5148 = vmatmul.mubr.f32.gmra.mrb[0].mxu0 %v5054
  %v5149 = vpop.f32.mrb[0].mxu0
  %v5150 = vadd.f32 0.0, %v5149
  %v5151 = vpop.f32.mrb[0].mxu0
  %5152 = vmatprep.mubr.f32.mxu0 0.0
  %5153 = vmatmul.mubr.f32.gmra.mrb[0].mxu0 %v5057
  %v5154 = vpop.f32.mrb[0].mxu0
  %v5155 = vadd.f32 0.0, %v5154
  %v5156 = vpop.f32.mrb[0].mxu0
  %5157 = vmatprep.mubr.f32.mxu0 0.0
  %5158 = vmatmul.mubr.f32.gmra.mrb[0].mxu0 %v5060
  %v5159 = vpop.f32.mrb[0].mxu0
  %v5160 = vadd.f32 0.0, %v5159
  %v5161 = vpop.f32.mrb[0].mxu0
  %5162 = vmatprep.mubr.f32.mxu0 0.0
  %5163 = vmatmul.mubr.f32.gmra.mrb[0].mxu0 %v5063
  %v5164 = vpop.f32.mrb[0].mxu0
  %v5165 = vadd.f32 0.0, %v5164
  %v5166 = vpop.f32.mrb[0].mxu0
  %5167 = vmatprep.mubr.f32.mxu0 0.0
  %5168 = vmatmul.mubr.f32.gmra.mrb[0].mxu0 %v5066
  %v5169 = vpop.f32.mrb[0].mxu0
  %v5170 = vadd.f32 0.0, %v5169
  %v5171 = vpop.f32.mrb[0].mxu0
  %5172 = vmatprep.mubr.f32.mxu0 0.0
  %5173 = vmatmul.mubr.f32.gmra.mrb[0].mxu0 %v5069
  %v5174 = vpop.f32.mrb[0].mxu0
  %v5175 = vadd.f32 0.0, %v5174
  %v5176 = vpop.f32.mrb[0].mxu0
  %5177 = vmatprep.mubr.f32.mxu0 0.0
  %5178 = vmatmul.mubr.f32.gmra.mrb[0].mxu0 %v5072
  %v5179 = vpop.f32.mrb[0].mxu0
  %v5180 = vadd.f32 0.0, %v5179
  %v5181 = vpop.f32.mrb[0].mxu0
  %5182 = vmatprep.mubr.f32.mxu0 0.0
  %5183 = vmatmul.mubr.f32.gmra.mrb[0].mxu0 %v5075
  %v5184 = vpop.f32.mrb[0].mxu0
  %v5185 = vadd.f32 0.0, %v5184
  %v5186 = vpop.f32.mrb[0].mxu0
  %5187 = vmatprep.mubr.f32.mxu0 0.0
  %5188 = vmatmul.mubr.f32.gmra.mrb[0].mxu0 %v5078
  %v5189 = vpop.f32.mrb[0].mxu0
  %v5190 = vadd.f32 0.0, %v5189
  %v5191 = vpop.f32.mrb[0].mxu0
  %5192 = vmatprep.mubr.f32.mxu0 0.0
  %5193 = vmatmul.mubr.f32.gmra.mrb[0].mxu0 %v5081
  %v5194 = vpop.f32.mrb[0].mxu0
  %v5195 = vadd.f32 0.0, %v5194
  %v5196 = vpop.f32.mrb[0].mxu0
  %5197 = vdwg.mxu0
  %v5198 = vadd.f32 %v5031, %v5150
  %v5199 = vadd.f32 %v5032, %v5155
  %v5200 = vadd.f32 %v5033, %v5160
  %v5201 = vadd.f32 %v5034, %v5165
  %v5202 = vadd.f32 %v5035, %v5170
  %v5203 = vadd.f32 %v5036, %v5175
  %v5204 = vadd.f32 %v5037, %v5180
  %v5205 = vadd.f32 %v5038, %v5185
  %v5206 = vadd.f32 %v5039, %v5190
  %v5207 = vadd.f32 %v5040, %v5195
  %v5208 = vld [vmem:[#allocation4 + $0x16] sm:$0xff]
  %v5209 = vld [vmem:[#allocation4 + $0x1e] sm:$0xff]
  %v5210 = vld [vmem:[#allocation4 + $0x26] sm:$0xff]
  %v5211 = vld [vmem:[#allocation4 + $0x2e] sm:$0xff]
  %v5212 = vld [vmem:[#allocation4 + $0x36] sm:$0xff]
  %v5213 = vld [vmem:[#allocation4 + $0x3e] sm:$0xff]
  %v5214 = vld [vmem:[#allocation4 + $0x46] sm:$0xff]
  %v5215 = vld [vmem:[#allocation4 + $0x4e] sm:$0xff]
  %v5216 = vld [vmem:[#allocation4 + $0x56] sm:$0xff]
  %v5217 = vld [vmem:[#allocation4 + $0x5e] sm:$0xff]
  %s5218 = scalar_lea.vmem %s2, 64
  %v5219 = vld [vmem:[%s5218] sm:$0xff]
  %v5221 = vsel %vm1951, %v5208, 0
  %v5224 = vsel %vm1951, %v5209, 0
  %v5227 = vsel %vm1951, %v5210, 0
  %v5230 = vsel %vm1951, %v5211, 0
  %v5233 = vsel %vm1951, %v5212, 0
  %v5236 = vsel %vm1951, %v5213, 0
  %v5239 = vsel %vm1951, %v5214, 0
  %v5242 = vsel %vm1951, %v5215, 0
  %v5245 = vsel %vm1951, %v5216, 0
  %v5248 = vsel %vm1951, %v5217, 0
  %5250 = vmatprep.subr.mxu0 0.0
  %5251 = vmatpush1.msra.mxu0 %v5219
  %5252 = vmatprep.subr.mxu0 0.0
  %5253 = vmatpush1.msra.mxu0 0.0
  %5254 = vmatprep.subr.mxu0 0.0
  %5255 = vmatpush1.msra.mxu0 0.0
  %5256 = vmatprep.subr.mxu0 0.0
  %5257 = vmatpush1.msra.mxu0 0.0
  %5258 = vmatprep.subr.mxu0 0.0
  %5259 = vmatpush1.msra.mxu0 0.0
  %5260 = vmatprep.subr.mxu0 0.0
  %5261 = vmatpush1.msra.mxu0 0.0
  %5262 = vmatprep.subr.mxu0 0.0
  %5263 = vmatpush1.msra.mxu0 0.0
  %5264 = vmatprep.subr.mxu0 0.0
  %5265 = vmatpush1.msra.mxu0 0.0
  %5266 = vmatprep.subr.mxu0 0.0
  %5267 = vmatpush1.msra.mxu0 0.0
  %5268 = vmatprep.subr.mxu0 0.0
  %5269 = vmatpush1.msra.mxu0 0.0
  %5270 = vmatprep.subr.mxu0 0.0
  %5271 = vmatpush1.msra.mxu0 0.0
  %5272 = vmatprep.subr.mxu0 0.0
  %5273 = vmatpush1.msra.mxu0 0.0
  %5274 = vmatprep.subr.mxu0 0.0
  %5275 = vmatpush1.msra.mxu0 0.0
  %5276 = vmatprep.subr.mxu0 0.0
  %5277 = vmatpush1.msra.mxu0 0.0
  %5278 = vmatprep.subr.mxu0 0.0
  %5279 = vmatpush1.msra.mxu0 0.0
  %5280 = vmatprep.subr.mxu0 0.0
  %5281 = vmatpush1.msra.mxu0 0.0
  %5282 = vmatprep.subr.mxu0 0.0
  %5283 = vmatpush1.msra.mxu0 0.0
  %5284 = vmatprep.subr.mxu0 0.0
  %5285 = vmatpush1.msra.mxu0 0.0
  %5286 = vmatprep.subr.mxu0 0.0
  %5287 = vmatpush1.msra.mxu0 0.0
  %5288 = vmatprep.subr.mxu0 0.0
  %5289 = vmatpush1.msra.mxu0 0.0
  %5290 = vmatprep.subr.mxu0 0.0
  %5291 = vmatpush1.msra.mxu0 0.0
  %5292 = vmatprep.subr.mxu0 0.0
  %5293 = vmatpush1.msra.mxu0 0.0
  %5294 = vmatprep.subr.mxu0 0.0
  %5295 = vmatpush1.msra.mxu0 0.0
  %5296 = vmatprep.subr.mxu0 0.0
  %5297 = vmatpush1.msra.mxu0 0.0
  %5298 = vmatprep.subr.mxu0 0.0
  %5299 = vmatpush1.msra.mxu0 0.0
  %5300 = vmatprep.subr.mxu0 0.0
  %5301 = vmatpush1.msra.mxu0 0.0
  %5302 = vmatprep.subr.mxu0 0.0
  %5303 = vmatpush1.msra.mxu0 0.0
  %5304 = vmatprep.subr.mxu0 0.0
  %5305 = vmatpush1.msra.mxu0 0.0
  %5306 = vmatprep.subr.mxu0 0.0
  %5307 = vmatpush1.msra.mxu0 0.0
  %5308 = vmatprep.subr.mxu0 0.0
  %5309 = vmatpush1.msra.mxu0 0.0
  %5310 = vmatprep.subr.mxu0 0.0
  %5311 = vmatpush1.msra.mxu0 0.0
  %5312 = vmatprep.subr.mxu0 0.0
  %5313 = vmatpush1.msra.mxu0 0.0
  %5314 = vmatprep.mubr.f32.mxu0 0.0
  %5315 = vmatmul.mubr.f32.gmra.mrb[0].mxu0 %v5221
  %v5316 = vpop.f32.mrb[0].mxu0
  %v5317 = vadd.f32 0.0, %v5316
  %v5318 = vpop.f32.mrb[0].mxu0
  %5319 = vmatprep.mubr.f32.mxu0 0.0
  %5320 = vmatmul.mubr.f32.gmra.mrb[0].mxu0 %v5224
  %v5321 = vpop.f32.mrb[0].mxu0
  %v5322 = vadd.f32 0.0, %v5321
  %v5323 = vpop.f32.mrb[0].mxu0
  %5324 = vmatprep.mubr.f32.mxu0 0.0
  %5325 = vmatmul.mubr.f32.gmra.mrb[0].mxu0 %v5227
  %v5326 = vpop.f32.mrb[0].mxu0
  %v5327 = vadd.f32 0.0, %v5326
  %v5328 = vpop.f32.mrb[0].mxu0
  %5329 = vmatprep.mubr.f32.mxu0 0.0
  %5330 = vmatmul.mubr.f32.gmra.mrb[0].mxu0 %v5230
  %v5331 = vpop.f32.mrb[0].mxu0
  %v5332 = vadd.f32 0.0, %v5331
  %v5333 = vpop.f32.mrb[0].mxu0
  %5334 = vmatprep.mubr.f32.mxu0 0.0
  %5335 = vmatmul.mubr.f32.gmra.mrb[0].mxu0 %v5233
  %v5336 = vpop.f32.mrb[0].mxu0
  %v5337 = vadd.f32 0.0, %v5336
  %v5338 = vpop.f32.mrb[0].mxu0
  %5339 = vmatprep.mubr.f32.mxu0 0.0
  %5340 = vmatmul.mubr.f32.gmra.mrb[0].mxu0 %v5236
  %v5341 = vpop.f32.mrb[0].mxu0
  %v5342 = vadd.f32 0.0, %v5341
  %v5343 = vpop.f32.mrb[0].mxu0
  %5344 = vmatprep.mubr.f32.mxu0 0.0
  %5345 = vmatmul.mubr.f32.gmra.mrb[0].mxu0 %v5239
  %v5346 = vpop.f32.mrb[0].mxu0
  %v5347 = vadd.f32 0.0, %v5346
  %v5348 = vpop.f32.mrb[0].mxu0
  %5349 = vmatprep.mubr.f32.mxu0 0.0
  %5350 = vmatmul.mubr.f32.gmra.mrb[0].mxu0 %v5242
  %v5351 = vpop.f32.mrb[0].mxu0
  %v5352 = vadd.f32 0.0, %v5351
  %v5353 = vpop.f32.mrb[0].mxu0
  %5354 = vmatprep.mubr.f32.mxu0 0.0
  %5355 = vmatmul.mubr.f32.gmra.mrb[0].mxu0 %v5245
  %v5356 = vpop.f32.mrb[0].mxu0
  %v5357 = vadd.f32 0.0, %v5356
  %v5358 = vpop.f32.mrb[0].mxu0
  %5359 = vmatprep.mubr.f32.mxu0 0.0
  %5360 = vmatmul.mubr.f32.gmra.mrb[0].mxu0 %v5248
  %v5361 = vpop.f32.mrb[0].mxu0
  %v5362 = vadd.f32 0.0, %v5361
  %v5363 = vpop.f32.mrb[0].mxu0
  %5364 = vdwg.mxu0
  %v5365 = vadd.f32 %v5198, %v5317
  %v5366 = vadd.f32 %v5199, %v5322
  %v5367 = vadd.f32 %v5200, %v5327
  %v5368 = vadd.f32 %v5201, %v5332
  %v5369 = vadd.f32 %v5202, %v5337
  %v5370 = vadd.f32 %v5203, %v5342
  %v5371 = vadd.f32 %v5204, %v5347
  %v5372 = vadd.f32 %v5205, %v5352
  %v5373 = vadd.f32 %v5206, %v5357
  %v5374 = vadd.f32 %v5207, %v5362
  %5375 = vst.msk [vmem:[#allocation5] sm:$0xff] %vm1951, %v5365
  %5376 = vst.msk [vmem:[#allocation5 + $0x8] sm:$0xff] %vm1951, %v5366
  %5377 = vst.msk [vmem:[#allocation5 + $0x10] sm:$0xff] %vm1951, %v5367
  %5378 = vst.msk [vmem:[#allocation5 + $0x18] sm:$0xff] %vm1951, %v5368
  %5379 = vst.msk [vmem:[#allocation5 + $0x20] sm:$0xff] %vm1951, %v5369
  %5380 = vst.msk [vmem:[#allocation5 + $0x28] sm:$0xff] %vm1951, %v5370
  %5381 = vst.msk [vmem:[#allocation5 + $0x30] sm:$0xff] %vm1951, %v5371
  %5382 = vst.msk [vmem:[#allocation5 + $0x38] sm:$0xff] %vm1951, %v5372
  %5383 = vst.msk [vmem:[#allocation5 + $0x40] sm:$0xff] %vm1951, %v5373
  %5384 = vst.msk [vmem:[#allocation5 + $0x48] sm:$0xff] %vm1951, %v5374
  %v5385 = vld [vmem:[%s3856] sm:$0xff]
  %v5386 = vld [vmem:[%s3856 + $0x8] sm:$0xff]
  %v5387 = vld [vmem:[%s3856 + $0x10] sm:$0xff]
  %v5388 = vld [vmem:[%s3856 + $0x18] sm:$0xff]
  %v5389 = vld [vmem:[%s3856 + $0x20] sm:$0xff]
  %v5390 = vld [vmem:[%s3856 + $0x28] sm:$0xff]
  %v5391 = vld [vmem:[%s3856 + $0x30] sm:$0xff]
  %v5392 = vld [vmem:[%s3856 + $0x38] sm:$0xff]
  %v5393 = vld [vmem:[%s3856 + $0x40] sm:$0xff]
  %v5394 = vld [vmem:[%s3856 + $0x48] sm:$0xff]
  %v5395 = vld [vmem:[%s2] sm:$0xff]
  %v5396 = vld [vmem:[%s3856 + $0x1] sm:$0xff]
  %v5397 = vld [vmem:[%s3856 + $0x9] sm:$0xff]
  %v5398 = vld [vmem:[%s3856 + $0x11] sm:$0xff]
  %v5399 = vld [vmem:[%s3856 + $0x19] sm:$0xff]
  %v5400 = vld [vmem:[%s3856 + $0x21] sm:$0xff]
  %v5401 = vld [vmem:[%s3856 + $0x29] sm:$0xff]
  %v5402 = vld [vmem:[%s3856 + $0x31] sm:$0xff]
  %v5403 = vld [vmem:[%s3856 + $0x39] sm:$0xff]
  %v5404 = vld [vmem:[%s3856 + $0x41] sm:$0xff]
  %v5405 = vld [vmem:[%s3856 + $0x49] sm:$0xff]
  %v5406 = vld [vmem:[%s3914] sm:$0xff]
  %v5408 = vsel %vm1951, %v5396, 0
  %v5411 = vsel %vm1951, %v5397, 0
  %v5414 = vsel %vm1951, %v5398, 0
  %v5417 = vsel %vm1951, %v5399, 0
  %v5420 = vsel %vm1951, %v5400, 0
  %v5423 = vsel %vm1951, %v5401, 0
  %v5426 = vsel %vm1951, %v5402, 0
  %v5429 = vsel %vm1951, %v5403, 0
  %v5432 = vsel %vm1951, %v5404, 0
  %v5435 = vsel %vm1951, %v5405, 0
  %5437 = vmatprep.subr.mxu0 0.0
  %5438 = vmatpush1.msra.mxu0 %v5406
  %5439 = vmatprep.subr.mxu0 0.0
  %5440 = vmatpush1.msra.mxu0 0.0
  %5441 = vmatprep.subr.mxu0 0.0
  %5442 = vmatpush1.msra.mxu0 0.0
  %5443 = vmatprep.subr.mxu0 0.0
  %5444 = vmatpush1.msra.mxu0 0.0
  %5445 = vmatprep.subr.mxu0 0.0
  %5446 = vmatpush1.msra.mxu0 0.0
  %5447 = vmatprep.subr.mxu0 0.0
  %5448 = vmatpush1.msra.mxu0 0.0
  %5449 = vmatprep.subr.mxu0 0.0
  %5450 = vmatpush1.msra.mxu0 0.0
  %5451 = vmatprep.subr.mxu0 0.0
  %5452 = vmatpush1.msra.mxu0 0.0
  %5453 = vmatprep.subr.mxu0 0.0
  %5454 = vmatpush1.msra.mxu0 0.0
  %5455 = vmatprep.subr.mxu0 0.0
  %5456 = vmatpush1.msra.mxu0 0.0
  %5457 = vmatprep.subr.mxu0 0.0
  %5458 = vmatpush1.msra.mxu0 0.0
  %5459 = vmatprep.subr.mxu0 0.0
  %5460 = vmatpush1.msra.mxu0 0.0
  %5461 = vmatprep.subr.mxu0 0.0
  %5462 = vmatpush1.msra.mxu0 0.0
  %5463 = vmatprep.subr.mxu0 0.0
  %5464 = vmatpush1.msra.mxu0 0.0
  %5465 = vmatprep.subr.mxu0 0.0
  %5466 = vmatpush1.msra.mxu0 0.0
  %5467 = vmatprep.subr.mxu0 0.0
  %5468 = vmatpush1.msra.mxu0 0.0
  %5469 = vmatprep.subr.mxu0 0.0
  %5470 = vmatpush1.msra.mxu0 0.0
  %5471 = vmatprep.subr.mxu0 0.0
  %5472 = vmatpush1.msra.mxu0 0.0
  %5473 = vmatprep.subr.mxu0 0.0
  %5474 = vmatpush1.msra.mxu0 0.0
  %5475 = vmatprep.subr.mxu0 0.0
  %5476 = vmatpush1.msra.mxu0 0.0
  %5477 = vmatprep.subr.mxu0 0.0
  %5478 = vmatpush1.msra.mxu0 0.0
  %5479 = vmatprep.subr.mxu0 0.0
  %5480 = vmatpush1.msra.mxu0 0.0
  %5481 = vmatprep.subr.mxu0 0.0
  %5482 = vmatpush1.msra.mxu0 0.0
  %5483 = vmatprep.subr.mxu0 0.0
  %5484 = vmatpush1.msra.mxu0 0.0
  %5485 = vmatprep.subr.mxu0 0.0
  %5486 = vmatpush1.msra.mxu0 0.0
  %5487 = vmatprep.subr.mxu0 0.0
  %5488 = vmatpush1.msra.mxu0 0.0
  %5489 = vmatprep.subr.mxu0 0.0
  %5490 = vmatpush1.msra.mxu0 0.0
  %5491 = vmatprep.subr.mxu0 0.0
  %5492 = vmatpush1.msra.mxu0 0.0
  %5493 = vmatprep.subr.mxu0 0.0
  %5494 = vmatpush1.msra.mxu0 0.0
  %5495 = vmatprep.subr.mxu0 0.0
  %5496 = vmatpush1.msra.mxu0 0.0
  %5497 = vmatprep.subr.mxu0 0.0
  %5498 = vmatpush1.msra.mxu0 0.0
  %5499 = vmatprep.subr.mxu0 0.0
  %5500 = vmatpush1.msra.mxu0 0.0
  %5501 = vmatprep.mubr.f32.mxu0 0.0
  %5502 = vmatmul.mubr.f32.gmra.mrb[0].mxu0 %v5408
  %v5503 = vpop.f32.mrb[0].mxu0
  %v5504 = vadd.f32 0.0, %v5503
  %v5505 = vpop.f32.mrb[0].mxu0
  %5506 = vmatprep.mubr.f32.mxu0 0.0
  %5507 = vmatmul.mubr.f32.gmra.mrb[0].mxu0 %v5411
  %v5508 = vpop.f32.mrb[0].mxu0
  %v5509 = vadd.f32 0.0, %v5508
  %v5510 = vpop.f32.mrb[0].mxu0
  %5511 = vmatprep.mubr.f32.mxu0 0.0
  %5512 = vmatmul.mubr.f32.gmra.mrb[0].mxu0 %v5414
  %v5513 = vpop.f32.mrb[0].mxu0
  %v5514 = vadd.f32 0.0, %v5513
  %v5515 = vpop.f32.mrb[0].mxu0
  %5516 = vmatprep.mubr.f32.mxu0 0.0
  %5517 = vmatmul.mubr.f32.gmra.mrb[0].mxu0 %v5417
  %v5518 = vpop.f32.mrb[0].mxu0
  %v5519 = vadd.f32 0.0, %v5518
  %v5520 = vpop.f32.mrb[0].mxu0
  %5521 = vmatprep.mubr.f32.mxu0 0.0
  %5522 = vmatmul.mubr.f32.gmra.mrb[0].mxu0 %v5420
  %v5523 = vpop.f32.mrb[0].mxu0
  %v5524 = vadd.f32 0.0, %v5523
  %v5525 = vpop.f32.mrb[0].mxu0
  %5526 = vmatprep.mubr.f32.mxu0 0.0
  %5527 = vmatmul.mubr.f32.gmra.mrb[0].mxu0 %v5423
  %v5528 = vpop.f32.mrb[0].mxu0
  %v5529 = vadd.f32 0.0, %v5528
  %v5530 = vpop.f32.mrb[0].mxu0
  %5531 = vmatprep.mubr.f32.mxu0 0.0
  %5532 = vmatmul.mubr.f32.gmra.mrb[0].mxu0 %v5426
  %v5533 = vpop.f32.mrb[0].mxu0
  %v5534 = vadd.f32 0.0, %v5533
  %v5535 = vpop.f32.mrb[0].mxu0
  %5536 = vmatprep.mubr.f32.mxu0 0.0
  %5537 = vmatmul.mubr.f32.gmra.mrb[0].mxu0 %v5429
  %v5538 = vpop.f32.mrb[0].mxu0
  %v5539 = vadd.f32 0.0, %v5538
  %v5540 = vpop.f32.mrb[0].mxu0
  %5541 = vmatprep.mubr.f32.mxu0 0.0
  %5542 = vmatmul.mubr.f32.gmra.mrb[0].mxu0 %v5432
  %v5543 = vpop.f32.mrb[0].mxu0
  %v5544 = vadd.f32 0.0, %v5543
  %v5545 = vpop.f32.mrb[0].mxu0
  %5546 = vmatprep.mubr.f32.mxu0 0.0
  %5547 = vmatmul.mubr.f32.gmra.mrb[0].mxu0 %v5435
  %v5548 = vpop.f32.mrb[0].mxu0
  %v5549 = vadd.f32 0.0, %v5548
  %v5550 = vpop.f32.mrb[0].mxu0
  %5551 = vdwg.mxu0
  %v5553 = vsel %vm1951, %v5385, 0
  %v5556 = vsel %vm1951, %v5386, 0
  %v5559 = vsel %vm1951, %v5387, 0
  %v5562 = vsel %vm1951, %v5388, 0
  %v5565 = vsel %vm1951, %v5389, 0
  %v5568 = vsel %vm1951, %v5390, 0
  %v5571 = vsel %vm1951, %v5391, 0
  %v5574 = vsel %vm1951, %v5392, 0
  %v5577 = vsel %vm1951, %v5393, 0
  %v5580 = vsel %vm1951, %v5394, 0
  %5582 = vmatprep.subr.mxu0 0.0
  %5583 = vmatpush1.msra.mxu0 %v5395
  %5584 = vmatprep.subr.mxu0 0.0
  %5585 = vmatpush1.msra.mxu0 0.0
  %5586 = vmatprep.subr.mxu0 0.0
  %5587 = vmatpush1.msra.mxu0 0.0
  %5588 = vmatprep.subr.mxu0 0.0
  %5589 = vmatpush1.msra.mxu0 0.0
  %5590 = vmatprep.subr.mxu0 0.0
  %5591 = vmatpush1.msra.mxu0 0.0
  %5592 = vmatprep.subr.mxu0 0.0
  %5593 = vmatpush1.msra.mxu0 0.0
  %5594 = vmatprep.subr.mxu0 0.0
  %5595 = vmatpush1.msra.mxu0 0.0
  %5596 = vmatprep.subr.mxu0 0.0
  %5597 = vmatpush1.msra.mxu0 0.0
  %5598 = vmatprep.subr.mxu0 0.0
  %5599 = vmatpush1.msra.mxu0 0.0
  %5600 = vmatprep.subr.mxu0 0.0
  %5601 = vmatpush1.msra.mxu0 0.0
  %5602 = vmatprep.subr.mxu0 0.0
  %5603 = vmatpush1.msra.mxu0 0.0
  %5604 = vmatprep.subr.mxu0 0.0
  %5605 = vmatpush1.msra.mxu0 0.0
  %5606 = vmatprep.subr.mxu0 0.0
  %5607 = vmatpush1.msra.mxu0 0.0
  %5608 = vmatprep.subr.mxu0 0.0
  %5609 = vmatpush1.msra.mxu0 0.0
  %5610 = vmatprep.subr.mxu0 0.0
  %5611 = vmatpush1.msra.mxu0 0.0
  %5612 = vmatprep.subr.mxu0 0.0
  %5613 = vmatpush1.msra.mxu0 0.0
  %5614 = vmatprep.subr.mxu0 0.0
  %5615 = vmatpush1.msra.mxu0 0.0
  %5616 = vmatprep.subr.mxu0 0.0
  %5617 = vmatpush1.msra.mxu0 0.0
  %5618 = vmatprep.subr.mxu0 0.0
  %5619 = vmatpush1.msra.mxu0 0.0
  %5620 = vmatprep.subr.mxu0 0.0
  %5621 = vmatpush1.msra.mxu0 0.0
  %5622 = vmatprep.subr.mxu0 0.0
  %5623 = vmatpush1.msra.mxu0 0.0
  %5624 = vmatprep.subr.mxu0 0.0
  %5625 = vmatpush1.msra.mxu0 0.0
  %5626 = vmatprep.subr.mxu0 0.0
  %5627 = vmatpush1.msra.mxu0 0.0
  %5628 = vmatprep.subr.mxu0 0.0
  %5629 = vmatpush1.msra.mxu0 0.0
  %5630 = vmatprep.subr.mxu0 0.0
  %5631 = vmatpush1.msra.mxu0 0.0
  %5632 = vmatprep.subr.mxu0 0.0
  %5633 = vmatpush1.msra.mxu0 0.0
  %5634 = vmatprep.subr.mxu0 0.0
  %5635 = vmatpush1.msra.mxu0 0.0
  %5636 = vmatprep.subr.mxu0 0.0
  %5637 = vmatpush1.msra.mxu0 0.0
  %5638 = vmatprep.subr.mxu0 0.0
  %5639 = vmatpush1.msra.mxu0 0.0
  %5640 = vmatprep.subr.mxu0 0.0
  %5641 = vmatpush1.msra.mxu0 0.0
  %5642 = vmatprep.subr.mxu0 0.0
  %5643 = vmatpush1.msra.mxu0 0.0
  %5644 = vmatprep.subr.mxu0 0.0
  %5645 = vmatpush1.msra.mxu0 0.0
  %5646 = vmatprep.mubr.f32.mxu0 0.0
  %5647 = vmatmul.mubr.f32.gmra.mrb[0].mxu0 %v5553
  %v5648 = vpop.f32.mrb[0].mxu0
  %v5649 = vadd.f32 %v5504, %v5648
  %v5650 = vpop.f32.mrb[0].mxu0
  %5651 = vmatprep.mubr.f32.mxu0 0.0
  %5652 = vmatmul.mubr.f32.gmra.mrb[0].mxu0 %v5556
  %v5653 = vpop.f32.mrb[0].mxu0
  %v5654 = vadd.f32 %v5509, %v5653
  %v5655 = vpop.f32.mrb[0].mxu0
  %5656 = vmatprep.mubr.f32.mxu0 0.0
  %5657 = vmatmul.mubr.f32.gmra.mrb[0].mxu0 %v5559
  %v5658 = vpop.f32.mrb[0].mxu0
  %v5659 = vadd.f32 %v5514, %v5658
  %v5660 = vpop.f32.mrb[0].mxu0
  %5661 = vmatprep.mubr.f32.mxu0 0.0
  %5662 = vmatmul.mubr.f32.gmra.mrb[0].mxu0 %v5562
  %v5663 = vpop.f32.mrb[0].mxu0
  %v5664 = vadd.f32 %v5519, %v5663
  %v5665 = vpop.f32.mrb[0].mxu0
  %5666 = vmatprep.mubr.f32.mxu0 0.0
  %5667 = vmatmul.mubr.f32.gmra.mrb[0].mxu0 %v5565
  %v5668 = vpop.f32.mrb[0].mxu0
  %v5669 = vadd.f32 %v5524, %v5668
  %v5670 = vpop.f32.mrb[0].mxu0
  %5671 = vmatprep.mubr.f32.mxu0 0.0
  %5672 = vmatmul.mubr.f32.gmra.mrb[0].mxu0 %v5568
  %v5673 = vpop.f32.mrb[0].mxu0
  %v5674 = vadd.f32 %v5529, %v5673
  %v5675 = vpop.f32.mrb[0].mxu0
  %5676 = vmatprep.mubr.f32.mxu0 0.0
  %5677 = vmatmul.mubr.f32.gmra.mrb[0].mxu0 %v5571
  %v5678 = vpop.f32.mrb[0].mxu0
  %v5679 = vadd.f32 %v5534, %v5678
  %v5680 = vpop.f32.mrb[0].mxu0
  %5681 = vmatprep.mubr.f32.mxu0 0.0
  %5682 = vmatmul.mubr.f32.gmra.mrb[0].mxu0 %v5574
  %v5683 = vpop.f32.mrb[0].mxu0
  %v5684 = vadd.f32 %v5539, %v5683
  %v5685 = vpop.f32.mrb[0].mxu0
  %5686 = vmatprep.mubr.f32.mxu0 0.0
  %5687 = vmatmul.mubr.f32.gmra.mrb[0].mxu0 %v5577
  %v5688 = vpop.f32.mrb[0].mxu0
  %v5689 = vadd.f32 %v5544, %v5688
  %v5690 = vpop.f32.mrb[0].mxu0
  %5691 = vmatprep.mubr.f32.mxu0 0.0
  %5692 = vmatmul.mubr.f32.gmra.mrb[0].mxu0 %v5580
  %v5693 = vpop.f32.mrb[0].mxu0
  %v5694 = vadd.f32 %v5549, %v5693
  %v5695 = vpop.f32.mrb[0].mxu0
  %5696 = vdwg.mxu0
  %v5697 = vld [vmem:[%s3856 + $0x2] sm:$0xff]
  %v5698 = vld [vmem:[%s3856 + $0xa] sm:$0xff]
  %v5699 = vld [vmem:[%s3856 + $0x12] sm:$0xff]
  %v5700 = vld [vmem:[%s3856 + $0x1a] sm:$0xff]
  %v5701 = vld [vmem:[%s3856 + $0x22] sm:$0xff]
  %v5702 = vld [vmem:[%s3856 + $0x2a] sm:$0xff]
  %v5703 = vld [vmem:[%s3856 + $0x32] sm:$0xff]
  %v5704 = vld [vmem:[%s3856 + $0x3a] sm:$0xff]
  %v5705 = vld [vmem:[%s3856 + $0x42] sm:$0xff]
  %v5706 = vld [vmem:[%s3856 + $0x4a] sm:$0xff]
  %v5707 = vld [vmem:[%s4216] sm:$0xff]
  %v5709 = vsel %vm1951, %v5697, 0
  %v5712 = vsel %vm1951, %v5698, 0
  %v5715 = vsel %vm1951, %v5699, 0
  %v5718 = vsel %vm1951, %v5700, 0
  %v5721 = vsel %vm1951, %v5701, 0
  %v5724 = vsel %vm1951, %v5702, 0
  %v5727 = vsel %vm1951, %v5703, 0
  %v5730 = vsel %vm1951, %v5704, 0
  %v5733 = vsel %vm1951, %v5705, 0
  %v5736 = vsel %vm1951, %v5706, 0
  %5738 = vmatprep.subr.mxu0 0.0
  %5739 = vmatpush1.msra.mxu0 %v5707
  %5740 = vmatprep.subr.mxu0 0.0
  %5741 = vmatpush1.msra.mxu0 0.0
  %5742 = vmatprep.subr.mxu0 0.0
  %5743 = vmatpush1.msra.mxu0 0.0
  %5744 = vmatprep.subr.mxu0 0.0
  %5745 = vmatpush1.msra.mxu0 0.0
  %5746 = vmatprep.subr.mxu0 0.0
  %5747 = vmatpush1.msra.mxu0 0.0
  %5748 = vmatprep.subr.mxu0 0.0
  %5749 = vmatpush1.msra.mxu0 0.0
  %5750 = vmatprep.subr.mxu0 0.0
  %5751 = vmatpush1.msra.mxu0 0.0
  %5752 = vmatprep.subr.mxu0 0.0
  %5753 = vmatpush1.msra.mxu0 0.0
  %5754 = vmatprep.subr.mxu0 0.0
  %5755 = vmatpush1.msra.mxu0 0.0
  %5756 = vmatprep.subr.mxu0 0.0
  %5757 = vmatpush1.msra.mxu0 0.0
  %5758 = vmatprep.subr.mxu0 0.0
  %5759 = vmatpush1.msra.mxu0 0.0
  %5760 = vmatprep.subr.mxu0 0.0
  %5761 = vmatpush1.msra.mxu0 0.0
  %5762 = vmatprep.subr.mxu0 0.0
  %5763 = vmatpush1.msra.mxu0 0.0
  %5764 = vmatprep.subr.mxu0 0.0
  %5765 = vmatpush1.msra.mxu0 0.0
  %5766 = vmatprep.subr.mxu0 0.0
  %5767 = vmatpush1.msra.mxu0 0.0
  %5768 = vmatprep.subr.mxu0 0.0
  %5769 = vmatpush1.msra.mxu0 0.0
  %5770 = vmatprep.subr.mxu0 0.0
  %5771 = vmatpush1.msra.mxu0 0.0
  %5772 = vmatprep.subr.mxu0 0.0
  %5773 = vmatpush1.msra.mxu0 0.0
  %5774 = vmatprep.subr.mxu0 0.0
  %5775 = vmatpush1.msra.mxu0 0.0
  %5776 = vmatprep.subr.mxu0 0.0
  %5777 = vmatpush1.msra.mxu0 0.0
  %5778 = vmatprep.subr.mxu0 0.0
  %5779 = vmatpush1.msra.mxu0 0.0
  %5780 = vmatprep.subr.mxu0 0.0
  %5781 = vmatpush1.msra.mxu0 0.0
  %5782 = vmatprep.subr.mxu0 0.0
  %5783 = vmatpush1.msra.mxu0 0.0
  %5784 = vmatprep.subr.mxu0 0.0
  %5785 = vmatpush1.msra.mxu0 0.0
  %5786 = vmatprep.subr.mxu0 0.0
  %5787 = vmatpush1.msra.mxu0 0.0
  %5788 = vmatprep.subr.mxu0 0.0
  %5789 = vmatpush1.msra.mxu0 0.0
  %5790 = vmatprep.subr.mxu0 0.0
  %5791 = vmatpush1.msra.mxu0 0.0
  %5792 = vmatprep.subr.mxu0 0.0
  %5793 = vmatpush1.msra.mxu0 0.0
  %5794 = vmatprep.subr.mxu0 0.0
  %5795 = vmatpush1.msra.mxu0 0.0
  %5796 = vmatprep.subr.mxu0 0.0
  %5797 = vmatpush1.msra.mxu0 0.0
  %5798 = vmatprep.subr.mxu0 0.0
  %5799 = vmatpush1.msra.mxu0 0.0
  %5800 = vmatprep.subr.mxu0 0.0
  %5801 = vmatpush1.msra.mxu0 0.0
  %5802 = vmatprep.mubr.f32.mxu0 0.0
  %5803 = vmatmul.mubr.f32.gmra.mrb[0].mxu0 %v5709
  %v5804 = vpop.f32.mrb[0].mxu0
  %v5805 = vadd.f32 0.0, %v5804
  %v5806 = vpop.f32.mrb[0].mxu0
  %5807 = vmatprep.mubr.f32.mxu0 0.0
  %5808 = vmatmul.mubr.f32.gmra.mrb[0].mxu0 %v5712
  %v5809 = vpop.f32.mrb[0].mxu0
  %v5810 = vadd.f32 0.0, %v5809
  %v5811 = vpop.f32.mrb[0].mxu0
  %5812 = vmatprep.mubr.f32.mxu0 0.0
  %5813 = vmatmul.mubr.f32.gmra.mrb[0].mxu0 %v5715
  %v5814 = vpop.f32.mrb[0].mxu0
  %v5815 = vadd.f32 0.0, %v5814
  %v5816 = vpop.f32.mrb[0].mxu0
  %5817 = vmatprep.mubr.f32.mxu0 0.0
  %5818 = vmatmul.mubr.f32.gmra.mrb[0].mxu0 %v5718
  %v5819 = vpop.f32.mrb[0].mxu0
  %v5820 = vadd.f32 0.0, %v5819
  %v5821 = vpop.f32.mrb[0].mxu0
  %5822 = vmatprep.mubr.f32.mxu0 0.0
  %5823 = vmatmul.mubr.f32.gmra.mrb[0].mxu0 %v5721
  %v5824 = vpop.f32.mrb[0].mxu0
  %v5825 = vadd.f32 0.0, %v5824
  %v5826 = vpop.f32.mrb[0].mxu0
  %5827 = vmatprep.mubr.f32.mxu0 0.0
  %5828 = vmatmul.mubr.f32.gmra.mrb[0].mxu0 %v5724
  %v5829 = vpop.f32.mrb[0].mxu0
  %v5830 = vadd.f32 0.0, %v5829
  %v5831 = vpop.f32.mrb[0].mxu0
  %5832 = vmatprep.mubr.f32.mxu0 0.0
  %5833 = vmatmul.mubr.f32.gmra.mrb[0].mxu0 %v5727
  %v5834 = vpop.f32.mrb[0].mxu0
  %v5835 = vadd.f32 0.0, %v5834
  %v5836 = vpop.f32.mrb[0].mxu0
  %5837 = vmatprep.mubr.f32.mxu0 0.0
  %5838 = vmatmul.mubr.f32.gmra.mrb[0].mxu0 %v5730
  %v5839 = vpop.f32.mrb[0].mxu0
  %v5840 = vadd.f32 0.0, %v5839
  %v5841 = vpop.f32.mrb[0].mxu0
  %5842 = vmatprep.mubr.f32.mxu0 0.0
  %5843 = vmatmul.mubr.f32.gmra.mrb[0].mxu0 %v5733
  %v5844 = vpop.f32.mrb[0].mxu0
  %v5845 = vadd.f32 0.0, %v5844
  %v5846 = vpop.f32.mrb[0].mxu0
  %5847 = vmatprep.mubr.f32.mxu0 0.0
  %5848 = vmatmul.mubr.f32.gmra.mrb[0].mxu0 %v5736
  %v5849 = vpop.f32.mrb[0].mxu0
  %v5850 = vadd.f32 0.0, %v5849
  %v5851 = vpop.f32.mrb[0].mxu0
  %5852 = vdwg.mxu0
  %v5853 = vadd.f32 %v5649, %v5805
  %v5854 = vadd.f32 %v5654, %v5810
  %v5855 = vadd.f32 %v5659, %v5815
  %v5856 = vadd.f32 %v5664, %v5820
  %v5857 = vadd.f32 %v5669, %v5825
  %v5858 = vadd.f32 %v5674, %v5830
  %v5859 = vadd.f32 %v5679, %v5835
  %v5860 = vadd.f32 %v5684, %v5840
  %v5861 = vadd.f32 %v5689, %v5845
  %v5862 = vadd.f32 %v5694, %v5850
  %v5863 = vld [vmem:[%s3856 + $0xa] sm:$0xff]
  %v5864 = vld [vmem:[%s3856 + $0x12] sm:$0xff]
  %v5865 = vld [vmem:[%s3856 + $0x1a] sm:$0xff]
  %v5866 = vld [vmem:[%s3856 + $0x22] sm:$0xff]
  %v5867 = vld [vmem:[%s3856 + $0x2a] sm:$0xff]
  %v5868 = vld [vmem:[%s3856 + $0x32] sm:$0xff]
  %v5869 = vld [vmem:[%s3856 + $0x3a] sm:$0xff]
  %v5870 = vld [vmem:[%s3856 + $0x42] sm:$0xff]
  %v5871 = vld [vmem:[%s3856 + $0x4a] sm:$0xff]
  %v5872 = vld [vmem:[%s3856 + $0x52] sm:$0xff]
  %v5873 = vld [vmem:[%s4383] sm:$0xff]
  %v5875 = vsel %vm1951, %v5863, 0
  %v5878 = vsel %vm1951, %v5864, 0
  %v5881 = vsel %vm1951, %v5865, 0
  %v5884 = vsel %vm1951, %v5866, 0
  %v5887 = vsel %vm1951, %v5867, 0
  %v5890 = vsel %vm1951, %v5868, 0
  %v5893 = vsel %vm1951, %v5869, 0
  %v5896 = vsel %vm1951, %v5870, 0
  %v5899 = vsel %vm1951, %v5871, 0
  %v5902 = vsel %vm1951, %v5872, 0
  %5904 = vmatprep.subr.mxu0 0.0
  %5905 = vmatpush1.msra.mxu0 %v5873
  %5906 = vmatprep.subr.mxu0 0.0
  %5907 = vmatpush1.msra.mxu0 0.0
  %5908 = vmatprep.subr.mxu0 0.0
  %5909 = vmatpush1.msra.mxu0 0.0
  %5910 = vmatprep.subr.mxu0 0.0
  %5911 = vmatpush1.msra.mxu0 0.0
  %5912 = vmatprep.subr.mxu0 0.0
  %5913 = vmatpush1.msra.mxu0 0.0
  %5914 = vmatprep.subr.mxu0 0.0
  %5915 = vmatpush1.msra.mxu0 0.0
  %5916 = vmatprep.subr.mxu0 0.0
  %5917 = vmatpush1.msra.mxu0 0.0
  %5918 = vmatprep.subr.mxu0 0.0
  %5919 = vmatpush1.msra.mxu0 0.0
  %5920 = vmatprep.subr.mxu0 0.0
  %5921 = vmatpush1.msra.mxu0 0.0
  %5922 = vmatprep.subr.mxu0 0.0
  %5923 = vmatpush1.msra.mxu0 0.0
  %5924 = vmatprep.subr.mxu0 0.0
  %5925 = vmatpush1.msra.mxu0 0.0
  %5926 = vmatprep.subr.mxu0 0.0
  %5927 = vmatpush1.msra.mxu0 0.0
  %5928 = vmatprep.subr.mxu0 0.0
  %5929 = vmatpush1.msra.mxu0 0.0
  %5930 = vmatprep.subr.mxu0 0.0
  %5931 = vmatpush1.msra.mxu0 0.0
  %5932 = vmatprep.subr.mxu0 0.0
  %5933 = vmatpush1.msra.mxu0 0.0
  %5934 = vmatprep.subr.mxu0 0.0
  %5935 = vmatpush1.msra.mxu0 0.0
  %5936 = vmatprep.subr.mxu0 0.0
  %5937 = vmatpush1.msra.mxu0 0.0
  %5938 = vmatprep.subr.mxu0 0.0
  %5939 = vmatpush1.msra.mxu0 0.0
  %5940 = vmatprep.subr.mxu0 0.0
  %5941 = vmatpush1.msra.mxu0 0.0
  %5942 = vmatprep.subr.mxu0 0.0
  %5943 = vmatpush1.msra.mxu0 0.0
  %5944 = vmatprep.subr.mxu0 0.0
  %5945 = vmatpush1.msra.mxu0 0.0
  %5946 = vmatprep.subr.mxu0 0.0
  %5947 = vmatpush1.msra.mxu0 0.0
  %5948 = vmatprep.subr.mxu0 0.0
  %5949 = vmatpush1.msra.mxu0 0.0
  %5950 = vmatprep.subr.mxu0 0.0
  %5951 = vmatpush1.msra.mxu0 0.0
  %5952 = vmatprep.subr.mxu0 0.0
  %5953 = vmatpush1.msra.mxu0 0.0
  %5954 = vmatprep.subr.mxu0 0.0
  %5955 = vmatpush1.msra.mxu0 0.0
  %5956 = vmatprep.subr.mxu0 0.0
  %5957 = vmatpush1.msra.mxu0 0.0
  %5958 = vmatprep.subr.mxu0 0.0
  %5959 = vmatpush1.msra.mxu0 0.0
  %5960 = vmatprep.subr.mxu0 0.0
  %5961 = vmatpush1.msra.mxu0 0.0
  %5962 = vmatprep.subr.mxu0 0.0
  %5963 = vmatpush1.msra.mxu0 0.0
  %5964 = vmatprep.subr.mxu0 0.0
  %5965 = vmatpush1.msra.mxu0 0.0
  %5966 = vmatprep.subr.mxu0 0.0
  %5967 = vmatpush1.msra.mxu0 0.0
  %5968 = vmatprep.mubr.f32.mxu0 0.0
  %5969 = vmatmul.mubr.f32.gmra.mrb[0].mxu0 %v5875
  %v5970 = vpop.f32.mrb[0].mxu0
  %v5971 = vadd.f32 0.0, %v5970
  %v5972 = vpop.f32.mrb[0].mxu0
  %5973 = vmatprep.mubr.f32.mxu0 0.0
  %5974 = vmatmul.mubr.f32.gmra.mrb[0].mxu0 %v5878
  %v5975 = vpop.f32.mrb[0].mxu0
  %v5976 = vadd.f32 0.0, %v5975
  %v5977 = vpop.f32.mrb[0].mxu0
  %5978 = vmatprep.mubr.f32.mxu0 0.0
  %5979 = vmatmul.mubr.f32.gmra.mrb[0].mxu0 %v5881
  %v5980 = vpop.f32.mrb[0].mxu0
  %v5981 = vadd.f32 0.0, %v5980
  %v5982 = vpop.f32.mrb[0].mxu0
  %5983 = vmatprep.mubr.f32.mxu0 0.0
  %5984 = vmatmul.mubr.f32.gmra.mrb[0].mxu0 %v5884
  %v5985 = vpop.f32.mrb[0].mxu0
  %v5986 = vadd.f32 0.0, %v5985
  %v5987 = vpop.f32.mrb[0].mxu0
  %5988 = vmatprep.mubr.f32.mxu0 0.0
  %5989 = vmatmul.mubr.f32.gmra.mrb[0].mxu0 %v5887
  %v5990 = vpop.f32.mrb[0].mxu0
  %v5991 = vadd.f32 0.0, %v5990
  %v5992 = vpop.f32.mrb[0].mxu0
  %5993 = vmatprep.mubr.f32.mxu0 0.0
  %5994 = vmatmul.mubr.f32.gmra.mrb[0].mxu0 %v5890
  %v5995 = vpop.f32.mrb[0].mxu0
  %v5996 = vadd.f32 0.0, %v5995
  %v5997 = vpop.f32.mrb[0].mxu0
  %5998 = vmatprep.mubr.f32.mxu0 0.0
  %5999 = vmatmul.mubr.f32.gmra.mrb[0].mxu0 %v5893
  %v6000 = vpop.f32.mrb[0].mxu0
  %v6001 = vadd.f32 0.0, %v6000
  %v6002 = vpop.f32.mrb[0].mxu0
  %6003 = vmatprep.mubr.f32.mxu0 0.0
  %6004 = vmatmul.mubr.f32.gmra.mrb[0].mxu0 %v5896
  %v6005 = vpop.f32.mrb[0].mxu0
  %v6006 = vadd.f32 0.0, %v6005
  %v6007 = vpop.f32.mrb[0].mxu0
  %6008 = vmatprep.mubr.f32.mxu0 0.0
  %6009 = vmatmul.mubr.f32.gmra.mrb[0].mxu0 %v5899
  %v6010 = vpop.f32.mrb[0].mxu0
  %v6011 = vadd.f32 0.0, %v6010
  %v6012 = vpop.f32.mrb[0].mxu0
  %6013 = vmatprep.mubr.f32.mxu0 0.0
  %6014 = vmatmul.mubr.f32.gmra.mrb[0].mxu0 %v5902
  %v6015 = vpop.f32.mrb[0].mxu0
  %v6016 = vadd.f32 0.0, %v6015
  %v6017 = vpop.f32.mrb[0].mxu0
  %6018 = vdwg.mxu0
  %v6019 = vadd.f32 %v5853, %v5971
  %v6020 = vadd.f32 %v5854, %v5976
  %v6021 = vadd.f32 %v5855, %v5981
  %v6022 = vadd.f32 %v5856, %v5986
  %v6023 = vadd.f32 %v5857, %v5991
  %v6024 = vadd.f32 %v5858, %v5996
  %v6025 = vadd.f32 %v5859, %v6001
  %v6026 = vadd.f32 %v5860, %v6006
  %v6027 = vadd.f32 %v5861, %v6011
  %v6028 = vadd.f32 %v5862, %v6016
  %v6029 = vld [vmem:[%s3856 + $0xb] sm:$0xff]
  %v6030 = vld [vmem:[%s3856 + $0x13] sm:$0xff]
  %v6031 = vld [vmem:[%s3856 + $0x1b] sm:$0xff]
  %v6032 = vld [vmem:[%s3856 + $0x23] sm:$0xff]
  %v6033 = vld [vmem:[%s3856 + $0x2b] sm:$0xff]
  %v6034 = vld [vmem:[%s3856 + $0x33] sm:$0xff]
  %v6035 = vld [vmem:[%s3856 + $0x3b] sm:$0xff]
  %v6036 = vld [vmem:[%s3856 + $0x43] sm:$0xff]
  %v6037 = vld [vmem:[%s3856 + $0x4b] sm:$0xff]
  %v6038 = vld [vmem:[%s3856 + $0x53] sm:$0xff]
  %v6039 = vld [vmem:[%s4550] sm:$0xff]
  %v6041 = vsel %vm1951, %v6029, 0
  %v6044 = vsel %vm1951, %v6030, 0
  %v6047 = vsel %vm1951, %v6031, 0
  %v6050 = vsel %vm1951, %v6032, 0
  %v6053 = vsel %vm1951, %v6033, 0
  %v6056 = vsel %vm1951, %v6034, 0
  %v6059 = vsel %vm1951, %v6035, 0
  %v6062 = vsel %vm1951, %v6036, 0
  %v6065 = vsel %vm1951, %v6037, 0
  %v6068 = vsel %vm1951, %v6038, 0
  %6070 = vmatprep.subr.mxu0 0.0
  %6071 = vmatpush1.msra.mxu0 %v6039
  %6072 = vmatprep.subr.mxu0 0.0
  %6073 = vmatpush1.msra.mxu0 0.0
  %6074 = vmatprep.subr.mxu0 0.0
  %6075 = vmatpush1.msra.mxu0 0.0
  %6076 = vmatprep.subr.mxu0 0.0
  %6077 = vmatpush1.msra.mxu0 0.0
  %6078 = vmatprep.subr.mxu0 0.0
  %6079 = vmatpush1.msra.mxu0 0.0
  %6080 = vmatprep.subr.mxu0 0.0
  %6081 = vmatpush1.msra.mxu0 0.0
  %6082 = vmatprep.subr.mxu0 0.0
  %6083 = vmatpush1.msra.mxu0 0.0
  %6084 = vmatprep.subr.mxu0 0.0
  %6085 = vmatpush1.msra.mxu0 0.0
  %6086 = vmatprep.subr.mxu0 0.0
  %6087 = vmatpush1.msra.mxu0 0.0
  %6088 = vmatprep.subr.mxu0 0.0
  %6089 = vmatpush1.msra.mxu0 0.0
  %6090 = vmatprep.subr.mxu0 0.0
  %6091 = vmatpush1.msra.mxu0 0.0
  %6092 = vmatprep.subr.mxu0 0.0
  %6093 = vmatpush1.msra.mxu0 0.0
  %6094 = vmatprep.subr.mxu0 0.0
  %6095 = vmatpush1.msra.mxu0 0.0
  %6096 = vmatprep.subr.mxu0 0.0
  %6097 = vmatpush1.msra.mxu0 0.0
  %6098 = vmatprep.subr.mxu0 0.0
  %6099 = vmatpush1.msra.mxu0 0.0
  %6100 = vmatprep.subr.mxu0 0.0
  %6101 = vmatpush1.msra.mxu0 0.0
  %6102 = vmatprep.subr.mxu0 0.0
  %6103 = vmatpush1.msra.mxu0 0.0
  %6104 = vmatprep.subr.mxu0 0.0
  %6105 = vmatpush1.msra.mxu0 0.0
  %6106 = vmatprep.subr.mxu0 0.0
  %6107 = vmatpush1.msra.mxu0 0.0
  %6108 = vmatprep.subr.mxu0 0.0
  %6109 = vmatpush1.msra.mxu0 0.0
  %6110 = vmatprep.subr.mxu0 0.0
  %6111 = vmatpush1.msra.mxu0 0.0
  %6112 = vmatprep.subr.mxu0 0.0
  %6113 = vmatpush1.msra.mxu0 0.0
  %6114 = vmatprep.subr.mxu0 0.0
  %6115 = vmatpush1.msra.mxu0 0.0
  %6116 = vmatprep.subr.mxu0 0.0
  %6117 = vmatpush1.msra.mxu0 0.0
  %6118 = vmatprep.subr.mxu0 0.0
  %6119 = vmatpush1.msra.mxu0 0.0
  %6120 = vmatprep.subr.mxu0 0.0
  %6121 = vmatpush1.msra.mxu0 0.0
  %6122 = vmatprep.subr.mxu0 0.0
  %6123 = vmatpush1.msra.mxu0 0.0
  %6124 = vmatprep.subr.mxu0 0.0
  %6125 = vmatpush1.msra.mxu0 0.0
  %6126 = vmatprep.subr.mxu0 0.0
  %6127 = vmatpush1.msra.mxu0 0.0
  %6128 = vmatprep.subr.mxu0 0.0
  %6129 = vmatpush1.msra.mxu0 0.0
  %6130 = vmatprep.subr.mxu0 0.0
  %6131 = vmatpush1.msra.mxu0 0.0
  %6132 = vmatprep.subr.mxu0 0.0
  %6133 = vmatpush1.msra.mxu0 0.0
  %6134 = vmatprep.mubr.f32.mxu0 0.0
  %6135 = vmatmul.mubr.f32.gmra.mrb[0].mxu0 %v6041
  %v6136 = vpop.f32.mrb[0].mxu0
  %v6137 = vadd.f32 0.0, %v6136
  %v6138 = vpop.f32.mrb[0].mxu0
  %6139 = vmatprep.mubr.f32.mxu0 0.0
  %6140 = vmatmul.mubr.f32.gmra.mrb[0].mxu0 %v6044
  %v6141 = vpop.f32.mrb[0].mxu0
  %v6142 = vadd.f32 0.0, %v6141
  %v6143 = vpop.f32.mrb[0].mxu0
  %6144 = vmatprep.mubr.f32.mxu0 0.0
  %6145 = vmatmul.mubr.f32.gmra.mrb[0].mxu0 %v6047
  %v6146 = vpop.f32.mrb[0].mxu0
  %v6147 = vadd.f32 0.0, %v6146
  %v6148 = vpop.f32.mrb[0].mxu0
  %6149 = vmatprep.mubr.f32.mxu0 0.0
  %6150 = vmatmul.mubr.f32.gmra.mrb[0].mxu0 %v6050
  %v6151 = vpop.f32.mrb[0].mxu0
  %v6152 = vadd.f32 0.0, %v6151
  %v6153 = vpop.f32.mrb[0].mxu0
  %6154 = vmatprep.mubr.f32.mxu0 0.0
  %6155 = vmatmul.mubr.f32.gmra.mrb[0].mxu0 %v6053
  %v6156 = vpop.f32.mrb[0].mxu0
  %v6157 = vadd.f32 0.0, %v6156
  %v6158 = vpop.f32.mrb[0].mxu0
  %6159 = vmatprep.mubr.f32.mxu0 0.0
  %6160 = vmatmul.mubr.f32.gmra.mrb[0].mxu0 %v6056
  %v6161 = vpop.f32.mrb[0].mxu0
  %v6162 = vadd.f32 0.0, %v6161
  %v6163 = vpop.f32.mrb[0].mxu0
  %6164 = vmatprep.mubr.f32.mxu0 0.0
  %6165 = vmatmul.mubr.f32.gmra.mrb[0].mxu0 %v6059
  %v6166 = vpop.f32.mrb[0].mxu0
  %v6167 = vadd.f32 0.0, %v6166
  %v6168 = vpop.f32.mrb[0].mxu0
  %6169 = vmatprep.mubr.f32.mxu0 0.0
  %6170 = vmatmul.mubr.f32.gmra.mrb[0].mxu0 %v6062
  %v6171 = vpop.f32.mrb[0].mxu0
  %v6172 = vadd.f32 0.0, %v6171
  %v6173 = vpop.f32.mrb[0].mxu0
  %6174 = vmatprep.mubr.f32.mxu0 0.0
  %6175 = vmatmul.mubr.f32.gmra.mrb[0].mxu0 %v6065
  %v6176 = vpop.f32.mrb[0].mxu0
  %v6177 = vadd.f32 0.0, %v6176
  %v6178 = vpop.f32.mrb[0].mxu0
  %6179 = vmatprep.mubr.f32.mxu0 0.0
  %6180 = vmatmul.mubr.f32.gmra.mrb[0].mxu0 %v6068
  %v6181 = vpop.f32.mrb[0].mxu0
  %v6182 = vadd.f32 0.0, %v6181
  %v6183 = vpop.f32.mrb[0].mxu0
  %6184 = vdwg.mxu0
  %v6185 = vadd.f32 %v6019, %v6137
  %v6186 = vadd.f32 %v6020, %v6142
  %v6187 = vadd.f32 %v6021, %v6147
  %v6188 = vadd.f32 %v6022, %v6152
  %v6189 = vadd.f32 %v6023, %v6157
  %v6190 = vadd.f32 %v6024, %v6162
  %v6191 = vadd.f32 %v6025, %v6167
  %v6192 = vadd.f32 %v6026, %v6172
  %v6193 = vadd.f32 %v6027, %v6177
  %v6194 = vadd.f32 %v6028, %v6182
  %v6195 = vld [vmem:[%s3856 + $0xc] sm:$0xff]
  %v6196 = vld [vmem:[%s3856 + $0x14] sm:$0xff]
  %v6197 = vld [vmem:[%s3856 + $0x1c] sm:$0xff]
  %v6198 = vld [vmem:[%s3856 + $0x24] sm:$0xff]
  %v6199 = vld [vmem:[%s3856 + $0x2c] sm:$0xff]
  %v6200 = vld [vmem:[%s3856 + $0x34] sm:$0xff]
  %v6201 = vld [vmem:[%s3856 + $0x3c] sm:$0xff]
  %v6202 = vld [vmem:[%s3856 + $0x44] sm:$0xff]
  %v6203 = vld [vmem:[%s3856 + $0x4c] sm:$0xff]
  %v6204 = vld [vmem:[%s3856 + $0x54] sm:$0xff]
  %v6205 = vld [vmem:[%s4717] sm:$0xff]
  %v6207 = vsel %vm1951, %v6195, 0
  %v6210 = vsel %vm1951, %v6196, 0
  %v6213 = vsel %vm1951, %v6197, 0
  %v6216 = vsel %vm1951, %v6198, 0
  %v6219 = vsel %vm1951, %v6199, 0
  %v6222 = vsel %vm1951, %v6200, 0
  %v6225 = vsel %vm1951, %v6201, 0
  %v6228 = vsel %vm1951, %v6202, 0
  %v6231 = vsel %vm1951, %v6203, 0
  %v6234 = vsel %vm1951, %v6204, 0
  %6236 = vmatprep.subr.mxu0 0.0
  %6237 = vmatpush1.msra.mxu0 %v6205
  %6238 = vmatprep.subr.mxu0 0.0
  %6239 = vmatpush1.msra.mxu0 0.0
  %6240 = vmatprep.subr.mxu0 0.0
  %6241 = vmatpush1.msra.mxu0 0.0
  %6242 = vmatprep.subr.mxu0 0.0
  %6243 = vmatpush1.msra.mxu0 0.0
  %6244 = vmatprep.subr.mxu0 0.0
  %6245 = vmatpush1.msra.mxu0 0.0
  %6246 = vmatprep.subr.mxu0 0.0
  %6247 = vmatpush1.msra.mxu0 0.0
  %6248 = vmatprep.subr.mxu0 0.0
  %6249 = vmatpush1.msra.mxu0 0.0
  %6250 = vmatprep.subr.mxu0 0.0
  %6251 = vmatpush1.msra.mxu0 0.0
  %6252 = vmatprep.subr.mxu0 0.0
  %6253 = vmatpush1.msra.mxu0 0.0
  %6254 = vmatprep.subr.mxu0 0.0
  %6255 = vmatpush1.msra.mxu0 0.0
  %6256 = vmatprep.subr.mxu0 0.0
  %6257 = vmatpush1.msra.mxu0 0.0
  %6258 = vmatprep.subr.mxu0 0.0
  %6259 = vmatpush1.msra.mxu0 0.0
  %6260 = vmatprep.subr.mxu0 0.0
  %6261 = vmatpush1.msra.mxu0 0.0
  %6262 = vmatprep.subr.mxu0 0.0
  %6263 = vmatpush1.msra.mxu0 0.0
  %6264 = vmatprep.subr.mxu0 0.0
  %6265 = vmatpush1.msra.mxu0 0.0
  %6266 = vmatprep.subr.mxu0 0.0
  %6267 = vmatpush1.msra.mxu0 0.0
  %6268 = vmatprep.subr.mxu0 0.0
  %6269 = vmatpush1.msra.mxu0 0.0
  %6270 = vmatprep.subr.mxu0 0.0
  %6271 = vmatpush1.msra.mxu0 0.0
  %6272 = vmatprep.subr.mxu0 0.0
  %6273 = vmatpush1.msra.mxu0 0.0
  %6274 = vmatprep.subr.mxu0 0.0
  %6275 = vmatpush1.msra.mxu0 0.0
  %6276 = vmatprep.subr.mxu0 0.0
  %6277 = vmatpush1.msra.mxu0 0.0
  %6278 = vmatprep.subr.mxu0 0.0
  %6279 = vmatpush1.msra.mxu0 0.0
  %6280 = vmatprep.subr.mxu0 0.0
  %6281 = vmatpush1.msra.mxu0 0.0
  %6282 = vmatprep.subr.mxu0 0.0
  %6283 = vmatpush1.msra.mxu0 0.0
  %6284 = vmatprep.subr.mxu0 0.0
  %6285 = vmatpush1.msra.mxu0 0.0
  %6286 = vmatprep.subr.mxu0 0.0
  %6287 = vmatpush1.msra.mxu0 0.0
  %6288 = vmatprep.subr.mxu0 0.0
  %6289 = vmatpush1.msra.mxu0 0.0
  %6290 = vmatprep.subr.mxu0 0.0
  %6291 = vmatpush1.msra.mxu0 0.0
  %6292 = vmatprep.subr.mxu0 0.0
  %6293 = vmatpush1.msra.mxu0 0.0
  %6294 = vmatprep.subr.mxu0 0.0
  %6295 = vmatpush1.msra.mxu0 0.0
  %6296 = vmatprep.subr.mxu0 0.0
  %6297 = vmatpush1.msra.mxu0 0.0
  %6298 = vmatprep.subr.mxu0 0.0
  %6299 = vmatpush1.msra.mxu0 0.0
  %6300 = vmatprep.mubr.f32.mxu0 0.0
  %6301 = vmatmul.mubr.f32.gmra.mrb[0].mxu0 %v6207
  %v6302 = vpop.f32.mrb[0].mxu0
  %v6303 = vadd.f32 0.0, %v6302
  %v6304 = vpop.f32.mrb[0].mxu0
  %6305 = vmatprep.mubr.f32.mxu0 0.0
  %6306 = vmatmul.mubr.f32.gmra.mrb[0].mxu0 %v6210
  %v6307 = vpop.f32.mrb[0].mxu0
  %v6308 = vadd.f32 0.0, %v6307
  %v6309 = vpop.f32.mrb[0].mxu0
  %6310 = vmatprep.mubr.f32.mxu0 0.0
  %6311 = vmatmul.mubr.f32.gmra.mrb[0].mxu0 %v6213
  %v6312 = vpop.f32.mrb[0].mxu0
  %v6313 = vadd.f32 0.0, %v6312
  %v6314 = vpop.f32.mrb[0].mxu0
  %6315 = vmatprep.mubr.f32.mxu0 0.0
  %6316 = vmatmul.mubr.f32.gmra.mrb[0].mxu0 %v6216
  %v6317 = vpop.f32.mrb[0].mxu0
  %v6318 = vadd.f32 0.0, %v6317
  %v6319 = vpop.f32.mrb[0].mxu0
  %6320 = vmatprep.mubr.f32.mxu0 0.0
  %6321 = vmatmul.mubr.f32.gmra.mrb[0].mxu0 %v6219
  %v6322 = vpop.f32.mrb[0].mxu0
  %v6323 = vadd.f32 0.0, %v6322
  %v6324 = vpop.f32.mrb[0].mxu0
  %6325 = vmatprep.mubr.f32.mxu0 0.0
  %6326 = vmatmul.mubr.f32.gmra.mrb[0].mxu0 %v6222
  %v6327 = vpop.f32.mrb[0].mxu0
  %v6328 = vadd.f32 0.0, %v6327
  %v6329 = vpop.f32.mrb[0].mxu0
  %6330 = vmatprep.mubr.f32.mxu0 0.0
  %6331 = vmatmul.mubr.f32.gmra.mrb[0].mxu0 %v6225
  %v6332 = vpop.f32.mrb[0].mxu0
  %v6333 = vadd.f32 0.0, %v6332
  %v6334 = vpop.f32.mrb[0].mxu0
  %6335 = vmatprep.mubr.f32.mxu0 0.0
  %6336 = vmatmul.mubr.f32.gmra.mrb[0].mxu0 %v6228
  %v6337 = vpop.f32.mrb[0].mxu0
  %v6338 = vadd.f32 0.0, %v6337
  %v6339 = vpop.f32.mrb[0].mxu0
  %6340 = vmatprep.mubr.f32.mxu0 0.0
  %6341 = vmatmul.mubr.f32.gmra.mrb[0].mxu0 %v6231
  %v6342 = vpop.f32.mrb[0].mxu0
  %v6343 = vadd.f32 0.0, %v6342
  %v6344 = vpop.f32.mrb[0].mxu0
  %6345 = vmatprep.mubr.f32.mxu0 0.0
  %6346 = vmatmul.mubr.f32.gmra.mrb[0].mxu0 %v6234
  %v6347 = vpop.f32.mrb[0].mxu0
  %v6348 = vadd.f32 0.0, %v6347
  %v6349 = vpop.f32.mrb[0].mxu0
  %6350 = vdwg.mxu0
  %v6351 = vadd.f32 %v6185, %v6303
  %v6352 = vadd.f32 %v6186, %v6308
  %v6353 = vadd.f32 %v6187, %v6313
  %v6354 = vadd.f32 %v6188, %v6318
  %v6355 = vadd.f32 %v6189, %v6323
  %v6356 = vadd.f32 %v6190, %v6328
  %v6357 = vadd.f32 %v6191, %v6333
  %v6358 = vadd.f32 %v6192, %v6338
  %v6359 = vadd.f32 %v6193, %v6343
  %v6360 = vadd.f32 %v6194, %v6348
  %v6361 = vld [vmem:[%s3856 + $0x14] sm:$0xff]
  %v6362 = vld [vmem:[%s3856 + $0x1c] sm:$0xff]
  %v6363 = vld [vmem:[%s3856 + $0x24] sm:$0xff]
  %v6364 = vld [vmem:[%s3856 + $0x2c] sm:$0xff]
  %v6365 = vld [vmem:[%s3856 + $0x34] sm:$0xff]
  %v6366 = vld [vmem:[%s3856 + $0x3c] sm:$0xff]
  %v6367 = vld [vmem:[%s3856 + $0x44] sm:$0xff]
  %v6368 = vld [vmem:[%s3856 + $0x4c] sm:$0xff]
  %v6369 = vld [vmem:[%s3856 + $0x54] sm:$0xff]
  %v6370 = vld [vmem:[%s3856 + $0x5c] sm:$0xff]
  %v6371 = vld [vmem:[%s4884] sm:$0xff]
  %v6373 = vsel %vm1951, %v6361, 0
  %v6376 = vsel %vm1951, %v6362, 0
  %v6379 = vsel %vm1951, %v6363, 0
  %v6382 = vsel %vm1951, %v6364, 0
  %v6385 = vsel %vm1951, %v6365, 0
  %v6388 = vsel %vm1951, %v6366, 0
  %v6391 = vsel %vm1951, %v6367, 0
  %v6394 = vsel %vm1951, %v6368, 0
  %v6397 = vsel %vm1951, %v6369, 0
  %v6400 = vsel %vm1951, %v6370, 0
  %6402 = vmatprep.subr.mxu0 0.0
  %6403 = vmatpush1.msra.mxu0 %v6371
  %6404 = vmatprep.subr.mxu0 0.0
  %6405 = vmatpush1.msra.mxu0 0.0
  %6406 = vmatprep.subr.mxu0 0.0
  %6407 = vmatpush1.msra.mxu0 0.0
  %6408 = vmatprep.subr.mxu0 0.0
  %6409 = vmatpush1.msra.mxu0 0.0
  %6410 = vmatprep.subr.mxu0 0.0
  %6411 = vmatpush1.msra.mxu0 0.0
  %6412 = vmatprep.subr.mxu0 0.0
  %6413 = vmatpush1.msra.mxu0 0.0
  %6414 = vmatprep.subr.mxu0 0.0
  %6415 = vmatpush1.msra.mxu0 0.0
  %6416 = vmatprep.subr.mxu0 0.0
  %6417 = vmatpush1.msra.mxu0 0.0
  %6418 = vmatprep.subr.mxu0 0.0
  %6419 = vmatpush1.msra.mxu0 0.0
  %6420 = vmatprep.subr.mxu0 0.0
  %6421 = vmatpush1.msra.mxu0 0.0
  %6422 = vmatprep.subr.mxu0 0.0
  %6423 = vmatpush1.msra.mxu0 0.0
  %6424 = vmatprep.subr.mxu0 0.0
  %6425 = vmatpush1.msra.mxu0 0.0
  %6426 = vmatprep.subr.mxu0 0.0
  %6427 = vmatpush1.msra.mxu0 0.0
  %6428 = vmatprep.subr.mxu0 0.0
  %6429 = vmatpush1.msra.mxu0 0.0
  %6430 = vmatprep.subr.mxu0 0.0
  %6431 = vmatpush1.msra.mxu0 0.0
  %6432 = vmatprep.subr.mxu0 0.0
  %6433 = vmatpush1.msra.mxu0 0.0
  %6434 = vmatprep.subr.mxu0 0.0
  %6435 = vmatpush1.msra.mxu0 0.0
  %6436 = vmatprep.subr.mxu0 0.0
  %6437 = vmatpush1.msra.mxu0 0.0
  %6438 = vmatprep.subr.mxu0 0.0
  %6439 = vmatpush1.msra.mxu0 0.0
  %6440 = vmatprep.subr.mxu0 0.0
  %6441 = vmatpush1.msra.mxu0 0.0
  %6442 = vmatprep.subr.mxu0 0.0
  %6443 = vmatpush1.msra.mxu0 0.0
  %6444 = vmatprep.subr.mxu0 0.0
  %6445 = vmatpush1.msra.mxu0 0.0
  %6446 = vmatprep.subr.mxu0 0.0
  %6447 = vmatpush1.msra.mxu0 0.0
  %6448 = vmatprep.subr.mxu0 0.0
  %6449 = vmatpush1.msra.mxu0 0.0
  %6450 = vmatprep.subr.mxu0 0.0
  %6451 = vmatpush1.msra.mxu0 0.0
  %6452 = vmatprep.subr.mxu0 0.0
  %6453 = vmatpush1.msra.mxu0 0.0
  %6454 = vmatprep.subr.mxu0 0.0
  %6455 = vmatpush1.msra.mxu0 0.0
  %6456 = vmatprep.subr.mxu0 0.0
  %6457 = vmatpush1.msra.mxu0 0.0
  %6458 = vmatprep.subr.mxu0 0.0
  %6459 = vmatpush1.msra.mxu0 0.0
  %6460 = vmatprep.subr.mxu0 0.0
  %6461 = vmatpush1.msra.mxu0 0.0
  %6462 = vmatprep.subr.mxu0 0.0
  %6463 = vmatpush1.msra.mxu0 0.0
  %6464 = vmatprep.subr.mxu0 0.0
  %6465 = vmatpush1.msra.mxu0 0.0
  %6466 = vmatprep.mubr.f32.mxu0 0.0
  %6467 = vmatmul.mubr.f32.gmra.mrb[0].mxu0 %v6373
  %v6468 = vpop.f32.mrb[0].mxu0
  %v6469 = vadd.f32 0.0, %v6468
  %v6470 = vpop.f32.mrb[0].mxu0
  %6471 = vmatprep.mubr.f32.mxu0 0.0
  %6472 = vmatmul.mubr.f32.gmra.mrb[0].mxu0 %v6376
  %v6473 = vpop.f32.mrb[0].mxu0
  %v6474 = vadd.f32 0.0, %v6473
  %v6475 = vpop.f32.mrb[0].mxu0
  %6476 = vmatprep.mubr.f32.mxu0 0.0
  %6477 = vmatmul.mubr.f32.gmra.mrb[0].mxu0 %v6379
  %v6478 = vpop.f32.mrb[0].mxu0
  %v6479 = vadd.f32 0.0, %v6478
  %v6480 = vpop.f32.mrb[0].mxu0
  %6481 = vmatprep.mubr.f32.mxu0 0.0
  %6482 = vmatmul.mubr.f32.gmra.mrb[0].mxu0 %v6382
  %v6483 = vpop.f32.mrb[0].mxu0
  %v6484 = vadd.f32 0.0, %v6483
  %v6485 = vpop.f32.mrb[0].mxu0
  %6486 = vmatprep.mubr.f32.mxu0 0.0
  %6487 = vmatmul.mubr.f32.gmra.mrb[0].mxu0 %v6385
  %v6488 = vpop.f32.mrb[0].mxu0
  %v6489 = vadd.f32 0.0, %v6488
  %v6490 = vpop.f32.mrb[0].mxu0
  %6491 = vmatprep.mubr.f32.mxu0 0.0
  %6492 = vmatmul.mubr.f32.gmra.mrb[0].mxu0 %v6388
  %v6493 = vpop.f32.mrb[0].mxu0
  %v6494 = vadd.f32 0.0, %v6493
  %v6495 = vpop.f32.mrb[0].mxu0
  %6496 = vmatprep.mubr.f32.mxu0 0.0
  %6497 = vmatmul.mubr.f32.gmra.mrb[0].mxu0 %v6391
  %v6498 = vpop.f32.mrb[0].mxu0
  %v6499 = vadd.f32 0.0, %v6498
  %v6500 = vpop.f32.mrb[0].mxu0
  %6501 = vmatprep.mubr.f32.mxu0 0.0
  %6502 = vmatmul.mubr.f32.gmra.mrb[0].mxu0 %v6394
  %v6503 = vpop.f32.mrb[0].mxu0
  %v6504 = vadd.f32 0.0, %v6503
  %v6505 = vpop.f32.mrb[0].mxu0
  %6506 = vmatprep.mubr.f32.mxu0 0.0
  %6507 = vmatmul.mubr.f32.gmra.mrb[0].mxu0 %v6397
  %v6508 = vpop.f32.mrb[0].mxu0
  %v6509 = vadd.f32 0.0, %v6508
  %v6510 = vpop.f32.mrb[0].mxu0
  %6511 = vmatprep.mubr.f32.mxu0 0.0
  %6512 = vmatmul.mubr.f32.gmra.mrb[0].mxu0 %v6400
  %v6513 = vpop.f32.mrb[0].mxu0
  %v6514 = vadd.f32 0.0, %v6513
  %v6515 = vpop.f32.mrb[0].mxu0
  %6516 = vdwg.mxu0
  %v6517 = vadd.f32 %v6351, %v6469
  %v6518 = vadd.f32 %v6352, %v6474
  %v6519 = vadd.f32 %v6353, %v6479
  %v6520 = vadd.f32 %v6354, %v6484
  %v6521 = vadd.f32 %v6355, %v6489
  %v6522 = vadd.f32 %v6356, %v6494
  %v6523 = vadd.f32 %v6357, %v6499
  %v6524 = vadd.f32 %v6358, %v6504
  %v6525 = vadd.f32 %v6359, %v6509
  %v6526 = vadd.f32 %v6360, %v6514
  %v6527 = vld [vmem:[%s3856 + $0x15] sm:$0xff]
  %v6528 = vld [vmem:[%s3856 + $0x1d] sm:$0xff]
  %v6529 = vld [vmem:[%s3856 + $0x25] sm:$0xff]
  %v6530 = vld [vmem:[%s3856 + $0x2d] sm:$0xff]
  %v6531 = vld [vmem:[%s3856 + $0x35] sm:$0xff]
  %v6532 = vld [vmem:[%s3856 + $0x3d] sm:$0xff]
  %v6533 = vld [vmem:[%s3856 + $0x45] sm:$0xff]
  %v6534 = vld [vmem:[%s3856 + $0x4d] sm:$0xff]
  %v6535 = vld [vmem:[%s3856 + $0x55] sm:$0xff]
  %v6536 = vld [vmem:[%s3856 + $0x5d] sm:$0xff]
  %v6537 = vld [vmem:[%s5051] sm:$0xff]
  %v6539 = vsel %vm1951, %v6527, 0
  %v6542 = vsel %vm1951, %v6528, 0
  %v6545 = vsel %vm1951, %v6529, 0
  %v6548 = vsel %vm1951, %v6530, 0
  %v6551 = vsel %vm1951, %v6531, 0
  %v6554 = vsel %vm1951, %v6532, 0
  %v6557 = vsel %vm1951, %v6533, 0
  %v6560 = vsel %vm1951, %v6534, 0
  %v6563 = vsel %vm1951, %v6535, 0
  %v6566 = vsel %vm1951, %v6536, 0
  %6568 = vmatprep.subr.mxu0 0.0
  %6569 = vmatpush1.msra.mxu0 %v6537
  %6570 = vmatprep.subr.mxu0 0.0
  %6571 = vmatpush1.msra.mxu0 0.0
  %6572 = vmatprep.subr.mxu0 0.0
  %6573 = vmatpush1.msra.mxu0 0.0
  %6574 = vmatprep.subr.mxu0 0.0
  %6575 = vmatpush1.msra.mxu0 0.0
  %6576 = vmatprep.subr.mxu0 0.0
  %6577 = vmatpush1.msra.mxu0 0.0
  %6578 = vmatprep.subr.mxu0 0.0
  %6579 = vmatpush1.msra.mxu0 0.0
  %6580 = vmatprep.subr.mxu0 0.0
  %6581 = vmatpush1.msra.mxu0 0.0
  %6582 = vmatprep.subr.mxu0 0.0
  %6583 = vmatpush1.msra.mxu0 0.0
  %6584 = vmatprep.subr.mxu0 0.0
  %6585 = vmatpush1.msra.mxu0 0.0
  %6586 = vmatprep.subr.mxu0 0.0
  %6587 = vmatpush1.msra.mxu0 0.0
  %6588 = vmatprep.subr.mxu0 0.0
  %6589 = vmatpush1.msra.mxu0 0.0
  %6590 = vmatprep.subr.mxu0 0.0
  %6591 = vmatpush1.msra.mxu0 0.0
  %6592 = vmatprep.subr.mxu0 0.0
  %6593 = vmatpush1.msra.mxu0 0.0
  %6594 = vmatprep.subr.mxu0 0.0
  %6595 = vmatpush1.msra.mxu0 0.0
  %6596 = vmatprep.subr.mxu0 0.0
  %6597 = vmatpush1.msra.mxu0 0.0
  %6598 = vmatprep.subr.mxu0 0.0
  %6599 = vmatpush1.msra.mxu0 0.0
  %6600 = vmatprep.subr.mxu0 0.0
  %6601 = vmatpush1.msra.mxu0 0.0
  %6602 = vmatprep.subr.mxu0 0.0
  %6603 = vmatpush1.msra.mxu0 0.0
  %6604 = vmatprep.subr.mxu0 0.0
  %6605 = vmatpush1.msra.mxu0 0.0
  %6606 = vmatprep.subr.mxu0 0.0
  %6607 = vmatpush1.msra.mxu0 0.0
  %6608 = vmatprep.subr.mxu0 0.0
  %6609 = vmatpush1.msra.mxu0 0.0
  %6610 = vmatprep.subr.mxu0 0.0
  %6611 = vmatpush1.msra.mxu0 0.0
  %6612 = vmatprep.subr.mxu0 0.0
  %6613 = vmatpush1.msra.mxu0 0.0
  %6614 = vmatprep.subr.mxu0 0.0
  %6615 = vmatpush1.msra.mxu0 0.0
  %6616 = vmatprep.subr.mxu0 0.0
  %6617 = vmatpush1.msra.mxu0 0.0
  %6618 = vmatprep.subr.mxu0 0.0
  %6619 = vmatpush1.msra.mxu0 0.0
  %6620 = vmatprep.subr.mxu0 0.0
  %6621 = vmatpush1.msra.mxu0 0.0
  %6622 = vmatprep.subr.mxu0 0.0
  %6623 = vmatpush1.msra.mxu0 0.0
  %6624 = vmatprep.subr.mxu0 0.0
  %6625 = vmatpush1.msra.mxu0 0.0
  %6626 = vmatprep.subr.mxu0 0.0
  %6627 = vmatpush1.msra.mxu0 0.0
  %6628 = vmatprep.subr.mxu0 0.0
  %6629 = vmatpush1.msra.mxu0 0.0
  %6630 = vmatprep.subr.mxu0 0.0
  %6631 = vmatpush1.msra.mxu0 0.0
  %6632 = vmatprep.mubr.f32.mxu0 0.0
  %6633 = vmatmul.mubr.f32.gmra.mrb[0].mxu0 %v6539
  %v6634 = vpop.f32.mrb[0].mxu0
  %v6635 = vadd.f32 0.0, %v6634
  %v6636 = vpop.f32.mrb[0].mxu0
  %6637 = vmatprep.mubr.f32.mxu0 0.0
  %6638 = vmatmul.mubr.f32.gmra.mrb[0].mxu0 %v6542
  %v6639 = vpop.f32.mrb[0].mxu0
  %v6640 = vadd.f32 0.0, %v6639
  %v6641 = vpop.f32.mrb[0].mxu0
  %6642 = vmatprep.mubr.f32.mxu0 0.0
  %6643 = vmatmul.mubr.f32.gmra.mrb[0].mxu0 %v6545
  %v6644 = vpop.f32.mrb[0].mxu0
  %v6645 = vadd.f32 0.0, %v6644
  %v6646 = vpop.f32.mrb[0].mxu0
  %6647 = vmatprep.mubr.f32.mxu0 0.0
  %6648 = vmatmul.mubr.f32.gmra.mrb[0].mxu0 %v6548
  %v6649 = vpop.f32.mrb[0].mxu0
  %v6650 = vadd.f32 0.0, %v6649
  %v6651 = vpop.f32.mrb[0].mxu0
  %6652 = vmatprep.mubr.f32.mxu0 0.0
  %6653 = vmatmul.mubr.f32.gmra.mrb[0].mxu0 %v6551
  %v6654 = vpop.f32.mrb[0].mxu0
  %v6655 = vadd.f32 0.0, %v6654
  %v6656 = vpop.f32.mrb[0].mxu0
  %6657 = vmatprep.mubr.f32.mxu0 0.0
  %6658 = vmatmul.mubr.f32.gmra.mrb[0].mxu0 %v6554
  %v6659 = vpop.f32.mrb[0].mxu0
  %v6660 = vadd.f32 0.0, %v6659
  %v6661 = vpop.f32.mrb[0].mxu0
  %6662 = vmatprep.mubr.f32.mxu0 0.0
  %6663 = vmatmul.mubr.f32.gmra.mrb[0].mxu0 %v6557
  %v6664 = vpop.f32.mrb[0].mxu0
  %v6665 = vadd.f32 0.0, %v6664
  %v6666 = vpop.f32.mrb[0].mxu0
  %6667 = vmatprep.mubr.f32.mxu0 0.0
  %6668 = vmatmul.mubr.f32.gmra.mrb[0].mxu0 %v6560
  %v6669 = vpop.f32.mrb[0].mxu0
  %v6670 = vadd.f32 0.0, %v6669
  %v6671 = vpop.f32.mrb[0].mxu0
  %6672 = vmatprep.mubr.f32.mxu0 0.0
  %6673 = vmatmul.mubr.f32.gmra.mrb[0].mxu0 %v6563
  %v6674 = vpop.f32.mrb[0].mxu0
  %v6675 = vadd.f32 0.0, %v6674
  %v6676 = vpop.f32.mrb[0].mxu0
  %6677 = vmatprep.mubr.f32.mxu0 0.0
  %6678 = vmatmul.mubr.f32.gmra.mrb[0].mxu0 %v6566
  %v6679 = vpop.f32.mrb[0].mxu0
  %v6680 = vadd.f32 0.0, %v6679
  %v6681 = vpop.f32.mrb[0].mxu0
  %6682 = vdwg.mxu0
  %v6683 = vadd.f32 %v6517, %v6635
  %v6684 = vadd.f32 %v6518, %v6640
  %v6685 = vadd.f32 %v6519, %v6645
  %v6686 = vadd.f32 %v6520, %v6650
  %v6687 = vadd.f32 %v6521, %v6655
  %v6688 = vadd.f32 %v6522, %v6660
  %v6689 = vadd.f32 %v6523, %v6665
  %v6690 = vadd.f32 %v6524, %v6670
  %v6691 = vadd.f32 %v6525, %v6675
  %v6692 = vadd.f32 %v6526, %v6680
  %v6693 = vld [vmem:[%s3856 + $0x16] sm:$0xff]
  %v6694 = vld [vmem:[%s3856 + $0x1e] sm:$0xff]
  %v6695 = vld [vmem:[%s3856 + $0x26] sm:$0xff]
  %v6696 = vld [vmem:[%s3856 + $0x2e] sm:$0xff]
  %v6697 = vld [vmem:[%s3856 + $0x36] sm:$0xff]
  %v6698 = vld [vmem:[%s3856 + $0x3e] sm:$0xff]
  %v6699 = vld [vmem:[%s3856 + $0x46] sm:$0xff]
  %v6700 = vld [vmem:[%s3856 + $0x4e] sm:$0xff]
  %v6701 = vld [vmem:[%s3856 + $0x56] sm:$0xff]
  %v6702 = vld [vmem:[%s3856 + $0x5e] sm:$0xff]
  %v6703 = vld [vmem:[%s5218] sm:$0xff]
  %v6705 = vsel %vm1951, %v6693, 0
  %v6708 = vsel %vm1951, %v6694, 0
  %v6711 = vsel %vm1951, %v6695, 0
  %v6714 = vsel %vm1951, %v6696, 0
  %v6717 = vsel %vm1951, %v6697, 0
  %v6720 = vsel %vm1951, %v6698, 0
  %v6723 = vsel %vm1951, %v6699, 0
  %v6726 = vsel %vm1951, %v6700, 0
  %v6729 = vsel %vm1951, %v6701, 0
  %v6732 = vsel %vm1951, %v6702, 0
  %6734 = vmatprep.subr.mxu0 0.0
  %6735 = vmatpush1.msra.mxu0 %v6703
  %6736 = vmatprep.subr.mxu0 0.0
  %6737 = vmatpush1.msra.mxu0 0.0
  %6738 = vmatprep.subr.mxu0 0.0
  %6739 = vmatpush1.msra.mxu0 0.0
  %6740 = vmatprep.subr.mxu0 0.0
  %6741 = vmatpush1.msra.mxu0 0.0
  %6742 = vmatprep.subr.mxu0 0.0
  %6743 = vmatpush1.msra.mxu0 0.0
  %6744 = vmatprep.subr.mxu0 0.0
  %6745 = vmatpush1.msra.mxu0 0.0
  %6746 = vmatprep.subr.mxu0 0.0
  %6747 = vmatpush1.msra.mxu0 0.0
  %6748 = vmatprep.subr.mxu0 0.0
  %6749 = vmatpush1.msra.mxu0 0.0
  %6750 = vmatprep.subr.mxu0 0.0
  %6751 = vmatpush1.msra.mxu0 0.0
  %6752 = vmatprep.subr.mxu0 0.0
  %6753 = vmatpush1.msra.mxu0 0.0
  %6754 = vmatprep.subr.mxu0 0.0
  %6755 = vmatpush1.msra.mxu0 0.0
  %6756 = vmatprep.subr.mxu0 0.0
  %6757 = vmatpush1.msra.mxu0 0.0
  %6758 = vmatprep.subr.mxu0 0.0
  %6759 = vmatpush1.msra.mxu0 0.0
  %6760 = vmatprep.subr.mxu0 0.0
  %6761 = vmatpush1.msra.mxu0 0.0
  %6762 = vmatprep.subr.mxu0 0.0
  %6763 = vmatpush1.msra.mxu0 0.0
  %6764 = vmatprep.subr.mxu0 0.0
  %6765 = vmatpush1.msra.mxu0 0.0
  %6766 = vmatprep.subr.mxu0 0.0
  %6767 = vmatpush1.msra.mxu0 0.0
  %6768 = vmatprep.subr.mxu0 0.0
  %6769 = vmatpush1.msra.mxu0 0.0
  %6770 = vmatprep.subr.mxu0 0.0
  %6771 = vmatpush1.msra.mxu0 0.0
  %6772 = vmatprep.subr.mxu0 0.0
  %6773 = vmatpush1.msra.mxu0 0.0
  %6774 = vmatprep.subr.mxu0 0.0
  %6775 = vmatpush1.msra.mxu0 0.0
  %6776 = vmatprep.subr.mxu0 0.0
  %6777 = vmatpush1.msra.mxu0 0.0
  %6778 = vmatprep.subr.mxu0 0.0
  %6779 = vmatpush1.msra.mxu0 0.0
  %6780 = vmatprep.subr.mxu0 0.0
  %6781 = vmatpush1.msra.mxu0 0.0
  %6782 = vmatprep.subr.mxu0 0.0
  %6783 = vmatpush1.msra.mxu0 0.0
  %6784 = vmatprep.subr.mxu0 0.0
  %6785 = vmatpush1.msra.mxu0 0.0
  %6786 = vmatprep.subr.mxu0 0.0
  %6787 = vmatpush1.msra.mxu0 0.0
  %6788 = vmatprep.subr.mxu0 0.0
  %6789 = vmatpush1.msra.mxu0 0.0
  %6790 = vmatprep.subr.mxu0 0.0
  %6791 = vmatpush1.msra.mxu0 0.0
  %6792 = vmatprep.subr.mxu0 0.0
  %6793 = vmatpush1.msra.mxu0 0.0
  %6794 = vmatprep.subr.mxu0 0.0
  %6795 = vmatpush1.msra.mxu0 0.0
  %6796 = vmatprep.subr.mxu0 0.0
  %6797 = vmatpush1.msra.mxu0 0.0
  %6798 = vmatprep.mubr.f32.mxu0 0.0
  %6799 = vmatmul.mubr.f32.gmra.mrb[0].mxu0 %v6705
  %v6800 = vpop.f32.mrb[0].mxu0
  %v6801 = vadd.f32 0.0, %v6800
  %v6802 = vpop.f32.mrb[0].mxu0
  %6803 = vmatprep.mubr.f32.mxu0 0.0
  %6804 = vmatmul.mubr.f32.gmra.mrb[0].mxu0 %v6708
  %v6805 = vpop.f32.mrb[0].mxu0
  %v6806 = vadd.f32 0.0, %v6805
  %v6807 = vpop.f32.mrb[0].mxu0
  %6808 = vmatprep.mubr.f32.mxu0 0.0
  %6809 = vmatmul.mubr.f32.gmra.mrb[0].mxu0 %v6711
  %v6810 = vpop.f32.mrb[0].mxu0
  %v6811 = vadd.f32 0.0, %v6810
  %v6812 = vpop.f32.mrb[0].mxu0
  %6813 = vmatprep.mubr.f32.mxu0 0.0
  %6814 = vmatmul.mubr.f32.gmra.mrb[0].mxu0 %v6714
  %v6815 = vpop.f32.mrb[0].mxu0
  %v6816 = vadd.f32 0.0, %v6815
  %v6817 = vpop.f32.mrb[0].mxu0
  %6818 = vmatprep.mubr.f32.mxu0 0.0
  %6819 = vmatmul.mubr.f32.gmra.mrb[0].mxu0 %v6717
  %v6820 = vpop.f32.mrb[0].mxu0
  %v6821 = vadd.f32 0.0, %v6820
  %v6822 = vpop.f32.mrb[0].mxu0
  %6823 = vmatprep.mubr.f32.mxu0 0.0
  %6824 = vmatmul.mubr.f32.gmra.mrb[0].mxu0 %v6720
  %v6825 = vpop.f32.mrb[0].mxu0
  %v6826 = vadd.f32 0.0, %v6825
  %v6827 = vpop.f32.mrb[0].mxu0
  %6828 = vmatprep.mubr.f32.mxu0 0.0
  %6829 = vmatmul.mubr.f32.gmra.mrb[0].mxu0 %v6723
  %v6830 = vpop.f32.mrb[0].mxu0
  %v6831 = vadd.f32 0.0, %v6830
  %v6832 = vpop.f32.mrb[0].mxu0
  %6833 = vmatprep.mubr.f32.mxu0 0.0
  %6834 = vmatmul.mubr.f32.gmra.mrb[0].mxu0 %v6726
  %v6835 = vpop.f32.mrb[0].mxu0
  %v6836 = vadd.f32 0.0, %v6835
  %v6837 = vpop.f32.mrb[0].mxu0
  %6838 = vmatprep.mubr.f32.mxu0 0.0
  %6839 = vmatmul.mubr.f32.gmra.mrb[0].mxu0 %v6729
  %v6840 = vpop.f32.mrb[0].mxu0
  %v6841 = vadd.f32 0.0, %v6840
  %v6842 = vpop.f32.mrb[0].mxu0
  %6843 = vmatprep.mubr.f32.mxu0 0.0
  %6844 = vmatmul.mubr.f32.gmra.mrb[0].mxu0 %v6732
  %v6845 = vpop.f32.mrb[0].mxu0
  %v6846 = vadd.f32 0.0, %v6845
  %v6847 = vpop.f32.mrb[0].mxu0
  %6848 = vdwg.mxu0
  %v6849 = vadd.f32 %v6683, %v6801
  %v6850 = vadd.f32 %v6684, %v6806
  %v6851 = vadd.f32 %v6685, %v6811
  %v6852 = vadd.f32 %v6686, %v6816
  %v6853 = vadd.f32 %v6687, %v6821
  %v6854 = vadd.f32 %v6688, %v6826
  %v6855 = vadd.f32 %v6689, %v6831
  %v6856 = vadd.f32 %v6690, %v6836
  %v6857 = vadd.f32 %v6691, %v6841
  %v6858 = vadd.f32 %v6692, %v6846
  %s6859 = scalar_lea.vmem [#allocation5], 80
  %6860 = vst.msk [vmem:[%s6859] sm:$0xff] %vm1951, %v6849
  %6861 = vst.msk [vmem:[%s6859 + $0x8] sm:$0xff] %vm1951, %v6850
  %6862 = vst.msk [vmem:[%s6859 + $0x10] sm:$0xff] %vm1951, %v6851
  %6863 = vst.msk [vmem:[%s6859 + $0x18] sm:$0xff] %vm1951, %v6852
  %6864 = vst.msk [vmem:[%s6859 + $0x20] sm:$0xff] %vm1951, %v6853
  %6865 = vst.msk [vmem:[%s6859 + $0x28] sm:$0xff] %vm1951, %v6854
  %6866 = vst.msk [vmem:[%s6859 + $0x30] sm:$0xff] %vm1951, %v6855
  %6867 = vst.msk [vmem:[%s6859 + $0x38] sm:$0xff] %vm1951, %v6856
  %6868 = vst.msk [vmem:[%s6859 + $0x40] sm:$0xff] %vm1951, %v6857
  %6869 = vst.msk [vmem:[%s6859 + $0x48] sm:$0xff] %vm1951, %v6858
  %v6870 = vld [vmem:[#allocation5] sm:$0xff]
  %v6871 = vsel %vm1951, %v6870, 0.0
  %v6872 = vrot.slane %v6871, 4
  %v6873 = vadd.f32 %v6871, %v6872
  %v6874 = vrot.slane %v6873, 2
  %v6875 = vadd.f32 %v6873, %v6874
  %v6876 = vrot.slane %v6875, 1
  %v6877 = vadd.f32 %v6875, %v6876
  %v6878 = vadd.f32 %v6877, 0.0
  %v6879 = vmul.f32 %v6870, %v6870
  %v6880 = vsel %vm1951, %v6879, 0.0
  %v6881 = vrot.slane %v6880, 4
  %v6882 = vadd.f32 %v6880, %v6881
  %v6883 = vrot.slane %v6882, 2
  %v6884 = vadd.f32 %v6882, %v6883
  %v6885 = vrot.slane %v6884, 1
  %v6886 = vadd.f32 %v6884, %v6885
  %v6887 = vadd.f32 %v6886, 0.0
  %v6888 = vld [vmem:[#allocation5 + $0xa] sm:$0xff]
  %v6889 = vsel %vm1951, %v6888, 0.0
  %v6890 = vrot.slane %v6889, 4
  %v6891 = vadd.f32 %v6889, %v6890
  %v6892 = vrot.slane %v6891, 2
  %v6893 = vadd.f32 %v6891, %v6892
  %v6894 = vrot.slane %v6893, 1
  %v6895 = vadd.f32 %v6893, %v6894
  %v6896 = vadd.f32 %v6878, %v6895
  %v6897 = vmul.f32 %v6888, %v6888
  %v6898 = vsel %vm1951, %v6897, 0.0
  %v6899 = vrot.slane %v6898, 4
  %v6900 = vadd.f32 %v6898, %v6899
  %v6901 = vrot.slane %v6900, 2
  %v6902 = vadd.f32 %v6900, %v6901
  %v6903 = vrot.slane %v6902, 1
  %v6904 = vadd.f32 %v6902, %v6903
  %v6905 = vadd.f32 %v6887, %v6904
  %v6906 = vld [vmem:[#allocation5 + $0x14] sm:$0xff]
  %v6907 = vsel %vm1951, %v6906, 0.0
  %v6908 = vrot.slane %v6907, 4
  %v6909 = vadd.f32 %v6907, %v6908
  %v6910 = vrot.slane %v6909, 2
  %v6911 = vadd.f32 %v6909, %v6910
  %v6912 = vrot.slane %v6911, 1
  %v6913 = vadd.f32 %v6911, %v6912
  %v6914 = vadd.f32 %v6896, %v6913
  %v6915 = vmul.f32 %v6906, %v6906
  %v6916 = vsel %vm1951, %v6915, 0.0
  %v6917 = vrot.slane %v6916, 4
  %v6918 = vadd.f32 %v6916, %v6917
  %v6919 = vrot.slane %v6918, 2
  %v6920 = vadd.f32 %v6918, %v6919
  %v6921 = vrot.slane %v6920, 1
  %v6922 = vadd.f32 %v6920, %v6921
  %v6923 = vadd.f32 %v6905, %v6922
  %v6924 = vld [vmem:[#allocation5 + $0x1e] sm:$0xff]
  %v6925 = vsel %vm1951, %v6924, 0.0
  %v6926 = vrot.slane %v6925, 4
  %v6927 = vadd.f32 %v6925, %v6926
  %v6928 = vrot.slane %v6927, 2
  %v6929 = vadd.f32 %v6927, %v6928
  %v6930 = vrot.slane %v6929, 1
  %v6931 = vadd.f32 %v6929, %v6930
  %v6932 = vadd.f32 %v6914, %v6931
  %v6933 = vmul.f32 %v6924, %v6924
  %v6934 = vsel %vm1951, %v6933, 0.0
  %v6935 = vrot.slane %v6934, 4
  %v6936 = vadd.f32 %v6934, %v6935
  %v6937 = vrot.slane %v6936, 2
  %v6938 = vadd.f32 %v6936, %v6937
  %v6939 = vrot.slane %v6938, 1
  %v6940 = vadd.f32 %v6938, %v6939
  %v6941 = vadd.f32 %v6923, %v6940
  %v6942 = vld [vmem:[#allocation5 + $0x28] sm:$0xff]
  %v6943 = vsel %vm1951, %v6942, 0.0
  %v6944 = vrot.slane %v6943, 4
  %v6945 = vadd.f32 %v6943, %v6944
  %v6946 = vrot.slane %v6945, 2
  %v6947 = vadd.f32 %v6945, %v6946
  %v6948 = vrot.slane %v6947, 1
  %v6949 = vadd.f32 %v6947, %v6948
  %v6950 = vadd.f32 %v6932, %v6949
  %v6951 = vmul.f32 %v6942, %v6942
  %v6952 = vsel %vm1951, %v6951, 0.0
  %v6953 = vrot.slane %v6952, 4
  %v6954 = vadd.f32 %v6952, %v6953
  %v6955 = vrot.slane %v6954, 2
  %v6956 = vadd.f32 %v6954, %v6955
  %v6957 = vrot.slane %v6956, 1
  %v6958 = vadd.f32 %v6956, %v6957
  %v6959 = vadd.f32 %v6941, %v6958
  %v6960 = vld [vmem:[#allocation5 + $0x32] sm:$0xff]
  %v6961 = vsel %vm1951, %v6960, 0.0
  %v6962 = vrot.slane %v6961, 4
  %v6963 = vadd.f32 %v6961, %v6962
  %v6964 = vrot.slane %v6963, 2
  %v6965 = vadd.f32 %v6963, %v6964
  %v6966 = vrot.slane %v6965, 1
  %v6967 = vadd.f32 %v6965, %v6966
  %v6968 = vadd.f32 %v6950, %v6967
  %v6969 = vmul.f32 %v6960, %v6960
  %v6970 = vsel %vm1951, %v6969, 0.0
  %v6971 = vrot.slane %v6970, 4
  %v6972 = vadd.f32 %v6970, %v6971
  %v6973 = vrot.slane %v6972, 2
  %v6974 = vadd.f32 %v6972, %v6973
  %v6975 = vrot.slane %v6974, 1
  %v6976 = vadd.f32 %v6974, %v6975
  %v6977 = vadd.f32 %v6959, %v6976
  %v6978 = vld [vmem:[#allocation5 + $0x3c] sm:$0xff]
  %v6979 = vsel %vm1951, %v6978, 0.0
  %v6980 = vrot.slane %v6979, 4
  %v6981 = vadd.f32 %v6979, %v6980
  %v6982 = vrot.slane %v6981, 2
  %v6983 = vadd.f32 %v6981, %v6982
  %v6984 = vrot.slane %v6983, 1
  %v6985 = vadd.f32 %v6983, %v6984
  %v6986 = vadd.f32 %v6968, %v6985
  %v6987 = vmul.f32 %v6978, %v6978
  %v6988 = vsel %vm1951, %v6987, 0.0
  %v6989 = vrot.slane %v6988, 4
  %v6990 = vadd.f32 %v6988, %v6989
  %v6991 = vrot.slane %v6990, 2
  %v6992 = vadd.f32 %v6990, %v6991
  %v6993 = vrot.slane %v6992, 1
  %v6994 = vadd.f32 %v6992, %v6993
  %v6995 = vadd.f32 %v6977, %v6994
  %v6996 = vld [vmem:[#allocation5 + $0x46] sm:$0xff]
  %v6997 = vsel %vm1951, %v6996, 0.0
  %v6998 = vrot.slane %v6997, 4
  %v6999 = vadd.f32 %v6997, %v6998
  %v7000 = vrot.slane %v6999, 2
  %v7001 = vadd.f32 %v6999, %v7000
  %v7002 = vrot.slane %v7001, 1
  %v7003 = vadd.f32 %v7001, %v7002
  %v7004 = vadd.f32 %v6986, %v7003
  %v7005 = vmul.f32 %v6996, %v6996
  %v7006 = vsel %vm1951, %v7005, 0.0
  %v7007 = vrot.slane %v7006, 4
  %v7008 = vadd.f32 %v7006, %v7007
  %v7009 = vrot.slane %v7008, 2
  %v7010 = vadd.f32 %v7008, %v7009
  %v7011 = vrot.slane %v7010, 1
  %v7012 = vadd.f32 %v7010, %v7011
  %v7013 = vadd.f32 %v6995, %v7012
  %v7014 = vld [vmem:[%s6859] sm:$0xff]
  %v7015 = vsel %vm1951, %v7014, 0.0
  %v7016 = vrot.slane %v7015, 4
  %v7017 = vadd.f32 %v7015, %v7016
  %v7018 = vrot.slane %v7017, 2
  %v7019 = vadd.f32 %v7017, %v7018
  %v7020 = vrot.slane %v7019, 1
  %v7021 = vadd.f32 %v7019, %v7020
  %v7022 = vadd.f32 %v7004, %v7021
  %v7023 = vmul.f32 %v7014, %v7014
  %v7024 = vsel %vm1951, %v7023, 0.0
  %v7025 = vrot.slane %v7024, 4
  %v7026 = vadd.f32 %v7024, %v7025
  %v7027 = vrot.slane %v7026, 2
  %v7028 = vadd.f32 %v7026, %v7027
  %v7029 = vrot.slane %v7028, 1
  %v7030 = vadd.f32 %v7028, %v7029
  %v7031 = vadd.f32 %v7013, %v7030
  %v7032 = vld [vmem:[%s6859 + $0xa] sm:$0xff]
  %v7033 = vsel %vm1951, %v7032, 0.0
  %v7034 = vrot.slane %v7033, 4
  %v7035 = vadd.f32 %v7033, %v7034
  %v7036 = vrot.slane %v7035, 2
  %v7037 = vadd.f32 %v7035, %v7036
  %v7038 = vrot.slane %v7037, 1
  %v7039 = vadd.f32 %v7037, %v7038
  %v7040 = vadd.f32 %v7022, %v7039
  %v7041 = vmul.f32 %v7032, %v7032
  %v7042 = vsel %vm1951, %v7041, 0.0
  %v7043 = vrot.slane %v7042, 4
  %v7044 = vadd.f32 %v7042, %v7043
  %v7045 = vrot.slane %v7044, 2
  %v7046 = vadd.f32 %v7044, %v7045
  %v7047 = vrot.slane %v7046, 1
  %v7048 = vadd.f32 %v7046, %v7047
  %v7049 = vadd.f32 %v7031, %v7048
  %v7050 = vld [vmem:[%s6859 + $0x14] sm:$0xff]
  %v7051 = vsel %vm1951, %v7050, 0.0
  %v7052 = vrot.slane %v7051, 4
  %v7053 = vadd.f32 %v7051, %v7052
  %v7054 = vrot.slane %v7053, 2
  %v7055 = vadd.f32 %v7053, %v7054
  %v7056 = vrot.slane %v7055, 1
  %v7057 = vadd.f32 %v7055, %v7056
  %v7058 = vadd.f32 %v7040, %v7057
  %v7059 = vmul.f32 %v7050, %v7050
  %v7060 = vsel %vm1951, %v7059, 0.0
  %v7061 = vrot.slane %v7060, 4
  %v7062 = vadd.f32 %v7060, %v7061
  %v7063 = vrot.slane %v7062, 2
  %v7064 = vadd.f32 %v7062, %v7063
  %v7065 = vrot.slane %v7064, 1
  %v7066 = vadd.f32 %v7064, %v7065
  %v7067 = vadd.f32 %v7049, %v7066
  %v7068 = vld [vmem:[%s6859 + $0x1e] sm:$0xff]
  %v7069 = vsel %vm1951, %v7068, 0.0
  %v7070 = vrot.slane %v7069, 4
  %v7071 = vadd.f32 %v7069, %v7070
  %v7072 = vrot.slane %v7071, 2
  %v7073 = vadd.f32 %v7071, %v7072
  %v7074 = vrot.slane %v7073, 1
  %v7075 = vadd.f32 %v7073, %v7074
  %v7076 = vadd.f32 %v7058, %v7075
  %v7077 = vmul.f32 %v7068, %v7068
  %v7078 = vsel %vm1951, %v7077, 0.0
  %v7079 = vrot.slane %v7078, 4
  %v7080 = vadd.f32 %v7078, %v7079
  %v7081 = vrot.slane %v7080, 2
  %v7082 = vadd.f32 %v7080, %v7081
  %v7083 = vrot.slane %v7082, 1
  %v7084 = vadd.f32 %v7082, %v7083
  %v7085 = vadd.f32 %v7067, %v7084
  %v7086 = vld [vmem:[%s6859 + $0x28] sm:$0xff]
  %v7087 = vsel %vm1951, %v7086, 0.0
  %v7088 = vrot.slane %v7087, 4
  %v7089 = vadd.f32 %v7087, %v7088
  %v7090 = vrot.slane %v7089, 2
  %v7091 = vadd.f32 %v7089, %v7090
  %v7092 = vrot.slane %v7091, 1
  %v7093 = vadd.f32 %v7091, %v7092
  %v7094 = vadd.f32 %v7076, %v7093
  %v7095 = vmul.f32 %v7086, %v7086
  %v7096 = vsel %vm1951, %v7095, 0.0
  %v7097 = vrot.slane %v7096, 4
  %v7098 = vadd.f32 %v7096, %v7097
  %v7099 = vrot.slane %v7098, 2
  %v7100 = vadd.f32 %v7098, %v7099
  %v7101 = vrot.slane %v7100, 1
  %v7102 = vadd.f32 %v7100, %v7101
  %v7103 = vadd.f32 %v7085, %v7102
  %v7104 = vld [vmem:[%s6859 + $0x32] sm:$0xff]
  %v7105 = vsel %vm1951, %v7104, 0.0
  %v7106 = vrot.slane %v7105, 4
  %v7107 = vadd.f32 %v7105, %v7106
  %v7108 = vrot.slane %v7107, 2
  %v7109 = vadd.f32 %v7107, %v7108
  %v7110 = vrot.slane %v7109, 1
  %v7111 = vadd.f32 %v7109, %v7110
  %v7112 = vadd.f32 %v7094, %v7111
  %v7113 = vmul.f32 %v7104, %v7104
  %v7114 = vsel %vm1951, %v7113, 0.0
  %v7115 = vrot.slane %v7114, 4
  %v7116 = vadd.f32 %v7114, %v7115
  %v7117 = vrot.slane %v7116, 2
  %v7118 = vadd.f32 %v7116, %v7117
  %v7119 = vrot.slane %v7118, 1
  %v7120 = vadd.f32 %v7118, %v7119
  %v7121 = vadd.f32 %v7103, %v7120
  %v7122 = vld [vmem:[%s6859 + $0x3c] sm:$0xff]
  %v7123 = vsel %vm1951, %v7122, 0.0
  %v7124 = vrot.slane %v7123, 4
  %v7125 = vadd.f32 %v7123, %v7124
  %v7126 = vrot.slane %v7125, 2
  %v7127 = vadd.f32 %v7125, %v7126
  %v7128 = vrot.slane %v7127, 1
  %v7129 = vadd.f32 %v7127, %v7128
  %v7130 = vadd.f32 %v7112, %v7129
  %v7131 = vmul.f32 %v7122, %v7122
  %v7132 = vsel %vm1951, %v7131, 0.0
  %v7133 = vrot.slane %v7132, 4
  %v7134 = vadd.f32 %v7132, %v7133
  %v7135 = vrot.slane %v7134, 2
  %v7136 = vadd.f32 %v7134, %v7135
  %v7137 = vrot.slane %v7136, 1
  %v7138 = vadd.f32 %v7136, %v7137
  %v7139 = vadd.f32 %v7121, %v7138
  %v7140 = vld [vmem:[%s6859 + $0x46] sm:$0xff]
  %v7141 = vsel %vm1951, %v7140, 0.0
  %v7142 = vrot.slane %v7141, 4
  %v7143 = vadd.f32 %v7141, %v7142
  %v7144 = vrot.slane %v7143, 2
  %v7145 = vadd.f32 %v7143, %v7144
  %v7146 = vrot.slane %v7145, 1
  %v7147 = vadd.f32 %v7145, %v7146
  %v7148 = vadd.f32 %v7130, %v7147
  %v7149 = vmul.f32 %v7140, %v7140
  %v7150 = vsel %vm1951, %v7149, 0.0
  %v7151 = vrot.slane %v7150, 4
  %v7152 = vadd.f32 %v7150, %v7151
  %v7153 = vrot.slane %v7152, 2
  %v7154 = vadd.f32 %v7152, %v7153
  %v7155 = vrot.slane %v7154, 1
  %v7156 = vadd.f32 %v7154, %v7155
  %v7157 = vadd.f32 %v7139, %v7156
  %v7158 = vmul.f32 %v7148, 0.0078125
  %v7159 = vmul.f32 %v7157, 0.0078125
  %v7160 = vmul.f32 %v7158, %v7158
  %v7161 = vsub.f32 %v7159, %v7160
  %v7162 = vmax.f32 %v7161, 0.0
  %v7163 = vld [vmem:[%s5] sm:$0x1]
  %v7164 = vadd.f32 %v7162, 1e-05
  %v7165 = vrsqrt.pop %v7164
  %v7166 = vmul.f32 %v7163, %v7165
  %v7167 = vld [vmem:[%s6] sm:$0x1]
  %v7168 = vmul.f32 %v7158, %v7166
  %v7169 = vsub.f32 %v7167, %v7168
  %v7171 = vlaneseq
  %v7172 = vshrl.u32 %v7171, 7
  %v7173 = vsub.s32 0, %v7172
  %v7174 = vrot.slane %v7166, %v7173
  %v7176 = vmul.f32 %v6870, %v7174
  %v7178 = vlaneseq
  %v7179 = vshrl.u32 %v7178, 7
  %v7180 = vsub.s32 0, %v7179
  %v7181 = vrot.slane %v7169, %v7180
  %v7183 = vadd.f32 %v7176, %v7181
  %v7184 = vmax.f32 %v7183, 0.0
  %7185 = vst.msk [vmem:[%s7] sm:$0xff] %vm1951, %v7184
  %v7186 = vld [vmem:[#allocation5 + $0xa] sm:$0xff]
  %v7187 = vmul.f32 %v7186, %v7174
  %v7188 = vadd.f32 %v7187, %v7181
  %v7189 = vmax.f32 %v7188, 0.0
  %s7190 = scalar_lea.vmem %s7, 8
  %7191 = vst.msk [vmem:[%s7190] sm:$0xff] %vm1951, %v7189
  %v7192 = vld [vmem:[#allocation5 + $0x14] sm:$0xff]
  %v7193 = vmul.f32 %v7192, %v7174
  %v7194 = vadd.f32 %v7193, %v7181
  %v7195 = vmax.f32 %v7194, 0.0
  %s7196 = scalar_lea.vmem %s7, 16
  %7197 = vst.msk [vmem:[%s7196] sm:$0xff] %vm1951, %v7195
  %v7198 = vld [vmem:[#allocation5 + $0x1e] sm:$0xff]
  %v7199 = vmul.f32 %v7198, %v7174
  %v7200 = vadd.f32 %v7199, %v7181
  %v7201 = vmax.f32 %v7200, 0.0
  %s7202 = scalar_lea.vmem %s7, 24
  %7203 = vst.msk [vmem:[%s7202] sm:$0xff] %vm1951, %v7201
  %v7204 = vld [vmem:[#allocation5 + $0x28] sm:$0xff]
  %v7205 = vmul.f32 %v7204, %v7174
  %v7206 = vadd.f32 %v7205, %v7181
  %v7207 = vmax.f32 %v7206, 0.0
  %s7208 = scalar_lea.vmem %s7, 32
  %7209 = vst.msk [vmem:[%s7208] sm:$0xff] %vm1951, %v7207
  %v7210 = vld [vmem:[#allocation5 + $0x32] sm:$0xff]
  %v7211 = vmul.f32 %v7210, %v7174
  %v7212 = vadd.f32 %v7211, %v7181
  %v7213 = vmax.f32 %v7212, 0.0
  %s7214 = scalar_lea.vmem %s7, 40
  %7215 = vst.msk [vmem:[%s7214] sm:$0xff] %vm1951, %v7213
  %v7216 = vld [vmem:[#allocation5 + $0x3c] sm:$0xff]
  %v7217 = vmul.f32 %v7216, %v7174
  %v7218 = vadd.f32 %v7217, %v7181
  %v7219 = vmax.f32 %v7218, 0.0
  %s7220 = scalar_lea.vmem %s7, 48
  %7221 = vst.msk [vmem:[%s7220] sm:$0xff] %vm1951, %v7219
  %v7222 = vld [vmem:[#allocation5 + $0x46] sm:$0xff]
  %v7223 = vmul.f32 %v7222, %v7174
  %v7224 = vadd.f32 %v7223, %v7181
  %v7225 = vmax.f32 %v7224, 0.0
  %s7226 = scalar_lea.vmem %s7, 56
  %7227 = vst.msk [vmem:[%s7226] sm:$0xff] %vm1951, %v7225
  %v7228 = vld [vmem:[%s6859] sm:$0xff]
  %v7229 = vmul.f32 %v7228, %v7174
  %v7230 = vadd.f32 %v7229, %v7181
  %v7231 = vmax.f32 %v7230, 0.0
  %s7232 = scalar_lea.vmem %s7, 64
  %7233 = vst.msk [vmem:[%s7232] sm:$0xff] %vm1951, %v7231
  %v7234 = vld [vmem:[%s6859 + $0xa] sm:$0xff]
  %v7235 = vmul.f32 %v7234, %v7174
  %v7236 = vadd.f32 %v7235, %v7181
  %v7237 = vmax.f32 %v7236, 0.0
  %s7238 = scalar_lea.vmem %s7, 72
  %7239 = vst.msk [vmem:[%s7238] sm:$0xff] %vm1951, %v7237
  %v7240 = vld [vmem:[%s6859 + $0x14] sm:$0xff]
  %v7241 = vmul.f32 %v7240, %v7174
  %v7242 = vadd.f32 %v7241, %v7181
  %v7243 = vmax.f32 %v7242, 0.0
  %s7244 = scalar_lea.vmem %s7, 80
  %7245 = vst.msk [vmem:[%s7244] sm:$0xff] %vm1951, %v7243
  %v7246 = vld [vmem:[%s6859 + $0x1e] sm:$0xff]
  %v7247 = vmul.f32 %v7246, %v7174
  %v7248 = vadd.f32 %v7247, %v7181
  %v7249 = vmax.f32 %v7248, 0.0
  %s7250 = scalar_lea.vmem %s7, 88
  %7251 = vst.msk [vmem:[%s7250] sm:$0xff] %vm1951, %v7249
  %v7252 = vld [vmem:[%s6859 + $0x28] sm:$0xff]
  %v7253 = vmul.f32 %v7252, %v7174
  %v7254 = vadd.f32 %v7253, %v7181
  %v7255 = vmax.f32 %v7254, 0.0
  %s7256 = scalar_lea.vmem %s7, 96
  %7257 = vst.msk [vmem:[%s7256] sm:$0xff] %vm1951, %v7255
  %v7258 = vld [vmem:[%s6859 + $0x32] sm:$0xff]
  %v7259 = vmul.f32 %v7258, %v7174
  %v7260 = vadd.f32 %v7259, %v7181
  %v7261 = vmax.f32 %v7260, 0.0
  %s7262 = scalar_lea.vmem %s7, 104
  %7263 = vst.msk [vmem:[%s7262] sm:$0xff] %vm1951, %v7261
  %v7264 = vld [vmem:[%s6859 + $0x3c] sm:$0xff]
  %v7265 = vmul.f32 %v7264, %v7174
  %v7266 = vadd.f32 %v7265, %v7181
  %v7267 = vmax.f32 %v7266, 0.0
  %s7268 = scalar_lea.vmem %s7, 112
  %7269 = vst.msk [vmem:[%s7268] sm:$0xff] %vm1951, %v7267
  %v7270 = vld [vmem:[%s6859 + $0x46] sm:$0xff]
  %v7271 = vmul.f32 %v7270, %v7174
  %v7272 = vadd.f32 %v7271, %v7181
  %v7273 = vmax.f32 %v7272, 0.0
  %s7274 = scalar_lea.vmem %s7, 120
  %7275 = vst.msk [vmem:[%s7274] sm:$0xff] %vm1951, %v7273
  // Predicated region
  $region30: #{down_forward.1} parent=0 // pred_check
    _
  $region31: #{down_forward.1} parent=0 // pred_check_branch
    %7277 = sbr.rel (0) target = $region33
  $region32: #{down_forward.1} parent=0 // pred_region
    _
  $region33: #{down_forward.1} parent=0 // pred_fallthru
    _
  // Predicated region
  $region34: #{down_forward.1} parent=0 // pred_check
    _
  $region35: #{down_forward.1} parent=0 // pred_check_branch
    %7279 = sbr.rel (0) target = $region37
  $region36: #{down_forward.1} parent=0 // pred_region
    _
  $region37: #{down_forward.1} parent=0 // pred_fallthru
    _

</llo_original>
